<compile_context>
chip_gen: v5e
topology: v5e:2x2
jax: 0.10.0
libtpu: 0.0.40
codegen_flags: <defaults>
</compile_context>

<pallas_src>
import functools

import jax
import jax.numpy as jnp
import numpy as np
from jax.experimental import pallas as pl
from jax.experimental.pallas import tpu as pltpu


_VMEM_LIMIT_BYTES = 32 * 1024 * 1024     # scoped-VMEM limit: safe on v5e/v6e/v7x
_LINEAR_VMEM_BUDGET = 12 * 1024 * 1024   # working-set budget for the linear kernels
_ATTN_VMEM_BUDGET = 16 * 1024 * 1024     # working-set budget for the attention kernel


# ------------------------------ tile selection ------------------------------ #

def _pick_tile_m(M, K, N, *, x_bytes=4, w_bytes=2, out_bytes=2,
                 budget=_LINEAR_VMEM_BUDGET):
    """Largest row tile whose working set (double-buffered input & output, resident
    weight, f32 accumulator, bias) stays under the VMEM budget."""
    tm = M if M <= 1024 else 1024
    if tm != M:
        tm = max(8, (tm // 8) * 8)

    def ws(t):
        return (2 * t * K * x_bytes        # input tile, double-buffered
                + 2 * t * N * out_bytes    # output tile, double-buffered
                + t * N * 4                # f32 accumulator
                + K * N * w_bytes          # resident weight
                + 4 * N * 4)               # bias / LN params

    while tm > 8 and ws(tm) > budget:
        nxt = max(8, ((tm // 2) // 8) * 8)
        if nxt >= tm:
            break
        tm = nxt
    return tm


def _pick_tile_q(N, Nr, C, *, budget=_ATTN_VMEM_BUDGET):
    """Query-row tile for the attention kernel (multiple of 8, VMEM-budgeted)."""
    tq = N if N <= 512 else 512
    if tq != N:
        tq = max(8, (tq // 8) * 8)

    def ws(t):
        return (2 * t * C * 2              # q tile (bf16), double-buffered
                + 2 * t * C * 4            # out tile (f32), double-buffered
                + 2 * 2 * Nr * C * 2       # k + v (bf16), double-buffered
                + C * C * 2 + C * 4        # proj weight (bf16) + bias (f32)
                + 2 * t * Nr * 4           # logits / probs intermediates (f32)
                + t * C * 2)               # per-head output scratch (bf16)

    while tq > 8 and ws(tq) > budget:
        nxt = max(8, ((tq // 2) // 8) * 8)
        if nxt >= tq:
            break
        tq = nxt
    return tq


# ------------------------------ Pallas kernels ------------------------------ #

def _linear_kernel(x_ref, w_ref, b_ref, o_ref):
    # (TM, K) @ (K, N) + (1, N); bf16 MXU inputs (weight pre-cast), f32 accumulation.
    acc = jnp.dot(x_ref[...].astype(jnp.bfloat16), w_ref[...],
                  preferred_element_type=jnp.float32) + b_ref[...]
    o_ref[...] = acc.astype(o_ref.dtype)


def _linear_ln_kernel(x_ref, w_ref, b_ref, g_ref, bb_ref, o_ref, *, eps):
    # Linear (+bias) with LayerNorm fused into the epilogue (stats in f32).
    acc = jnp.dot(x_ref[...].astype(jnp.bfloat16), w_ref[...],
                  preferred_element_type=jnp.float32) + b_ref[...]
    mean = jnp.mean(acc, axis=-1, keepdims=True)
    xc = acc - mean
    var = jnp.mean(xc * xc, axis=-1, keepdims=True)   # biased, like nn.LayerNorm
    inv = jax.lax.rsqrt(var + eps)
    o_ref[...] = (xc * inv * g_ref[...] + bb_ref[...]).astype(o_ref.dtype)


def _linear2_kernel(x_ref, w1_ref, b1_ref, w2_ref, b2_ref, o1_ref, o2_ref):
    # Two linears sharing the same input tile (k and v projections) -> two
    # lane-dense outputs (no (Nr, 2C) lane split downstream).
    x = x_ref[...].astype(jnp.bfloat16)
    a1 = jnp.dot(x, w1_ref[...], preferred_element_type=jnp.float32) + b1_ref[...]
    a2 = jnp.dot(x, w2_ref[...], preferred_element_type=jnp.float32) + b2_ref[...]
    o1_ref[...] = a1.astype(o1_ref.dtype)
    o2_ref[...] = a2.astype(o2_ref.dtype)


def _attn_proj_kernel(q_ref, k_ref, v_ref, pw_ref, pb_ref, o_ref, oh_ref, *, num_heads):
    # One (batch, query-tile) per grid step.
    #   q_ref:  (1, tq, C)  bf16, softmax scale pre-folded into the q projection
    #   k_ref:  (1, Nr, C)  bf16, resident along the query-tile grid axis
    #   v_ref:  (1, Nr, C)  bf16, resident along the query-tile grid axis
    #   pw_ref: (C, C)      bf16 proj weight (resident);  pb_ref: (1, C) f32 bias
    #   oh_ref: (tq, C)     bf16 VMEM scratch holding all heads' attention outputs
    C = q_ref.shape[2]
    d = C // num_heads
    q = q_ref[0]
    k = k_ref[0]
    v = v_ref[0]

    # Static (unrolled) loop over heads; each head writes its (tq, d) slice into the
    # scratch so the output projection runs once with full contraction K = C.
    for h in range(num_heads):
        sl = slice(h * d, (h + 1) * d)
        s = jax.lax.dot_general(q[:, sl], k[:, sl], (((1,), (1,)), ((), ())),
                                preferred_element_type=jnp.float32)       # (tq, Nr)
        m = jnp.max(s, axis=-1, keepdims=True)
        p = jnp.exp(s - m)
        denom = jnp.sum(p, axis=-1, keepdims=True)
        attn = (p * pl.reciprocal(denom, approx=True)).astype(jnp.bfloat16)
        oh_ref[:, sl] = jnp.dot(attn, v[:, sl],
                                preferred_element_type=jnp.float32).astype(jnp.bfloat16)

    # Single full-K projection matmul + bias in the epilogue.
    out = jnp.dot(oh_ref[...], pw_ref[...],
                  preferred_element_type=jnp.float32) + pb_ref[...]
    o_ref[0] = out.astype(o_ref.dtype)


# ------------------------------ kernel wrappers ----------------------------- #

def pallas_linear(x, w, b, *, ln_gamma=None, ln_beta=None, ln_eps=1e-5, out_dtype=None):
    """x: (M, K), w: (K, N) [bf16], b: (N,) -> (M, N), optionally with fused LayerNorm."""
    M, K = x.shape
    N = w.shape[1]
    if out_dtype is None:
        out_dtype = x.dtype
    tm = _pick_tile_m(M, K, N,
                      x_bytes=x.dtype.itemsize,
                      w_bytes=w.dtype.itemsize,
                      out_bytes=jnp.dtype(out_dtype).itemsize)
    grid = (pl.cdiv(M, tm),)

    in_specs = [pl.BlockSpec((tm, K), lambda i: (i, 0)),
                pl.BlockSpec((K, N), lambda i: (0, 0)),
                pl.BlockSpec((1, N), lambda i: (0, 0))]
    args = [x, w, b.reshape(1, N)]

    if ln_gamma is not None:
        kern = functools.partial(_linear_ln_kernel, eps=ln_eps)
        in_specs += [pl.BlockSpec((1, N), lambda i: (0, 0)),
                     pl.BlockSpec((1, N), lambda i: (0, 0))]
        args += [ln_gamma.reshape(1, N), ln_beta.reshape(1, N)]
    else:
        kern = _linear_kernel

    return pl.pallas_call(
        kern,
        out_shape=jax.ShapeDtypeStruct((M, N), out_dtype),
        grid=grid,
        in_specs=in_specs,
        out_specs=pl.BlockSpec((tm, N), lambda i: (i, 0)),
        compiler_params=pltpu.CompilerParams(
            dimension_semantics=("parallel",),
            vmem_limit_bytes=_VMEM_LIMIT_BYTES),
    )(*args)


def pallas_linear2(x, w1, b1, w2, b2, *, out_dtype=None):
    """x: (M, K) -> (x@w1+b1, x@w2+b2), each (M, N).  Used for the k / v projections."""
    M, K = x.shape
    N = w1.shape[1]
    if out_dtype is None:
        out_dtype = x.dtype
    tm = _pick_tile_m(M, K, 2 * N,
                      x_bytes=x.dtype.itemsize,
                      w_bytes=w1.dtype.itemsize,
                      out_bytes=jnp.dtype(out_dtype).itemsize)
    grid = (pl.cdiv(M, tm),)
    o_sds = jax.ShapeDtypeStruct((M, N), out_dtype)

    return pl.pallas_call(
        _linear2_kernel,
        out_shape=(o_sds, o_sds),
        grid=grid,
        in_specs=[pl.BlockSpec((tm, K), lambda i: (i, 0)),
                  pl.BlockSpec((K, N), lambda i: (0, 0)),
                  pl.BlockSpec((1, N), lambda i: (0, 0)),
                  pl.BlockSpec((K, N), lambda i: (0, 0)),
                  pl.BlockSpec((1, N), lambda i: (0, 0))],
        out_specs=[pl.BlockSpec((tm, N), lambda i: (i, 0)),
                   pl.BlockSpec((tm, N), lambda i: (i, 0))],
        compiler_params=pltpu.CompilerParams(
            dimension_semantics=("parallel",),
            vmem_limit_bytes=_VMEM_LIMIT_BYTES),
    )(x, w1, b1.reshape(1, N), w2, b2.reshape(1, N))


def pallas_attention_proj(q, k, v, proj_w, proj_b, *, num_heads, out_dtype):
    """q: (B, N, C) bf16 (scale folded in), k/v: (B, Nr, C) bf16 -> (B, N, C) with the
    output projection fused.  Query-tiled grid; k/v/proj stay VMEM-resident per batch."""
    B, N, C = q.shape
    Nr = k.shape[1]
    tq = _pick_tile_q(N, Nr, C)
    grid = (B, pl.cdiv(N, tq))

    return pl.pallas_call(
        functools.partial(_attn_proj_kernel, num_heads=num_heads),
        out_shape=jax.ShapeDtypeStruct((B, N, C), out_dtype),
        grid=grid,
        in_specs=[pl.BlockSpec((1, tq, C), lambda b, qi: (b, qi, 0)),
                  pl.BlockSpec((1, Nr, C), lambda b, qi: (b, 0, 0)),
                  pl.BlockSpec((1, Nr, C), lambda b, qi: (b, 0, 0)),
                  pl.BlockSpec((C, C), lambda b, qi: (0, 0)),
                  pl.BlockSpec((1, C), lambda b, qi: (0, 0))],
        out_specs=pl.BlockSpec((1, tq, C), lambda b, qi: (b, qi, 0)),
        scratch_shapes=[pltpu.VMEM((tq, C), jnp.bfloat16)],
        compiler_params=pltpu.CompilerParams(
            dimension_semantics=("parallel", "parallel"),
            vmem_limit_bytes=_VMEM_LIMIT_BYTES),
    )(q, k, v, proj_w, proj_b.reshape(1, C))


# --------------------------- parameter preparation -------------------------- #

def prepare_kernel_params(params, C, num_heads, reduction_ratio):
    """One-time weight preparation: bf16 casts, softmax-scale folding, k/v split,
    conv-weight reordering for channels-last patches."""
    d = C // num_heads
    scale = d ** (-0.5)
    r = reduction_ratio
    kp = {
        # scale folded into the q projection: x @ (W*s) + b*s == (x @ W + b) * s
        "q_w": (params["q_w"] * scale).astype(jnp.bfloat16),
        "q_b": (params["q_b"] * scale).astype(jnp.float32),
        # kv weight split into separate k / v projections
        "k_w": params["kv_w"][:, :C].astype(jnp.bfloat16),
        "k_b": params["kv_b"][:C].astype(jnp.float32),
        "v_w": params["kv_w"][:, C:].astype(jnp.bfloat16),
        "v_b": params["kv_b"][C:].astype(jnp.float32),
        "proj_w": params["proj_w"].astype(jnp.bfloat16),
        "proj_b": params["proj_b"].astype(jnp.float32),
    }
    if r > 1:
        # Conv2d(kernel=stride=r) OIHW weight -> rows in (p, q, c_in) feature order
        # (matches channels-last patch extraction), columns c_out.
        kp["sr_w"] = (params["sr_w_conv"].transpose(2, 3, 1, 0)
                      .reshape(r * r * C, C).astype(jnp.bfloat16))
        kp["sr_b"] = params["sr_b"].astype(jnp.float32)
        kp["ln_g"] = params["ln_g"].astype(jnp.float32)
        kp["ln_b"] = params["ln_b"].astype(jnp.float32)
    return kp


# ------------------------------- Forward pass ------------------------------- #

def efficient_attention_forward(kp, x, H, W, num_heads, reduction_ratio):
    B, N, C = x.shape
    xf = x.reshape(B * N, C)

    # q projection (scale pre-folded), emitted in bf16 to halve attention-kernel DMA.
    q = pallas_linear(xf, kp["q_w"], kp["q_b"], out_dtype=jnp.bfloat16).reshape(B, N, C)

    if reduction_ratio > 1:
        r = reduction_ratio
        Hr, Wr = H // r, W // r
        Nr = Hr * Wr
        # Channels-last non-overlapping r x r patch extraction: C stays innermost
        # (lane-dense), only small spatial axes are permuted (no NCHW HBM transpose).
        patches = (x.reshape(B, Hr, r, Wr, r, C)
                     .transpose(0, 1, 3, 2, 4, 5)
                     .reshape(B * Nr, r * r * C))
        # conv-as-matmul with LayerNorm fused into the epilogue, bf16 output.
        xr = pallas_linear(patches, kp["sr_w"], kp["sr_b"],
                           ln_gamma=kp["ln_g"], ln_beta=kp["ln_b"],
                           out_dtype=jnp.bfloat16)
    else:
        Nr = N
        xr = xf

    # k / v projections as two separate lane-dense bf16 outputs of one kernel.
    k, v = pallas_linear2(xr, kp["k_w"], kp["k_b"], kp["v_w"], kp["v_b"],
                          out_dtype=jnp.bfloat16)
    k = k.reshape(B, Nr, C)
    v = v.reshape(B, Nr, C)

    # query-tiled attention core + fused output projection.
    return pallas_attention_proj(q, k, v, kp["proj_w"], kp["proj_b"],
                                 num_heads=num_heads, out_dtype=x.dtype)


# ------------------------- Pure-JAX reference check ------------------------- #

def reference_forward(params, x, H, W, num_heads, reduction_ratio):
    B, N, C = x.shape
    d = C // num_heads
    scale = d ** (-0.5)
    q = (x @ params["q_w"] + params["q_b"]).reshape(B, N, num_heads, d).transpose(0, 2, 1, 3)
    if reduction_ratio > 1:
        r = reduction_ratio
        x_nchw = x.transpose(0, 2, 1).reshape(B, C, H, W)
        conv = jax.lax.conv_general_dilated(
            x_nchw, params["sr_w_conv"], (r, r), "VALID",
            dimension_numbers=("NCHW", "OIHW", "NCHW"))
        conv = conv + params["sr_b"][None, :, None, None]
        xr = conv.reshape(B, C, -1).transpose(0, 2, 1)
        mean = jnp.mean(xr, axis=-1, keepdims=True)
        var = jnp.var(xr, axis=-1, keepdims=True)
        xr = (xr - mean) / jnp.sqrt(var + 1e-5) * params["ln_g"] + params["ln_b"]
    else:
        xr = x
    Nr = xr.shape[1]
    kv = (xr @ params["kv_w"] + params["kv_b"]).reshape(B, Nr, 2, num_heads, d)
    kv = kv.transpose(2, 0, 3, 1, 4)
    k, v = kv[0], kv[1]
    attn = jax.nn.softmax(jnp.einsum("bhnd,bhmd->bhnm", q, k) * scale, axis=-1)
    o = jnp.einsum("bhnm,bhmd->bhnd", attn, v).transpose(0, 2, 1, 3).reshape(B, N, C)
    return o @ params["proj_w"] + params["proj_b"]


# ----------------------------------- Main ------------------------------------ #

if __name__ == "__main__":
    B, H, W, C = 2, 16, 16, 32
    num_heads, r = 8, 4
    N = H * W

    key = jax.random.PRNGKey(0)
    keys = jax.random.split(key, 10)
    s = 0.1
    params = {
        # nn.Linear weights stored pre-transposed as (in, out)
        "q_w":    jax.random.normal(keys[0], (C, C), jnp.float32) * s,
        "q_b":    jax.random.normal(keys[1], (C,), jnp.float32) * s,
        "kv_w":   jax.random.normal(keys[2], (C, 2 * C), jnp.float32) * s,
        "kv_b":   jax.random.normal(keys[3], (2 * C,), jnp.float32) * s,
        "proj_w": jax.random.normal(keys[4], (C, C), jnp.float32) * s,
        "proj_b": jax.random.normal(keys[5], (C,), jnp.float32) * s,
        # nn.Conv2d(dim, dim, kernel=r, stride=r) weight in OIHW
        "sr_w_conv": jax.random.normal(keys[6], (C, C, r, r), jnp.float32) * s,
        "sr_b":      jax.random.normal(keys[7], (C,), jnp.float32) * s,
        # nn.LayerNorm defaults
        "ln_g": jnp.ones((C,), jnp.float32),
        "ln_b": jnp.zeros((C,), jnp.float32),
    }

    x = jax.random.normal(keys[8], (B, N, C), jnp.float32)

    kp = prepare_kernel_params(params, C, num_heads, r)
    fwd = jax.jit(lambda p, xx: efficient_attention_forward(p, xx, H, W, num_heads, r))
    out = jax.block_until_ready(fwd(kp, x))

    ref = reference_forward(params, x, H, W, num_heads, r)
    # Tolerance reflects bf16 MXU inputs AND bf16 storage of the q/k/v/spatial-reduced
    # intermediates (f32 accumulation, f32 softmax/LN stats, approx reciprocal).
    np.testing.assert_allclose(np.asarray(out), np.asarray(ref), rtol=3e-2, atol=2e-2)

    print("KERNEL_OK")
</pallas_src>

<mosaic_0001>
module attributes {stable_mosaic.version = 11 : i64} {
  func.func @_linear_ln_kernel(%arg0: i32, %arg1: memref<32x512xf32, #tpu.memory_space<vmem>>, %arg2: memref<512x32xbf16, #tpu.memory_space<vmem>>, %arg3: memref<1x32xf32, #tpu.memory_space<vmem>>, %arg4: memref<1x32xf32, #tpu.memory_space<vmem>>, %arg5: memref<1x32xf32, #tpu.memory_space<vmem>>, %arg6: memref<32x32xbf16, #tpu.memory_space<vmem>>) attributes {dimension_semantics = [#tpu.dimension_semantics<parallel>], iteration_bounds = array<i64: 1>, scalar_prefetch = 0 : i64, scratch_operands = 0 : i64, tpu.core_type = #tpu.core_type<tc>, window_params = [{transform_indices = @transform_0, window_bounds = array<i64: 32, 512>}, {pipeline_mode = #tpu.pipeline_mode<synchronous>, transform_indices = @transform_1, window_bounds = array<i64: 512, 32>}, {pipeline_mode = #tpu.pipeline_mode<synchronous>, transform_indices = @transform_2, window_bounds = array<i64: 1, 32>}, {pipeline_mode = #tpu.pipeline_mode<synchronous>, transform_indices = @transform_3, window_bounds = array<i64: 1, 32>}, {pipeline_mode = #tpu.pipeline_mode<synchronous>, transform_indices = @transform_4, window_bounds = array<i64: 1, 32>}, {transform_indices = @transform_5, window_bounds = array<i64: 32, 32>}]} {
    %c0 = arith.constant 0 : index
    %c0_0 = arith.constant 0 : index
    %0 = vector.load %arg1[%c0, %c0_0] : memref<32x512xf32, #tpu.memory_space<vmem>>, vector<32x512xf32>
    %1 = arith.truncf %0 : vector<32x512xf32> to vector<32x512xbf16>
    %c0_1 = arith.constant 0 : index
    %c0_2 = arith.constant 0 : index
    %2 = vector.load %arg2[%c0_1, %c0_2] : memref<512x32xbf16, #tpu.memory_space<vmem>>, vector<512x32xbf16>
    %cst = arith.constant dense<0.000000e+00> : vector<32x32xf32>
    %3 = tpu.matmul %1, %2, %cst {dimension_numbers = #tpu.dot_dimension_numbers<[1], [0], [0], [1], [0, 0, 1, 1], [], []>} : vector<32x512xbf16>, vector<512x32xbf16>, vector<32x32xf32> -> vector<32x32xf32>
    %c0_3 = arith.constant 0 : index
    %c0_4 = arith.constant 0 : index
    %4 = vector.load %arg3[%c0_3, %c0_4] : memref<1x32xf32, #tpu.memory_space<vmem>>, vector<1x32xf32>
    %5 = vector.broadcast %4 : vector<1x32xf32> to vector<32x32xf32>
    %6 = arith.addf %3, %5 : vector<32x32xf32>
    %cst_5 = arith.constant dense<0.000000e+00> : vector<32xf32>
    %7 = vector.multi_reduction <add>, %6, %cst_5 [1] : vector<32x32xf32> to vector<32xf32>
    %8 = vector.shape_cast %7 : vector<32xf32> to vector<32x1xf32>
    %cst_6 = arith.constant 3.200000e+01 : f32
    %9 = vector.broadcast %cst_6 : f32 to vector<32x1xf32>
    %10 = arith.divf %8, %9 : vector<32x1xf32>
    %11 = vector.broadcast %10 : vector<32x1xf32> to vector<32x32xf32>
    %12 = arith.subf %6, %11 : vector<32x32xf32>
    %13 = arith.mulf %12, %12 : vector<32x32xf32>
    %cst_7 = arith.constant dense<0.000000e+00> : vector<32xf32>
    %14 = vector.multi_reduction <add>, %13, %cst_7 [1] : vector<32x32xf32> to vector<32xf32>
    %15 = vector.shape_cast %14 : vector<32xf32> to vector<32x1xf32>
    %cst_8 = arith.constant 3.200000e+01 : f32
    %16 = vector.broadcast %cst_8 : f32 to vector<32x1xf32>
    %17 = arith.divf %15, %16 : vector<32x1xf32>
    %cst_9 = arith.constant 9.99999974E-6 : f32
    %18 = vector.broadcast %cst_9 : f32 to vector<32x1xf32>
    %19 = arith.addf %17, %18 : vector<32x1xf32>
    %20 = math.rsqrt %19 : vector<32x1xf32>
    %21 = vector.broadcast %20 : vector<32x1xf32> to vector<32x32xf32>
    %22 = arith.mulf %12, %21 : vector<32x32xf32>
    %c0_10 = arith.constant 0 : index
    %c0_11 = arith.constant 0 : index
    %23 = vector.load %arg4[%c0_10, %c0_11] : memref<1x32xf32, #tpu.memory_space<vmem>>, vector<1x32xf32>
    %24 = vector.broadcast %23 : vector<1x32xf32> to vector<32x32xf32>
    %25 = arith.mulf %22, %24 : vector<32x32xf32>
    %c0_12 = arith.constant 0 : index
    %c0_13 = arith.constant 0 : index
    %26 = vector.load %arg5[%c0_12, %c0_13] : memref<1x32xf32, #tpu.memory_space<vmem>>, vector<1x32xf32>
    %27 = vector.broadcast %26 : vector<1x32xf32> to vector<32x32xf32>
    %28 = arith.addf %25, %27 : vector<32x32xf32>
    %29 = arith.truncf %28 : vector<32x32xf32> to vector<32x32xbf16>
    %c0_14 = arith.constant 0 : index
    %c0_15 = arith.constant 0 : index
    %30 = vector.load %arg6[%c0_14, %c0_15] : memref<32x32xbf16, #tpu.memory_space<vmem>>, vector<32x32xbf16>
    tpu.vector_store %arg6[%c0_14, %c0_15], %29 {strides = array<i32>} : memref<32x32xbf16, #tpu.memory_space<vmem>>, vector<32x32xbf16>,
    return
  }
  func.func @transform_0(%arg0: i32) -> (i32, i32) {
    %c0_i32 = arith.constant 0 : i32
    %c0_i32_0 = arith.constant 0 : i32
    return %arg0, %c0_i32 : i32, i32
  }
  func.func @transform_1(%arg0: i32) -> (i32, i32) {
    %c0_i32 = arith.constant 0 : i32
    %c0_i32_0 = arith.constant 0 : i32
    %c0_i32_1 = arith.constant 0 : i32
    return %c0_i32, %c0_i32_0 : i32, i32
  }
  func.func @transform_2(%arg0: i32) -> (i32, i32) {
    %c0_i32 = arith.constant 0 : i32
    %c0_i32_0 = arith.constant 0 : i32
    %c0_i32_1 = arith.constant 0 : i32
    return %c0_i32, %c0_i32_0 : i32, i32
  }
  func.func @transform_3(%arg0: i32) -> (i32, i32) {
    %c0_i32 = arith.constant 0 : i32
    %c0_i32_0 = arith.constant 0 : i32
    %c0_i32_1 = arith.constant 0 : i32
    return %c0_i32, %c0_i32_0 : i32, i32
  }
  func.func @transform_4(%arg0: i32) -> (i32, i32) {
    %c0_i32 = arith.constant 0 : i32
    %c0_i32_0 = arith.constant 0 : i32
    %c0_i32_1 = arith.constant 0 : i32
    return %c0_i32, %c0_i32_0 : i32, i32
  }
  func.func @transform_5(%arg0: i32) -> (i32, i32) {
    %c0_i32 = arith.constant 0 : i32
    %c0_i32_0 = arith.constant 0 : i32
    return %arg0, %c0_i32 : i32, i32
  }
}

module attributes {stable_mosaic.version = 11 : i64} {
  func.func @_linear_kernel(%arg0: i32, %arg1: memref<512x32xf32, #tpu.memory_space<vmem>>, %arg2: memref<32x32xbf16, #tpu.memory_space<vmem>>, %arg3: memref<1x32xf32, #tpu.memory_space<vmem>>, %arg4: memref<512x32xbf16, #tpu.memory_space<vmem>>) attributes {dimension_semantics = [#tpu.dimension_semantics<parallel>], iteration_bounds = array<i64: 1>, scalar_prefetch = 0 : i64, scratch_operands = 0 : i64, tpu.core_type = #tpu.core_type<tc>, window_params = [{transform_indices = @transform_0, window_bounds = array<i64: 512, 32>}, {pipeline_mode = #tpu.pipeline_mode<synchronous>, transform_indices = @transform_1, window_bounds = array<i64: 32, 32>}, {pipeline_mode = #tpu.pipeline_mode<synchronous>, transform_indices = @transform_2, window_bounds = array<i64: 1, 32>}, {transform_indices = @transform_3, window_bounds = array<i64: 512, 32>}]} {
    %c0 = arith.constant 0 : index
    %c0_0 = arith.constant 0 : index
    %0 = vector.load %arg1[%c0, %c0_0] : memref<512x32xf32, #tpu.memory_space<vmem>>, vector<512x32xf32>
    %1 = arith.truncf %0 : vector<512x32xf32> to vector<512x32xbf16>
    %c0_1 = arith.constant 0 : index
    %c0_2 = arith.constant 0 : index
    %2 = vector.load %arg2[%c0_1, %c0_2] : memref<32x32xbf16, #tpu.memory_space<vmem>>, vector<32x32xbf16>
    %cst = arith.constant dense<0.000000e+00> : vector<512x32xf32>
    %3 = tpu.matmul %1, %2, %cst {dimension_numbers = #tpu.dot_dimension_numbers<[1], [0], [0], [1], [0, 0, 1, 1], [], []>} : vector<512x32xbf16>, vector<32x32xbf16>, vector<512x32xf32> -> vector<512x32xf32>
    %c0_3 = arith.constant 0 : index
    %c0_4 = arith.constant 0 : index
    %4 = vector.load %arg3[%c0_3, %c0_4] : memref<1x32xf32, #tpu.memory_space<vmem>>, vector<1x32xf32>
    %5 = vector.broadcast %4 : vector<1x32xf32> to vector<512x32xf32>
    %6 = arith.addf %3, %5 : vector<512x32xf32>
    %7 = arith.truncf %6 : vector<512x32xf32> to vector<512x32xbf16>
    %c0_5 = arith.constant 0 : index
    %c0_6 = arith.constant 0 : index
    %8 = vector.load %arg4[%c0_5, %c0_6] : memref<512x32xbf16, #tpu.memory_space<vmem>>, vector<512x32xbf16>
    tpu.vector_store %arg4[%c0_5, %c0_6], %7 {strides = array<i32>} : memref<512x32xbf16, #tpu.memory_space<vmem>>, vector<512x32xbf16>,
    return
  }
  func.func @transform_0(%arg0: i32) -> (i32, i32) {
    %c0_i32 = arith.constant 0 : i32
    %c0_i32_0 = arith.constant 0 : i32
    return %arg0, %c0_i32 : i32, i32
  }
  func.func @transform_1(%arg0: i32) -> (i32, i32) {
    %c0_i32 = arith.constant 0 : i32
    %c0_i32_0 = arith.constant 0 : i32
    %c0_i32_1 = arith.constant 0 : i32
    return %c0_i32, %c0_i32_0 : i32, i32
  }
  func.func @transform_2(%arg0: i32) -> (i32, i32) {
    %c0_i32 = arith.constant 0 : i32
    %c0_i32_0 = arith.constant 0 : i32
    %c0_i32_1 = arith.constant 0 : i32
    return %c0_i32, %c0_i32_0 : i32, i32
  }
  func.func @transform_3(%arg0: i32) -> (i32, i32) {
    %c0_i32 = arith.constant 0 : i32
    %c0_i32_0 = arith.constant 0 : i32
    return %arg0, %c0_i32 : i32, i32
  }
}

module attributes {stable_mosaic.version = 11 : i64} {
  func.func @_linear2_kernel(%arg0: i32, %arg1: memref<32x32xbf16, #tpu.memory_space<vmem>>, %arg2: memref<32x32xbf16, #tpu.memory_space<vmem>>, %arg3: memref<1x32xf32, #tpu.memory_space<vmem>>, %arg4: memref<32x32xbf16, #tpu.memory_space<vmem>>, %arg5: memref<1x32xf32, #tpu.memory_space<vmem>>, %arg6: memref<32x32xbf16, #tpu.memory_space<vmem>>, %arg7: memref<32x32xbf16, #tpu.memory_space<vmem>>) attributes {dimension_semantics = [#tpu.dimension_semantics<parallel>], iteration_bounds = array<i64: 1>, scalar_prefetch = 0 : i64, scratch_operands = 0 : i64, tpu.core_type = #tpu.core_type<tc>, window_params = [{transform_indices = @transform_0, window_bounds = array<i64: 32, 32>}, {pipeline_mode = #tpu.pipeline_mode<synchronous>, transform_indices = @transform_1, window_bounds = array<i64: 32, 32>}, {pipeline_mode = #tpu.pipeline_mode<synchronous>, transform_indices = @transform_2, window_bounds = array<i64: 1, 32>}, {pipeline_mode = #tpu.pipeline_mode<synchronous>, transform_indices = @transform_3, window_bounds = array<i64: 32, 32>}, {pipeline_mode = #tpu.pipeline_mode<synchronous>, transform_indices = @transform_4, window_bounds = array<i64: 1, 32>}, {transform_indices = @transform_5, window_bounds = array<i64: 32, 32>}, {transform_indices = @transform_6, window_bounds = array<i64: 32, 32>}]} {
    %c0 = arith.constant 0 : index
    %c0_0 = arith.constant 0 : index
    %0 = vector.load %arg1[%c0, %c0_0] : memref<32x32xbf16, #tpu.memory_space<vmem>>, vector<32x32xbf16>
    %c0_1 = arith.constant 0 : index
    %c0_2 = arith.constant 0 : index
    %1 = vector.load %arg2[%c0_1, %c0_2] : memref<32x32xbf16, #tpu.memory_space<vmem>>, vector<32x32xbf16>
    %cst = arith.constant dense<0.000000e+00> : vector<32x32xf32>
    %2 = tpu.matmul %0, %1, %cst {dimension_numbers = #tpu.dot_dimension_numbers<[1], [0], [0], [1], [0, 0, 1, 1], [], []>} : vector<32x32xbf16>, vector<32x32xbf16>, vector<32x32xf32> -> vector<32x32xf32>
    %c0_3 = arith.constant 0 : index
    %c0_4 = arith.constant 0 : index
    %3 = vector.load %arg3[%c0_3, %c0_4] : memref<1x32xf32, #tpu.memory_space<vmem>>, vector<1x32xf32>
    %4 = vector.broadcast %3 : vector<1x32xf32> to vector<32x32xf32>
    %5 = arith.addf %2, %4 : vector<32x32xf32>
    %c0_5 = arith.constant 0 : index
    %c0_6 = arith.constant 0 : index
    %6 = vector.load %arg4[%c0_5, %c0_6] : memref<32x32xbf16, #tpu.memory_space<vmem>>, vector<32x32xbf16>
    %cst_7 = arith.constant dense<0.000000e+00> : vector<32x32xf32>
    %7 = tpu.matmul %0, %6, %cst_7 {dimension_numbers = #tpu.dot_dimension_numbers<[1], [0], [0], [1], [0, 0, 1, 1], [], []>} : vector<32x32xbf16>, vector<32x32xbf16>, vector<32x32xf32> -> vector<32x32xf32>
    %c0_8 = arith.constant 0 : index
    %c0_9 = arith.constant 0 : index
    %8 = vector.load %arg5[%c0_8, %c0_9] : memref<1x32xf32, #tpu.memory_space<vmem>>, vector<1x32xf32>
    %9 = vector.broadcast %8 : vector<1x32xf32> to vector<32x32xf32>
    %10 = arith.addf %7, %9 : vector<32x32xf32>
    %11 = arith.truncf %5 : vector<32x32xf32> to vector<32x32xbf16>
    %c0_10 = arith.constant 0 : index
    %c0_11 = arith.constant 0 : index
    %12 = vector.load %arg6[%c0_10, %c0_11] : memref<32x32xbf16, #tpu.memory_space<vmem>>, vector<32x32xbf16>
    tpu.vector_store %arg6[%c0_10, %c0_11], %11 {strides = array<i32>} : memref<32x32xbf16, #tpu.memory_space<vmem>>, vector<32x32xbf16>,
    %13 = arith.truncf %10 : vector<32x32xf32> to vector<32x32xbf16>
    %c0_12 = arith.constant 0 : index
    %c0_13 = arith.constant 0 : index
    %14 = vector.load %arg7[%c0_12, %c0_13] : memref<32x32xbf16, #tpu.memory_space<vmem>>, vector<32x32xbf16>
    tpu.vector_store %arg7[%c0_12, %c0_13], %13 {strides = array<i32>} : memref<32x32xbf16, #tpu.memory_space<vmem>>, vector<32x32xbf16>,
    return
  }
  func.func @transform_0(%arg0: i32) -> (i32, i32) {
    %c0_i32 = arith.constant 0 : i32
    %c0_i32_0 = arith.constant 0 : i32
    return %arg0, %c0_i32 : i32, i32
  }
  func.func @transform_1(%arg0: i32) -> (i32, i32) {
    %c0_i32 = arith.constant 0 : i32
    %c0_i32_0 = arith.constant 0 : i32
    %c0_i32_1 = arith.constant 0 : i32
    return %c0_i32, %c0_i32_0 : i32, i32
  }
  func.func @transform_2(%arg0: i32) -> (i32, i32) {
    %c0_i32 = arith.constant 0 : i32
    %c0_i32_0 = arith.constant 0 : i32
    %c0_i32_1 = arith.constant 0 : i32
    return %c0_i32, %c0_i32_0 : i32, i32
  }
  func.func @transform_3(%arg0: i32) -> (i32, i32) {
    %c0_i32 = arith.constant 0 : i32
    %c0_i32_0 = arith.constant 0 : i32
    %c0_i32_1 = arith.constant 0 : i32
    return %c0_i32, %c0_i32_0 : i32, i32
  }
  func.func @transform_4(%arg0: i32) -> (i32, i32) {
    %c0_i32 = arith.constant 0 : i32
    %c0_i32_0 = arith.constant 0 : i32
    %c0_i32_1 = arith.constant 0 : i32
    return %c0_i32, %c0_i32_0 : i32, i32
  }
  func.func @transform_5(%arg0: i32) -> (i32, i32) {
    %c0_i32 = arith.constant 0 : i32
    %c0_i32_0 = arith.constant 0 : i32
    return %arg0, %c0_i32 : i32, i32
  }
  func.func @transform_6(%arg0: i32) -> (i32, i32) {
    %c0_i32 = arith.constant 0 : i32
    %c0_i32_0 = arith.constant 0 : i32
    return %arg0, %c0_i32 : i32, i32
  }
}

module attributes {stable_mosaic.version = 11 : i64} {
  func.func @_attn_proj_kernel(%arg0: i32, %arg1: i32, %arg2: memref<1x256x32xbf16, #tpu.memory_space<vmem>>, %arg3: memref<1x16x32xbf16, #tpu.memory_space<vmem>>, %arg4: memref<1x16x32xbf16, #tpu.memory_space<vmem>>, %arg5: memref<32x32xbf16, #tpu.memory_space<vmem>>, %arg6: memref<1x32xf32, #tpu.memory_space<vmem>>, %arg7: memref<1x256x32xf32, #tpu.memory_space<vmem>>, %arg8: memref<256x32xbf16, #tpu.memory_space<vmem>>) attributes {dimension_semantics = [#tpu.dimension_semantics<parallel>, #tpu.dimension_semantics<parallel>], iteration_bounds = array<i64: 2, 1>, scalar_prefetch = 0 : i64, scratch_operands = 1 : i64, tpu.core_type = #tpu.core_type<tc>, window_params = [{transform_indices = @transform_0, window_bounds = array<i64: 1, 256, 32>}, {transform_indices = @transform_1, window_bounds = array<i64: 1, 16, 32>}, {transform_indices = @transform_2, window_bounds = array<i64: 1, 16, 32>}, {pipeline_mode = #tpu.pipeline_mode<synchronous>, transform_indices = @transform_3, window_bounds = array<i64: 32, 32>}, {pipeline_mode = #tpu.pipeline_mode<synchronous>, transform_indices = @transform_4, window_bounds = array<i64: 1, 32>}, {transform_indices = @transform_5, window_bounds = array<i64: 1, 256, 32>}]} {
    %c0 = arith.constant 0 : index
    %c0_0 = arith.constant 0 : index
    %c0_1 = arith.constant 0 : index
    %0 = vector.load %arg2[%c0, %c0_0, %c0_1] : memref<1x256x32xbf16, #tpu.memory_space<vmem>>, vector<1x256x32xbf16>
    %1 = vector.shape_cast %0 : vector<1x256x32xbf16> to vector<256x32xbf16>
    %c0_2 = arith.constant 0 : index
    %c0_3 = arith.constant 0 : index
    %c0_4 = arith.constant 0 : index
    %2 = vector.load %arg3[%c0_2, %c0_3, %c0_4] : memref<1x16x32xbf16, #tpu.memory_space<vmem>>, vector<1x16x32xbf16>
    %3 = vector.shape_cast %2 : vector<1x16x32xbf16> to vector<16x32xbf16>
    %c0_5 = arith.constant 0 : index
    %c0_6 = arith.constant 0 : index
    %c0_7 = arith.constant 0 : index
    %4 = vector.load %arg4[%c0_5, %c0_6, %c0_7] : memref<1x16x32xbf16, #tpu.memory_space<vmem>>, vector<1x16x32xbf16>
    %5 = vector.shape_cast %4 : vector<1x16x32xbf16> to vector<16x32xbf16>
    %6 = vector.extract_strided_slice %1 {offsets = [0, 0], sizes = [256, 4], strides = [1, 1]} : vector<256x32xbf16> to vector<256x4xbf16>
    %7 = vector.extract_strided_slice %3 {offsets = [0, 0], sizes = [16, 4], strides = [1, 1]} : vector<16x32xbf16> to vector<16x4xbf16>
    %cst = arith.constant dense<0.000000e+00> : vector<256x16xf32>
    %8 = tpu.matmul %6, %7, %cst {dimension_numbers = #tpu.dot_dimension_numbers<[1], [1], [0], [0], [0, 0, 1, 0], [], []>} : vector<256x4xbf16>, vector<16x4xbf16>, vector<256x16xf32> -> vector<256x16xf32>
    %cst_8 = arith.constant dense<0xFF800000> : vector<256xf32>
    %9 = vector.multi_reduction <maximumf>, %8, %cst_8 [1] : vector<256x16xf32> to vector<256xf32>
    %10 = vector.shape_cast %9 : vector<256xf32> to vector<256x1xf32>
    %11 = vector.broadcast %10 : vector<256x1xf32> to vector<256x16xf32>
    %12 = arith.subf %8, %11 : vector<256x16xf32>
    %13 = math.exp %12 : vector<256x16xf32>
    %cst_9 = arith.constant dense<0.000000e+00> : vector<256xf32>
    %14 = vector.multi_reduction <add>, %13, %cst_9 [1] : vector<256x16xf32> to vector<256xf32>
    %15 = vector.shape_cast %14 : vector<256xf32> to vector<256x1xf32>
    %16 = tpu.reciprocal %15 {approx = true} : vector<256x1xf32> -> vector<256x1xf32>
    %17 = vector.broadcast %16 : vector<256x1xf32> to vector<256x16xf32>
    %18 = arith.mulf %13, %17 : vector<256x16xf32>
    %19 = arith.truncf %18 : vector<256x16xf32> to vector<256x16xbf16>
    %20 = vector.extract_strided_slice %5 {offsets = [0, 0], sizes = [16, 4], strides = [1, 1]} : vector<16x32xbf16> to vector<16x4xbf16>
    %cst_10 = arith.constant dense<0.000000e+00> : vector<256x4xf32>
    %21 = tpu.matmul %19, %20, %cst_10 {dimension_numbers = #tpu.dot_dimension_numbers<[1], [0], [0], [1], [0, 0, 1, 1], [], []>} : vector<256x16xbf16>, vector<16x4xbf16>, vector<256x4xf32> -> vector<256x4xf32>
    %22 = arith.truncf %21 : vector<256x4xf32> to vector<256x4xbf16>
    %c0_11 = arith.constant 0 : index
    %c0_12 = arith.constant 0 : index
    %23 = vector.load %arg8[%c0_11, %c0_12] : memref<256x32xbf16, #tpu.memory_space<vmem>>, vector<256x4xbf16>
    tpu.vector_store %arg8[%c0_11, %c0_12], %22 {strides = array<i32>} : memref<256x32xbf16, #tpu.memory_space<vmem>>, vector<256x4xbf16>,
    %24 = vector.extract_strided_slice %1 {offsets = [0, 4], sizes = [256, 4], strides = [1, 1]} : vector<256x32xbf16> to vector<256x4xbf16>
    %25 = vector.extract_strided_slice %3 {offsets = [0, 4], sizes = [16, 4], strides = [1, 1]} : vector<16x32xbf16> to vector<16x4xbf16>
    %cst_13 = arith.constant dense<0.000000e+00> : vector<256x16xf32>
    %26 = tpu.matmul %24, %25, %cst_13 {dimension_numbers = #tpu.dot_dimension_numbers<[1], [1], [0], [0], [0, 0, 1, 0], [], []>} : vector<256x4xbf16>, vector<16x4xbf16>, vector<256x16xf32> -> vector<256x16xf32>
    %cst_14 = arith.constant dense<0xFF800000> : vector<256xf32>
    %27 = vector.multi_reduction <maximumf>, %26, %cst_14 [1] : vector<256x16xf32> to vector<256xf32>
    %28 = vector.shape_cast %27 : vector<256xf32> to vector<256x1xf32>
    %29 = vector.broadcast %28 : vector<256x1xf32> to vector<256x16xf32>
    %30 = arith.subf %26, %29 : vector<256x16xf32>
    %31 = math.exp %30 : vector<256x16xf32>
    %cst_15 = arith.constant dense<0.000000e+00> : vector<256xf32>
    %32 = vector.multi_reduction <add>, %31, %cst_15 [1] : vector<256x16xf32> to vector<256xf32>
    %33 = vector.shape_cast %32 : vector<256xf32> to vector<256x1xf32>
    %34 = tpu.reciprocal %33 {approx = true} : vector<256x1xf32> -> vector<256x1xf32>
    %35 = vector.broadcast %34 : vector<256x1xf32> to vector<256x16xf32>
    %36 = arith.mulf %31, %35 : vector<256x16xf32>
    %37 = arith.truncf %36 : vector<256x16xf32> to vector<256x16xbf16>
    %38 = vector.extract_strided_slice %5 {offsets = [0, 4], sizes = [16, 4], strides = [1, 1]} : vector<16x32xbf16> to vector<16x4xbf16>
    %cst_16 = arith.constant dense<0.000000e+00> : vector<256x4xf32>
    %39 = tpu.matmul %37, %38, %cst_16 {dimension_numbers = #tpu.dot_dimension_numbers<[1], [0], [0], [1], [0, 0, 1, 1], [], []>} : vector<256x16xbf16>, vector<16x4xbf16>, vector<256x4xf32> -> vector<256x4xf32>
    %40 = arith.truncf %39 : vector<256x4xf32> to vector<256x4xbf16>
    %c0_17 = arith.constant 0 : index
    %c4 = arith.constant 4 : index
    %41 = vector.load %arg8[%c0_17, %c4] : memref<256x32xbf16, #tpu.memory_space<vmem>>, vector<256x4xbf16>
    tpu.vector_store %arg8[%c0_17, %c4], %40 {strides = array<i32>} : memref<256x32xbf16, #tpu.memory_space<vmem>>, vector<256x4xbf16>,
    %42 = vector.extract_strided_slice %1 {offsets = [0, 8], sizes = [256, 4], strides = [1, 1]} : vector<256x32xbf16> to vector<256x4xbf16>
    %43 = vector.extract_strided_slice %3 {offsets = [0, 8], sizes = [16, 4], strides = [1, 1]} : vector<16x32xbf16> to vector<16x4xbf16>
    %cst_18 = arith.constant dense<0.000000e+00> : vector<256x16xf32>
    %44 = tpu.matmul %42, %43, %cst_18 {dimension_numbers = #tpu.dot_dimension_numbers<[1], [1], [0], [0], [0, 0, 1, 0], [], []>} : vector<256x4xbf16>, vector<16x4xbf16>, vector<256x16xf32> -> vector<256x16xf32>
    %cst_19 = arith.constant dense<0xFF800000> : vector<256xf32>
    %45 = vector.multi_reduction <maximumf>, %44, %cst_19 [1] : vector<256x16xf32> to vector<256xf32>
    %46 = vector.shape_cast %45 : vector<256xf32> to vector<256x1xf32>
    %47 = vector.broadcast %46 : vector<256x1xf32> to vector<256x16xf32>
    %48 = arith.subf %44, %47 : vector<256x16xf32>
    %49 = math.exp %48 : vector<256x16xf32>
    %cst_20 = arith.constant dense<0.000000e+00> : vector<256xf32>
    %50 = vector.multi_reduction <add>, %49, %cst_20 [1] : vector<256x16xf32> to vector<256xf32>
    %51 = vector.shape_cast %50 : vector<256xf32> to vector<256x1xf32>
    %52 = tpu.reciprocal %51 {approx = true} : vector<256x1xf32> -> vector<256x1xf32>
    %53 = vector.broadcast %52 : vector<256x1xf32> to vector<256x16xf32>
    %54 = arith.mulf %49, %53 : vector<256x16xf32>
    %55 = arith.truncf %54 : vector<256x16xf32> to vector<256x16xbf16>
    %56 = vector.extract_strided_slice %5 {offsets = [0, 8], sizes = [16, 4], strides = [1, 1]} : vector<16x32xbf16> to vector<16x4xbf16>
    %cst_21 = arith.constant dense<0.000000e+00> : vector<256x4xf32>
    %57 = tpu.matmul %55, %56, %cst_21 {dimension_numbers = #tpu.dot_dimension_numbers<[1], [0], [0], [1], [0, 0, 1, 1], [], []>} : vector<256x16xbf16>, vector<16x4xbf16>, vector<256x4xf32> -> vector<256x4xf32>
    %58 = arith.truncf %57 : vector<256x4xf32> to vector<256x4xbf16>
    %c0_22 = arith.constant 0 : index
    %c8 = arith.constant 8 : index
    %59 = vector.load %arg8[%c0_22, %c8] : memref<256x32xbf16, #tpu.memory_space<vmem>>, vector<256x4xbf16>
    tpu.vector_store %arg8[%c0_22, %c8], %58 {strides = array<i32>} : memref<256x32xbf16, #tpu.memory_space<vmem>>, vector<256x4xbf16>,
    %60 = vector.extract_strided_slice %1 {offsets = [0, 12], sizes = [256, 4], strides = [1, 1]} : vector<256x32xbf16> to vector<256x4xbf16>
    %61 = vector.extract_strided_slice %3 {offsets = [0, 12], sizes = [16, 4], strides = [1, 1]} : vector<16x32xbf16> to vector<16x4xbf16>
    %cst_23 = arith.constant dense<0.000000e+00> : vector<256x16xf32>
    %62 = tpu.matmul %60, %61, %cst_23 {dimension_numbers = #tpu.dot_dimension_numbers<[1], [1], [0], [0], [0, 0, 1, 0], [], []>} : vector<256x4xbf16>, vector<16x4xbf16>, vector<256x16xf32> -> vector<256x16xf32>
    %cst_24 = arith.constant dense<0xFF800000> : vector<256xf32>
    %63 = vector.multi_reduction <maximumf>, %62, %cst_24 [1] : vector<256x16xf32> to vector<256xf32>
    %64 = vector.shape_cast %63 : vector<256xf32> to vector<256x1xf32>
    %65 = vector.broadcast %64 : vector<256x1xf32> to vector<256x16xf32>
    %66 = arith.subf %62, %65 : vector<256x16xf32>
    %67 = math.exp %66 : vector<256x16xf32>
    %cst_25 = arith.constant dense<0.000000e+00> : vector<256xf32>
    %68 = vector.multi_reduction <add>, %67, %cst_25 [1] : vector<256x16xf32> to vector<256xf32>
    %69 = vector.shape_cast %68 : vector<256xf32> to vector<256x1xf32>
    %70 = tpu.reciprocal %69 {approx = true} : vector<256x1xf32> -> vector<256x1xf32>
    %71 = vector.broadcast %70 : vector<256x1xf32> to vector<256x16xf32>
    %72 = arith.mulf %67, %71 : vector<256x16xf32>
    %73 = arith.truncf %72 : vector<256x16xf32> to vector<256x16xbf16>
    %74 = vector.extract_strided_slice %5 {offsets = [0, 12], sizes = [16, 4], strides = [1, 1]} : vector<16x32xbf16> to vector<16x4xbf16>
    %cst_26 = arith.constant dense<0.000000e+00> : vector<256x4xf32>
    %75 = tpu.matmul %73, %74, %cst_26 {dimension_numbers = #tpu.dot_dimension_numbers<[1], [0], [0], [1], [0, 0, 1, 1], [], []>} : vector<256x16xbf16>, vector<16x4xbf16>, vector<256x4xf32> -> vector<256x4xf32>
    %76 = arith.truncf %75 : vector<256x4xf32> to vector<256x4xbf16>
    %c0_27 = arith.constant 0 : index
    %c12 = arith.constant 12 : index
    %77 = vector.load %arg8[%c0_27, %c12] : memref<256x32xbf16, #tpu.memory_space<vmem>>, vector<256x4xbf16>
    tpu.vector_store %arg8[%c0_27, %c12], %76 {strides = array<i32>} : memref<256x32xbf16, #tpu.memory_space<vmem>>, vector<256x4xbf16>,
    %78 = vector.extract_strided_slice %1 {offsets = [0, 16], sizes = [256, 4], strides = [1, 1]} : vector<256x32xbf16> to vector<256x4xbf16>
    %79 = vector.extract_strided_slice %3 {offsets = [0, 16], sizes = [16, 4], strides = [1, 1]} : vector<16x32xbf16> to vector<16x4xbf16>
    %cst_28 = arith.constant dense<0.000000e+00> : vector<256x16xf32>
    %80 = tpu.matmul %78, %79, %cst_28 {dimension_numbers = #tpu.dot_dimension_numbers<[1], [1], [0], [0], [0, 0, 1, 0], [], []>} : vector<256x4xbf16>, vector<16x4xbf16>, vector<256x16xf32> -> vector<256x16xf32>
    %cst_29 = arith.constant dense<0xFF800000> : vector<256xf32>
    %81 = vector.multi_reduction <maximumf>, %80, %cst_29 [1] : vector<256x16xf32> to vector<256xf32>
    %82 = vector.shape_cast %81 : vector<256xf32> to vector<256x1xf32>
    %83 = vector.broadcast %82 : vector<256x1xf32> to vector<256x16xf32>
    %84 = arith.subf %80, %83 : vector<256x16xf32>
    %85 = math.exp %84 : vector<256x16xf32>
    %cst_30 = arith.constant dense<0.000000e+00> : vector<256xf32>
    %86 = vector.multi_reduction <add>, %85, %cst_30 [1] : vector<256x16xf32> to vector<256xf32>
    %87 = vector.shape_cast %86 : vector<256xf32> to vector<256x1xf32>
    %88 = tpu.reciprocal %87 {approx = true} : vector<256x1xf32> -> vector<256x1xf32>
    %89 = vector.broadcast %88 : vector<256x1xf32> to vector<256x16xf32>
    %90 = arith.mulf %85, %89 : vector<256x16xf32>
    %91 = arith.truncf %90 : vector<256x16xf32> to vector<256x16xbf16>
    %92 = vector.extract_strided_slice %5 {offsets = [0, 16], sizes = [16, 4], strides = [1, 1]} : vector<16x32xbf16> to vector<16x4xbf16>
    %cst_31 = arith.constant dense<0.000000e+00> : vector<256x4xf32>
    %93 = tpu.matmul %91, %92, %cst_31 {dimension_numbers = #tpu.dot_dimension_numbers<[1], [0], [0], [1], [0, 0, 1, 1], [], []>} : vector<256x16xbf16>, vector<16x4xbf16>, vector<256x4xf32> -> vector<256x4xf32>
    %94 = arith.truncf %93 : vector<256x4xf32> to vector<256x4xbf16>
    %c0_32 = arith.constant 0 : index
    %c16 = arith.constant 16 : index
    %95 = vector.load %arg8[%c0_32, %c16] : memref<256x32xbf16, #tpu.memory_space<vmem>>, vector<256x4xbf16>
    tpu.vector_store %arg8[%c0_32, %c16], %94 {strides = array<i32>} : memref<256x32xbf16, #tpu.memory_space<vmem>>, vector<256x4xbf16>,
    %96 = vector.extract_strided_slice %1 {offsets = [0, 20], sizes = [256, 4], strides = [1, 1]} : vector<256x32xbf16> to vector<256x4xbf16>
    %97 = vector.extract_strided_slice %3 {offsets = [0, 20], sizes = [16, 4], strides = [1, 1]} : vector<16x32xbf16> to vector<16x4xbf16>
    %cst_33 = arith.constant dense<0.000000e+00> : vector<256x16xf32>
    %98 = tpu.matmul %96, %97, %cst_33 {dimension_numbers = #tpu.dot_dimension_numbers<[1], [1], [0], [0], [0, 0, 1, 0], [], []>} : vector<256x4xbf16>, vector<16x4xbf16>, vector<256x16xf32> -> vector<256x16xf32>
    %cst_34 = arith.constant dense<0xFF800000> : vector<256xf32>
    %99 = vector.multi_reduction <maximumf>, %98, %cst_34 [1] : vector<256x16xf32> to vector<256xf32>
    %100 = vector.shape_cast %99 : vector<256xf32> to vector<256x1xf32>
    %101 = vector.broadcast %100 : vector<256x1xf32> to vector<256x16xf32>
    %102 = arith.subf %98, %101 : vector<256x16xf32>
    %103 = math.exp %102 : vector<256x16xf32>
    %cst_35 = arith.constant dense<0.000000e+00> : vector<256xf32>
    %104 = vector.multi_reduction <add>, %103, %cst_35 [1] : vector<256x16xf32> to vector<256xf32>
    %105 = vector.shape_cast %104 : vector<256xf32> to vector<256x1xf32>
    %106 = tpu.reciprocal %105 {approx = true} : vector<256x1xf32> -> vector<256x1xf32>
    %107 = vector.broadcast %106 : vector<256x1xf32> to vector<256x16xf32>
    %108 = arith.mulf %103, %107 : vector<256x16xf32>
    %109 = arith.truncf %108 : vector<256x16xf32> to vector<256x16xbf16>
    %110 = vector.extract_strided_slice %5 {offsets = [0, 20], sizes = [16, 4], strides = [1, 1]} : vector<16x32xbf16> to vector<16x4xbf16>
    %cst_36 = arith.constant dense<0.000000e+00> : vector<256x4xf32>
    %111 = tpu.matmul %109, %110, %cst_36 {dimension_numbers = #tpu.dot_dimension_numbers<[1], [0], [0], [1], [0, 0, 1, 1], [], []>} : vector<256x16xbf16>, vector<16x4xbf16>, vector<256x4xf32> -> vector<256x4xf32>
    %112 = arith.truncf %111 : vector<256x4xf32> to vector<256x4xbf16>
    %c0_37 = arith.constant 0 : index
    %c20 = arith.constant 20 : index
    %113 = vector.load %arg8[%c0_37, %c20] : memref<256x32xbf16, #tpu.memory_space<vmem>>, vector<256x4xbf16>
    tpu.vector_store %arg8[%c0_37, %c20], %112 {strides = array<i32>} : memref<256x32xbf16, #tpu.memory_space<vmem>>, vector<256x4xbf16>,
    %114 = vector.extract_strided_slice %1 {offsets = [0, 24], sizes = [256, 4], strides = [1, 1]} : vector<256x32xbf16> to vector<256x4xbf16>
    %115 = vector.extract_strided_slice %3 {offsets = [0, 24], sizes = [16, 4], strides = [1, 1]} : vector<16x32xbf16> to vector<16x4xbf16>
    %cst_38 = arith.constant dense<0.000000e+00> : vector<256x16xf32>
    %116 = tpu.matmul %114, %115, %cst_38 {dimension_numbers = #tpu.dot_dimension_numbers<[1], [1], [0], [0], [0, 0, 1, 0], [], []>} : vector<256x4xbf16>, vector<16x4xbf16>, vector<256x16xf32> -> vector<256x16xf32>
    %cst_39 = arith.constant dense<0xFF800000> : vector<256xf32>
    %117 = vector.multi_reduction <maximumf>, %116, %cst_39 [1] : vector<256x16xf32> to vector<256xf32>
    %118 = vector.shape_cast %117 : vector<256xf32> to vector<256x1xf32>
    %119 = vector.broadcast %118 : vector<256x1xf32> to vector<256x16xf32>
    %120 = arith.subf %116, %119 : vector<256x16xf32>
    %121 = math.exp %120 : vector<256x16xf32>
    %cst_40 = arith.constant dense<0.000000e+00> : vector<256xf32>
    %122 = vector.multi_reduction <add>, %121, %cst_40 [1] : vector<256x16xf32> to vector<256xf32>
    %123 = vector.shape_cast %122 : vector<256xf32> to vector<256x1xf32>
    %124 = tpu.reciprocal %123 {approx = true} : vector<256x1xf32> -> vector<256x1xf32>
    %125 = vector.broadcast %124 : vector<256x1xf32> to vector<256x16xf32>
    %126 = arith.mulf %121, %125 : vector<256x16xf32>
    %127 = arith.truncf %126 : vector<256x16xf32> to vector<256x16xbf16>
    %128 = vector.extract_strided_slice %5 {offsets = [0, 24], sizes = [16, 4], strides = [1, 1]} : vector<16x32xbf16> to vector<16x4xbf16>
    %cst_41 = arith.constant dense<0.000000e+00> : vector<256x4xf32>
    %129 = tpu.matmul %127, %128, %cst_41 {dimension_numbers = #tpu.dot_dimension_numbers<[1], [0], [0], [1], [0, 0, 1, 1], [], []>} : vector<256x16xbf16>, vector<16x4xbf16>, vector<256x4xf32> -> vector<256x4xf32>
    %130 = arith.truncf %129 : vector<256x4xf32> to vector<256x4xbf16>
    %c0_42 = arith.constant 0 : index
    %c24 = arith.constant 24 : index
    %131 = vector.load %arg8[%c0_42, %c24] : memref<256x32xbf16, #tpu.memory_space<vmem>>, vector<256x4xbf16>
    tpu.vector_store %arg8[%c0_42, %c24], %130 {strides = array<i32>} : memref<256x32xbf16, #tpu.memory_space<vmem>>, vector<256x4xbf16>,
    %132 = vector.extract_strided_slice %1 {offsets = [0, 28], sizes = [256, 4], strides = [1, 1]} : vector<256x32xbf16> to vector<256x4xbf16>
    %133 = vector.extract_strided_slice %3 {offsets = [0, 28], sizes = [16, 4], strides = [1, 1]} : vector<16x32xbf16> to vector<16x4xbf16>
    %cst_43 = arith.constant dense<0.000000e+00> : vector<256x16xf32>
    %134 = tpu.matmul %132, %133, %cst_43 {dimension_numbers = #tpu.dot_dimension_numbers<[1], [1], [0], [0], [0, 0, 1, 0], [], []>} : vector<256x4xbf16>, vector<16x4xbf16>, vector<256x16xf32> -> vector<256x16xf32>
    %cst_44 = arith.constant dense<0xFF800000> : vector<256xf32>
    %135 = vector.multi_reduction <maximumf>, %134, %cst_44 [1] : vector<256x16xf32> to vector<256xf32>
    %136 = vector.shape_cast %135 : vector<256xf32> to vector<256x1xf32>
    %137 = vector.broadcast %136 : vector<256x1xf32> to vector<256x16xf32>
    %138 = arith.subf %134, %137 : vector<256x16xf32>
    %139 = math.exp %138 : vector<256x16xf32>
    %cst_45 = arith.constant dense<0.000000e+00> : vector<256xf32>
    %140 = vector.multi_reduction <add>, %139, %cst_45 [1] : vector<256x16xf32> to vector<256xf32>
    %141 = vector.shape_cast %140 : vector<256xf32> to vector<256x1xf32>
    %142 = tpu.reciprocal %141 {approx = true} : vector<256x1xf32> -> vector<256x1xf32>
    %143 = vector.broadcast %142 : vector<256x1xf32> to vector<256x16xf32>
    %144 = arith.mulf %139, %143 : vector<256x16xf32>
    %145 = arith.truncf %144 : vector<256x16xf32> to vector<256x16xbf16>
    %146 = vector.extract_strided_slice %5 {offsets = [0, 28], sizes = [16, 4], strides = [1, 1]} : vector<16x32xbf16> to vector<16x4xbf16>
    %cst_46 = arith.constant dense<0.000000e+00> : vector<256x4xf32>
    %147 = tpu.matmul %145, %146, %cst_46 {dimension_numbers = #tpu.dot_dimension_numbers<[1], [0], [0], [1], [0, 0, 1, 1], [], []>} : vector<256x16xbf16>, vector<16x4xbf16>, vector<256x4xf32> -> vector<256x4xf32>
    %148 = arith.truncf %147 : vector<256x4xf32> to vector<256x4xbf16>
    %c0_47 = arith.constant 0 : index
    %c28 = arith.constant 28 : index
    %149 = vector.load %arg8[%c0_47, %c28] : memref<256x32xbf16, #tpu.memory_space<vmem>>, vector<256x4xbf16>
    tpu.vector_store %arg8[%c0_47, %c28], %148 {strides = array<i32>} : memref<256x32xbf16, #tpu.memory_space<vmem>>, vector<256x4xbf16>,
    %c0_48 = arith.constant 0 : index
    %c0_49 = arith.constant 0 : index
    %150 = vector.load %arg8[%c0_48, %c0_49] : memref<256x32xbf16, #tpu.memory_space<vmem>>, vector<256x32xbf16>
    %c0_50 = arith.constant 0 : index
    %c0_51 = arith.constant 0 : index
    %151 = vector.load %arg5[%c0_50, %c0_51] : memref<32x32xbf16, #tpu.memory_space<vmem>>, vector<32x32xbf16>
    %cst_52 = arith.constant dense<0.000000e+00> : vector<256x32xf32>
    %152 = tpu.matmul %150, %151, %cst_52 {dimension_numbers = #tpu.dot_dimension_numbers<[1], [0], [0], [1], [0, 0, 1, 1], [], []>} : vector<256x32xbf16>, vector<32x32xbf16>, vector<256x32xf32> -> vector<256x32xf32>
    %c0_53 = arith.constant 0 : index
    %c0_54 = arith.constant 0 : index
    %153 = vector.load %arg6[%c0_53, %c0_54] : memref<1x32xf32, #tpu.memory_space<vmem>>, vector<1x32xf32>
    %154 = vector.broadcast %153 : vector<1x32xf32> to vector<256x32xf32>
    %155 = arith.addf %152, %154 : vector<256x32xf32>
    %c0_55 = arith.constant 0 : index
    %c0_56 = arith.constant 0 : index
    %c0_57 = arith.constant 0 : index
    %156 = vector.load %arg7[%c0_55, %c0_56, %c0_57] : memref<1x256x32xf32, #tpu.memory_space<vmem>>, vector<1x256x32xf32>
    %157 = vector.shape_cast %156 : vector<1x256x32xf32> to vector<256x32xf32>
    %158 = vector.shape_cast %155 : vector<256x32xf32> to vector<1x256x32xf32>
    tpu.vector_store %arg7[%c0_55, %c0_56, %c0_57], %158 {strides = array<i32>} : memref<1x256x32xf32, #tpu.memory_space<vmem>>, vector<1x256x32xf32>,
    return
  }
  func.func @transform_0(%arg0: i32, %arg1: i32) -> (i32, i32, i32) {
    %c0_i32 = arith.constant 0 : i32
    %c0_i32_0 = arith.constant 0 : i32
    return %arg0, %arg1, %c0_i32 : i32, i32, i32
  }
  func.func @transform_1(%arg0: i32, %arg1: i32) -> (i32, i32, i32) {
    %c0_i32 = arith.constant 0 : i32
    %c0_i32_0 = arith.constant 0 : i32
    %c0_i32_1 = arith.constant 0 : i32
    return %arg0, %c0_i32, %c0_i32_0 : i32, i32, i32
  }
  func.func @transform_2(%arg0: i32, %arg1: i32) -> (i32, i32, i32) {
    %c0_i32 = arith.constant 0 : i32
    %c0_i32_0 = arith.constant 0 : i32
    %c0_i32_1 = arith.constant 0 : i32
    return %arg0, %c0_i32, %c0_i32_0 : i32, i32, i32
  }
  func.func @transform_3(%arg0: i32, %arg1: i32) -> (i32, i32) {
    %c0_i32 = arith.constant 0 : i32
    %c0_i32_0 = arith.constant 0 : i32
    %c0_i32_1 = arith.constant 0 : i32
    return %c0_i32, %c0_i32_0 : i32, i32
  }
  func.func @transform_4(%arg0: i32, %arg1: i32) -> (i32, i32) {
    %c0_i32 = arith.constant 0 : i32
    %c0_i32_0 = arith.constant 0 : i32
    %c0_i32_1 = arith.constant 0 : i32
    return %c0_i32, %c0_i32_0 : i32, i32
  }
  func.func @transform_5(%arg0: i32, %arg1: i32) -> (i32, i32, i32) {
    %c0_i32 = arith.constant 0 : i32
    %c0_i32_0 = arith.constant 0 : i32
    return %arg0, %arg1, %c0_i32 : i32, i32, i32
  }
}

</mosaic_0001>

<llo_original>
// kernel: _lambda_.6
$region0: #{_lambda_.6}
  #allocation0 [shape = 'u32[]', space=smem, size = 0x4, offset = 0x4, fixed_abs, tag = 'smem constant byte address 0x4 - core index']
  #allocation1 [shape = 'u32[72,128]{1,0:T(1,128)}', space=vmem, size = 0x9000, scoped, tag = 'internal scratch']
  %s0 = inlined_call_operand.vmem [shape: bf16[32,32], index: 0, kind: input, shape index: {}]
  %s1 = inlined_call_operand.vmem [shape: bf16[32,32], index: 1, kind: input, shape index: {}]
  %s2 = inlined_call_operand.vmem [shape: f32[1,32], index: 2, kind: input, shape index: {}]
  %s3 = inlined_call_operand.vmem [shape: bf16[32,32], index: 3, kind: input, shape index: {}]
  %s4 = inlined_call_operand.vmem [shape: f32[1,32], index: 4, kind: input, shape index: {}]
  %s5 = inlined_call_operand.vmem [shape: bf16[32,32], index: 5, kind: output, shape index: {0}]
  %s6 = inlined_call_operand.vmem [shape: bf16[32,32], index: 6, kind: output, shape index: {1}]
  %7 = xla_tuple %s5, %s6
  %s8 = sld [smem:[#allocation0]]
  $region38: #{_lambda_.6} parent=0
    _
  %s10 = ssub.s32 1, %s8
  %s11 = scalar_select 0, %s10, %s8
  // Predicated region
  $region2: #{_lambda_.6} parent=0 // pred_check
    _
  $region3: #{_lambda_.6} parent=0 // pred_check_branch
    %13 = sbr.rel (0) target = $region5
  $region4: #{_lambda_.6} parent=0 // pred_region
    _
  $region5: #{_lambda_.6} parent=0 // pred_fallthru
    _
  // Predicated region
  $region6: #{_lambda_.6} parent=0 // pred_check
    _
  $region7: #{_lambda_.6} parent=0 // pred_check_branch
    %15 = sbr.rel (0) target = $region9
  $region8: #{_lambda_.6} parent=0 // pred_region
    _
  $region9: #{_lambda_.6} parent=0 // pred_fallthru
    _
  // Predicated region
  $region10: #{_lambda_.6} parent=0 // pred_check
    _
  $region11: #{_lambda_.6} parent=0 // pred_check_branch
    %17 = sbr.rel (0) target = $region13
  $region12: #{_lambda_.6} parent=0 // pred_region
    _
  $region13: #{_lambda_.6} parent=0 // pred_fallthru
    _
  // Predicated region
  $region14: #{_lambda_.6} parent=0 // pred_check
    _
  $region15: #{_lambda_.6} parent=0 // pred_check_branch
    %19 = sbr.rel (0) target = $region17
  $region16: #{_lambda_.6} parent=0 // pred_region
    _
  $region17: #{_lambda_.6} parent=0 // pred_fallthru
    _
  // Predicated region
  $region18: #{_lambda_.6} parent=0 // pred_check
    _
  $region19: #{_lambda_.6} parent=0 // pred_check_branch
    %21 = sbr.rel (0) target = $region21
  $region20: #{_lambda_.6} parent=0 // pred_region
    _
  $region21: #{_lambda_.6} parent=0 // pred_fallthru
    _
  %v23 = vld [vmem:[%s0] sm:$0xf]
  %v24 = vld [vmem:[%s0 + $0x4] sm:$0xf]
  %v25 = vld [vmem:[%s0 + $0x8] sm:$0xf]
  %v26 = vld [vmem:[%s0 + $0xc] sm:$0xf]
  %v27 = vld [vmem:[%s1] sm:$0xf]
  %v28 = vld [vmem:[%s1 + $0x4] sm:$0xf]
  %v29 = vld [vmem:[%s1 + $0x8] sm:$0xf]
  %v30 = vld [vmem:[%s1 + $0xc] sm:$0xf]
  %v31 = vld [vmem:[%s2] sm:$0x1]
  %v33 = vperm.slane %v31, 0
  %v39 = vunpack.c.l.b16 %v23
  %v40 = vunpack.c.l.b16 %v24
  %v41 = vunpack.c.l.b16 %v25
  %v42 = vunpack.c.l.b16 %v26
  %v43 = vpack.c.b16 %v40, %v39
  %v44 = vpack.c.b16 %v42, %v41
  %v49 = vunpack.c.l.b16 %v27
  %v50 = vunpack.c.l.b16 %v28
  %v51 = vunpack.c.l.b16 %v29
  %v52 = vunpack.c.l.b16 %v30
  %v53 = vpack.c.b16 %v50, %v49
  %v54 = vpack.c.b16 %v52, %v51
  %vm57 = vcmask 261120
  %v59 = vsel %vm57, %v43, 0
  %v62 = vsel %vm57, %v44, 0
  %64 = vmatpush.bf16.msra.mxu0 0
  %65 = vmatpush.bf16.msra.mxu0 0
  %66 = vmatpush.bf16.msra.mxu0 0
  %67 = vmatpush.bf16.msra.mxu0 0
  %68 = vmatpush.bf16.msra.mxu0 0
  %69 = vmatpush.bf16.msra.mxu0 0
  %70 = vmatpush.bf16.msra.mxu0 %v54
  %71 = vmatpush.bf16.msra.mxu0 %v53
  %72 = vmatmul.bf16.gmra.mxu0 %v59
  %v73 = vpop.f32.mrf.mxu0
  %v74 = vadd.f32 %v33, %v73
  %v75 = vpop.f32.mrf.mxu0
  %v76 = vadd.f32 %v33, %v75
  %77 = vmatmul.bf16.gmra.mxu0 %v62
  %v78 = vpop.f32.mrf.mxu0
  %v79 = vadd.f32 %v33, %v78
  %v80 = vpop.f32.mrf.mxu0
  %v81 = vadd.f32 %v33, %v80
  %82 = vdwg.mxu0
  %v83 = vld [vmem:[%s3] sm:$0xf]
  %v84 = vld [vmem:[%s3 + $0x4] sm:$0xf]
  %v85 = vld [vmem:[%s3 + $0x8] sm:$0xf]
  %v86 = vld [vmem:[%s3 + $0xc] sm:$0xf]
  %v87 = vld [vmem:[%s4] sm:$0x1]
  %v89 = vperm.slane %v87, 0
  %v95 = vunpack.c.l.b16 %v83
  %v96 = vunpack.c.l.b16 %v84
  %v97 = vunpack.c.l.b16 %v85
  %v98 = vunpack.c.l.b16 %v86
  %v99 = vpack.c.b16 %v96, %v95
  %v100 = vpack.c.b16 %v98, %v97
  %103 = vmatpush.bf16.msra.mxu0 0
  %104 = vmatpush.bf16.msra.mxu0 0
  %105 = vmatpush.bf16.msra.mxu0 0
  %106 = vmatpush.bf16.msra.mxu0 0
  %107 = vmatpush.bf16.msra.mxu0 0
  %108 = vmatpush.bf16.msra.mxu0 0
  %109 = vmatpush.bf16.msra.mxu0 %v100
  %110 = vmatpush.bf16.msra.mxu0 %v99
  %111 = vmatmul.bf16.gmra.mxu0 %v59
  %v112 = vpop.f32.mrf.mxu0
  %v113 = vadd.f32 %v89, %v112
  %v114 = vpop.f32.mrf.mxu0
  %v115 = vadd.f32 %v89, %v114
  %116 = vmatmul.bf16.gmra.mxu0 %v62
  %v117 = vpop.f32.mrf.mxu0
  %v118 = vadd.f32 %v89, %v117
  %v119 = vpop.f32.mrf.mxu0
  %v120 = vadd.f32 %v89, %v119
  %121 = vdwg.mxu0
  %v122 = vpack.c.bf16 %v74, %v74
  %v123 = vpack.c.bf16 %v76, %v76
  %v124 = vpack.c.bf16 %v79, %v79
  %v125 = vpack.c.bf16 %v81, %v81
  %vm126 = vcmask 257024
  %127 = vst.msk [vmem:[%s5] sm:$0xf] %vm126, %v122
  %128 = vst.msk [vmem:[%s5 + $0x4] sm:$0xf] %vm126, %v123
  %129 = vst.msk [vmem:[%s5 + $0x8] sm:$0xf] %vm126, %v124
  %130 = vst.msk [vmem:[%s5 + $0xc] sm:$0xf] %vm126, %v125
  %v131 = vpack.c.bf16 %v113, %v113
  %v132 = vpack.c.bf16 %v115, %v115
  %v133 = vpack.c.bf16 %v118, %v118
  %v134 = vpack.c.bf16 %v120, %v120
  %135 = vst.msk [vmem:[%s6] sm:$0xf] %vm126, %v131
  %136 = vst.msk [vmem:[%s6 + $0x4] sm:$0xf] %vm126, %v132
  %137 = vst.msk [vmem:[%s6 + $0x8] sm:$0xf] %vm126, %v133
  %138 = vst.msk [vmem:[%s6 + $0xc] sm:$0xf] %vm126, %v134
  // Predicated region
  $region22: #{_lambda_.6} parent=0 // pred_check
    _
  $region23: #{_lambda_.6} parent=0 // pred_check_branch
    %140 = sbr.rel (0) target = $region25
  $region24: #{_lambda_.6} parent=0 // pred_region
    _
  $region25: #{_lambda_.6} parent=0 // pred_fallthru
    _
  // Predicated region
  $region26: #{_lambda_.6} parent=0 // pred_check
    _
  $region27: #{_lambda_.6} parent=0 // pred_check_branch
    %142 = sbr.rel (0) target = $region29
  $region28: #{_lambda_.6} parent=0 // pred_region
    _
  $region29: #{_lambda_.6} parent=0 // pred_fallthru
    _
  // Predicated region
  $region30: #{_lambda_.6} parent=0 // pred_check
    _
  $region31: #{_lambda_.6} parent=0 // pred_check_branch
    %144 = sbr.rel (0) target = $region33
  $region32: #{_lambda_.6} parent=0 // pred_region
    _
  $region33: #{_lambda_.6} parent=0 // pred_fallthru
    _
  // Predicated region
  $region34: #{_lambda_.6} parent=0 // pred_check
    _
  $region35: #{_lambda_.6} parent=0 // pred_check_branch
    %146 = sbr.rel (0) target = $region37
  $region36: #{_lambda_.6} parent=0 // pred_region
    _
  $region37: #{_lambda_.6} parent=0 // pred_fallthru
    _

// kernel: _lambda_.5
$region0: #{_lambda_.5}
  #allocation0 [shape = 'u32[]', space=smem, size = 0x4, offset = 0x4, fixed_abs, tag = 'smem constant byte address 0x4 - core index']
  #allocation1 [shape = 'u32[72,128]{1,0:T(1,128)}', space=vmem, size = 0x9000, scoped, tag = 'internal scratch']
  %s0 = inlined_call_operand.vmem [shape: f32[32,512], index: 0, kind: input, shape index: {}]
  %s1 = inlined_call_operand.vmem [shape: bf16[512,32], index: 1, kind: input, shape index: {}]
  %s2 = inlined_call_operand.vmem [shape: f32[1,32], index: 2, kind: input, shape index: {}]
  %s3 = inlined_call_operand.vmem [shape: f32[1,32], index: 3, kind: input, shape index: {}]
  %s4 = inlined_call_operand.vmem [shape: f32[1,32], index: 4, kind: input, shape index: {}]
  %s5 = inlined_call_operand.vmem [shape: bf16[32,32], index: 5, kind: output, shape index: {}]
  %s6 = sld [smem:[#allocation0]]
  $region30: #{_lambda_.5} parent=0
    _
  %s8 = ssub.s32 1, %s6
  %s9 = scalar_select 0, %s8, %s6
  // Predicated region
  $region2: #{_lambda_.5} parent=0 // pred_check
    _
  $region3: #{_lambda_.5} parent=0 // pred_check_branch
    %11 = sbr.rel (0) target = $region5
  $region4: #{_lambda_.5} parent=0 // pred_region
    _
  $region5: #{_lambda_.5} parent=0 // pred_fallthru
    _
  // Predicated region
  $region6: #{_lambda_.5} parent=0 // pred_check
    _
  $region7: #{_lambda_.5} parent=0 // pred_check_branch
    %13 = sbr.rel (0) target = $region9
  $region8: #{_lambda_.5} parent=0 // pred_region
    _
  $region9: #{_lambda_.5} parent=0 // pred_fallthru
    _
  // Predicated region
  $region10: #{_lambda_.5} parent=0 // pred_check
    _
  $region11: #{_lambda_.5} parent=0 // pred_check_branch
    %15 = sbr.rel (0) target = $region13
  $region12: #{_lambda_.5} parent=0 // pred_region
    _
  $region13: #{_lambda_.5} parent=0 // pred_fallthru
    _
  // Predicated region
  $region14: #{_lambda_.5} parent=0 // pred_check
    _
  $region15: #{_lambda_.5} parent=0 // pred_check_branch
    %17 = sbr.rel (0) target = $region17
  $region16: #{_lambda_.5} parent=0 // pred_region
    _
  $region17: #{_lambda_.5} parent=0 // pred_fallthru
    _
  // Predicated region
  $region18: #{_lambda_.5} parent=0 // pred_check
    _
  $region19: #{_lambda_.5} parent=0 // pred_check_branch
    %19 = sbr.rel (0) target = $region21
  $region20: #{_lambda_.5} parent=0 // pred_region
    _
  $region21: #{_lambda_.5} parent=0 // pred_fallthru
    _
  %v20 = vld [vmem:[%s0] sm:$0xff]
  %v21 = vld [vmem:[%s0 + $0x8] sm:$0xff]
  %v22 = vld [vmem:[%s0 + $0x10] sm:$0xff]
  %v23 = vld [vmem:[%s0 + $0x18] sm:$0xff]
  %v24 = vld [vmem:[%s0 + $0x20] sm:$0xff]
  %v25 = vld [vmem:[%s0 + $0x28] sm:$0xff]
  %v26 = vld [vmem:[%s0 + $0x30] sm:$0xff]
  %v27 = vld [vmem:[%s0 + $0x38] sm:$0xff]
  %v28 = vld [vmem:[%s0 + $0x40] sm:$0xff]
  %v29 = vld [vmem:[%s0 + $0x48] sm:$0xff]
  %v30 = vld [vmem:[%s0 + $0x50] sm:$0xff]
  %v31 = vld [vmem:[%s0 + $0x58] sm:$0xff]
  %v32 = vld [vmem:[%s0 + $0x60] sm:$0xff]
  %v33 = vld [vmem:[%s0 + $0x68] sm:$0xff]
  %v34 = vld [vmem:[%s0 + $0x70] sm:$0xff]
  %v35 = vld [vmem:[%s0 + $0x78] sm:$0xff]
  %v36 = vpack.c.bf16 %v24, %v20
  %v37 = vpack.c.bf16 %v25, %v21
  %v38 = vpack.c.bf16 %v26, %v22
  %v39 = vpack.c.bf16 %v27, %v23
  %v40 = vpack.c.bf16 %v32, %v28
  %v41 = vpack.c.bf16 %v33, %v29
  %v42 = vpack.c.bf16 %v34, %v30
  %v43 = vpack.c.bf16 %v35, %v31
  %v44 = vld [vmem:[%s1] sm:$0xf]
  %v45 = vld [vmem:[%s1 + $0x4] sm:$0xf]
  %v46 = vld [vmem:[%s1 + $0x8] sm:$0xf]
  %v47 = vld [vmem:[%s1 + $0xc] sm:$0xf]
  %v48 = vld [vmem:[%s1 + $0x10] sm:$0xf]
  %v49 = vld [vmem:[%s1 + $0x14] sm:$0xf]
  %v50 = vld [vmem:[%s1 + $0x18] sm:$0xf]
  %v51 = vld [vmem:[%s1 + $0x1c] sm:$0xf]
  %v52 = vld [vmem:[%s1 + $0x20] sm:$0xf]
  %v53 = vld [vmem:[%s1 + $0x24] sm:$0xf]
  %v54 = vld [vmem:[%s1 + $0x28] sm:$0xf]
  %v55 = vld [vmem:[%s1 + $0x2c] sm:$0xf]
  %v56 = vld [vmem:[%s1 + $0x30] sm:$0xf]
  %v57 = vld [vmem:[%s1 + $0x34] sm:$0xf]
  %v58 = vld [vmem:[%s1 + $0x38] sm:$0xf]
  %v59 = vld [vmem:[%s1 + $0x3c] sm:$0xf]
  %v60 = vld [vmem:[%s1 + $0x40] sm:$0xf]
  %v61 = vld [vmem:[%s1 + $0x44] sm:$0xf]
  %v62 = vld [vmem:[%s1 + $0x48] sm:$0xf]
  %v63 = vld [vmem:[%s1 + $0x4c] sm:$0xf]
  %v64 = vld [vmem:[%s1 + $0x50] sm:$0xf]
  %v65 = vld [vmem:[%s1 + $0x54] sm:$0xf]
  %v66 = vld [vmem:[%s1 + $0x58] sm:$0xf]
  %v67 = vld [vmem:[%s1 + $0x5c] sm:$0xf]
  %v68 = vld [vmem:[%s1 + $0x60] sm:$0xf]
  %v69 = vld [vmem:[%s1 + $0x64] sm:$0xf]
  %v70 = vld [vmem:[%s1 + $0x68] sm:$0xf]
  %v71 = vld [vmem:[%s1 + $0x6c] sm:$0xf]
  %v72 = vld [vmem:[%s1 + $0x70] sm:$0xf]
  %v73 = vld [vmem:[%s1 + $0x74] sm:$0xf]
  %v74 = vld [vmem:[%s1 + $0x78] sm:$0xf]
  %v75 = vld [vmem:[%s1 + $0x7c] sm:$0xf]
  %v76 = vld [vmem:[%s1 + $0x80] sm:$0xf]
  %v77 = vld [vmem:[%s1 + $0x84] sm:$0xf]
  %v78 = vld [vmem:[%s1 + $0x88] sm:$0xf]
  %v79 = vld [vmem:[%s1 + $0x8c] sm:$0xf]
  %v80 = vld [vmem:[%s1 + $0x90] sm:$0xf]
  %v81 = vld [vmem:[%s1 + $0x94] sm:$0xf]
  %v82 = vld [vmem:[%s1 + $0x98] sm:$0xf]
  %v83 = vld [vmem:[%s1 + $0x9c] sm:$0xf]
  %v84 = vld [vmem:[%s1 + $0xa0] sm:$0xf]
  %v85 = vld [vmem:[%s1 + $0xa4] sm:$0xf]
  %v86 = vld [vmem:[%s1 + $0xa8] sm:$0xf]
  %v87 = vld [vmem:[%s1 + $0xac] sm:$0xf]
  %v88 = vld [vmem:[%s1 + $0xb0] sm:$0xf]
  %v89 = vld [vmem:[%s1 + $0xb4] sm:$0xf]
  %v90 = vld [vmem:[%s1 + $0xb8] sm:$0xf]
  %v91 = vld [vmem:[%s1 + $0xbc] sm:$0xf]
  %v92 = vld [vmem:[%s1 + $0xc0] sm:$0xf]
  %v93 = vld [vmem:[%s1 + $0xc4] sm:$0xf]
  %v94 = vld [vmem:[%s1 + $0xc8] sm:$0xf]
  %v95 = vld [vmem:[%s1 + $0xcc] sm:$0xf]
  %v96 = vld [vmem:[%s1 + $0xd0] sm:$0xf]
  %v97 = vld [vmem:[%s1 + $0xd4] sm:$0xf]
  %v98 = vld [vmem:[%s1 + $0xd8] sm:$0xf]
  %v99 = vld [vmem:[%s1 + $0xdc] sm:$0xf]
  %v100 = vld [vmem:[%s1 + $0xe0] sm:$0xf]
  %v101 = vld [vmem:[%s1 + $0xe4] sm:$0xf]
  %v102 = vld [vmem:[%s1 + $0xe8] sm:$0xf]
  %v103 = vld [vmem:[%s1 + $0xec] sm:$0xf]
  %v104 = vld [vmem:[%s1 + $0xf0] sm:$0xf]
  %v105 = vld [vmem:[%s1 + $0xf4] sm:$0xf]
  %v106 = vld [vmem:[%s1 + $0xf8] sm:$0xf]
  %v107 = vld [vmem:[%s1 + $0xfc] sm:$0xf]
  %v108 = vld [vmem:[%s2] sm:$0x1]
  %v110 = vperm.slane %v108, 0
  %v176 = vunpack.c.l.b16 %v44
  %v177 = vunpack.c.l.b16 %v45
  %v178 = vunpack.c.l.b16 %v46
  %v179 = vunpack.c.l.b16 %v47
  %v180 = vunpack.c.l.b16 %v48
  %v181 = vunpack.c.l.b16 %v49
  %v182 = vunpack.c.l.b16 %v50
  %v183 = vunpack.c.l.b16 %v51
  %v184 = vunpack.c.l.b16 %v52
  %v185 = vunpack.c.l.b16 %v53
  %v186 = vunpack.c.l.b16 %v54
  %v187 = vunpack.c.l.b16 %v55
  %v188 = vunpack.c.l.b16 %v56
  %v189 = vunpack.c.l.b16 %v57
  %v190 = vunpack.c.l.b16 %v58
  %v191 = vunpack.c.l.b16 %v59
  %v192 = vunpack.c.l.b16 %v60
  %v193 = vunpack.c.l.b16 %v61
  %v194 = vunpack.c.l.b16 %v62
  %v195 = vunpack.c.l.b16 %v63
  %v196 = vunpack.c.l.b16 %v64
  %v197 = vunpack.c.l.b16 %v65
  %v198 = vunpack.c.l.b16 %v66
  %v199 = vunpack.c.l.b16 %v67
  %v200 = vunpack.c.l.b16 %v68
  %v201 = vunpack.c.l.b16 %v69
  %v202 = vunpack.c.l.b16 %v70
  %v203 = vunpack.c.l.b16 %v71
  %v204 = vunpack.c.l.b16 %v72
  %v205 = vunpack.c.l.b16 %v73
  %v206 = vunpack.c.l.b16 %v74
  %v207 = vunpack.c.l.b16 %v75
  %v208 = vunpack.c.l.b16 %v76
  %v209 = vunpack.c.l.b16 %v77
  %v210 = vunpack.c.l.b16 %v78
  %v211 = vunpack.c.l.b16 %v79
  %v212 = vunpack.c.l.b16 %v80
  %v213 = vunpack.c.l.b16 %v81
  %v214 = vunpack.c.l.b16 %v82
  %v215 = vunpack.c.l.b16 %v83
  %v216 = vunpack.c.l.b16 %v84
  %v217 = vunpack.c.l.b16 %v85
  %v218 = vunpack.c.l.b16 %v86
  %v219 = vunpack.c.l.b16 %v87
  %v220 = vunpack.c.l.b16 %v88
  %v221 = vunpack.c.l.b16 %v89
  %v222 = vunpack.c.l.b16 %v90
  %v223 = vunpack.c.l.b16 %v91
  %v224 = vunpack.c.l.b16 %v92
  %v225 = vunpack.c.l.b16 %v93
  %v226 = vunpack.c.l.b16 %v94
  %v227 = vunpack.c.l.b16 %v95
  %v228 = vunpack.c.l.b16 %v96
  %v229 = vunpack.c.l.b16 %v97
  %v230 = vunpack.c.l.b16 %v98
  %v231 = vunpack.c.l.b16 %v99
  %v232 = vunpack.c.l.b16 %v100
  %v233 = vunpack.c.l.b16 %v101
  %v234 = vunpack.c.l.b16 %v102
  %v235 = vunpack.c.l.b16 %v103
  %v236 = vunpack.c.l.b16 %v104
  %v237 = vunpack.c.l.b16 %v105
  %v238 = vunpack.c.l.b16 %v106
  %v239 = vunpack.c.l.b16 %v107
  %v240 = vpack.c.b16 %v177, %v176
  %v241 = vpack.c.b16 %v179, %v178
  %v242 = vpack.c.b16 %v181, %v180
  %v243 = vpack.c.b16 %v183, %v182
  %v244 = vpack.c.b16 %v185, %v184
  %v245 = vpack.c.b16 %v187, %v186
  %v246 = vpack.c.b16 %v189, %v188
  %v247 = vpack.c.b16 %v191, %v190
  %v248 = vpack.c.b16 %v193, %v192
  %v249 = vpack.c.b16 %v195, %v194
  %v250 = vpack.c.b16 %v197, %v196
  %v251 = vpack.c.b16 %v199, %v198
  %v252 = vpack.c.b16 %v201, %v200
  %v253 = vpack.c.b16 %v203, %v202
  %v254 = vpack.c.b16 %v205, %v204
  %v255 = vpack.c.b16 %v207, %v206
  %v256 = vpack.c.b16 %v209, %v208
  %v257 = vpack.c.b16 %v211, %v210
  %v258 = vpack.c.b16 %v213, %v212
  %v259 = vpack.c.b16 %v215, %v214
  %v260 = vpack.c.b16 %v217, %v216
  %v261 = vpack.c.b16 %v219, %v218
  %v262 = vpack.c.b16 %v221, %v220
  %v263 = vpack.c.b16 %v223, %v222
  %v264 = vpack.c.b16 %v225, %v224
  %v265 = vpack.c.b16 %v227, %v226
  %v266 = vpack.c.b16 %v229, %v228
  %v267 = vpack.c.b16 %v231, %v230
  %v268 = vpack.c.b16 %v233, %v232
  %v269 = vpack.c.b16 %v235, %v234
  %v270 = vpack.c.b16 %v237, %v236
  %v271 = vpack.c.b16 %v239, %v238
  %304 = vmatpush.bf16.msra.mxu0 %v247
  %305 = vmatpush.bf16.msra.mxu0 %v246
  %306 = vmatpush.bf16.msra.mxu0 %v245
  %307 = vmatpush.bf16.msra.mxu0 %v244
  %308 = vmatpush.bf16.msra.mxu0 %v243
  %309 = vmatpush.bf16.msra.mxu0 %v242
  %310 = vmatpush.bf16.msra.mxu0 %v241
  %311 = vmatpush.bf16.msra.mxu0 %v240
  %312 = vmatmul.bf16.gmra.mxu0 %v36
  %v313 = vpop.f32.mrf.mxu0
  %v314 = vadd.f32 %v110, %v313
  %v315 = vpop.f32.mrf.mxu0
  %v316 = vadd.f32 %v110, %v315
  %317 = vmatmul.bf16.gmra.mxu0 %v40
  %v318 = vpop.f32.mrf.mxu0
  %v319 = vadd.f32 %v110, %v318
  %v320 = vpop.f32.mrf.mxu0
  %v321 = vadd.f32 %v110, %v320
  %322 = vdwg.mxu0
  %323 = vmatpush.bf16.msra.mxu0 %v255
  %324 = vmatpush.bf16.msra.mxu0 %v254
  %325 = vmatpush.bf16.msra.mxu0 %v253
  %326 = vmatpush.bf16.msra.mxu0 %v252
  %327 = vmatpush.bf16.msra.mxu0 %v251
  %328 = vmatpush.bf16.msra.mxu0 %v250
  %329 = vmatpush.bf16.msra.mxu0 %v249
  %330 = vmatpush.bf16.msra.mxu0 %v248
  %331 = vmatmul.bf16.gmra.mxu0 %v37
  %v332 = vpop.f32.mrf.mxu0
  %v333 = vadd.f32 %v314, %v332
  %v334 = vpop.f32.mrf.mxu0
  %v335 = vadd.f32 %v316, %v334
  %336 = vmatmul.bf16.gmra.mxu0 %v41
  %v337 = vpop.f32.mrf.mxu0
  %v338 = vadd.f32 %v319, %v337
  %v339 = vpop.f32.mrf.mxu0
  %v340 = vadd.f32 %v321, %v339
  %341 = vdwg.mxu0
  %342 = vmatpush.bf16.msra.mxu0 %v263
  %343 = vmatpush.bf16.msra.mxu0 %v262
  %344 = vmatpush.bf16.msra.mxu0 %v261
  %345 = vmatpush.bf16.msra.mxu0 %v260
  %346 = vmatpush.bf16.msra.mxu0 %v259
  %347 = vmatpush.bf16.msra.mxu0 %v258
  %348 = vmatpush.bf16.msra.mxu0 %v257
  %349 = vmatpush.bf16.msra.mxu0 %v256
  %350 = vmatmul.bf16.gmra.mxu0 %v38
  %v351 = vpop.f32.mrf.mxu0
  %v352 = vadd.f32 %v333, %v351
  %v353 = vpop.f32.mrf.mxu0
  %v354 = vadd.f32 %v335, %v353
  %355 = vmatmul.bf16.gmra.mxu0 %v42
  %v356 = vpop.f32.mrf.mxu0
  %v357 = vadd.f32 %v338, %v356
  %v358 = vpop.f32.mrf.mxu0
  %v359 = vadd.f32 %v340, %v358
  %360 = vdwg.mxu0
  %361 = vmatpush.bf16.msra.mxu0 %v271
  %362 = vmatpush.bf16.msra.mxu0 %v270
  %363 = vmatpush.bf16.msra.mxu0 %v269
  %364 = vmatpush.bf16.msra.mxu0 %v268
  %365 = vmatpush.bf16.msra.mxu0 %v267
  %366 = vmatpush.bf16.msra.mxu0 %v266
  %367 = vmatpush.bf16.msra.mxu0 %v265
  %368 = vmatpush.bf16.msra.mxu0 %v264
  %369 = vmatmul.bf16.gmra.mxu0 %v39
  %v370 = vpop.f32.mrf.mxu0
  %v371 = vadd.f32 %v352, %v370
  %v372 = vpop.f32.mrf.mxu0
  %v373 = vadd.f32 %v354, %v372
  %374 = vmatmul.bf16.gmra.mxu0 %v43
  %v375 = vpop.f32.mrf.mxu0
  %v376 = vadd.f32 %v357, %v375
  %v377 = vpop.f32.mrf.mxu0
  %v378 = vadd.f32 %v359, %v377
  %379 = vdwg.mxu0
  %vm380 = vcmask 261120
  %v381 = vsel %vm380, %v371, 0.0
  %382 = vadd.xlane.f32.xlu0 %v381
  %v383 = vpop.xlane.xlu0 %382
  %v384 = vsel %vm380, %v373, 0.0
  %385 = vadd.xlane.f32.xlu0 %v384
  %v386 = vpop.xlane.xlu0 %385
  %v387 = vsel %vm380, %v376, 0.0
  %388 = vadd.xlane.f32.xlu0 %v387
  %v389 = vpop.xlane.xlu0 %388
  %v390 = vsel %vm380, %v378, 0.0
  %391 = vadd.xlane.f32.xlu0 %v390
  %v392 = vpop.xlane.xlu0 %391
  %v393 = vrcp.pop 32.0
  %v394 = vmul.f32 32.0, %v393
  %v395 = vsub.f32 1.0, %v394
  %v396 = vmul.f32 %v393, %v395
  %v397 = vadd.f32 %v393, %v396
  %vm398 = vweird.f32 %v393
  %v399 = vsel %vm398, %v393, %v397
  %v400 = vmul.f32 %v383, %v399
  %v401 = vmul.f32 %v386, %v399
  %v402 = vmul.f32 %v389, %v399
  %v403 = vmul.f32 %v392, %v399
  %v404 = vsub.f32 %v371, %v400
  %v405 = vsub.f32 %v373, %v401
  %v406 = vsub.f32 %v376, %v402
  %v407 = vsub.f32 %v378, %v403
  %v408 = vmul.f32 %v404, %v404
  %v409 = vmul.f32 %v405, %v405
  %v410 = vmul.f32 %v406, %v406
  %v411 = vmul.f32 %v407, %v407
  %v412 = vsel %vm380, %v408, 0.0
  %413 = vadd.xlane.f32.xlu0 %v412
  %v414 = vpop.xlane.xlu0 %413
  %v415 = vsel %vm380, %v409, 0.0
  %416 = vadd.xlane.f32.xlu0 %v415
  %v417 = vpop.xlane.xlu0 %416
  %v418 = vsel %vm380, %v410, 0.0
  %419 = vadd.xlane.f32.xlu0 %v418
  %v420 = vpop.xlane.xlu0 %419
  %v421 = vsel %vm380, %v411, 0.0
  %422 = vadd.xlane.f32.xlu0 %v421
  %v423 = vpop.xlane.xlu0 %422
  %v424 = vmul.f32 %v414, %v399
  %v425 = vmul.f32 %v417, %v399
  %v426 = vmul.f32 %v420, %v399
  %v427 = vmul.f32 %v423, %v399
  %v428 = vadd.f32 %v424, 1e-05
  %v429 = vadd.f32 %v425, 1e-05
  %v430 = vadd.f32 %v426, 1e-05
  %v431 = vadd.f32 %v427, 1e-05
  %v432 = vrsqrt.pop %v428
  %v433 = vmul.f32 %v432, %v428
  %v434 = vmul.f32 %v433, %v432
  %v435 = vmul.f32 0.5, %v434
  %v436 = vsub.f32 1.5, %v435
  %v437 = vmul.f32 %v432, %v436
  %vm438 = vweird.f32 %v428
  %vm439 = vweird.f32 %v432
  %vm440 = vmor %vm438, %vm439
  %v441 = vsel %vm440, %v432, %v437
  %v442 = vrsqrt.pop %v429
  %v443 = vmul.f32 %v442, %v429
  %v444 = vmul.f32 %v443, %v442
  %v445 = vmul.f32 0.5, %v444
  %v446 = vsub.f32 1.5, %v445
  %v447 = vmul.f32 %v442, %v446
  %vm448 = vweird.f32 %v429
  %vm449 = vweird.f32 %v442
  %vm450 = vmor %vm448, %vm449
  %v451 = vsel %vm450, %v442, %v447
  %v452 = vrsqrt.pop %v430
  %v453 = vmul.f32 %v452, %v430
  %v454 = vmul.f32 %v453, %v452
  %v455 = vmul.f32 0.5, %v454
  %v456 = vsub.f32 1.5, %v455
  %v457 = vmul.f32 %v452, %v456
  %vm458 = vweird.f32 %v430
  %vm459 = vweird.f32 %v452
  %vm460 = vmor %vm458, %vm459
  %v461 = vsel %vm460, %v452, %v457
  %v462 = vrsqrt.pop %v431
  %v463 = vmul.f32 %v462, %v431
  %v464 = vmul.f32 %v463, %v462
  %v465 = vmul.f32 0.5, %v464
  %v466 = vsub.f32 1.5, %v465
  %v467 = vmul.f32 %v462, %v466
  %vm468 = vweird.f32 %v431
  %vm469 = vweird.f32 %v462
  %vm470 = vmor %vm468, %vm469
  %v471 = vsel %vm470, %v462, %v467
  %v472 = vmul.f32 %v404, %v441
  %v473 = vmul.f32 %v405, %v451
  %v474 = vmul.f32 %v406, %v461
  %v475 = vmul.f32 %v407, %v471
  %v476 = vld [vmem:[%s3] sm:$0x1]
  %v478 = vperm.slane %v476, 0
  %v480 = vmul.f32 %v472, %v478
  %v481 = vmul.f32 %v473, %v478
  %v482 = vmul.f32 %v474, %v478
  %v483 = vmul.f32 %v475, %v478
  %v484 = vld [vmem:[%s4] sm:$0x1]
  %v486 = vperm.slane %v484, 0
  %v488 = vadd.f32 %v480, %v486
  %v489 = vadd.f32 %v481, %v486
  %v490 = vadd.f32 %v482, %v486
  %v491 = vadd.f32 %v483, %v486
  %v492 = vpack.c.bf16 %v488, %v488
  %v493 = vpack.c.bf16 %v489, %v489
  %v494 = vpack.c.bf16 %v490, %v490
  %v495 = vpack.c.bf16 %v491, %v491
  %vm496 = vcmask 257024
  %497 = vst.msk [vmem:[%s5] sm:$0xf] %vm496, %v492
  %498 = vst.msk [vmem:[%s5 + $0x4] sm:$0xf] %vm496, %v493
  %499 = vst.msk [vmem:[%s5 + $0x8] sm:$0xf] %vm496, %v494
  %500 = vst.msk [vmem:[%s5 + $0xc] sm:$0xf] %vm496, %v495
  // Predicated region
  $region22: #{_lambda_.5} parent=0 // pred_check
    _
  $region23: #{_lambda_.5} parent=0 // pred_check_branch
    %502 = sbr.rel (0) target = $region25
  $region24: #{_lambda_.5} parent=0 // pred_region
    _
  $region25: #{_lambda_.5} parent=0 // pred_fallthru
    _
  // Predicated region
  $region26: #{_lambda_.5} parent=0 // pred_check
    _
  $region27: #{_lambda_.5} parent=0 // pred_check_branch
    %504 = sbr.rel (0) target = $region29
  $region28: #{_lambda_.5} parent=0 // pred_region
    _
  $region29: #{_lambda_.5} parent=0 // pred_fallthru
    _

// kernel: _lambda_.4
$region0: #{_lambda_.4}
  #allocation0 [shape = 'u32[]', space=smem, size = 0x4, offset = 0x4, fixed_abs, tag = 'smem constant byte address 0x4 - core index']
  #allocation1 [shape = 'u32[72,128]{1,0:T(1,128)}', space=vmem, size = 0x9000, scoped, tag = 'internal scratch']
  %s0 = inlined_call_operand.vmem [shape: f32[512,32], index: 0, kind: input, shape index: {}]
  %s1 = inlined_call_operand.vmem [shape: bf16[32,32], index: 1, kind: input, shape index: {}]
  %s2 = inlined_call_operand.vmem [shape: f32[1,32], index: 2, kind: input, shape index: {}]
  %s3 = inlined_call_operand.vmem [shape: bf16[512,32], index: 3, kind: output, shape index: {}]
  %s4 = sld [smem:[#allocation0]]
  $region22: #{_lambda_.4} parent=0
    _
  %s6 = ssub.s32 1, %s4
  %s7 = scalar_select 0, %s6, %s4
  // Predicated region
  $region2: #{_lambda_.4} parent=0 // pred_check
    _
  $region3: #{_lambda_.4} parent=0 // pred_check_branch
    %9 = sbr.rel (0) target = $region5
  $region4: #{_lambda_.4} parent=0 // pred_region
    _
  $region5: #{_lambda_.4} parent=0 // pred_fallthru
    _
  // Predicated region
  $region6: #{_lambda_.4} parent=0 // pred_check
    _
  $region7: #{_lambda_.4} parent=0 // pred_check_branch
    %11 = sbr.rel (0) target = $region9
  $region8: #{_lambda_.4} parent=0 // pred_region
    _
  $region9: #{_lambda_.4} parent=0 // pred_fallthru
    _
  // Predicated region
  $region10: #{_lambda_.4} parent=0 // pred_check
    _
  $region11: #{_lambda_.4} parent=0 // pred_check_branch
    %13 = sbr.rel (0) target = $region13
  $region12: #{_lambda_.4} parent=0 // pred_region
    _
  $region13: #{_lambda_.4} parent=0 // pred_fallthru
    _
  %v15 = vld [vmem:[%s0] sm:$0xff]
  %v16 = vld [vmem:[%s0 + $0x8] sm:$0xff]
  %v17 = vld [vmem:[%s0 + $0x10] sm:$0xff]
  %v18 = vld [vmem:[%s0 + $0x18] sm:$0xff]
  %v19 = vld [vmem:[%s0 + $0x20] sm:$0xff]
  %v20 = vld [vmem:[%s0 + $0x28] sm:$0xff]
  %v21 = vld [vmem:[%s0 + $0x30] sm:$0xff]
  %v22 = vld [vmem:[%s0 + $0x38] sm:$0xff]
  %v23 = vld [vmem:[%s0 + $0x40] sm:$0xff]
  %v24 = vld [vmem:[%s0 + $0x48] sm:$0xff]
  %v25 = vld [vmem:[%s0 + $0x50] sm:$0xff]
  %v26 = vld [vmem:[%s0 + $0x58] sm:$0xff]
  %v27 = vld [vmem:[%s0 + $0x60] sm:$0xff]
  %v28 = vld [vmem:[%s0 + $0x68] sm:$0xff]
  %v29 = vld [vmem:[%s0 + $0x70] sm:$0xff]
  %v30 = vld [vmem:[%s0 + $0x78] sm:$0xff]
  %v31 = vld [vmem:[%s0 + $0x80] sm:$0xff]
  %v32 = vld [vmem:[%s0 + $0x88] sm:$0xff]
  %v33 = vld [vmem:[%s0 + $0x90] sm:$0xff]
  %v34 = vld [vmem:[%s0 + $0x98] sm:$0xff]
  %v35 = vld [vmem:[%s0 + $0xa0] sm:$0xff]
  %v36 = vld [vmem:[%s0 + $0xa8] sm:$0xff]
  %v37 = vld [vmem:[%s0 + $0xb0] sm:$0xff]
  %v38 = vld [vmem:[%s0 + $0xb8] sm:$0xff]
  %v39 = vld [vmem:[%s0 + $0xc0] sm:$0xff]
  %v40 = vld [vmem:[%s0 + $0xc8] sm:$0xff]
  %v41 = vld [vmem:[%s0 + $0xd0] sm:$0xff]
  %v42 = vld [vmem:[%s0 + $0xd8] sm:$0xff]
  %v43 = vld [vmem:[%s0 + $0xe0] sm:$0xff]
  %v44 = vld [vmem:[%s0 + $0xe8] sm:$0xff]
  %v45 = vld [vmem:[%s0 + $0xf0] sm:$0xff]
  %v46 = vld [vmem:[%s0 + $0xf8] sm:$0xff]
  %v47 = vld [vmem:[%s0 + $0x100] sm:$0xff]
  %v48 = vld [vmem:[%s0 + $0x108] sm:$0xff]
  %v49 = vld [vmem:[%s0 + $0x110] sm:$0xff]
  %v50 = vld [vmem:[%s0 + $0x118] sm:$0xff]
  %v51 = vld [vmem:[%s0 + $0x120] sm:$0xff]
  %v52 = vld [vmem:[%s0 + $0x128] sm:$0xff]
  %v53 = vld [vmem:[%s0 + $0x130] sm:$0xff]
  %v54 = vld [vmem:[%s0 + $0x138] sm:$0xff]
  %v55 = vld [vmem:[%s0 + $0x140] sm:$0xff]
  %v56 = vld [vmem:[%s0 + $0x148] sm:$0xff]
  %v57 = vld [vmem:[%s0 + $0x150] sm:$0xff]
  %v58 = vld [vmem:[%s0 + $0x158] sm:$0xff]
  %v59 = vld [vmem:[%s0 + $0x160] sm:$0xff]
  %v60 = vld [vmem:[%s0 + $0x168] sm:$0xff]
  %v61 = vld [vmem:[%s0 + $0x170] sm:$0xff]
  %v62 = vld [vmem:[%s0 + $0x178] sm:$0xff]
  %v63 = vld [vmem:[%s0 + $0x180] sm:$0xff]
  %v64 = vld [vmem:[%s0 + $0x188] sm:$0xff]
  %v65 = vld [vmem:[%s0 + $0x190] sm:$0xff]
  %v66 = vld [vmem:[%s0 + $0x198] sm:$0xff]
  %v67 = vld [vmem:[%s0 + $0x1a0] sm:$0xff]
  %v68 = vld [vmem:[%s0 + $0x1a8] sm:$0xff]
  %v69 = vld [vmem:[%s0 + $0x1b0] sm:$0xff]
  %v70 = vld [vmem:[%s0 + $0x1b8] sm:$0xff]
  %v71 = vld [vmem:[%s0 + $0x1c0] sm:$0xff]
  %v72 = vld [vmem:[%s0 + $0x1c8] sm:$0xff]
  %v73 = vld [vmem:[%s0 + $0x1d0] sm:$0xff]
  %v74 = vld [vmem:[%s0 + $0x1d8] sm:$0xff]
  %v75 = vld [vmem:[%s0 + $0x1e0] sm:$0xff]
  %v76 = vld [vmem:[%s0 + $0x1e8] sm:$0xff]
  %v77 = vld [vmem:[%s0 + $0x1f0] sm:$0xff]
  %v78 = vld [vmem:[%s0 + $0x1f8] sm:$0xff]
  %v79 = vpack.c.bf16 %v16, %v15
  %v80 = vpack.c.bf16 %v18, %v17
  %v81 = vpack.c.bf16 %v20, %v19
  %v82 = vpack.c.bf16 %v22, %v21
  %v83 = vpack.c.bf16 %v24, %v23
  %v84 = vpack.c.bf16 %v26, %v25
  %v85 = vpack.c.bf16 %v28, %v27
  %v86 = vpack.c.bf16 %v30, %v29
  %v87 = vpack.c.bf16 %v32, %v31
  %v88 = vpack.c.bf16 %v34, %v33
  %v89 = vpack.c.bf16 %v36, %v35
  %v90 = vpack.c.bf16 %v38, %v37
  %v91 = vpack.c.bf16 %v40, %v39
  %v92 = vpack.c.bf16 %v42, %v41
  %v93 = vpack.c.bf16 %v44, %v43
  %v94 = vpack.c.bf16 %v46, %v45
  %v95 = vpack.c.bf16 %v48, %v47
  %v96 = vpack.c.bf16 %v50, %v49
  %v97 = vpack.c.bf16 %v52, %v51
  %v98 = vpack.c.bf16 %v54, %v53
  %v99 = vpack.c.bf16 %v56, %v55
  %v100 = vpack.c.bf16 %v58, %v57
  %v101 = vpack.c.bf16 %v60, %v59
  %v102 = vpack.c.bf16 %v62, %v61
  %v103 = vpack.c.bf16 %v64, %v63
  %v104 = vpack.c.bf16 %v66, %v65
  %v105 = vpack.c.bf16 %v68, %v67
  %v106 = vpack.c.bf16 %v70, %v69
  %v107 = vpack.c.bf16 %v72, %v71
  %v108 = vpack.c.bf16 %v74, %v73
  %v109 = vpack.c.bf16 %v76, %v75
  %v110 = vpack.c.bf16 %v78, %v77
  %v111 = vld [vmem:[%s1] sm:$0xf]
  %v112 = vld [vmem:[%s1 + $0x4] sm:$0xf]
  %v113 = vld [vmem:[%s1 + $0x8] sm:$0xf]
  %v114 = vld [vmem:[%s1 + $0xc] sm:$0xf]
  %v115 = vld [vmem:[%s2] sm:$0x1]
  %v117 = vperm.slane %v115, 0
  %v123 = vunpack.c.l.b16 %v111
  %v124 = vunpack.c.l.b16 %v112
  %v125 = vunpack.c.l.b16 %v113
  %v126 = vunpack.c.l.b16 %v114
  %v127 = vpack.c.b16 %v124, %v123
  %v128 = vpack.c.b16 %v126, %v125
  %vm131 = vcmask 261120
  %v133 = vsel %vm131, %v79, 0
  %v136 = vsel %vm131, %v80, 0
  %v139 = vsel %vm131, %v81, 0
  %v142 = vsel %vm131, %v82, 0
  %v145 = vsel %vm131, %v83, 0
  %v148 = vsel %vm131, %v84, 0
  %v151 = vsel %vm131, %v85, 0
  %v154 = vsel %vm131, %v86, 0
  %v157 = vsel %vm131, %v87, 0
  %v160 = vsel %vm131, %v88, 0
  %v163 = vsel %vm131, %v89, 0
  %v166 = vsel %vm131, %v90, 0
  %v169 = vsel %vm131, %v91, 0
  %v172 = vsel %vm131, %v92, 0
  %v175 = vsel %vm131, %v93, 0
  %v178 = vsel %vm131, %v94, 0
  %v181 = vsel %vm131, %v95, 0
  %v184 = vsel %vm131, %v96, 0
  %v187 = vsel %vm131, %v97, 0
  %v190 = vsel %vm131, %v98, 0
  %v193 = vsel %vm131, %v99, 0
  %v196 = vsel %vm131, %v100, 0
  %v199 = vsel %vm131, %v101, 0
  %v202 = vsel %vm131, %v102, 0
  %v205 = vsel %vm131, %v103, 0
  %v208 = vsel %vm131, %v104, 0
  %v211 = vsel %vm131, %v105, 0
  %v214 = vsel %vm131, %v106, 0
  %v217 = vsel %vm131, %v107, 0
  %v220 = vsel %vm131, %v108, 0
  %v223 = vsel %vm131, %v109, 0
  %v226 = vsel %vm131, %v110, 0
  %228 = vmatpush.bf16.msra.mxu0 0
  %229 = vmatpush.bf16.msra.mxu0 0
  %230 = vmatpush.bf16.msra.mxu0 0
  %231 = vmatpush.bf16.msra.mxu0 0
  %232 = vmatpush.bf16.msra.mxu0 0
  %233 = vmatpush.bf16.msra.mxu0 0
  %234 = vmatpush.bf16.msra.mxu0 %v128
  %235 = vmatpush.bf16.msra.mxu0 %v127
  %236 = vmatmul.bf16.gmra.mxu0 %v133
  %v237 = vpop.f32.mrf.mxu0
  %v238 = vadd.f32 %v117, %v237
  %v239 = vpop.f32.mrf.mxu0
  %v240 = vadd.f32 %v117, %v239
  %241 = vmatmul.bf16.gmra.mxu0 %v136
  %v242 = vpop.f32.mrf.mxu0
  %v243 = vadd.f32 %v117, %v242
  %v244 = vpop.f32.mrf.mxu0
  %v245 = vadd.f32 %v117, %v244
  %246 = vmatmul.bf16.gmra.mxu0 %v139
  %v247 = vpop.f32.mrf.mxu0
  %v248 = vadd.f32 %v117, %v247
  %v249 = vpop.f32.mrf.mxu0
  %v250 = vadd.f32 %v117, %v249
  %251 = vmatmul.bf16.gmra.mxu0 %v142
  %v252 = vpop.f32.mrf.mxu0
  %v253 = vadd.f32 %v117, %v252
  %v254 = vpop.f32.mrf.mxu0
  %v255 = vadd.f32 %v117, %v254
  %256 = vmatmul.bf16.gmra.mxu0 %v145
  %v257 = vpop.f32.mrf.mxu0
  %v258 = vadd.f32 %v117, %v257
  %v259 = vpop.f32.mrf.mxu0
  %v260 = vadd.f32 %v117, %v259
  %261 = vmatmul.bf16.gmra.mxu0 %v148
  %v262 = vpop.f32.mrf.mxu0
  %v263 = vadd.f32 %v117, %v262
  %v264 = vpop.f32.mrf.mxu0
  %v265 = vadd.f32 %v117, %v264
  %266 = vmatmul.bf16.gmra.mxu0 %v151
  %v267 = vpop.f32.mrf.mxu0
  %v268 = vadd.f32 %v117, %v267
  %v269 = vpop.f32.mrf.mxu0
  %v270 = vadd.f32 %v117, %v269
  %271 = vmatmul.bf16.gmra.mxu0 %v154
  %v272 = vpop.f32.mrf.mxu0
  %v273 = vadd.f32 %v117, %v272
  %v274 = vpop.f32.mrf.mxu0
  %v275 = vadd.f32 %v117, %v274
  %276 = vmatmul.bf16.gmra.mxu0 %v157
  %v277 = vpop.f32.mrf.mxu0
  %v278 = vadd.f32 %v117, %v277
  %v279 = vpop.f32.mrf.mxu0
  %v280 = vadd.f32 %v117, %v279
  %281 = vmatmul.bf16.gmra.mxu0 %v160
  %v282 = vpop.f32.mrf.mxu0
  %v283 = vadd.f32 %v117, %v282
  %v284 = vpop.f32.mrf.mxu0
  %v285 = vadd.f32 %v117, %v284
  %286 = vmatmul.bf16.gmra.mxu0 %v163
  %v287 = vpop.f32.mrf.mxu0
  %v288 = vadd.f32 %v117, %v287
  %v289 = vpop.f32.mrf.mxu0
  %v290 = vadd.f32 %v117, %v289
  %291 = vmatmul.bf16.gmra.mxu0 %v166
  %v292 = vpop.f32.mrf.mxu0
  %v293 = vadd.f32 %v117, %v292
  %v294 = vpop.f32.mrf.mxu0
  %v295 = vadd.f32 %v117, %v294
  %296 = vmatmul.bf16.gmra.mxu0 %v169
  %v297 = vpop.f32.mrf.mxu0
  %v298 = vadd.f32 %v117, %v297
  %v299 = vpop.f32.mrf.mxu0
  %v300 = vadd.f32 %v117, %v299
  %301 = vmatmul.bf16.gmra.mxu0 %v172
  %v302 = vpop.f32.mrf.mxu0
  %v303 = vadd.f32 %v117, %v302
  %v304 = vpop.f32.mrf.mxu0
  %v305 = vadd.f32 %v117, %v304
  %306 = vmatmul.bf16.gmra.mxu0 %v175
  %v307 = vpop.f32.mrf.mxu0
  %v308 = vadd.f32 %v117, %v307
  %v309 = vpop.f32.mrf.mxu0
  %v310 = vadd.f32 %v117, %v309
  %311 = vmatmul.bf16.gmra.mxu0 %v178
  %v312 = vpop.f32.mrf.mxu0
  %v313 = vadd.f32 %v117, %v312
  %v314 = vpop.f32.mrf.mxu0
  %v315 = vadd.f32 %v117, %v314
  %316 = vmatmul.bf16.gmra.mxu0 %v181
  %v317 = vpop.f32.mrf.mxu0
  %v318 = vadd.f32 %v117, %v317
  %v319 = vpop.f32.mrf.mxu0
  %v320 = vadd.f32 %v117, %v319
  %321 = vmatmul.bf16.gmra.mxu0 %v184
  %v322 = vpop.f32.mrf.mxu0
  %v323 = vadd.f32 %v117, %v322
  %v324 = vpop.f32.mrf.mxu0
  %v325 = vadd.f32 %v117, %v324
  %326 = vmatmul.bf16.gmra.mxu0 %v187
  %v327 = vpop.f32.mrf.mxu0
  %v328 = vadd.f32 %v117, %v327
  %v329 = vpop.f32.mrf.mxu0
  %v330 = vadd.f32 %v117, %v329
  %331 = vmatmul.bf16.gmra.mxu0 %v190
  %v332 = vpop.f32.mrf.mxu0
  %v333 = vadd.f32 %v117, %v332
  %v334 = vpop.f32.mrf.mxu0
  %v335 = vadd.f32 %v117, %v334
  %336 = vmatmul.bf16.gmra.mxu0 %v193
  %v337 = vpop.f32.mrf.mxu0
  %v338 = vadd.f32 %v117, %v337
  %v339 = vpop.f32.mrf.mxu0
  %v340 = vadd.f32 %v117, %v339
  %341 = vmatmul.bf16.gmra.mxu0 %v196
  %v342 = vpop.f32.mrf.mxu0
  %v343 = vadd.f32 %v117, %v342
  %v344 = vpop.f32.mrf.mxu0
  %v345 = vadd.f32 %v117, %v344
  %346 = vmatmul.bf16.gmra.mxu0 %v199
  %v347 = vpop.f32.mrf.mxu0
  %v348 = vadd.f32 %v117, %v347
  %v349 = vpop.f32.mrf.mxu0
  %v350 = vadd.f32 %v117, %v349
  %351 = vmatmul.bf16.gmra.mxu0 %v202
  %v352 = vpop.f32.mrf.mxu0
  %v353 = vadd.f32 %v117, %v352
  %v354 = vpop.f32.mrf.mxu0
  %v355 = vadd.f32 %v117, %v354
  %356 = vmatmul.bf16.gmra.mxu0 %v205
  %v357 = vpop.f32.mrf.mxu0
  %v358 = vadd.f32 %v117, %v357
  %v359 = vpop.f32.mrf.mxu0
  %v360 = vadd.f32 %v117, %v359
  %361 = vmatmul.bf16.gmra.mxu0 %v208
  %v362 = vpop.f32.mrf.mxu0
  %v363 = vadd.f32 %v117, %v362
  %v364 = vpop.f32.mrf.mxu0
  %v365 = vadd.f32 %v117, %v364
  %366 = vmatmul.bf16.gmra.mxu0 %v211
  %v367 = vpop.f32.mrf.mxu0
  %v368 = vadd.f32 %v117, %v367
  %v369 = vpop.f32.mrf.mxu0
  %v370 = vadd.f32 %v117, %v369
  %371 = vmatmul.bf16.gmra.mxu0 %v214
  %v372 = vpop.f32.mrf.mxu0
  %v373 = vadd.f32 %v117, %v372
  %v374 = vpop.f32.mrf.mxu0
  %v375 = vadd.f32 %v117, %v374
  %376 = vmatmul.bf16.gmra.mxu0 %v217
  %v377 = vpop.f32.mrf.mxu0
  %v378 = vadd.f32 %v117, %v377
  %v379 = vpop.f32.mrf.mxu0
  %v380 = vadd.f32 %v117, %v379
  %381 = vmatmul.bf16.gmra.mxu0 %v220
  %v382 = vpop.f32.mrf.mxu0
  %v383 = vadd.f32 %v117, %v382
  %v384 = vpop.f32.mrf.mxu0
  %v385 = vadd.f32 %v117, %v384
  %386 = vmatmul.bf16.gmra.mxu0 %v223
  %v387 = vpop.f32.mrf.mxu0
  %v388 = vadd.f32 %v117, %v387
  %v389 = vpop.f32.mrf.mxu0
  %v390 = vadd.f32 %v117, %v389
  %391 = vmatmul.bf16.gmra.mxu0 %v226
  %v392 = vpop.f32.mrf.mxu0
  %v393 = vadd.f32 %v117, %v392
  %v394 = vpop.f32.mrf.mxu0
  %v395 = vadd.f32 %v117, %v394
  %396 = vdwg.mxu0
  %v397 = vpack.c.bf16 %v238, %v238
  %v398 = vpack.c.bf16 %v240, %v240
  %v399 = vpack.c.bf16 %v243, %v243
  %v400 = vpack.c.bf16 %v245, %v245
  %v401 = vpack.c.bf16 %v248, %v248
  %v402 = vpack.c.bf16 %v250, %v250
  %v403 = vpack.c.bf16 %v253, %v253
  %v404 = vpack.c.bf16 %v255, %v255
  %v405 = vpack.c.bf16 %v258, %v258
  %v406 = vpack.c.bf16 %v260, %v260
  %v407 = vpack.c.bf16 %v263, %v263
  %v408 = vpack.c.bf16 %v265, %v265
  %v409 = vpack.c.bf16 %v268, %v268
  %v410 = vpack.c.bf16 %v270, %v270
  %v411 = vpack.c.bf16 %v273, %v273
  %v412 = vpack.c.bf16 %v275, %v275
  %v413 = vpack.c.bf16 %v278, %v278
  %v414 = vpack.c.bf16 %v280, %v280
  %v415 = vpack.c.bf16 %v283, %v283
  %v416 = vpack.c.bf16 %v285, %v285
  %v417 = vpack.c.bf16 %v288, %v288
  %v418 = vpack.c.bf16 %v290, %v290
  %v419 = vpack.c.bf16 %v293, %v293
  %v420 = vpack.c.bf16 %v295, %v295
  %v421 = vpack.c.bf16 %v298, %v298
  %v422 = vpack.c.bf16 %v300, %v300
  %v423 = vpack.c.bf16 %v303, %v303
  %v424 = vpack.c.bf16 %v305, %v305
  %v425 = vpack.c.bf16 %v308, %v308
  %v426 = vpack.c.bf16 %v310, %v310
  %v427 = vpack.c.bf16 %v313, %v313
  %v428 = vpack.c.bf16 %v315, %v315
  %v429 = vpack.c.bf16 %v318, %v318
  %v430 = vpack.c.bf16 %v320, %v320
  %v431 = vpack.c.bf16 %v323, %v323
  %v432 = vpack.c.bf16 %v325, %v325
  %v433 = vpack.c.bf16 %v328, %v328
  %v434 = vpack.c.bf16 %v330, %v330
  %v435 = vpack.c.bf16 %v333, %v333
  %v436 = vpack.c.bf16 %v335, %v335
  %v437 = vpack.c.bf16 %v338, %v338
  %v438 = vpack.c.bf16 %v340, %v340
  %v439 = vpack.c.bf16 %v343, %v343
  %v440 = vpack.c.bf16 %v345, %v345
  %v441 = vpack.c.bf16 %v348, %v348
  %v442 = vpack.c.bf16 %v350, %v350
  %v443 = vpack.c.bf16 %v353, %v353
  %v444 = vpack.c.bf16 %v355, %v355
  %v445 = vpack.c.bf16 %v358, %v358
  %v446 = vpack.c.bf16 %v360, %v360
  %v447 = vpack.c.bf16 %v363, %v363
  %v448 = vpack.c.bf16 %v365, %v365
  %v449 = vpack.c.bf16 %v368, %v368
  %v450 = vpack.c.bf16 %v370, %v370
  %v451 = vpack.c.bf16 %v373, %v373
  %v452 = vpack.c.bf16 %v375, %v375
  %v453 = vpack.c.bf16 %v378, %v378
  %v454 = vpack.c.bf16 %v380, %v380
  %v455 = vpack.c.bf16 %v383, %v383
  %v456 = vpack.c.bf16 %v385, %v385
  %v457 = vpack.c.bf16 %v388, %v388
  %v458 = vpack.c.bf16 %v390, %v390
  %v459 = vpack.c.bf16 %v393, %v393
  %v460 = vpack.c.bf16 %v395, %v395
  %vm461 = vcmask 257024
  %462 = vst.msk [vmem:[%s3] sm:$0xf] %vm461, %v397
  %463 = vst.msk [vmem:[%s3 + $0x4] sm:$0xf] %vm461, %v398
  %464 = vst.msk [vmem:[%s3 + $0x8] sm:$0xf] %vm461, %v399
  %465 = vst.msk [vmem:[%s3 + $0xc] sm:$0xf] %vm461, %v400
  %466 = vst.msk [vmem:[%s3 + $0x10] sm:$0xf] %vm461, %v401
  %467 = vst.msk [vmem:[%s3 + $0x14] sm:$0xf] %vm461, %v402
  %468 = vst.msk [vmem:[%s3 + $0x18] sm:$0xf] %vm461, %v403
  %469 = vst.msk [vmem:[%s3 + $0x1c] sm:$0xf] %vm461, %v404
  %470 = vst.msk [vmem:[%s3 + $0x20] sm:$0xf] %vm461, %v405
  %471 = vst.msk [vmem:[%s3 + $0x24] sm:$0xf] %vm461, %v406
  %472 = vst.msk [vmem:[%s3 + $0x28] sm:$0xf] %vm461, %v407
  %473 = vst.msk [vmem:[%s3 + $0x2c] sm:$0xf] %vm461, %v408
  %474 = vst.msk [vmem:[%s3 + $0x30] sm:$0xf] %vm461, %v409
  %475 = vst.msk [vmem:[%s3 + $0x34] sm:$0xf] %vm461, %v410
  %476 = vst.msk [vmem:[%s3 + $0x38] sm:$0xf] %vm461, %v411
  %477 = vst.msk [vmem:[%s3 + $0x3c] sm:$0xf] %vm461, %v412
  %478 = vst.msk [vmem:[%s3 + $0x40] sm:$0xf] %vm461, %v413
  %479 = vst.msk [vmem:[%s3 + $0x44] sm:$0xf] %vm461, %v414
  %480 = vst.msk [vmem:[%s3 + $0x48] sm:$0xf] %vm461, %v415
  %481 = vst.msk [vmem:[%s3 + $0x4c] sm:$0xf] %vm461, %v416
  %482 = vst.msk [vmem:[%s3 + $0x50] sm:$0xf] %vm461, %v417
  %483 = vst.msk [vmem:[%s3 + $0x54] sm:$0xf] %vm461, %v418
  %484 = vst.msk [vmem:[%s3 + $0x58] sm:$0xf] %vm461, %v419
  %485 = vst.msk [vmem:[%s3 + $0x5c] sm:$0xf] %vm461, %v420
  %486 = vst.msk [vmem:[%s3 + $0x60] sm:$0xf] %vm461, %v421
  %487 = vst.msk [vmem:[%s3 + $0x64] sm:$0xf] %vm461, %v422
  %488 = vst.msk [vmem:[%s3 + $0x68] sm:$0xf] %vm461, %v423
  %489 = vst.msk [vmem:[%s3 + $0x6c] sm:$0xf] %vm461, %v424
  %490 = vst.msk [vmem:[%s3 + $0x70] sm:$0xf] %vm461, %v425
  %491 = vst.msk [vmem:[%s3 + $0x74] sm:$0xf] %vm461, %v426
  %492 = vst.msk [vmem:[%s3 + $0x78] sm:$0xf] %vm461, %v427
  %493 = vst.msk [vmem:[%s3 + $0x7c] sm:$0xf] %vm461, %v428
  %494 = vst.msk [vmem:[%s3 + $0x80] sm:$0xf] %vm461, %v429
  %495 = vst.msk [vmem:[%s3 + $0x84] sm:$0xf] %vm461, %v430
  %496 = vst.msk [vmem:[%s3 + $0x88] sm:$0xf] %vm461, %v431
  %497 = vst.msk [vmem:[%s3 + $0x8c] sm:$0xf] %vm461, %v432
  %498 = vst.msk [vmem:[%s3 + $0x90] sm:$0xf] %vm461, %v433
  %499 = vst.msk [vmem:[%s3 + $0x94] sm:$0xf] %vm461, %v434
  %500 = vst.msk [vmem:[%s3 + $0x98] sm:$0xf] %vm461, %v435
  %501 = vst.msk [vmem:[%s3 + $0x9c] sm:$0xf] %vm461, %v436
  %502 = vst.msk [vmem:[%s3 + $0xa0] sm:$0xf] %vm461, %v437
  %503 = vst.msk [vmem:[%s3 + $0xa4] sm:$0xf] %vm461, %v438
  %504 = vst.msk [vmem:[%s3 + $0xa8] sm:$0xf] %vm461, %v439
  %505 = vst.msk [vmem:[%s3 + $0xac] sm:$0xf] %vm461, %v440
  %506 = vst.msk [vmem:[%s3 + $0xb0] sm:$0xf] %vm461, %v441
  %507 = vst.msk [vmem:[%s3 + $0xb4] sm:$0xf] %vm461, %v442
  %508 = vst.msk [vmem:[%s3 + $0xb8] sm:$0xf] %vm461, %v443
  %509 = vst.msk [vmem:[%s3 + $0xbc] sm:$0xf] %vm461, %v444
  %510 = vst.msk [vmem:[%s3 + $0xc0] sm:$0xf] %vm461, %v445
  %511 = vst.msk [vmem:[%s3 + $0xc4] sm:$0xf] %vm461, %v446
  %512 = vst.msk [vmem:[%s3 + $0xc8] sm:$0xf] %vm461, %v447
  %513 = vst.msk [vmem:[%s3 + $0xcc] sm:$0xf] %vm461, %v448
  %514 = vst.msk [vmem:[%s3 + $0xd0] sm:$0xf] %vm461, %v449
  %515 = vst.msk [vmem:[%s3 + $0xd4] sm:$0xf] %vm461, %v450
  %516 = vst.msk [vmem:[%s3 + $0xd8] sm:$0xf] %vm461, %v451
  %517 = vst.msk [vmem:[%s3 + $0xdc] sm:$0xf] %vm461, %v452
  %518 = vst.msk [vmem:[%s3 + $0xe0] sm:$0xf] %vm461, %v453
  %519 = vst.msk [vmem:[%s3 + $0xe4] sm:$0xf] %vm461, %v454
  %520 = vst.msk [vmem:[%s3 + $0xe8] sm:$0xf] %vm461, %v455
  %521 = vst.msk [vmem:[%s3 + $0xec] sm:$0xf] %vm461, %v456
  %522 = vst.msk [vmem:[%s3 + $0xf0] sm:$0xf] %vm461, %v457
  %523 = vst.msk [vmem:[%s3 + $0xf4] sm:$0xf] %vm461, %v458
  %524 = vst.msk [vmem:[%s3 + $0xf8] sm:$0xf] %vm461, %v459
  %525 = vst.msk [vmem:[%s3 + $0xfc] sm:$0xf] %vm461, %v460
  // Predicated region
  $region14: #{_lambda_.4} parent=0 // pred_check
    _
  $region15: #{_lambda_.4} parent=0 // pred_check_branch
    %527 = sbr.rel (0) target = $region17
  $region16: #{_lambda_.4} parent=0 // pred_region
    _
  $region17: #{_lambda_.4} parent=0 // pred_fallthru
    _
  // Predicated region
  $region18: #{_lambda_.4} parent=0 // pred_check
    _
  $region19: #{_lambda_.4} parent=0 // pred_check_branch
    %529 = sbr.rel (0) target = $region21
  $region20: #{_lambda_.4} parent=0 // pred_region
    _
  $region21: #{_lambda_.4} parent=0 // pred_fallthru
    _

// kernel: _lambda_.7
$region0: #{_lambda_.7}
  #allocation0 [shape = 'u32[]', space=smem, size = 0x4, offset = 0x4, fixed_abs, tag = 'smem constant byte address 0x4 - core index']
  #allocation1 [shape = 'u32[72,128]{1,0:T(1,128)}', space=vmem, size = 0x9000, scoped, tag = 'internal scratch']
  #allocation2 [shape = 'bf16[256,32]{1,0:T(8,128)(2,1)}', space=vmem, size = 0x10000, scoped, tag = 'scratch operand']
  %s0 = inlined_call_operand.vmem [shape: bf16[2,256,32], index: 0, kind: input, shape index: {}]
  %s1 = inlined_call_operand.vmem [shape: bf16[2,16,32], index: 1, kind: input, shape index: {}]
  %s2 = inlined_call_operand.vmem [shape: bf16[2,16,32], index: 2, kind: input, shape index: {}]
  %s3 = inlined_call_operand.vmem [shape: bf16[32,32], index: 3, kind: input, shape index: {}]
  %s4 = inlined_call_operand.vmem [shape: f32[1,32], index: 4, kind: input, shape index: {}]
  %s5 = inlined_call_operand.vmem [shape: f32[2,256,32], index: 5, kind: output, shape index: {}]
  %s6 = sld [smem:[#allocation0]]
  $region53: #{_lambda_.7} parent=0
    _
  %s8 = ssub.s32 1, %s6
  %s9 = scalar_select 0, %s8, %s6
  loop: start=0, step=1, limit=4
  $region2: #{_lambda_.7} parent=0 // loop_pre_header
    _
  $region3: #{_lambda_.7} parent=0 // loop_header
    %s11 = sphi 0, %s15
    %p12 = scmp.ge.s32.totalorder %s11, 4
    %s18 = sphi 0, %s30
    %s19 = sphi 0, %s26
    %s20 = sphi 0, %s18
    %s21 = sphi 0, %s19
    %s22 = sphi 0, %s20
    %s23 = sphi 0, %s21
    %s35 = sphi 0, %s37
    %s38 = sphi 0, %s35
    %s39 = sphi 0, %s38
    %s55 = sphi 0, %s39
    %s61 = sphi 0, %s63
    %s64 = sphi 0, %s61
    %s65 = sphi 0, %s64
    %s81 = sphi 0, %s65
    %s87 = sphi 0, %s89
    %s90 = sphi 0, %s87
    %s91 = sphi 0, %s90
    %s107 = sphi 0, %s91
    %s111 = sphi 0, %s111
    %s113 = sphi 0, %s111
    %s114 = sphi 0, %s113
    %s128 = sphi 0, %s114
    %s132 = sphi 0, %s132
    %s134 = sphi 0, %s132
    %s135 = sphi 0, %s134
    %s149 = sphi 0, %s135
    %s157 = sphi 0, %s159
    %s160 = sphi 0, %s157
    %s161 = sphi 0, %s160
    %s177 = sphi 0, %s161
  $region4: #{_lambda_.7} parent=0 // loop_header_branch
    %14 = sbr.rel (%p12) target = $region8
  $region5: #{_lambda_.7} parent=0 // loop_body
    %s16 = ssub.s32 %s11, 1
    %s17 = ssub.s32 %s11, 2
    %s24 = sadd.s32 1, %s19
    %p25 = scmp.ge.s32.totalorder %s24, 1
    %s26 = scalar_select %p25, 0, %s24
    %s27 = sadd.s32 1, %s18
    %s28 = scalar_select %p25, %s27, %s18
    %p29 = scmp.ge.s32.totalorder %s28, 2
    %s30 = scalar_select %p29, 0, %s28
    %s31 = ssub.s32 %s18, %s30
    %s32 = ssub.s32 %s19, %s26
    %s33 = sor.u32 %s31, %s32
    %p34 = scmp.eq.s32.totalorder %s33, 0
    %s36 = sadd.s32 %s35, 1
    %s37 = scalar_select %p34, %s35, %s36
    %p40 = pneg %p34
    %p41 = scmp.eq.s32.totalorder %s11, 1
    %p42 = por %p40, %p41
    %p43 = scmp.ne.s32.totalorder %s35, %s38
    %p44 = scmp.eq.s32.totalorder %s11, 0
    %p45 = por %p43, %p44
    %p46 = scmp.ne.s32.totalorder %s35, %s38
    %p47 = scmp.eq.s32.totalorder %s16, 1
    %p48 = por %p46, %p47
    %p49 = scmp.ne.s32.totalorder %s38, %s39
    %p50 = scmp.eq.s32.totalorder %s16, 0
    %p51 = por %p49, %p50
    %p52 = scmp.ne.s32.totalorder %s38, %s39
    %p53 = scmp.eq.s32.totalorder %s17, 1
    %p54 = por %p52, %p53
    %p56 = scmp.ne.s32.totalorder %s39, %s55
    %p57 = scmp.eq.s32.totalorder %s17, 0
    %p58 = por %p56, %p57
    %s59 = ssub.s32 %s18, %s30
    %p60 = scmp.eq.s32.totalorder %s59, 0
    %s62 = sadd.s32 %s61, 1
    %s63 = scalar_select %p60, %s61, %s62
    %p66 = pneg %p60
    %p67 = scmp.eq.s32.totalorder %s11, 1
    %p68 = por %p66, %p67
    %p69 = scmp.ne.s32.totalorder %s61, %s64
    %p70 = scmp.eq.s32.totalorder %s11, 0
    %p71 = por %p69, %p70
    %p72 = scmp.ne.s32.totalorder %s61, %s64
    %p73 = scmp.eq.s32.totalorder %s16, 1
    %p74 = por %p72, %p73
    %p75 = scmp.ne.s32.totalorder %s64, %s65
    %p76 = scmp.eq.s32.totalorder %s16, 0
    %p77 = por %p75, %p76
    %p78 = scmp.ne.s32.totalorder %s64, %s65
    %p79 = scmp.eq.s32.totalorder %s17, 1
    %p80 = por %p78, %p79
    %p82 = scmp.ne.s32.totalorder %s65, %s81
    %p83 = scmp.eq.s32.totalorder %s17, 0
    %p84 = por %p82, %p83
    %s85 = ssub.s32 %s18, %s30
    %p86 = scmp.eq.s32.totalorder %s85, 0
    %s88 = sadd.s32 %s87, 1
    %s89 = scalar_select %p86, %s87, %s88
    %p92 = pneg %p86
    %p93 = scmp.eq.s32.totalorder %s11, 1
    %p94 = por %p92, %p93
    %p95 = scmp.ne.s32.totalorder %s87, %s90
    %p96 = scmp.eq.s32.totalorder %s11, 0
    %p97 = por %p95, %p96
    %p98 = scmp.ne.s32.totalorder %s87, %s90
    %p99 = scmp.eq.s32.totalorder %s16, 1
    %p100 = por %p98, %p99
    %p101 = scmp.ne.s32.totalorder %s90, %s91
    %p102 = scmp.eq.s32.totalorder %s16, 0
    %p103 = por %p101, %p102
    %p104 = scmp.ne.s32.totalorder %s90, %s91
    %p105 = scmp.eq.s32.totalorder %s17, 1
    %p106 = por %p104, %p105
    %p108 = scmp.ne.s32.totalorder %s91, %s107
    %p109 = scmp.eq.s32.totalorder %s17, 0
    %p110 = por %p108, %p109
    %s112 = sadd.s32 %s111, 1
    %p115 = scmp.eq.s32.totalorder %s11, 1
    %p116 = scmp.ne.s32.totalorder %s111, %s113
    %p117 = scmp.eq.s32.totalorder %s11, 0
    %p118 = por %p116, %p117
    %p119 = scmp.ne.s32.totalorder %s111, %s113
    %p120 = scmp.eq.s32.totalorder %s16, 1
    %p121 = por %p119, %p120
    %p122 = scmp.ne.s32.totalorder %s113, %s114
    %p123 = scmp.eq.s32.totalorder %s16, 0
    %p124 = por %p122, %p123
    %p125 = scmp.ne.s32.totalorder %s113, %s114
    %p126 = scmp.eq.s32.totalorder %s17, 1
    %p127 = por %p125, %p126
    %p129 = scmp.ne.s32.totalorder %s114, %s128
    %p130 = scmp.eq.s32.totalorder %s17, 0
    %p131 = por %p129, %p130
    %s133 = sadd.s32 %s132, 1
    %p136 = scmp.eq.s32.totalorder %s11, 1
    %p137 = scmp.ne.s32.totalorder %s132, %s134
    %p138 = scmp.eq.s32.totalorder %s11, 0
    %p139 = por %p137, %p138
    %p140 = scmp.ne.s32.totalorder %s132, %s134
    %p141 = scmp.eq.s32.totalorder %s16, 1
    %p142 = por %p140, %p141
    %p143 = scmp.ne.s32.totalorder %s134, %s135
    %p144 = scmp.eq.s32.totalorder %s16, 0
    %p145 = por %p143, %p144
    %p146 = scmp.ne.s32.totalorder %s134, %s135
    %p147 = scmp.eq.s32.totalorder %s17, 1
    %p148 = por %p146, %p147
    %p150 = scmp.ne.s32.totalorder %s135, %s149
    %p151 = scmp.eq.s32.totalorder %s17, 0
    %p152 = por %p150, %p151
    %s153 = ssub.s32 %s18, %s30
    %s154 = ssub.s32 %s19, %s26
    %s155 = sor.u32 %s153, %s154
    %p156 = scmp.eq.s32.totalorder %s155, 0
    %s158 = sadd.s32 %s157, 1
    %s159 = scalar_select %p156, %s157, %s158
    %p162 = pneg %p156
    %p163 = scmp.eq.s32.totalorder %s11, 1
    %p164 = por %p162, %p163
    %p165 = scmp.ne.s32.totalorder %s157, %s160
    %p166 = scmp.eq.s32.totalorder %s11, 0
    %p167 = por %p165, %p166
    %p168 = scmp.ne.s32.totalorder %s157, %s160
    %p169 = scmp.eq.s32.totalorder %s16, 1
    %p170 = por %p168, %p169
    %p171 = scmp.ne.s32.totalorder %s160, %s161
    %p172 = scmp.eq.s32.totalorder %s16, 0
    %p173 = por %p171, %p172
    %p174 = scmp.ne.s32.totalorder %s160, %s161
    %p175 = scmp.eq.s32.totalorder %s17, 1
    %p176 = por %p174, %p175
    %p178 = scmp.ne.s32.totalorder %s161, %s177
    %p179 = scmp.eq.s32.totalorder %s17, 0
    %p180 = por %p178, %p179
    %p181 = scmp.le.s32.totalorder 1, %s11
    %p182 = scmp.lt.s32.totalorder %s11, 3
    %p183 = pnand %p181, %p182
    %p184 = pneg %p183
    // Predicated region
    $region9: #{_lambda_.7} parent=5 // pred_check
      _
    $region10: #{_lambda_.7} parent=5 // pred_check_branch
      %186 = sbr.rel (%p183) target = $region12
    $region11: #{_lambda_.7} parent=5 // pred_region
      %s187 = ssub.s32 %s11, 1
      // Predicated region
      $region13: #{_lambda_.7} parent=11 // pred_check
        %p188 = pneg %p124
      $region14: #{_lambda_.7} parent=11 // pred_check_branch
        %190 = sbr.rel (%p188) target = $region16
      $region15: #{_lambda_.7} parent=11 // pred_region
        _
      $region16: #{_lambda_.7} parent=11 // pred_fallthru
        _
      // Predicated region
      $region17: #{_lambda_.7} parent=11 // pred_check
        %p191 = pneg %p145
      $region18: #{_lambda_.7} parent=11 // pred_check_branch
        %193 = sbr.rel (%p191) target = $region20
      $region19: #{_lambda_.7} parent=11 // pred_region
        _
      $region20: #{_lambda_.7} parent=11 // pred_fallthru
        _
    $region12: #{_lambda_.7} parent=5 // pred_fallthru
      _
    %p194 = scmp.lt.s32.totalorder %s11, 2
    // Predicated region
    $region21: #{_lambda_.7} parent=5 // pred_check
      %p195 = pneg %p194
    $region22: #{_lambda_.7} parent=5 // pred_check_branch
      %197 = sbr.rel (%p195) target = $region24
    $region23: #{_lambda_.7} parent=5 // pred_region
      // Predicated region
      $region25: #{_lambda_.7} parent=23 // pred_check
        %p198 = pneg %p45
      $region26: #{_lambda_.7} parent=23 // pred_check_branch
        %200 = sbr.rel (%p198) target = $region28
      $region27: #{_lambda_.7} parent=23 // pred_region
        %s201 = smul.u32 32, %s19
        %p202 = scmp.lt.s32.totalorder %s18, 1
        %s203 = scalar_select %p202, %s18, 1
        %p204 = scmp.lt.s32.totalorder %s201, 31
        %s205 = scalar_select %p204, %s201, 31
        %s206 = smul.addr %s203, 32
        %s207 = sadd.s32 %s205, %s206
        %s208 = smul.addr %s207, 4
        %s209 = scalar_lea.vmem %s0, %s208
        %s210 = smul.u32 32, %s19
      $region28: #{_lambda_.7} parent=23 // pred_fallthru
        _
      // Predicated region
      $region29: #{_lambda_.7} parent=23 // pred_check
        %p211 = pneg %p71
      $region30: #{_lambda_.7} parent=23 // pred_check_branch
        %213 = sbr.rel (%p211) target = $region32
      $region31: #{_lambda_.7} parent=23 // pred_region
        %p214 = scmp.lt.s32.totalorder %s18, 1
        %s215 = scalar_select %p214, %s18, 1
        %s216 = smul.addr %s215, 2
        %s217 = smul.addr %s216, 4
        %s218 = scalar_lea.vmem %s1, %s217
      $region32: #{_lambda_.7} parent=23 // pred_fallthru
        _
      // Predicated region
      $region33: #{_lambda_.7} parent=23 // pred_check
        %p219 = pneg %p97
      $region34: #{_lambda_.7} parent=23 // pred_check_branch
        %221 = sbr.rel (%p219) target = $region36
      $region35: #{_lambda_.7} parent=23 // pred_region
        %p222 = scmp.lt.s32.totalorder %s18, 1
        %s223 = scalar_select %p222, %s18, 1
        %s224 = smul.addr %s223, 2
        %s225 = smul.addr %s224, 4
        %s226 = scalar_lea.vmem %s2, %s225
      $region36: #{_lambda_.7} parent=23 // pred_fallthru
        _
    $region24: #{_lambda_.7} parent=5 // pred_fallthru
      _
    %p227 = scmp.le.s32.totalorder 1, %s11
    %p228 = scmp.lt.s32.totalorder %s11, 3
    %p229 = pnand %p227, %p228
    %p230 = pneg %p229
    // Predicated region
    $region37: #{_lambda_.7} parent=5 // pred_check
      _
    $region38: #{_lambda_.7} parent=5 // pred_check_branch
      %232 = sbr.rel (%p229) target = $region40
    $region39: #{_lambda_.7} parent=5 // pred_region
      %s233 = ssub.s32 %s11, 1
      %s234 = smul.u32 32, %s21
      %p235 = scmp.lt.s32.totalorder %s20, 1
      %s236 = scalar_select %p235, %s20, 1
      %p237 = scmp.lt.s32.totalorder %s234, 31
      %s238 = scalar_select %p237, %s234, 31
      %s239 = smul.addr %s236, 32
      %s240 = sadd.s32 %s238, %s239
      %s241 = smul.addr %s240, 4
      %s242 = scalar_lea.vmem %s0, %s241
      %p243 = pneg %p51
      %p244 = pneg %p48
      %p245 = scmp.lt.s32.totalorder %s20, 1
      %s246 = scalar_select %p245, %s20, 1
      %s247 = smul.addr %s246, 2
      %s248 = smul.addr %s247, 4
      %s249 = scalar_lea.vmem %s1, %s248
      %p250 = pneg %p77
      %p251 = pneg %p74
      %p252 = scmp.lt.s32.totalorder %s20, 1
      %s253 = scalar_select %p252, %s20, 1
      %s254 = smul.addr %s253, 2
      %s255 = smul.addr %s254, 4
      %s256 = scalar_lea.vmem %s2, %s255
      %p257 = pneg %p103
      %p258 = pneg %p100
      %p259 = pneg %p124
      %p260 = pneg %p121
      %p261 = pneg %p145
      %p262 = pneg %p142
      %p263 = pneg %p173
      %p264 = pneg %p170
      %s265 = smul.u32 32, %s21
      %p266 = scmp.lt.s32.totalorder %s20, 1
      %s267 = scalar_select %p266, %s20, 1
      %p268 = scmp.lt.s32.totalorder %s265, 31
      %s269 = scalar_select %p268, %s265, 31
      %s270 = smul.addr %s267, 32
      %s271 = sadd.s32 %s269, %s270
      %s272 = smul.addr %s271, 8
      %s273 = scalar_lea.vmem %s5, %s272
      %s274 = smul.u32 32, %s21
      %p275 = scmp.lt.s32.totalorder %s20, 1
      %s276 = scalar_select %p275, %s20, 1
      %p277 = scmp.lt.s32.totalorder %s274, 31
      %s278 = scalar_select %p277, %s274, 31
      %s279 = smul.addr %s276, 32
      %s280 = sadd.s32 %s278, %s279
      %s281 = smul.addr %s280, 4
      %s282 = scalar_lea.vmem %s0, %s281
      %s283 = smul.u32 32, %s21
      %p284 = scmp.lt.s32.totalorder %s20, 1
      %s285 = scalar_select %p284, %s20, 1
      %s286 = smul.addr %s285, 2
      %s287 = smul.addr %s286, 4
      %s288 = scalar_lea.vmem %s1, %s287
      %p289 = scmp.lt.s32.totalorder %s20, 1
      %s290 = scalar_select %p289, %s20, 1
      %s291 = smul.addr %s290, 2
      %s292 = smul.addr %s291, 4
      %s293 = scalar_lea.vmem %s2, %s292
      %s294 = smul.u32 32, %s21
      %p295 = scmp.lt.s32.totalorder %s20, 1
      %s296 = scalar_select %p295, %s20, 1
      %p297 = scmp.lt.s32.totalorder %s294, 31
      %s298 = scalar_select %p297, %s294, 31
      %s299 = smul.addr %s296, 32
      %s300 = sadd.s32 %s298, %s299
      %s301 = smul.addr %s300, 8
      %s302 = scalar_lea.vmem %s5, %s301
      %s303 = smul.u32 32, %s21
      %v305 = vld [vmem:[%s282] sm:$0xf]
      %v306 = vld [vmem:[%s282 + $0x4] sm:$0xf]
      %v307 = vld [vmem:[%s282 + $0x8] sm:$0xf]
      %v308 = vld [vmem:[%s282 + $0xc] sm:$0xf]
      %v309 = vld [vmem:[%s282 + $0x10] sm:$0xf]
      %v310 = vld [vmem:[%s282 + $0x14] sm:$0xf]
      %v311 = vld [vmem:[%s282 + $0x18] sm:$0xf]
      %v312 = vld [vmem:[%s282 + $0x1c] sm:$0xf]
      %v313 = vld [vmem:[%s282 + $0x20] sm:$0xf]
      %v314 = vld [vmem:[%s282 + $0x24] sm:$0xf]
      %v315 = vld [vmem:[%s282 + $0x28] sm:$0xf]
      %v316 = vld [vmem:[%s282 + $0x2c] sm:$0xf]
      %v317 = vld [vmem:[%s282 + $0x30] sm:$0xf]
      %v318 = vld [vmem:[%s282 + $0x34] sm:$0xf]
      %v319 = vld [vmem:[%s282 + $0x38] sm:$0xf]
      %v320 = vld [vmem:[%s282 + $0x3c] sm:$0xf]
      %v321 = vld [vmem:[%s282 + $0x40] sm:$0xf]
      %v322 = vld [vmem:[%s282 + $0x44] sm:$0xf]
      %v323 = vld [vmem:[%s282 + $0x48] sm:$0xf]
      %v324 = vld [vmem:[%s282 + $0x4c] sm:$0xf]
      %v325 = vld [vmem:[%s282 + $0x50] sm:$0xf]
      %v326 = vld [vmem:[%s282 + $0x54] sm:$0xf]
      %v327 = vld [vmem:[%s282 + $0x58] sm:$0xf]
      %v328 = vld [vmem:[%s282 + $0x5c] sm:$0xf]
      %v329 = vld [vmem:[%s282 + $0x60] sm:$0xf]
      %v330 = vld [vmem:[%s282 + $0x64] sm:$0xf]
      %v331 = vld [vmem:[%s282 + $0x68] sm:$0xf]
      %v332 = vld [vmem:[%s282 + $0x6c] sm:$0xf]
      %v333 = vld [vmem:[%s282 + $0x70] sm:$0xf]
      %v334 = vld [vmem:[%s282 + $0x74] sm:$0xf]
      %v335 = vld [vmem:[%s282 + $0x78] sm:$0xf]
      %v336 = vld [vmem:[%s282 + $0x7c] sm:$0xf]
      %v337 = vld [vmem:[%s288] sm:$0xf]
      %v338 = vld [vmem:[%s288 + $0x4] sm:$0xf]
      %v339 = vld [vmem:[%s293] sm:$0xf]
      %v340 = vld [vmem:[%s293 + $0x4] sm:$0xf]
      %v373 = vunpack.c.l.b16 %v305
      %v374 = vunpack.c.l.b16 %v306
      %v375 = vunpack.c.l.b16 %v307
      %v376 = vunpack.c.l.b16 %v308
      %v377 = vunpack.c.l.b16 %v309
      %v378 = vunpack.c.l.b16 %v310
      %v379 = vunpack.c.l.b16 %v311
      %v380 = vunpack.c.l.b16 %v312
      %v381 = vunpack.c.l.b16 %v313
      %v382 = vunpack.c.l.b16 %v314
      %v383 = vunpack.c.l.b16 %v315
      %v384 = vunpack.c.l.b16 %v316
      %v385 = vunpack.c.l.b16 %v317
      %v386 = vunpack.c.l.b16 %v318
      %v387 = vunpack.c.l.b16 %v319
      %v388 = vunpack.c.l.b16 %v320
      %v389 = vunpack.c.l.b16 %v321
      %v390 = vunpack.c.l.b16 %v322
      %v391 = vunpack.c.l.b16 %v323
      %v392 = vunpack.c.l.b16 %v324
      %v393 = vunpack.c.l.b16 %v325
      %v394 = vunpack.c.l.b16 %v326
      %v395 = vunpack.c.l.b16 %v327
      %v396 = vunpack.c.l.b16 %v328
      %v397 = vunpack.c.l.b16 %v329
      %v398 = vunpack.c.l.b16 %v330
      %v399 = vunpack.c.l.b16 %v331
      %v400 = vunpack.c.l.b16 %v332
      %v401 = vunpack.c.l.b16 %v333
      %v402 = vunpack.c.l.b16 %v334
      %v403 = vunpack.c.l.b16 %v335
      %v404 = vunpack.c.l.b16 %v336
      %v405 = vpack.c.b16 %v374, %v373
      %v406 = vpack.c.b16 %v376, %v375
      %v407 = vpack.c.b16 %v378, %v377
      %v408 = vpack.c.b16 %v380, %v379
      %v409 = vpack.c.b16 %v382, %v381
      %v410 = vpack.c.b16 %v384, %v383
      %v411 = vpack.c.b16 %v386, %v385
      %v412 = vpack.c.b16 %v388, %v387
      %v413 = vpack.c.b16 %v390, %v389
      %v414 = vpack.c.b16 %v392, %v391
      %v415 = vpack.c.b16 %v394, %v393
      %v416 = vpack.c.b16 %v396, %v395
      %v417 = vpack.c.b16 %v398, %v397
      %v418 = vpack.c.b16 %v400, %v399
      %v419 = vpack.c.b16 %v402, %v401
      %v420 = vpack.c.b16 %v404, %v403
      %v423 = vunpack.c.l.b16 %v337
      %v424 = vunpack.c.l.b16 %v338
      %v425 = vpack.c.b16 %v424, %v423
      %vm426 = vcmask 31744
      %v428 = vsel %vm426, %v405, 0
      %v431 = vsel %vm426, %v406, 0
      %v434 = vsel %vm426, %v407, 0
      %v437 = vsel %vm426, %v408, 0
      %v440 = vsel %vm426, %v409, 0
      %v443 = vsel %vm426, %v410, 0
      %v446 = vsel %vm426, %v411, 0
      %v449 = vsel %vm426, %v412, 0
      %v452 = vsel %vm426, %v413, 0
      %v455 = vsel %vm426, %v414, 0
      %v458 = vsel %vm426, %v415, 0
      %v461 = vsel %vm426, %v416, 0
      %v464 = vsel %vm426, %v417, 0
      %v467 = vsel %vm426, %v418, 0
      %v470 = vsel %vm426, %v419, 0
      %v473 = vsel %vm426, %v420, 0
      %v476 = vsel %vm426, %v425, 0
      %478 = vmatpush.bf16.xpose.msra.mxu0 0
      %479 = vmatpush.bf16.xpose.msra.mxu0 0
      %480 = vmatpush.bf16.xpose.msra.mxu0 0
      %481 = vmatpush.bf16.xpose.msra.mxu0 0
      %482 = vmatpush.bf16.xpose.msra.mxu0 0
      %483 = vmatpush.bf16.xpose.msra.mxu0 0
      %484 = vmatpush.bf16.xpose.msra.mxu0 0
      %485 = vmatpush.bf16.xpose.msra.mxu0 %v476
      %486 = vmatmul.bf16.gmra.mxu0 %v428
      %v487 = vpop.f32.mrf.mxu0
      %v488 = vadd.f32 0.0, %v487
      %v489 = vpop.f32.mrf.mxu0
      %v490 = vadd.f32 0.0, %v489
      %491 = vmatmul.bf16.gmra.mxu0 %v431
      %v492 = vpop.f32.mrf.mxu0
      %v493 = vadd.f32 0.0, %v492
      %v494 = vpop.f32.mrf.mxu0
      %v495 = vadd.f32 0.0, %v494
      %496 = vmatmul.bf16.gmra.mxu0 %v434
      %v497 = vpop.f32.mrf.mxu0
      %v498 = vadd.f32 0.0, %v497
      %v499 = vpop.f32.mrf.mxu0
      %v500 = vadd.f32 0.0, %v499
      %501 = vmatmul.bf16.gmra.mxu0 %v437
      %v502 = vpop.f32.mrf.mxu0
      %v503 = vadd.f32 0.0, %v502
      %v504 = vpop.f32.mrf.mxu0
      %v505 = vadd.f32 0.0, %v504
      %506 = vmatmul.bf16.gmra.mxu0 %v440
      %v507 = vpop.f32.mrf.mxu0
      %v508 = vadd.f32 0.0, %v507
      %v509 = vpop.f32.mrf.mxu0
      %v510 = vadd.f32 0.0, %v509
      %511 = vmatmul.bf16.gmra.mxu0 %v443
      %v512 = vpop.f32.mrf.mxu0
      %v513 = vadd.f32 0.0, %v512
      %v514 = vpop.f32.mrf.mxu0
      %v515 = vadd.f32 0.0, %v514
      %516 = vmatmul.bf16.gmra.mxu0 %v446
      %v517 = vpop.f32.mrf.mxu0
      %v518 = vadd.f32 0.0, %v517
      %v519 = vpop.f32.mrf.mxu0
      %v520 = vadd.f32 0.0, %v519
      %521 = vmatmul.bf16.gmra.mxu0 %v449
      %v522 = vpop.f32.mrf.mxu0
      %v523 = vadd.f32 0.0, %v522
      %v524 = vpop.f32.mrf.mxu0
      %v525 = vadd.f32 0.0, %v524
      %526 = vmatmul.bf16.gmra.mxu0 %v452
      %v527 = vpop.f32.mrf.mxu0
      %v528 = vadd.f32 0.0, %v527
      %v529 = vpop.f32.mrf.mxu0
      %v530 = vadd.f32 0.0, %v529
      %531 = vmatmul.bf16.gmra.mxu0 %v455
      %v532 = vpop.f32.mrf.mxu0
      %v533 = vadd.f32 0.0, %v532
      %v534 = vpop.f32.mrf.mxu0
      %v535 = vadd.f32 0.0, %v534
      %536 = vmatmul.bf16.gmra.mxu0 %v458
      %v537 = vpop.f32.mrf.mxu0
      %v538 = vadd.f32 0.0, %v537
      %v539 = vpop.f32.mrf.mxu0
      %v540 = vadd.f32 0.0, %v539
      %541 = vmatmul.bf16.gmra.mxu0 %v461
      %v542 = vpop.f32.mrf.mxu0
      %v543 = vadd.f32 0.0, %v542
      %v544 = vpop.f32.mrf.mxu0
      %v545 = vadd.f32 0.0, %v544
      %546 = vmatmul.bf16.gmra.mxu0 %v464
      %v547 = vpop.f32.mrf.mxu0
      %v548 = vadd.f32 0.0, %v547
      %v549 = vpop.f32.mrf.mxu0
      %v550 = vadd.f32 0.0, %v549
      %551 = vmatmul.bf16.gmra.mxu0 %v467
      %v552 = vpop.f32.mrf.mxu0
      %v553 = vadd.f32 0.0, %v552
      %v554 = vpop.f32.mrf.mxu0
      %v555 = vadd.f32 0.0, %v554
      %556 = vmatmul.bf16.gmra.mxu0 %v470
      %v557 = vpop.f32.mrf.mxu0
      %v558 = vadd.f32 0.0, %v557
      %v559 = vpop.f32.mrf.mxu0
      %v560 = vadd.f32 0.0, %v559
      %561 = vmatmul.bf16.gmra.mxu0 %v473
      %v562 = vpop.f32.mrf.mxu0
      %v563 = vadd.f32 0.0, %v562
      %v564 = vpop.f32.mrf.mxu0
      %v565 = vadd.f32 0.0, %v564
      %566 = vdwg.mxu0
      %vm567 = vcmask 130048
      %v568 = vsel %vm567, %v488, -inf
      %569 = vmax.xlane.f32.xlu0 %v568
      %v570 = vpop.xlane.xlu0 %569
      %v571 = vsel %vm567, %v490, -inf
      %572 = vmax.xlane.f32.xlu0 %v571
      %v573 = vpop.xlane.xlu0 %572
      %v574 = vsel %vm567, %v493, -inf
      %575 = vmax.xlane.f32.xlu0 %v574
      %v576 = vpop.xlane.xlu0 %575
      %v577 = vsel %vm567, %v495, -inf
      %578 = vmax.xlane.f32.xlu0 %v577
      %v579 = vpop.xlane.xlu0 %578
      %v580 = vsel %vm567, %v498, -inf
      %581 = vmax.xlane.f32.xlu0 %v580
      %v582 = vpop.xlane.xlu0 %581
      %v583 = vsel %vm567, %v500, -inf
      %584 = vmax.xlane.f32.xlu0 %v583
      %v585 = vpop.xlane.xlu0 %584
      %v586 = vsel %vm567, %v503, -inf
      %587 = vmax.xlane.f32.xlu0 %v586
      %v588 = vpop.xlane.xlu0 %587
      %v589 = vsel %vm567, %v505, -inf
      %590 = vmax.xlane.f32.xlu0 %v589
      %v591 = vpop.xlane.xlu0 %590
      %v592 = vsel %vm567, %v508, -inf
      %593 = vmax.xlane.f32.xlu0 %v592
      %v594 = vpop.xlane.xlu0 %593
      %v595 = vsel %vm567, %v510, -inf
      %596 = vmax.xlane.f32.xlu0 %v595
      %v597 = vpop.xlane.xlu0 %596
      %v598 = vsel %vm567, %v513, -inf
      %599 = vmax.xlane.f32.xlu0 %v598
      %v600 = vpop.xlane.xlu0 %599
      %v601 = vsel %vm567, %v515, -inf
      %602 = vmax.xlane.f32.xlu0 %v601
      %v603 = vpop.xlane.xlu0 %602
      %v604 = vsel %vm567, %v518, -inf
      %605 = vmax.xlane.f32.xlu0 %v604
      %v606 = vpop.xlane.xlu0 %605
      %v607 = vsel %vm567, %v520, -inf
      %608 = vmax.xlane.f32.xlu0 %v607
      %v609 = vpop.xlane.xlu0 %608
      %v610 = vsel %vm567, %v523, -inf
      %611 = vmax.xlane.f32.xlu0 %v610
      %v612 = vpop.xlane.xlu0 %611
      %v613 = vsel %vm567, %v525, -inf
      %614 = vmax.xlane.f32.xlu0 %v613
      %v615 = vpop.xlane.xlu0 %614
      %v616 = vsel %vm567, %v528, -inf
      %617 = vmax.xlane.f32.xlu0 %v616
      %v618 = vpop.xlane.xlu0 %617
      %v619 = vsel %vm567, %v530, -inf
      %620 = vmax.xlane.f32.xlu0 %v619
      %v621 = vpop.xlane.xlu0 %620
      %v622 = vsel %vm567, %v533, -inf
      %623 = vmax.xlane.f32.xlu0 %v622
      %v624 = vpop.xlane.xlu0 %623
      %v625 = vsel %vm567, %v535, -inf
      %626 = vmax.xlane.f32.xlu0 %v625
      %v627 = vpop.xlane.xlu0 %626
      %v628 = vsel %vm567, %v538, -inf
      %629 = vmax.xlane.f32.xlu0 %v628
      %v630 = vpop.xlane.xlu0 %629
      %v631 = vsel %vm567, %v540, -inf
      %632 = vmax.xlane.f32.xlu0 %v631
      %v633 = vpop.xlane.xlu0 %632
      %v634 = vsel %vm567, %v543, -inf
      %635 = vmax.xlane.f32.xlu0 %v634
      %v636 = vpop.xlane.xlu0 %635
      %v637 = vsel %vm567, %v545, -inf
      %638 = vmax.xlane.f32.xlu0 %v637
      %v639 = vpop.xlane.xlu0 %638
      %v640 = vsel %vm567, %v548, -inf
      %641 = vmax.xlane.f32.xlu0 %v640
      %v642 = vpop.xlane.xlu0 %641
      %v643 = vsel %vm567, %v550, -inf
      %644 = vmax.xlane.f32.xlu0 %v643
      %v645 = vpop.xlane.xlu0 %644
      %v646 = vsel %vm567, %v553, -inf
      %647 = vmax.xlane.f32.xlu0 %v646
      %v648 = vpop.xlane.xlu0 %647
      %v649 = vsel %vm567, %v555, -inf
      %650 = vmax.xlane.f32.xlu0 %v649
      %v651 = vpop.xlane.xlu0 %650
      %v652 = vsel %vm567, %v558, -inf
      %653 = vmax.xlane.f32.xlu0 %v652
      %v654 = vpop.xlane.xlu0 %653
      %v655 = vsel %vm567, %v560, -inf
      %656 = vmax.xlane.f32.xlu0 %v655
      %v657 = vpop.xlane.xlu0 %656
      %v658 = vsel %vm567, %v563, -inf
      %659 = vmax.xlane.f32.xlu0 %v658
      %v660 = vpop.xlane.xlu0 %659
      %v661 = vsel %vm567, %v565, -inf
      %662 = vmax.xlane.f32.xlu0 %v661
      %v663 = vpop.xlane.xlu0 %662
      %v664 = vsub.f32 %v488, %v570
      %v665 = vsub.f32 %v490, %v573
      %v666 = vsub.f32 %v493, %v576
      %v667 = vsub.f32 %v495, %v579
      %v668 = vsub.f32 %v498, %v582
      %v669 = vsub.f32 %v500, %v585
      %v670 = vsub.f32 %v503, %v588
      %v671 = vsub.f32 %v505, %v591
      %v672 = vsub.f32 %v508, %v594
      %v673 = vsub.f32 %v510, %v597
      %v674 = vsub.f32 %v513, %v600
      %v675 = vsub.f32 %v515, %v603
      %v676 = vsub.f32 %v518, %v606
      %v677 = vsub.f32 %v520, %v609
      %v678 = vsub.f32 %v523, %v612
      %v679 = vsub.f32 %v525, %v615
      %v680 = vsub.f32 %v528, %v618
      %v681 = vsub.f32 %v530, %v621
      %v682 = vsub.f32 %v533, %v624
      %v683 = vsub.f32 %v535, %v627
      %v684 = vsub.f32 %v538, %v630
      %v685 = vsub.f32 %v540, %v633
      %v686 = vsub.f32 %v543, %v636
      %v687 = vsub.f32 %v545, %v639
      %v688 = vsub.f32 %v548, %v642
      %v689 = vsub.f32 %v550, %v645
      %v690 = vsub.f32 %v553, %v648
      %v691 = vsub.f32 %v555, %v651
      %v692 = vsub.f32 %v558, %v654
      %v693 = vsub.f32 %v560, %v657
      %v694 = vsub.f32 %v563, %v660
      %v695 = vsub.f32 %v565, %v663
      %v696 = vmul.f32 %v664, 1.442695
      %v697 = vpow.pop %v696
      %v698 = vmul.f32 %v665, 1.442695
      %v699 = vpow.pop %v698
      %v700 = vmul.f32 %v666, 1.442695
      %v701 = vpow.pop %v700
      %v702 = vmul.f32 %v667, 1.442695
      %v703 = vpow.pop %v702
      %v704 = vmul.f32 %v668, 1.442695
      %v705 = vpow.pop %v704
      %v706 = vmul.f32 %v669, 1.442695
      %v707 = vpow.pop %v706
      %v708 = vmul.f32 %v670, 1.442695
      %v709 = vpow.pop %v708
      %v710 = vmul.f32 %v671, 1.442695
      %v711 = vpow.pop %v710
      %v712 = vmul.f32 %v672, 1.442695
      %v713 = vpow.pop %v712
      %v714 = vmul.f32 %v673, 1.442695
      %v715 = vpow.pop %v714
      %v716 = vmul.f32 %v674, 1.442695
      %v717 = vpow.pop %v716
      %v718 = vmul.f32 %v675, 1.442695
      %v719 = vpow.pop %v718
      %v720 = vmul.f32 %v676, 1.442695
      %v721 = vpow.pop %v720
      %v722 = vmul.f32 %v677, 1.442695
      %v723 = vpow.pop %v722
      %v724 = vmul.f32 %v678, 1.442695
      %v725 = vpow.pop %v724
      %v726 = vmul.f32 %v679, 1.442695
      %v727 = vpow.pop %v726
      %v728 = vmul.f32 %v680, 1.442695
      %v729 = vpow.pop %v728
      %v730 = vmul.f32 %v681, 1.442695
      %v731 = vpow.pop %v730
      %v732 = vmul.f32 %v682, 1.442695
      %v733 = vpow.pop %v732
      %v734 = vmul.f32 %v683, 1.442695
      %v735 = vpow.pop %v734
      %v736 = vmul.f32 %v684, 1.442695
      %v737 = vpow.pop %v736
      %v738 = vmul.f32 %v685, 1.442695
      %v739 = vpow.pop %v738
      %v740 = vmul.f32 %v686, 1.442695
      %v741 = vpow.pop %v740
      %v742 = vmul.f32 %v687, 1.442695
      %v743 = vpow.pop %v742
      %v744 = vmul.f32 %v688, 1.442695
      %v745 = vpow.pop %v744
      %v746 = vmul.f32 %v689, 1.442695
      %v747 = vpow.pop %v746
      %v748 = vmul.f32 %v690, 1.442695
      %v749 = vpow.pop %v748
      %v750 = vmul.f32 %v691, 1.442695
      %v751 = vpow.pop %v750
      %v752 = vmul.f32 %v692, 1.442695
      %v753 = vpow.pop %v752
      %v754 = vmul.f32 %v693, 1.442695
      %v755 = vpow.pop %v754
      %v756 = vmul.f32 %v694, 1.442695
      %v757 = vpow.pop %v756
      %v758 = vmul.f32 %v695, 1.442695
      %v759 = vpow.pop %v758
      %v760 = vsel %vm567, %v697, 0.0
      %761 = vadd.xlane.f32.xlu0 %v760
      %v762 = vpop.xlane.xlu0 %761
      %v763 = vsel %vm567, %v699, 0.0
      %764 = vadd.xlane.f32.xlu0 %v763
      %v765 = vpop.xlane.xlu0 %764
      %v766 = vsel %vm567, %v701, 0.0
      %767 = vadd.xlane.f32.xlu0 %v766
      %v768 = vpop.xlane.xlu0 %767
      %v769 = vsel %vm567, %v703, 0.0
      %770 = vadd.xlane.f32.xlu0 %v769
      %v771 = vpop.xlane.xlu0 %770
      %v772 = vsel %vm567, %v705, 0.0
      %773 = vadd.xlane.f32.xlu0 %v772
      %v774 = vpop.xlane.xlu0 %773
      %v775 = vsel %vm567, %v707, 0.0
      %776 = vadd.xlane.f32.xlu0 %v775
      %v777 = vpop.xlane.xlu0 %776
      %v778 = vsel %vm567, %v709, 0.0
      %779 = vadd.xlane.f32.xlu0 %v778
      %v780 = vpop.xlane.xlu0 %779
      %v781 = vsel %vm567, %v711, 0.0
      %782 = vadd.xlane.f32.xlu0 %v781
      %v783 = vpop.xlane.xlu0 %782
      %v784 = vsel %vm567, %v713, 0.0
      %785 = vadd.xlane.f32.xlu0 %v784
      %v786 = vpop.xlane.xlu0 %785
      %v787 = vsel %vm567, %v715, 0.0
      %788 = vadd.xlane.f32.xlu0 %v787
      %v789 = vpop.xlane.xlu0 %788
      %v790 = vsel %vm567, %v717, 0.0
      %791 = vadd.xlane.f32.xlu0 %v790
      %v792 = vpop.xlane.xlu0 %791
      %v793 = vsel %vm567, %v719, 0.0
      %794 = vadd.xlane.f32.xlu0 %v793
      %v795 = vpop.xlane.xlu0 %794
      %v796 = vsel %vm567, %v721, 0.0
      %797 = vadd.xlane.f32.xlu0 %v796
      %v798 = vpop.xlane.xlu0 %797
      %v799 = vsel %vm567, %v723, 0.0
      %800 = vadd.xlane.f32.xlu0 %v799
      %v801 = vpop.xlane.xlu0 %800
      %v802 = vsel %vm567, %v725, 0.0
      %803 = vadd.xlane.f32.xlu0 %v802
      %v804 = vpop.xlane.xlu0 %803
      %v805 = vsel %vm567, %v727, 0.0
      %806 = vadd.xlane.f32.xlu0 %v805
      %v807 = vpop.xlane.xlu0 %806
      %v808 = vsel %vm567, %v729, 0.0
      %809 = vadd.xlane.f32.xlu0 %v808
      %v810 = vpop.xlane.xlu0 %809
      %v811 = vsel %vm567, %v731, 0.0
      %812 = vadd.xlane.f32.xlu0 %v811
      %v813 = vpop.xlane.xlu0 %812
      %v814 = vsel %vm567, %v733, 0.0
      %815 = vadd.xlane.f32.xlu0 %v814
      %v816 = vpop.xlane.xlu0 %815
      %v817 = vsel %vm567, %v735, 0.0
      %818 = vadd.xlane.f32.xlu0 %v817
      %v819 = vpop.xlane.xlu0 %818
      %v820 = vsel %vm567, %v737, 0.0
      %821 = vadd.xlane.f32.xlu0 %v820
      %v822 = vpop.xlane.xlu0 %821
      %v823 = vsel %vm567, %v739, 0.0
      %824 = vadd.xlane.f32.xlu0 %v823
      %v825 = vpop.xlane.xlu0 %824
      %v826 = vsel %vm567, %v741, 0.0
      %827 = vadd.xlane.f32.xlu0 %v826
      %v828 = vpop.xlane.xlu0 %827
      %v829 = vsel %vm567, %v743, 0.0
      %830 = vadd.xlane.f32.xlu0 %v829
      %v831 = vpop.xlane.xlu0 %830
      %v832 = vsel %vm567, %v745, 0.0
      %833 = vadd.xlane.f32.xlu0 %v832
      %v834 = vpop.xlane.xlu0 %833
      %v835 = vsel %vm567, %v747, 0.0
      %836 = vadd.xlane.f32.xlu0 %v835
      %v837 = vpop.xlane.xlu0 %836
      %v838 = vsel %vm567, %v749, 0.0
      %839 = vadd.xlane.f32.xlu0 %v838
      %v840 = vpop.xlane.xlu0 %839
      %v841 = vsel %vm567, %v751, 0.0
      %842 = vadd.xlane.f32.xlu0 %v841
      %v843 = vpop.xlane.xlu0 %842
      %v844 = vsel %vm567, %v753, 0.0
      %845 = vadd.xlane.f32.xlu0 %v844
      %v846 = vpop.xlane.xlu0 %845
      %v847 = vsel %vm567, %v755, 0.0
      %848 = vadd.xlane.f32.xlu0 %v847
      %v849 = vpop.xlane.xlu0 %848
      %v850 = vsel %vm567, %v757, 0.0
      %851 = vadd.xlane.f32.xlu0 %v850
      %v852 = vpop.xlane.xlu0 %851
      %v853 = vsel %vm567, %v759, 0.0
      %854 = vadd.xlane.f32.xlu0 %v853
      %v855 = vpop.xlane.xlu0 %854
      %v856 = vrcp.pop %v762
      %v857 = vrcp.pop %v765
      %v858 = vrcp.pop %v768
      %v859 = vrcp.pop %v771
      %v860 = vrcp.pop %v774
      %v861 = vrcp.pop %v777
      %v862 = vrcp.pop %v780
      %v863 = vrcp.pop %v783
      %v864 = vrcp.pop %v786
      %v865 = vrcp.pop %v789
      %v866 = vrcp.pop %v792
      %v867 = vrcp.pop %v795
      %v868 = vrcp.pop %v798
      %v869 = vrcp.pop %v801
      %v870 = vrcp.pop %v804
      %v871 = vrcp.pop %v807
      %v872 = vrcp.pop %v810
      %v873 = vrcp.pop %v813
      %v874 = vrcp.pop %v816
      %v875 = vrcp.pop %v819
      %v876 = vrcp.pop %v822
      %v877 = vrcp.pop %v825
      %v878 = vrcp.pop %v828
      %v879 = vrcp.pop %v831
      %v880 = vrcp.pop %v834
      %v881 = vrcp.pop %v837
      %v882 = vrcp.pop %v840
      %v883 = vrcp.pop %v843
      %v884 = vrcp.pop %v846
      %v885 = vrcp.pop %v849
      %v886 = vrcp.pop %v852
      %v887 = vrcp.pop %v855
      %v888 = vmul.f32 %v697, %v856
      %v889 = vmul.f32 %v699, %v857
      %v890 = vmul.f32 %v701, %v858
      %v891 = vmul.f32 %v703, %v859
      %v892 = vmul.f32 %v705, %v860
      %v893 = vmul.f32 %v707, %v861
      %v894 = vmul.f32 %v709, %v862
      %v895 = vmul.f32 %v711, %v863
      %v896 = vmul.f32 %v713, %v864
      %v897 = vmul.f32 %v715, %v865
      %v898 = vmul.f32 %v717, %v866
      %v899 = vmul.f32 %v719, %v867
      %v900 = vmul.f32 %v721, %v868
      %v901 = vmul.f32 %v723, %v869
      %v902 = vmul.f32 %v725, %v870
      %v903 = vmul.f32 %v727, %v871
      %v904 = vmul.f32 %v729, %v872
      %v905 = vmul.f32 %v731, %v873
      %v906 = vmul.f32 %v733, %v874
      %v907 = vmul.f32 %v735, %v875
      %v908 = vmul.f32 %v737, %v876
      %v909 = vmul.f32 %v739, %v877
      %v910 = vmul.f32 %v741, %v878
      %v911 = vmul.f32 %v743, %v879
      %v912 = vmul.f32 %v745, %v880
      %v913 = vmul.f32 %v747, %v881
      %v914 = vmul.f32 %v749, %v882
      %v915 = vmul.f32 %v751, %v883
      %v916 = vmul.f32 %v753, %v884
      %v917 = vmul.f32 %v755, %v885
      %v918 = vmul.f32 %v757, %v886
      %v919 = vmul.f32 %v759, %v887
      %v920 = vpack.c.bf16 %v889, %v888
      %v921 = vpack.c.bf16 %v891, %v890
      %v922 = vpack.c.bf16 %v893, %v892
      %v923 = vpack.c.bf16 %v895, %v894
      %v924 = vpack.c.bf16 %v897, %v896
      %v925 = vpack.c.bf16 %v899, %v898
      %v926 = vpack.c.bf16 %v901, %v900
      %v927 = vpack.c.bf16 %v903, %v902
      %v928 = vpack.c.bf16 %v905, %v904
      %v929 = vpack.c.bf16 %v907, %v906
      %v930 = vpack.c.bf16 %v909, %v908
      %v931 = vpack.c.bf16 %v911, %v910
      %v932 = vpack.c.bf16 %v913, %v912
      %v933 = vpack.c.bf16 %v915, %v914
      %v934 = vpack.c.bf16 %v917, %v916
      %v935 = vpack.c.bf16 %v919, %v918
      %v938 = vunpack.c.l.b16 %v339
      %v939 = vunpack.c.l.b16 %v340
      %v940 = vpack.c.b16 %v939, %v938
      %v943 = vsel %vm567, %v920, 0
      %v946 = vsel %vm567, %v921, 0
      %v949 = vsel %vm567, %v922, 0
      %v952 = vsel %vm567, %v923, 0
      %v955 = vsel %vm567, %v924, 0
      %v958 = vsel %vm567, %v925, 0
      %v961 = vsel %vm567, %v926, 0
      %v964 = vsel %vm567, %v927, 0
      %v967 = vsel %vm567, %v928, 0
      %v970 = vsel %vm567, %v929, 0
      %v973 = vsel %vm567, %v930, 0
      %v976 = vsel %vm567, %v931, 0
      %v979 = vsel %vm567, %v932, 0
      %v982 = vsel %vm567, %v933, 0
      %v985 = vsel %vm567, %v934, 0
      %v988 = vsel %vm567, %v935, 0
      %990 = vmatpush.bf16.msra.mxu0 0
      %991 = vmatpush.bf16.msra.mxu0 0
      %992 = vmatpush.bf16.msra.mxu0 0
      %993 = vmatpush.bf16.msra.mxu0 0
      %994 = vmatpush.bf16.msra.mxu0 0
      %995 = vmatpush.bf16.msra.mxu0 0
      %996 = vmatpush.bf16.msra.mxu0 0
      %997 = vmatpush.bf16.msra.mxu0 %v940
      %998 = vmatmul.bf16.gmra.mxu0 %v943
      %v999 = vpop.f32.mrf.mxu0
      %v1000 = vadd.f32 0.0, %v999
      %v1001 = vpop.f32.mrf.mxu0
      %v1002 = vadd.f32 0.0, %v1001
      %1003 = vmatmul.bf16.gmra.mxu0 %v946
      %v1004 = vpop.f32.mrf.mxu0
      %v1005 = vadd.f32 0.0, %v1004
      %v1006 = vpop.f32.mrf.mxu0
      %v1007 = vadd.f32 0.0, %v1006
      %1008 = vmatmul.bf16.gmra.mxu0 %v949
      %v1009 = vpop.f32.mrf.mxu0
      %v1010 = vadd.f32 0.0, %v1009
      %v1011 = vpop.f32.mrf.mxu0
      %v1012 = vadd.f32 0.0, %v1011
      %1013 = vmatmul.bf16.gmra.mxu0 %v952
      %v1014 = vpop.f32.mrf.mxu0
      %v1015 = vadd.f32 0.0, %v1014
      %v1016 = vpop.f32.mrf.mxu0
      %v1017 = vadd.f32 0.0, %v1016
      %1018 = vmatmul.bf16.gmra.mxu0 %v955
      %v1019 = vpop.f32.mrf.mxu0
      %v1020 = vadd.f32 0.0, %v1019
      %v1021 = vpop.f32.mrf.mxu0
      %v1022 = vadd.f32 0.0, %v1021
      %1023 = vmatmul.bf16.gmra.mxu0 %v958
      %v1024 = vpop.f32.mrf.mxu0
      %v1025 = vadd.f32 0.0, %v1024
      %v1026 = vpop.f32.mrf.mxu0
      %v1027 = vadd.f32 0.0, %v1026
      %1028 = vmatmul.bf16.gmra.mxu0 %v961
      %v1029 = vpop.f32.mrf.mxu0
      %v1030 = vadd.f32 0.0, %v1029
      %v1031 = vpop.f32.mrf.mxu0
      %v1032 = vadd.f32 0.0, %v1031
      %1033 = vmatmul.bf16.gmra.mxu0 %v964
      %v1034 = vpop.f32.mrf.mxu0
      %v1035 = vadd.f32 0.0, %v1034
      %v1036 = vpop.f32.mrf.mxu0
      %v1037 = vadd.f32 0.0, %v1036
      %1038 = vmatmul.bf16.gmra.mxu0 %v967
      %v1039 = vpop.f32.mrf.mxu0
      %v1040 = vadd.f32 0.0, %v1039
      %v1041 = vpop.f32.mrf.mxu0
      %v1042 = vadd.f32 0.0, %v1041
      %1043 = vmatmul.bf16.gmra.mxu0 %v970
      %v1044 = vpop.f32.mrf.mxu0
      %v1045 = vadd.f32 0.0, %v1044
      %v1046 = vpop.f32.mrf.mxu0
      %v1047 = vadd.f32 0.0, %v1046
      %1048 = vmatmul.bf16.gmra.mxu0 %v973
      %v1049 = vpop.f32.mrf.mxu0
      %v1050 = vadd.f32 0.0, %v1049
      %v1051 = vpop.f32.mrf.mxu0
      %v1052 = vadd.f32 0.0, %v1051
      %1053 = vmatmul.bf16.gmra.mxu0 %v976
      %v1054 = vpop.f32.mrf.mxu0
      %v1055 = vadd.f32 0.0, %v1054
      %v1056 = vpop.f32.mrf.mxu0
      %v1057 = vadd.f32 0.0, %v1056
      %1058 = vmatmul.bf16.gmra.mxu0 %v979
      %v1059 = vpop.f32.mrf.mxu0
      %v1060 = vadd.f32 0.0, %v1059
      %v1061 = vpop.f32.mrf.mxu0
      %v1062 = vadd.f32 0.0, %v1061
      %1063 = vmatmul.bf16.gmra.mxu0 %v982
      %v1064 = vpop.f32.mrf.mxu0
      %v1065 = vadd.f32 0.0, %v1064
      %v1066 = vpop.f32.mrf.mxu0
      %v1067 = vadd.f32 0.0, %v1066
      %1068 = vmatmul.bf16.gmra.mxu0 %v985
      %v1069 = vpop.f32.mrf.mxu0
      %v1070 = vadd.f32 0.0, %v1069
      %v1071 = vpop.f32.mrf.mxu0
      %v1072 = vadd.f32 0.0, %v1071
      %1073 = vmatmul.bf16.gmra.mxu0 %v988
      %v1074 = vpop.f32.mrf.mxu0
      %v1075 = vadd.f32 0.0, %v1074
      %v1076 = vpop.f32.mrf.mxu0
      %v1077 = vadd.f32 0.0, %v1076
      %1078 = vdwg.mxu0
      %v1079 = vpack.c.bf16 %v1000, %v1000
      %v1080 = vpack.c.bf16 %v1002, %v1002
      %v1081 = vpack.c.bf16 %v1005, %v1005
      %v1082 = vpack.c.bf16 %v1007, %v1007
      %v1083 = vpack.c.bf16 %v1010, %v1010
      %v1084 = vpack.c.bf16 %v1012, %v1012
      %v1085 = vpack.c.bf16 %v1015, %v1015
      %v1086 = vpack.c.bf16 %v1017, %v1017
      %v1087 = vpack.c.bf16 %v1020, %v1020
      %v1088 = vpack.c.bf16 %v1022, %v1022
      %v1089 = vpack.c.bf16 %v1025, %v1025
      %v1090 = vpack.c.bf16 %v1027, %v1027
      %v1091 = vpack.c.bf16 %v1030, %v1030
      %v1092 = vpack.c.bf16 %v1032, %v1032
      %v1093 = vpack.c.bf16 %v1035, %v1035
      %v1094 = vpack.c.bf16 %v1037, %v1037
      %v1095 = vpack.c.bf16 %v1040, %v1040
      %v1096 = vpack.c.bf16 %v1042, %v1042
      %v1097 = vpack.c.bf16 %v1045, %v1045
      %v1098 = vpack.c.bf16 %v1047, %v1047
      %v1099 = vpack.c.bf16 %v1050, %v1050
      %v1100 = vpack.c.bf16 %v1052, %v1052
      %v1101 = vpack.c.bf16 %v1055, %v1055
      %v1102 = vpack.c.bf16 %v1057, %v1057
      %v1103 = vpack.c.bf16 %v1060, %v1060
      %v1104 = vpack.c.bf16 %v1062, %v1062
      %v1105 = vpack.c.bf16 %v1065, %v1065
      %v1106 = vpack.c.bf16 %v1067, %v1067
      %v1107 = vpack.c.bf16 %v1070, %v1070
      %v1108 = vpack.c.bf16 %v1072, %v1072
      %v1109 = vpack.c.bf16 %v1075, %v1075
      %v1110 = vpack.c.bf16 %v1077, %v1077
      %vm1111 = vcmask 27648
      %1112 = vst.msk [vmem:[#allocation2] sm:$0xf] %vm1111, %v1079
      %1113 = vst.msk [vmem:[#allocation2 + $0x4] sm:$0xf] %vm1111, %v1080
      %1114 = vst.msk [vmem:[#allocation2 + $0x8] sm:$0xf] %vm1111, %v1081
      %1115 = vst.msk [vmem:[#allocation2 + $0xc] sm:$0xf] %vm1111, %v1082
      %1116 = vst.msk [vmem:[#allocation2 + $0x10] sm:$0xf] %vm1111, %v1083
      %1117 = vst.msk [vmem:[#allocation2 + $0x14] sm:$0xf] %vm1111, %v1084
      %1118 = vst.msk [vmem:[#allocation2 + $0x18] sm:$0xf] %vm1111, %v1085
      %1119 = vst.msk [vmem:[#allocation2 + $0x1c] sm:$0xf] %vm1111, %v1086
      %1120 = vst.msk [vmem:[#allocation2 + $0x20] sm:$0xf] %vm1111, %v1087
      %1121 = vst.msk [vmem:[#allocation2 + $0x24] sm:$0xf] %vm1111, %v1088
      %1122 = vst.msk [vmem:[#allocation2 + $0x28] sm:$0xf] %vm1111, %v1089
      %1123 = vst.msk [vmem:[#allocation2 + $0x2c] sm:$0xf] %vm1111, %v1090
      %1124 = vst.msk [vmem:[#allocation2 + $0x30] sm:$0xf] %vm1111, %v1091
      %1125 = vst.msk [vmem:[#allocation2 + $0x34] sm:$0xf] %vm1111, %v1092
      %1126 = vst.msk [vmem:[#allocation2 + $0x38] sm:$0xf] %vm1111, %v1093
      %1127 = vst.msk [vmem:[#allocation2 + $0x3c] sm:$0xf] %vm1111, %v1094
      %1128 = vst.msk [vmem:[#allocation2 + $0x40] sm:$0xf] %vm1111, %v1095
      %1129 = vst.msk [vmem:[#allocation2 + $0x44] sm:$0xf] %vm1111, %v1096
      %1130 = vst.msk [vmem:[#allocation2 + $0x48] sm:$0xf] %vm1111, %v1097
      %1131 = vst.msk [vmem:[#allocation2 + $0x4c] sm:$0xf] %vm1111, %v1098
      %1132 = vst.msk [vmem:[#allocation2 + $0x50] sm:$0xf] %vm1111, %v1099
      %1133 = vst.msk [vmem:[#allocation2 + $0x54] sm:$0xf] %vm1111, %v1100
      %1134 = vst.msk [vmem:[#allocation2 + $0x58] sm:$0xf] %vm1111, %v1101
      %1135 = vst.msk [vmem:[#allocation2 + $0x5c] sm:$0xf] %vm1111, %v1102
      %1136 = vst.msk [vmem:[#allocation2 + $0x60] sm:$0xf] %vm1111, %v1103
      %1137 = vst.msk [vmem:[#allocation2 + $0x64] sm:$0xf] %vm1111, %v1104
      %1138 = vst.msk [vmem:[#allocation2 + $0x68] sm:$0xf] %vm1111, %v1105
      %1139 = vst.msk [vmem:[#allocation2 + $0x6c] sm:$0xf] %vm1111, %v1106
      %1140 = vst.msk [vmem:[#allocation2 + $0x70] sm:$0xf] %vm1111, %v1107
      %1141 = vst.msk [vmem:[#allocation2 + $0x74] sm:$0xf] %vm1111, %v1108
      %1142 = vst.msk [vmem:[#allocation2 + $0x78] sm:$0xf] %vm1111, %v1109
      %1143 = vst.msk [vmem:[#allocation2 + $0x7c] sm:$0xf] %vm1111, %v1110
      %1144 = vrot.lane.b32.xlu0 %v405, 124
      %v1145 = vpop.permute.xlu0 %1144
      %1146 = vrot.lane.b32.xlu0 %v406, 124
      %v1147 = vpop.permute.xlu0 %1146
      %1148 = vrot.lane.b32.xlu0 %v407, 124
      %v1149 = vpop.permute.xlu0 %1148
      %1150 = vrot.lane.b32.xlu0 %v408, 124
      %v1151 = vpop.permute.xlu0 %1150
      %1152 = vrot.lane.b32.xlu0 %v409, 124
      %v1153 = vpop.permute.xlu0 %1152
      %1154 = vrot.lane.b32.xlu0 %v410, 124
      %v1155 = vpop.permute.xlu0 %1154
      %1156 = vrot.lane.b32.xlu0 %v411, 124
      %v1157 = vpop.permute.xlu0 %1156
      %1158 = vrot.lane.b32.xlu0 %v412, 124
      %v1159 = vpop.permute.xlu0 %1158
      %1160 = vrot.lane.b32.xlu0 %v413, 124
      %v1161 = vpop.permute.xlu0 %1160
      %1162 = vrot.lane.b32.xlu0 %v414, 124
      %v1163 = vpop.permute.xlu0 %1162
      %1164 = vrot.lane.b32.xlu0 %v415, 124
      %v1165 = vpop.permute.xlu0 %1164
      %1166 = vrot.lane.b32.xlu0 %v416, 124
      %v1167 = vpop.permute.xlu0 %1166
      %1168 = vrot.lane.b32.xlu0 %v417, 124
      %v1169 = vpop.permute.xlu0 %1168
      %1170 = vrot.lane.b32.xlu0 %v418, 124
      %v1171 = vpop.permute.xlu0 %1170
      %1172 = vrot.lane.b32.xlu0 %v419, 124
      %v1173 = vpop.permute.xlu0 %1172
      %1174 = vrot.lane.b32.xlu0 %v420, 124
      %v1175 = vpop.permute.xlu0 %1174
      %1176 = vrot.lane.b32.xlu0 %v425, 124
      %v1177 = vpop.permute.xlu0 %1176
      %v1179 = vsel %vm426, %v1145, 0
      %v1182 = vsel %vm426, %v1147, 0
      %v1185 = vsel %vm426, %v1149, 0
      %v1188 = vsel %vm426, %v1151, 0
      %v1191 = vsel %vm426, %v1153, 0
      %v1194 = vsel %vm426, %v1155, 0
      %v1197 = vsel %vm426, %v1157, 0
      %v1200 = vsel %vm426, %v1159, 0
      %v1203 = vsel %vm426, %v1161, 0
      %v1206 = vsel %vm426, %v1163, 0
      %v1209 = vsel %vm426, %v1165, 0
      %v1212 = vsel %vm426, %v1167, 0
      %v1215 = vsel %vm426, %v1169, 0
      %v1218 = vsel %vm426, %v1171, 0
      %v1221 = vsel %vm426, %v1173, 0
      %v1224 = vsel %vm426, %v1175, 0
      %v1227 = vsel %vm426, %v1177, 0
      %1229 = vmatpush.bf16.xpose.msra.mxu0 0
      %1230 = vmatpush.bf16.xpose.msra.mxu0 0
      %1231 = vmatpush.bf16.xpose.msra.mxu0 0
      %1232 = vmatpush.bf16.xpose.msra.mxu0 0
      %1233 = vmatpush.bf16.xpose.msra.mxu0 0
      %1234 = vmatpush.bf16.xpose.msra.mxu0 0
      %1235 = vmatpush.bf16.xpose.msra.mxu0 0
      %1236 = vmatpush.bf16.xpose.msra.mxu0 %v1227
      %1237 = vmatmul.bf16.gmra.mxu0 %v1179
      %v1238 = vpop.f32.mrf.mxu0
      %v1239 = vadd.f32 0.0, %v1238
      %v1240 = vpop.f32.mrf.mxu0
      %v1241 = vadd.f32 0.0, %v1240
      %1242 = vmatmul.bf16.gmra.mxu0 %v1182
      %v1243 = vpop.f32.mrf.mxu0
      %v1244 = vadd.f32 0.0, %v1243
      %v1245 = vpop.f32.mrf.mxu0
      %v1246 = vadd.f32 0.0, %v1245
      %1247 = vmatmul.bf16.gmra.mxu0 %v1185
      %v1248 = vpop.f32.mrf.mxu0
      %v1249 = vadd.f32 0.0, %v1248
      %v1250 = vpop.f32.mrf.mxu0
      %v1251 = vadd.f32 0.0, %v1250
      %1252 = vmatmul.bf16.gmra.mxu0 %v1188
      %v1253 = vpop.f32.mrf.mxu0
      %v1254 = vadd.f32 0.0, %v1253
      %v1255 = vpop.f32.mrf.mxu0
      %v1256 = vadd.f32 0.0, %v1255
      %1257 = vmatmul.bf16.gmra.mxu0 %v1191
      %v1258 = vpop.f32.mrf.mxu0
      %v1259 = vadd.f32 0.0, %v1258
      %v1260 = vpop.f32.mrf.mxu0
      %v1261 = vadd.f32 0.0, %v1260
      %1262 = vmatmul.bf16.gmra.mxu0 %v1194
      %v1263 = vpop.f32.mrf.mxu0
      %v1264 = vadd.f32 0.0, %v1263
      %v1265 = vpop.f32.mrf.mxu0
      %v1266 = vadd.f32 0.0, %v1265
      %1267 = vmatmul.bf16.gmra.mxu0 %v1197
      %v1268 = vpop.f32.mrf.mxu0
      %v1269 = vadd.f32 0.0, %v1268
      %v1270 = vpop.f32.mrf.mxu0
      %v1271 = vadd.f32 0.0, %v1270
      %1272 = vmatmul.bf16.gmra.mxu0 %v1200
      %v1273 = vpop.f32.mrf.mxu0
      %v1274 = vadd.f32 0.0, %v1273
      %v1275 = vpop.f32.mrf.mxu0
      %v1276 = vadd.f32 0.0, %v1275
      %1277 = vmatmul.bf16.gmra.mxu0 %v1203
      %v1278 = vpop.f32.mrf.mxu0
      %v1279 = vadd.f32 0.0, %v1278
      %v1280 = vpop.f32.mrf.mxu0
      %v1281 = vadd.f32 0.0, %v1280
      %1282 = vmatmul.bf16.gmra.mxu0 %v1206
      %v1283 = vpop.f32.mrf.mxu0
      %v1284 = vadd.f32 0.0, %v1283
      %v1285 = vpop.f32.mrf.mxu0
      %v1286 = vadd.f32 0.0, %v1285
      %1287 = vmatmul.bf16.gmra.mxu0 %v1209
      %v1288 = vpop.f32.mrf.mxu0
      %v1289 = vadd.f32 0.0, %v1288
      %v1290 = vpop.f32.mrf.mxu0
      %v1291 = vadd.f32 0.0, %v1290
      %1292 = vmatmul.bf16.gmra.mxu0 %v1212
      %v1293 = vpop.f32.mrf.mxu0
      %v1294 = vadd.f32 0.0, %v1293
      %v1295 = vpop.f32.mrf.mxu0
      %v1296 = vadd.f32 0.0, %v1295
      %1297 = vmatmul.bf16.gmra.mxu0 %v1215
      %v1298 = vpop.f32.mrf.mxu0
      %v1299 = vadd.f32 0.0, %v1298
      %v1300 = vpop.f32.mrf.mxu0
      %v1301 = vadd.f32 0.0, %v1300
      %1302 = vmatmul.bf16.gmra.mxu0 %v1218
      %v1303 = vpop.f32.mrf.mxu0
      %v1304 = vadd.f32 0.0, %v1303
      %v1305 = vpop.f32.mrf.mxu0
      %v1306 = vadd.f32 0.0, %v1305
      %1307 = vmatmul.bf16.gmra.mxu0 %v1221
      %v1308 = vpop.f32.mrf.mxu0
      %v1309 = vadd.f32 0.0, %v1308
      %v1310 = vpop.f32.mrf.mxu0
      %v1311 = vadd.f32 0.0, %v1310
      %1312 = vmatmul.bf16.gmra.mxu0 %v1224
      %v1313 = vpop.f32.mrf.mxu0
      %v1314 = vadd.f32 0.0, %v1313
      %v1315 = vpop.f32.mrf.mxu0
      %v1316 = vadd.f32 0.0, %v1315
      %1317 = vdwg.mxu0
      %v1318 = vsel %vm567, %v1239, -inf
      %1319 = vmax.xlane.f32.xlu0 %v1318
      %v1320 = vpop.xlane.xlu0 %1319
      %v1321 = vsel %vm567, %v1241, -inf
      %1322 = vmax.xlane.f32.xlu0 %v1321
      %v1323 = vpop.xlane.xlu0 %1322
      %v1324 = vsel %vm567, %v1244, -inf
      %1325 = vmax.xlane.f32.xlu0 %v1324
      %v1326 = vpop.xlane.xlu0 %1325
      %v1327 = vsel %vm567, %v1246, -inf
      %1328 = vmax.xlane.f32.xlu0 %v1327
      %v1329 = vpop.xlane.xlu0 %1328
      %v1330 = vsel %vm567, %v1249, -inf
      %1331 = vmax.xlane.f32.xlu0 %v1330
      %v1332 = vpop.xlane.xlu0 %1331
      %v1333 = vsel %vm567, %v1251, -inf
      %1334 = vmax.xlane.f32.xlu0 %v1333
      %v1335 = vpop.xlane.xlu0 %1334
      %v1336 = vsel %vm567, %v1254, -inf
      %1337 = vmax.xlane.f32.xlu0 %v1336
      %v1338 = vpop.xlane.xlu0 %1337
      %v1339 = vsel %vm567, %v1256, -inf
      %1340 = vmax.xlane.f32.xlu0 %v1339
      %v1341 = vpop.xlane.xlu0 %1340
      %v1342 = vsel %vm567, %v1259, -inf
      %1343 = vmax.xlane.f32.xlu0 %v1342
      %v1344 = vpop.xlane.xlu0 %1343
      %v1345 = vsel %vm567, %v1261, -inf
      %1346 = vmax.xlane.f32.xlu0 %v1345
      %v1347 = vpop.xlane.xlu0 %1346
      %v1348 = vsel %vm567, %v1264, -inf
      %1349 = vmax.xlane.f32.xlu0 %v1348
      %v1350 = vpop.xlane.xlu0 %1349
      %v1351 = vsel %vm567, %v1266, -inf
      %1352 = vmax.xlane.f32.xlu0 %v1351
      %v1353 = vpop.xlane.xlu0 %1352
      %v1354 = vsel %vm567, %v1269, -inf
      %1355 = vmax.xlane.f32.xlu0 %v1354
      %v1356 = vpop.xlane.xlu0 %1355
      %v1357 = vsel %vm567, %v1271, -inf
      %1358 = vmax.xlane.f32.xlu0 %v1357
      %v1359 = vpop.xlane.xlu0 %1358
      %v1360 = vsel %vm567, %v1274, -inf
      %1361 = vmax.xlane.f32.xlu0 %v1360
      %v1362 = vpop.xlane.xlu0 %1361
      %v1363 = vsel %vm567, %v1276, -inf
      %1364 = vmax.xlane.f32.xlu0 %v1363
      %v1365 = vpop.xlane.xlu0 %1364
      %v1366 = vsel %vm567, %v1279, -inf
      %1367 = vmax.xlane.f32.xlu0 %v1366
      %v1368 = vpop.xlane.xlu0 %1367
      %v1369 = vsel %vm567, %v1281, -inf
      %1370 = vmax.xlane.f32.xlu0 %v1369
      %v1371 = vpop.xlane.xlu0 %1370
      %v1372 = vsel %vm567, %v1284, -inf
      %1373 = vmax.xlane.f32.xlu0 %v1372
      %v1374 = vpop.xlane.xlu0 %1373
      %v1375 = vsel %vm567, %v1286, -inf
      %1376 = vmax.xlane.f32.xlu0 %v1375
      %v1377 = vpop.xlane.xlu0 %1376
      %v1378 = vsel %vm567, %v1289, -inf
      %1379 = vmax.xlane.f32.xlu0 %v1378
      %v1380 = vpop.xlane.xlu0 %1379
      %v1381 = vsel %vm567, %v1291, -inf
      %1382 = vmax.xlane.f32.xlu0 %v1381
      %v1383 = vpop.xlane.xlu0 %1382
      %v1384 = vsel %vm567, %v1294, -inf
      %1385 = vmax.xlane.f32.xlu0 %v1384
      %v1386 = vpop.xlane.xlu0 %1385
      %v1387 = vsel %vm567, %v1296, -inf
      %1388 = vmax.xlane.f32.xlu0 %v1387
      %v1389 = vpop.xlane.xlu0 %1388
      %v1390 = vsel %vm567, %v1299, -inf
      %1391 = vmax.xlane.f32.xlu0 %v1390
      %v1392 = vpop.xlane.xlu0 %1391
      %v1393 = vsel %vm567, %v1301, -inf
      %1394 = vmax.xlane.f32.xlu0 %v1393
      %v1395 = vpop.xlane.xlu0 %1394
      %v1396 = vsel %vm567, %v1304, -inf
      %1397 = vmax.xlane.f32.xlu0 %v1396
      %v1398 = vpop.xlane.xlu0 %1397
      %v1399 = vsel %vm567, %v1306, -inf
      %1400 = vmax.xlane.f32.xlu0 %v1399
      %v1401 = vpop.xlane.xlu0 %1400
      %v1402 = vsel %vm567, %v1309, -inf
      %1403 = vmax.xlane.f32.xlu0 %v1402
      %v1404 = vpop.xlane.xlu0 %1403
      %v1405 = vsel %vm567, %v1311, -inf
      %1406 = vmax.xlane.f32.xlu0 %v1405
      %v1407 = vpop.xlane.xlu0 %1406
      %v1408 = vsel %vm567, %v1314, -inf
      %1409 = vmax.xlane.f32.xlu0 %v1408
      %v1410 = vpop.xlane.xlu0 %1409
      %v1411 = vsel %vm567, %v1316, -inf
      %1412 = vmax.xlane.f32.xlu0 %v1411
      %v1413 = vpop.xlane.xlu0 %1412
      %v1414 = vsub.f32 %v1239, %v1320
      %v1415 = vsub.f32 %v1241, %v1323
      %v1416 = vsub.f32 %v1244, %v1326
      %v1417 = vsub.f32 %v1246, %v1329
      %v1418 = vsub.f32 %v1249, %v1332
      %v1419 = vsub.f32 %v1251, %v1335
      %v1420 = vsub.f32 %v1254, %v1338
      %v1421 = vsub.f32 %v1256, %v1341
      %v1422 = vsub.f32 %v1259, %v1344
      %v1423 = vsub.f32 %v1261, %v1347
      %v1424 = vsub.f32 %v1264, %v1350
      %v1425 = vsub.f32 %v1266, %v1353
      %v1426 = vsub.f32 %v1269, %v1356
      %v1427 = vsub.f32 %v1271, %v1359
      %v1428 = vsub.f32 %v1274, %v1362
      %v1429 = vsub.f32 %v1276, %v1365
      %v1430 = vsub.f32 %v1279, %v1368
      %v1431 = vsub.f32 %v1281, %v1371
      %v1432 = vsub.f32 %v1284, %v1374
      %v1433 = vsub.f32 %v1286, %v1377
      %v1434 = vsub.f32 %v1289, %v1380
      %v1435 = vsub.f32 %v1291, %v1383
      %v1436 = vsub.f32 %v1294, %v1386
      %v1437 = vsub.f32 %v1296, %v1389
      %v1438 = vsub.f32 %v1299, %v1392
      %v1439 = vsub.f32 %v1301, %v1395
      %v1440 = vsub.f32 %v1304, %v1398
      %v1441 = vsub.f32 %v1306, %v1401
      %v1442 = vsub.f32 %v1309, %v1404
      %v1443 = vsub.f32 %v1311, %v1407
      %v1444 = vsub.f32 %v1314, %v1410
      %v1445 = vsub.f32 %v1316, %v1413
      %v1446 = vmul.f32 %v1414, 1.442695
      %v1447 = vpow.pop %v1446
      %v1448 = vmul.f32 %v1415, 1.442695
      %v1449 = vpow.pop %v1448
      %v1450 = vmul.f32 %v1416, 1.442695
      %v1451 = vpow.pop %v1450
      %v1452 = vmul.f32 %v1417, 1.442695
      %v1453 = vpow.pop %v1452
      %v1454 = vmul.f32 %v1418, 1.442695
      %v1455 = vpow.pop %v1454
      %v1456 = vmul.f32 %v1419, 1.442695
      %v1457 = vpow.pop %v1456
      %v1458 = vmul.f32 %v1420, 1.442695
      %v1459 = vpow.pop %v1458
      %v1460 = vmul.f32 %v1421, 1.442695
      %v1461 = vpow.pop %v1460
      %v1462 = vmul.f32 %v1422, 1.442695
      %v1463 = vpow.pop %v1462
      %v1464 = vmul.f32 %v1423, 1.442695
      %v1465 = vpow.pop %v1464
      %v1466 = vmul.f32 %v1424, 1.442695
      %v1467 = vpow.pop %v1466
      %v1468 = vmul.f32 %v1425, 1.442695
      %v1469 = vpow.pop %v1468
      %v1470 = vmul.f32 %v1426, 1.442695
      %v1471 = vpow.pop %v1470
      %v1472 = vmul.f32 %v1427, 1.442695
      %v1473 = vpow.pop %v1472
      %v1474 = vmul.f32 %v1428, 1.442695
      %v1475 = vpow.pop %v1474
      %v1476 = vmul.f32 %v1429, 1.442695
      %v1477 = vpow.pop %v1476
      %v1478 = vmul.f32 %v1430, 1.442695
      %v1479 = vpow.pop %v1478
      %v1480 = vmul.f32 %v1431, 1.442695
      %v1481 = vpow.pop %v1480
      %v1482 = vmul.f32 %v1432, 1.442695
      %v1483 = vpow.pop %v1482
      %v1484 = vmul.f32 %v1433, 1.442695
      %v1485 = vpow.pop %v1484
      %v1486 = vmul.f32 %v1434, 1.442695
      %v1487 = vpow.pop %v1486
      %v1488 = vmul.f32 %v1435, 1.442695
      %v1489 = vpow.pop %v1488
      %v1490 = vmul.f32 %v1436, 1.442695
      %v1491 = vpow.pop %v1490
      %v1492 = vmul.f32 %v1437, 1.442695
      %v1493 = vpow.pop %v1492
      %v1494 = vmul.f32 %v1438, 1.442695
      %v1495 = vpow.pop %v1494
      %v1496 = vmul.f32 %v1439, 1.442695
      %v1497 = vpow.pop %v1496
      %v1498 = vmul.f32 %v1440, 1.442695
      %v1499 = vpow.pop %v1498
      %v1500 = vmul.f32 %v1441, 1.442695
      %v1501 = vpow.pop %v1500
      %v1502 = vmul.f32 %v1442, 1.442695
      %v1503 = vpow.pop %v1502
      %v1504 = vmul.f32 %v1443, 1.442695
      %v1505 = vpow.pop %v1504
      %v1506 = vmul.f32 %v1444, 1.442695
      %v1507 = vpow.pop %v1506
      %v1508 = vmul.f32 %v1445, 1.442695
      %v1509 = vpow.pop %v1508
      %v1510 = vsel %vm567, %v1447, 0.0
      %1511 = vadd.xlane.f32.xlu0 %v1510
      %v1512 = vpop.xlane.xlu0 %1511
      %v1513 = vsel %vm567, %v1449, 0.0
      %1514 = vadd.xlane.f32.xlu0 %v1513
      %v1515 = vpop.xlane.xlu0 %1514
      %v1516 = vsel %vm567, %v1451, 0.0
      %1517 = vadd.xlane.f32.xlu0 %v1516
      %v1518 = vpop.xlane.xlu0 %1517
      %v1519 = vsel %vm567, %v1453, 0.0
      %1520 = vadd.xlane.f32.xlu0 %v1519
      %v1521 = vpop.xlane.xlu0 %1520
      %v1522 = vsel %vm567, %v1455, 0.0
      %1523 = vadd.xlane.f32.xlu0 %v1522
      %v1524 = vpop.xlane.xlu0 %1523
      %v1525 = vsel %vm567, %v1457, 0.0
      %1526 = vadd.xlane.f32.xlu0 %v1525
      %v1527 = vpop.xlane.xlu0 %1526
      %v1528 = vsel %vm567, %v1459, 0.0
      %1529 = vadd.xlane.f32.xlu0 %v1528
      %v1530 = vpop.xlane.xlu0 %1529
      %v1531 = vsel %vm567, %v1461, 0.0
      %1532 = vadd.xlane.f32.xlu0 %v1531
      %v1533 = vpop.xlane.xlu0 %1532
      %v1534 = vsel %vm567, %v1463, 0.0
      %1535 = vadd.xlane.f32.xlu0 %v1534
      %v1536 = vpop.xlane.xlu0 %1535
      %v1537 = vsel %vm567, %v1465, 0.0
      %1538 = vadd.xlane.f32.xlu0 %v1537
      %v1539 = vpop.xlane.xlu0 %1538
      %v1540 = vsel %vm567, %v1467, 0.0
      %1541 = vadd.xlane.f32.xlu0 %v1540
      %v1542 = vpop.xlane.xlu0 %1541
      %v1543 = vsel %vm567, %v1469, 0.0
      %1544 = vadd.xlane.f32.xlu0 %v1543
      %v1545 = vpop.xlane.xlu0 %1544
      %v1546 = vsel %vm567, %v1471, 0.0
      %1547 = vadd.xlane.f32.xlu0 %v1546
      %v1548 = vpop.xlane.xlu0 %1547
      %v1549 = vsel %vm567, %v1473, 0.0
      %1550 = vadd.xlane.f32.xlu0 %v1549
      %v1551 = vpop.xlane.xlu0 %1550
      %v1552 = vsel %vm567, %v1475, 0.0
      %1553 = vadd.xlane.f32.xlu0 %v1552
      %v1554 = vpop.xlane.xlu0 %1553
      %v1555 = vsel %vm567, %v1477, 0.0
      %1556 = vadd.xlane.f32.xlu0 %v1555
      %v1557 = vpop.xlane.xlu0 %1556
      %v1558 = vsel %vm567, %v1479, 0.0
      %1559 = vadd.xlane.f32.xlu0 %v1558
      %v1560 = vpop.xlane.xlu0 %1559
      %v1561 = vsel %vm567, %v1481, 0.0
      %1562 = vadd.xlane.f32.xlu0 %v1561
      %v1563 = vpop.xlane.xlu0 %1562
      %v1564 = vsel %vm567, %v1483, 0.0
      %1565 = vadd.xlane.f32.xlu0 %v1564
      %v1566 = vpop.xlane.xlu0 %1565
      %v1567 = vsel %vm567, %v1485, 0.0
      %1568 = vadd.xlane.f32.xlu0 %v1567
      %v1569 = vpop.xlane.xlu0 %1568
      %v1570 = vsel %vm567, %v1487, 0.0
      %1571 = vadd.xlane.f32.xlu0 %v1570
      %v1572 = vpop.xlane.xlu0 %1571
      %v1573 = vsel %vm567, %v1489, 0.0
      %1574 = vadd.xlane.f32.xlu0 %v1573
      %v1575 = vpop.xlane.xlu0 %1574
      %v1576 = vsel %vm567, %v1491, 0.0
      %1577 = vadd.xlane.f32.xlu0 %v1576
      %v1578 = vpop.xlane.xlu0 %1577
      %v1579 = vsel %vm567, %v1493, 0.0
      %1580 = vadd.xlane.f32.xlu0 %v1579
      %v1581 = vpop.xlane.xlu0 %1580
      %v1582 = vsel %vm567, %v1495, 0.0
      %1583 = vadd.xlane.f32.xlu0 %v1582
      %v1584 = vpop.xlane.xlu0 %1583
      %v1585 = vsel %vm567, %v1497, 0.0
      %1586 = vadd.xlane.f32.xlu0 %v1585
      %v1587 = vpop.xlane.xlu0 %1586
      %v1588 = vsel %vm567, %v1499, 0.0
      %1589 = vadd.xlane.f32.xlu0 %v1588
      %v1590 = vpop.xlane.xlu0 %1589
      %v1591 = vsel %vm567, %v1501, 0.0
      %1592 = vadd.xlane.f32.xlu0 %v1591
      %v1593 = vpop.xlane.xlu0 %1592
      %v1594 = vsel %vm567, %v1503, 0.0
      %1595 = vadd.xlane.f32.xlu0 %v1594
      %v1596 = vpop.xlane.xlu0 %1595
      %v1597 = vsel %vm567, %v1505, 0.0
      %1598 = vadd.xlane.f32.xlu0 %v1597
      %v1599 = vpop.xlane.xlu0 %1598
      %v1600 = vsel %vm567, %v1507, 0.0
      %1601 = vadd.xlane.f32.xlu0 %v1600
      %v1602 = vpop.xlane.xlu0 %1601
      %v1603 = vsel %vm567, %v1509, 0.0
      %1604 = vadd.xlane.f32.xlu0 %v1603
      %v1605 = vpop.xlane.xlu0 %1604
      %v1606 = vrcp.pop %v1512
      %v1607 = vrcp.pop %v1515
      %v1608 = vrcp.pop %v1518
      %v1609 = vrcp.pop %v1521
      %v1610 = vrcp.pop %v1524
      %v1611 = vrcp.pop %v1527
      %v1612 = vrcp.pop %v1530
      %v1613 = vrcp.pop %v1533
      %v1614 = vrcp.pop %v1536
      %v1615 = vrcp.pop %v1539
      %v1616 = vrcp.pop %v1542
      %v1617 = vrcp.pop %v1545
      %v1618 = vrcp.pop %v1548
      %v1619 = vrcp.pop %v1551
      %v1620 = vrcp.pop %v1554
      %v1621 = vrcp.pop %v1557
      %v1622 = vrcp.pop %v1560
      %v1623 = vrcp.pop %v1563
      %v1624 = vrcp.pop %v1566
      %v1625 = vrcp.pop %v1569
      %v1626 = vrcp.pop %v1572
      %v1627 = vrcp.pop %v1575
      %v1628 = vrcp.pop %v1578
      %v1629 = vrcp.pop %v1581
      %v1630 = vrcp.pop %v1584
      %v1631 = vrcp.pop %v1587
      %v1632 = vrcp.pop %v1590
      %v1633 = vrcp.pop %v1593
      %v1634 = vrcp.pop %v1596
      %v1635 = vrcp.pop %v1599
      %v1636 = vrcp.pop %v1602
      %v1637 = vrcp.pop %v1605
      %v1638 = vmul.f32 %v1447, %v1606
      %v1639 = vmul.f32 %v1449, %v1607
      %v1640 = vmul.f32 %v1451, %v1608
      %v1641 = vmul.f32 %v1453, %v1609
      %v1642 = vmul.f32 %v1455, %v1610
      %v1643 = vmul.f32 %v1457, %v1611
      %v1644 = vmul.f32 %v1459, %v1612
      %v1645 = vmul.f32 %v1461, %v1613
      %v1646 = vmul.f32 %v1463, %v1614
      %v1647 = vmul.f32 %v1465, %v1615
      %v1648 = vmul.f32 %v1467, %v1616
      %v1649 = vmul.f32 %v1469, %v1617
      %v1650 = vmul.f32 %v1471, %v1618
      %v1651 = vmul.f32 %v1473, %v1619
      %v1652 = vmul.f32 %v1475, %v1620
      %v1653 = vmul.f32 %v1477, %v1621
      %v1654 = vmul.f32 %v1479, %v1622
      %v1655 = vmul.f32 %v1481, %v1623
      %v1656 = vmul.f32 %v1483, %v1624
      %v1657 = vmul.f32 %v1485, %v1625
      %v1658 = vmul.f32 %v1487, %v1626
      %v1659 = vmul.f32 %v1489, %v1627
      %v1660 = vmul.f32 %v1491, %v1628
      %v1661 = vmul.f32 %v1493, %v1629
      %v1662 = vmul.f32 %v1495, %v1630
      %v1663 = vmul.f32 %v1497, %v1631
      %v1664 = vmul.f32 %v1499, %v1632
      %v1665 = vmul.f32 %v1501, %v1633
      %v1666 = vmul.f32 %v1503, %v1634
      %v1667 = vmul.f32 %v1505, %v1635
      %v1668 = vmul.f32 %v1507, %v1636
      %v1669 = vmul.f32 %v1509, %v1637
      %v1670 = vpack.c.bf16 %v1639, %v1638
      %v1671 = vpack.c.bf16 %v1641, %v1640
      %v1672 = vpack.c.bf16 %v1643, %v1642
      %v1673 = vpack.c.bf16 %v1645, %v1644
      %v1674 = vpack.c.bf16 %v1647, %v1646
      %v1675 = vpack.c.bf16 %v1649, %v1648
      %v1676 = vpack.c.bf16 %v1651, %v1650
      %v1677 = vpack.c.bf16 %v1653, %v1652
      %v1678 = vpack.c.bf16 %v1655, %v1654
      %v1679 = vpack.c.bf16 %v1657, %v1656
      %v1680 = vpack.c.bf16 %v1659, %v1658
      %v1681 = vpack.c.bf16 %v1661, %v1660
      %v1682 = vpack.c.bf16 %v1663, %v1662
      %v1683 = vpack.c.bf16 %v1665, %v1664
      %v1684 = vpack.c.bf16 %v1667, %v1666
      %v1685 = vpack.c.bf16 %v1669, %v1668
      %1686 = vrot.lane.b32.xlu0 %v940, 124
      %v1687 = vpop.permute.xlu0 %1686
      %v1690 = vsel %vm567, %v1670, 0
      %v1693 = vsel %vm567, %v1671, 0
      %v1696 = vsel %vm567, %v1672, 0
      %v1699 = vsel %vm567, %v1673, 0
      %v1702 = vsel %vm567, %v1674, 0
      %v1705 = vsel %vm567, %v1675, 0
      %v1708 = vsel %vm567, %v1676, 0
      %v1711 = vsel %vm567, %v1677, 0
      %v1714 = vsel %vm567, %v1678, 0
      %v1717 = vsel %vm567, %v1679, 0
      %v1720 = vsel %vm567, %v1680, 0
      %v1723 = vsel %vm567, %v1681, 0
      %v1726 = vsel %vm567, %v1682, 0
      %v1729 = vsel %vm567, %v1683, 0
      %v1732 = vsel %vm567, %v1684, 0
      %v1735 = vsel %vm567, %v1685, 0
      %1737 = vmatpush.bf16.msra.mxu0 0
      %1738 = vmatpush.bf16.msra.mxu0 0
      %1739 = vmatpush.bf16.msra.mxu0 0
      %1740 = vmatpush.bf16.msra.mxu0 0
      %1741 = vmatpush.bf16.msra.mxu0 0
      %1742 = vmatpush.bf16.msra.mxu0 0
      %1743 = vmatpush.bf16.msra.mxu0 0
      %1744 = vmatpush.bf16.msra.mxu0 %v1687
      %1745 = vmatmul.bf16.gmra.mxu0 %v1690
      %v1746 = vpop.f32.mrf.mxu0
      %v1747 = vadd.f32 0.0, %v1746
      %v1748 = vpop.f32.mrf.mxu0
      %v1749 = vadd.f32 0.0, %v1748
      %1750 = vmatmul.bf16.gmra.mxu0 %v1693
      %v1751 = vpop.f32.mrf.mxu0
      %v1752 = vadd.f32 0.0, %v1751
      %v1753 = vpop.f32.mrf.mxu0
      %v1754 = vadd.f32 0.0, %v1753
      %1755 = vmatmul.bf16.gmra.mxu0 %v1696
      %v1756 = vpop.f32.mrf.mxu0
      %v1757 = vadd.f32 0.0, %v1756
      %v1758 = vpop.f32.mrf.mxu0
      %v1759 = vadd.f32 0.0, %v1758
      %1760 = vmatmul.bf16.gmra.mxu0 %v1699
      %v1761 = vpop.f32.mrf.mxu0
      %v1762 = vadd.f32 0.0, %v1761
      %v1763 = vpop.f32.mrf.mxu0
      %v1764 = vadd.f32 0.0, %v1763
      %1765 = vmatmul.bf16.gmra.mxu0 %v1702
      %v1766 = vpop.f32.mrf.mxu0
      %v1767 = vadd.f32 0.0, %v1766
      %v1768 = vpop.f32.mrf.mxu0
      %v1769 = vadd.f32 0.0, %v1768
      %1770 = vmatmul.bf16.gmra.mxu0 %v1705
      %v1771 = vpop.f32.mrf.mxu0
      %v1772 = vadd.f32 0.0, %v1771
      %v1773 = vpop.f32.mrf.mxu0
      %v1774 = vadd.f32 0.0, %v1773
      %1775 = vmatmul.bf16.gmra.mxu0 %v1708
      %v1776 = vpop.f32.mrf.mxu0
      %v1777 = vadd.f32 0.0, %v1776
      %v1778 = vpop.f32.mrf.mxu0
      %v1779 = vadd.f32 0.0, %v1778
      %1780 = vmatmul.bf16.gmra.mxu0 %v1711
      %v1781 = vpop.f32.mrf.mxu0
      %v1782 = vadd.f32 0.0, %v1781
      %v1783 = vpop.f32.mrf.mxu0
      %v1784 = vadd.f32 0.0, %v1783
      %1785 = vmatmul.bf16.gmra.mxu0 %v1714
      %v1786 = vpop.f32.mrf.mxu0
      %v1787 = vadd.f32 0.0, %v1786
      %v1788 = vpop.f32.mrf.mxu0
      %v1789 = vadd.f32 0.0, %v1788
      %1790 = vmatmul.bf16.gmra.mxu0 %v1717
      %v1791 = vpop.f32.mrf.mxu0
      %v1792 = vadd.f32 0.0, %v1791
      %v1793 = vpop.f32.mrf.mxu0
      %v1794 = vadd.f32 0.0, %v1793
      %1795 = vmatmul.bf16.gmra.mxu0 %v1720
      %v1796 = vpop.f32.mrf.mxu0
      %v1797 = vadd.f32 0.0, %v1796
      %v1798 = vpop.f32.mrf.mxu0
      %v1799 = vadd.f32 0.0, %v1798
      %1800 = vmatmul.bf16.gmra.mxu0 %v1723
      %v1801 = vpop.f32.mrf.mxu0
      %v1802 = vadd.f32 0.0, %v1801
      %v1803 = vpop.f32.mrf.mxu0
      %v1804 = vadd.f32 0.0, %v1803
      %1805 = vmatmul.bf16.gmra.mxu0 %v1726
      %v1806 = vpop.f32.mrf.mxu0
      %v1807 = vadd.f32 0.0, %v1806
      %v1808 = vpop.f32.mrf.mxu0
      %v1809 = vadd.f32 0.0, %v1808
      %1810 = vmatmul.bf16.gmra.mxu0 %v1729
      %v1811 = vpop.f32.mrf.mxu0
      %v1812 = vadd.f32 0.0, %v1811
      %v1813 = vpop.f32.mrf.mxu0
      %v1814 = vadd.f32 0.0, %v1813
      %1815 = vmatmul.bf16.gmra.mxu0 %v1732
      %v1816 = vpop.f32.mrf.mxu0
      %v1817 = vadd.f32 0.0, %v1816
      %v1818 = vpop.f32.mrf.mxu0
      %v1819 = vadd.f32 0.0, %v1818
      %1820 = vmatmul.bf16.gmra.mxu0 %v1735
      %v1821 = vpop.f32.mrf.mxu0
      %v1822 = vadd.f32 0.0, %v1821
      %v1823 = vpop.f32.mrf.mxu0
      %v1824 = vadd.f32 0.0, %v1823
      %1825 = vdwg.mxu0
      %v1826 = vpack.c.bf16 %v1747, %v1747
      %v1827 = vpack.c.bf16 %v1749, %v1749
      %v1828 = vpack.c.bf16 %v1752, %v1752
      %v1829 = vpack.c.bf16 %v1754, %v1754
      %v1830 = vpack.c.bf16 %v1757, %v1757
      %v1831 = vpack.c.bf16 %v1759, %v1759
      %v1832 = vpack.c.bf16 %v1762, %v1762
      %v1833 = vpack.c.bf16 %v1764, %v1764
      %v1834 = vpack.c.bf16 %v1767, %v1767
      %v1835 = vpack.c.bf16 %v1769, %v1769
      %v1836 = vpack.c.bf16 %v1772, %v1772
      %v1837 = vpack.c.bf16 %v1774, %v1774
      %v1838 = vpack.c.bf16 %v1777, %v1777
      %v1839 = vpack.c.bf16 %v1779, %v1779
      %v1840 = vpack.c.bf16 %v1782, %v1782
      %v1841 = vpack.c.bf16 %v1784, %v1784
      %v1842 = vpack.c.bf16 %v1787, %v1787
      %v1843 = vpack.c.bf16 %v1789, %v1789
      %v1844 = vpack.c.bf16 %v1792, %v1792
      %v1845 = vpack.c.bf16 %v1794, %v1794
      %v1846 = vpack.c.bf16 %v1797, %v1797
      %v1847 = vpack.c.bf16 %v1799, %v1799
      %v1848 = vpack.c.bf16 %v1802, %v1802
      %v1849 = vpack.c.bf16 %v1804, %v1804
      %v1850 = vpack.c.bf16 %v1807, %v1807
      %v1851 = vpack.c.bf16 %v1809, %v1809
      %v1852 = vpack.c.bf16 %v1812, %v1812
      %v1853 = vpack.c.bf16 %v1814, %v1814
      %v1854 = vpack.c.bf16 %v1817, %v1817
      %v1855 = vpack.c.bf16 %v1819, %v1819
      %v1856 = vpack.c.bf16 %v1822, %v1822
      %v1857 = vpack.c.bf16 %v1824, %v1824
      %1890 = vrot.lane.b32.xlu0 %v1826, 4
      %v1891 = vpop.permute.xlu0 %1890
      %1892 = vrot.lane.b32.xlu0 %v1827, 4
      %v1893 = vpop.permute.xlu0 %1892
      %1894 = vrot.lane.b32.xlu0 %v1828, 4
      %v1895 = vpop.permute.xlu0 %1894
      %1896 = vrot.lane.b32.xlu0 %v1829, 4
      %v1897 = vpop.permute.xlu0 %1896
      %1898 = vrot.lane.b32.xlu0 %v1830, 4
      %v1899 = vpop.permute.xlu0 %1898
      %1900 = vrot.lane.b32.xlu0 %v1831, 4
      %v1901 = vpop.permute.xlu0 %1900
      %1902 = vrot.lane.b32.xlu0 %v1832, 4
      %v1903 = vpop.permute.xlu0 %1902
      %1904 = vrot.lane.b32.xlu0 %v1833, 4
      %v1905 = vpop.permute.xlu0 %1904
      %1906 = vrot.lane.b32.xlu0 %v1834, 4
      %v1907 = vpop.permute.xlu0 %1906
      %1908 = vrot.lane.b32.xlu0 %v1835, 4
      %v1909 = vpop.permute.xlu0 %1908
      %1910 = vrot.lane.b32.xlu0 %v1836, 4
      %v1911 = vpop.permute.xlu0 %1910
      %1912 = vrot.lane.b32.xlu0 %v1837, 4
      %v1913 = vpop.permute.xlu0 %1912
      %1914 = vrot.lane.b32.xlu0 %v1838, 4
      %v1915 = vpop.permute.xlu0 %1914
      %1916 = vrot.lane.b32.xlu0 %v1839, 4
      %v1917 = vpop.permute.xlu0 %1916
      %1918 = vrot.lane.b32.xlu0 %v1840, 4
      %v1919 = vpop.permute.xlu0 %1918
      %1920 = vrot.lane.b32.xlu0 %v1841, 4
      %v1921 = vpop.permute.xlu0 %1920
      %1922 = vrot.lane.b32.xlu0 %v1842, 4
      %v1923 = vpop.permute.xlu0 %1922
      %1924 = vrot.lane.b32.xlu0 %v1843, 4
      %v1925 = vpop.permute.xlu0 %1924
      %1926 = vrot.lane.b32.xlu0 %v1844, 4
      %v1927 = vpop.permute.xlu0 %1926
      %1928 = vrot.lane.b32.xlu0 %v1845, 4
      %v1929 = vpop.permute.xlu0 %1928
      %1930 = vrot.lane.b32.xlu0 %v1846, 4
      %v1931 = vpop.permute.xlu0 %1930
      %1932 = vrot.lane.b32.xlu0 %v1847, 4
      %v1933 = vpop.permute.xlu0 %1932
      %1934 = vrot.lane.b32.xlu0 %v1848, 4
      %v1935 = vpop.permute.xlu0 %1934
      %1936 = vrot.lane.b32.xlu0 %v1849, 4
      %v1937 = vpop.permute.xlu0 %1936
      %1938 = vrot.lane.b32.xlu0 %v1850, 4
      %v1939 = vpop.permute.xlu0 %1938
      %1940 = vrot.lane.b32.xlu0 %v1851, 4
      %v1941 = vpop.permute.xlu0 %1940
      %1942 = vrot.lane.b32.xlu0 %v1852, 4
      %v1943 = vpop.permute.xlu0 %1942
      %1944 = vrot.lane.b32.xlu0 %v1853, 4
      %v1945 = vpop.permute.xlu0 %1944
      %1946 = vrot.lane.b32.xlu0 %v1854, 4
      %v1947 = vpop.permute.xlu0 %1946
      %1948 = vrot.lane.b32.xlu0 %v1855, 4
      %v1949 = vpop.permute.xlu0 %1948
      %1950 = vrot.lane.b32.xlu0 %v1856, 4
      %v1951 = vpop.permute.xlu0 %1950
      %1952 = vrot.lane.b32.xlu0 %v1857, 4
      %v1953 = vpop.permute.xlu0 %1952
      %vm1986 = vcmask 60448
      %1987 = vst.msk [vmem:[#allocation2] sm:$0xf] %vm1986, %v1891
      %1988 = vst.msk [vmem:[#allocation2 + $0x4] sm:$0xf] %vm1986, %v1893
      %1989 = vst.msk [vmem:[#allocation2 + $0x8] sm:$0xf] %vm1986, %v1895
      %1990 = vst.msk [vmem:[#allocation2 + $0xc] sm:$0xf] %vm1986, %v1897
      %1991 = vst.msk [vmem:[#allocation2 + $0x10] sm:$0xf] %vm1986, %v1899
      %1992 = vst.msk [vmem:[#allocation2 + $0x14] sm:$0xf] %vm1986, %v1901
      %1993 = vst.msk [vmem:[#allocation2 + $0x18] sm:$0xf] %vm1986, %v1903
      %1994 = vst.msk [vmem:[#allocation2 + $0x1c] sm:$0xf] %vm1986, %v1905
      %1995 = vst.msk [vmem:[#allocation2 + $0x20] sm:$0xf] %vm1986, %v1907
      %1996 = vst.msk [vmem:[#allocation2 + $0x24] sm:$0xf] %vm1986, %v1909
      %1997 = vst.msk [vmem:[#allocation2 + $0x28] sm:$0xf] %vm1986, %v1911
      %1998 = vst.msk [vmem:[#allocation2 + $0x2c] sm:$0xf] %vm1986, %v1913
      %1999 = vst.msk [vmem:[#allocation2 + $0x30] sm:$0xf] %vm1986, %v1915
      %2000 = vst.msk [vmem:[#allocation2 + $0x34] sm:$0xf] %vm1986, %v1917
      %2001 = vst.msk [vmem:[#allocation2 + $0x38] sm:$0xf] %vm1986, %v1919
      %2002 = vst.msk [vmem:[#allocation2 + $0x3c] sm:$0xf] %vm1986, %v1921
      %2003 = vst.msk [vmem:[#allocation2 + $0x40] sm:$0xf] %vm1986, %v1923
      %2004 = vst.msk [vmem:[#allocation2 + $0x44] sm:$0xf] %vm1986, %v1925
      %2005 = vst.msk [vmem:[#allocation2 + $0x48] sm:$0xf] %vm1986, %v1927
      %2006 = vst.msk [vmem:[#allocation2 + $0x4c] sm:$0xf] %vm1986, %v1929
      %2007 = vst.msk [vmem:[#allocation2 + $0x50] sm:$0xf] %vm1986, %v1931
      %2008 = vst.msk [vmem:[#allocation2 + $0x54] sm:$0xf] %vm1986, %v1933
      %2009 = vst.msk [vmem:[#allocation2 + $0x58] sm:$0xf] %vm1986, %v1935
      %2010 = vst.msk [vmem:[#allocation2 + $0x5c] sm:$0xf] %vm1986, %v1937
      %2011 = vst.msk [vmem:[#allocation2 + $0x60] sm:$0xf] %vm1986, %v1939
      %2012 = vst.msk [vmem:[#allocation2 + $0x64] sm:$0xf] %vm1986, %v1941
      %2013 = vst.msk [vmem:[#allocation2 + $0x68] sm:$0xf] %vm1986, %v1943
      %2014 = vst.msk [vmem:[#allocation2 + $0x6c] sm:$0xf] %vm1986, %v1945
      %2015 = vst.msk [vmem:[#allocation2 + $0x70] sm:$0xf] %vm1986, %v1947
      %2016 = vst.msk [vmem:[#allocation2 + $0x74] sm:$0xf] %vm1986, %v1949
      %2017 = vst.msk [vmem:[#allocation2 + $0x78] sm:$0xf] %vm1986, %v1951
      %2018 = vst.msk [vmem:[#allocation2 + $0x7c] sm:$0xf] %vm1986, %v1953
      %2019 = vrot.lane.b32.xlu0 %v405, 120
      %v2020 = vpop.permute.xlu0 %2019
      %2021 = vrot.lane.b32.xlu0 %v406, 120
      %v2022 = vpop.permute.xlu0 %2021
      %2023 = vrot.lane.b32.xlu0 %v407, 120
      %v2024 = vpop.permute.xlu0 %2023
      %2025 = vrot.lane.b32.xlu0 %v408, 120
      %v2026 = vpop.permute.xlu0 %2025
      %2027 = vrot.lane.b32.xlu0 %v409, 120
      %v2028 = vpop.permute.xlu0 %2027
      %2029 = vrot.lane.b32.xlu0 %v410, 120
      %v2030 = vpop.permute.xlu0 %2029
      %2031 = vrot.lane.b32.xlu0 %v411, 120
      %v2032 = vpop.permute.xlu0 %2031
      %2033 = vrot.lane.b32.xlu0 %v412, 120
      %v2034 = vpop.permute.xlu0 %2033
      %2035 = vrot.lane.b32.xlu0 %v413, 120
      %v2036 = vpop.permute.xlu0 %2035
      %2037 = vrot.lane.b32.xlu0 %v414, 120
      %v2038 = vpop.permute.xlu0 %2037
      %2039 = vrot.lane.b32.xlu0 %v415, 120
      %v2040 = vpop.permute.xlu0 %2039
      %2041 = vrot.lane.b32.xlu0 %v416, 120
      %v2042 = vpop.permute.xlu0 %2041
      %2043 = vrot.lane.b32.xlu0 %v417, 120
      %v2044 = vpop.permute.xlu0 %2043
      %2045 = vrot.lane.b32.xlu0 %v418, 120
      %v2046 = vpop.permute.xlu0 %2045
      %2047 = vrot.lane.b32.xlu0 %v419, 120
      %v2048 = vpop.permute.xlu0 %2047
      %2049 = vrot.lane.b32.xlu0 %v420, 120
      %v2050 = vpop.permute.xlu0 %2049
      %2051 = vrot.lane.b32.xlu0 %v425, 120
      %v2052 = vpop.permute.xlu0 %2051
      %v2054 = vsel %vm426, %v2020, 0
      %v2057 = vsel %vm426, %v2022, 0
      %v2060 = vsel %vm426, %v2024, 0
      %v2063 = vsel %vm426, %v2026, 0
      %v2066 = vsel %vm426, %v2028, 0
      %v2069 = vsel %vm426, %v2030, 0
      %v2072 = vsel %vm426, %v2032, 0
      %v2075 = vsel %vm426, %v2034, 0
      %v2078 = vsel %vm426, %v2036, 0
      %v2081 = vsel %vm426, %v2038, 0
      %v2084 = vsel %vm426, %v2040, 0
      %v2087 = vsel %vm426, %v2042, 0
      %v2090 = vsel %vm426, %v2044, 0
      %v2093 = vsel %vm426, %v2046, 0
      %v2096 = vsel %vm426, %v2048, 0
      %v2099 = vsel %vm426, %v2050, 0
      %v2102 = vsel %vm426, %v2052, 0
      %2104 = vmatpush.bf16.xpose.msra.mxu0 0
      %2105 = vmatpush.bf16.xpose.msra.mxu0 0
      %2106 = vmatpush.bf16.xpose.msra.mxu0 0
      %2107 = vmatpush.bf16.xpose.msra.mxu0 0
      %2108 = vmatpush.bf16.xpose.msra.mxu0 0
      %2109 = vmatpush.bf16.xpose.msra.mxu0 0
      %2110 = vmatpush.bf16.xpose.msra.mxu0 0
      %2111 = vmatpush.bf16.xpose.msra.mxu0 %v2102
      %2112 = vmatmul.bf16.gmra.mxu0 %v2054
      %v2113 = vpop.f32.mrf.mxu0
      %v2114 = vadd.f32 0.0, %v2113
      %v2115 = vpop.f32.mrf.mxu0
      %v2116 = vadd.f32 0.0, %v2115
      %2117 = vmatmul.bf16.gmra.mxu0 %v2057
      %v2118 = vpop.f32.mrf.mxu0
      %v2119 = vadd.f32 0.0, %v2118
      %v2120 = vpop.f32.mrf.mxu0
      %v2121 = vadd.f32 0.0, %v2120
      %2122 = vmatmul.bf16.gmra.mxu0 %v2060
      %v2123 = vpop.f32.mrf.mxu0
      %v2124 = vadd.f32 0.0, %v2123
      %v2125 = vpop.f32.mrf.mxu0
      %v2126 = vadd.f32 0.0, %v2125
      %2127 = vmatmul.bf16.gmra.mxu0 %v2063
      %v2128 = vpop.f32.mrf.mxu0
      %v2129 = vadd.f32 0.0, %v2128
      %v2130 = vpop.f32.mrf.mxu0
      %v2131 = vadd.f32 0.0, %v2130
      %2132 = vmatmul.bf16.gmra.mxu0 %v2066
      %v2133 = vpop.f32.mrf.mxu0
      %v2134 = vadd.f32 0.0, %v2133
      %v2135 = vpop.f32.mrf.mxu0
      %v2136 = vadd.f32 0.0, %v2135
      %2137 = vmatmul.bf16.gmra.mxu0 %v2069
      %v2138 = vpop.f32.mrf.mxu0
      %v2139 = vadd.f32 0.0, %v2138
      %v2140 = vpop.f32.mrf.mxu0
      %v2141 = vadd.f32 0.0, %v2140
      %2142 = vmatmul.bf16.gmra.mxu0 %v2072
      %v2143 = vpop.f32.mrf.mxu0
      %v2144 = vadd.f32 0.0, %v2143
      %v2145 = vpop.f32.mrf.mxu0
      %v2146 = vadd.f32 0.0, %v2145
      %2147 = vmatmul.bf16.gmra.mxu0 %v2075
      %v2148 = vpop.f32.mrf.mxu0
      %v2149 = vadd.f32 0.0, %v2148
      %v2150 = vpop.f32.mrf.mxu0
      %v2151 = vadd.f32 0.0, %v2150
      %2152 = vmatmul.bf16.gmra.mxu0 %v2078
      %v2153 = vpop.f32.mrf.mxu0
      %v2154 = vadd.f32 0.0, %v2153
      %v2155 = vpop.f32.mrf.mxu0
      %v2156 = vadd.f32 0.0, %v2155
      %2157 = vmatmul.bf16.gmra.mxu0 %v2081
      %v2158 = vpop.f32.mrf.mxu0
      %v2159 = vadd.f32 0.0, %v2158
      %v2160 = vpop.f32.mrf.mxu0
      %v2161 = vadd.f32 0.0, %v2160
      %2162 = vmatmul.bf16.gmra.mxu0 %v2084
      %v2163 = vpop.f32.mrf.mxu0
      %v2164 = vadd.f32 0.0, %v2163
      %v2165 = vpop.f32.mrf.mxu0
      %v2166 = vadd.f32 0.0, %v2165
      %2167 = vmatmul.bf16.gmra.mxu0 %v2087
      %v2168 = vpop.f32.mrf.mxu0
      %v2169 = vadd.f32 0.0, %v2168
      %v2170 = vpop.f32.mrf.mxu0
      %v2171 = vadd.f32 0.0, %v2170
      %2172 = vmatmul.bf16.gmra.mxu0 %v2090
      %v2173 = vpop.f32.mrf.mxu0
      %v2174 = vadd.f32 0.0, %v2173
      %v2175 = vpop.f32.mrf.mxu0
      %v2176 = vadd.f32 0.0, %v2175
      %2177 = vmatmul.bf16.gmra.mxu0 %v2093
      %v2178 = vpop.f32.mrf.mxu0
      %v2179 = vadd.f32 0.0, %v2178
      %v2180 = vpop.f32.mrf.mxu0
      %v2181 = vadd.f32 0.0, %v2180
      %2182 = vmatmul.bf16.gmra.mxu0 %v2096
      %v2183 = vpop.f32.mrf.mxu0
      %v2184 = vadd.f32 0.0, %v2183
      %v2185 = vpop.f32.mrf.mxu0
      %v2186 = vadd.f32 0.0, %v2185
      %2187 = vmatmul.bf16.gmra.mxu0 %v2099
      %v2188 = vpop.f32.mrf.mxu0
      %v2189 = vadd.f32 0.0, %v2188
      %v2190 = vpop.f32.mrf.mxu0
      %v2191 = vadd.f32 0.0, %v2190
      %2192 = vdwg.mxu0
      %v2193 = vsel %vm567, %v2114, -inf
      %2194 = vmax.xlane.f32.xlu0 %v2193
      %v2195 = vpop.xlane.xlu0 %2194
      %v2196 = vsel %vm567, %v2116, -inf
      %2197 = vmax.xlane.f32.xlu0 %v2196
      %v2198 = vpop.xlane.xlu0 %2197
      %v2199 = vsel %vm567, %v2119, -inf
      %2200 = vmax.xlane.f32.xlu0 %v2199
      %v2201 = vpop.xlane.xlu0 %2200
      %v2202 = vsel %vm567, %v2121, -inf
      %2203 = vmax.xlane.f32.xlu0 %v2202
      %v2204 = vpop.xlane.xlu0 %2203
      %v2205 = vsel %vm567, %v2124, -inf
      %2206 = vmax.xlane.f32.xlu0 %v2205
      %v2207 = vpop.xlane.xlu0 %2206
      %v2208 = vsel %vm567, %v2126, -inf
      %2209 = vmax.xlane.f32.xlu0 %v2208
      %v2210 = vpop.xlane.xlu0 %2209
      %v2211 = vsel %vm567, %v2129, -inf
      %2212 = vmax.xlane.f32.xlu0 %v2211
      %v2213 = vpop.xlane.xlu0 %2212
      %v2214 = vsel %vm567, %v2131, -inf
      %2215 = vmax.xlane.f32.xlu0 %v2214
      %v2216 = vpop.xlane.xlu0 %2215
      %v2217 = vsel %vm567, %v2134, -inf
      %2218 = vmax.xlane.f32.xlu0 %v2217
      %v2219 = vpop.xlane.xlu0 %2218
      %v2220 = vsel %vm567, %v2136, -inf
      %2221 = vmax.xlane.f32.xlu0 %v2220
      %v2222 = vpop.xlane.xlu0 %2221
      %v2223 = vsel %vm567, %v2139, -inf
      %2224 = vmax.xlane.f32.xlu0 %v2223
      %v2225 = vpop.xlane.xlu0 %2224
      %v2226 = vsel %vm567, %v2141, -inf
      %2227 = vmax.xlane.f32.xlu0 %v2226
      %v2228 = vpop.xlane.xlu0 %2227
      %v2229 = vsel %vm567, %v2144, -inf
      %2230 = vmax.xlane.f32.xlu0 %v2229
      %v2231 = vpop.xlane.xlu0 %2230
      %v2232 = vsel %vm567, %v2146, -inf
      %2233 = vmax.xlane.f32.xlu0 %v2232
      %v2234 = vpop.xlane.xlu0 %2233
      %v2235 = vsel %vm567, %v2149, -inf
      %2236 = vmax.xlane.f32.xlu0 %v2235
      %v2237 = vpop.xlane.xlu0 %2236
      %v2238 = vsel %vm567, %v2151, -inf
      %2239 = vmax.xlane.f32.xlu0 %v2238
      %v2240 = vpop.xlane.xlu0 %2239
      %v2241 = vsel %vm567, %v2154, -inf
      %2242 = vmax.xlane.f32.xlu0 %v2241
      %v2243 = vpop.xlane.xlu0 %2242
      %v2244 = vsel %vm567, %v2156, -inf
      %2245 = vmax.xlane.f32.xlu0 %v2244
      %v2246 = vpop.xlane.xlu0 %2245
      %v2247 = vsel %vm567, %v2159, -inf
      %2248 = vmax.xlane.f32.xlu0 %v2247
      %v2249 = vpop.xlane.xlu0 %2248
      %v2250 = vsel %vm567, %v2161, -inf
      %2251 = vmax.xlane.f32.xlu0 %v2250
      %v2252 = vpop.xlane.xlu0 %2251
      %v2253 = vsel %vm567, %v2164, -inf
      %2254 = vmax.xlane.f32.xlu0 %v2253
      %v2255 = vpop.xlane.xlu0 %2254
      %v2256 = vsel %vm567, %v2166, -inf
      %2257 = vmax.xlane.f32.xlu0 %v2256
      %v2258 = vpop.xlane.xlu0 %2257
      %v2259 = vsel %vm567, %v2169, -inf
      %2260 = vmax.xlane.f32.xlu0 %v2259
      %v2261 = vpop.xlane.xlu0 %2260
      %v2262 = vsel %vm567, %v2171, -inf
      %2263 = vmax.xlane.f32.xlu0 %v2262
      %v2264 = vpop.xlane.xlu0 %2263
      %v2265 = vsel %vm567, %v2174, -inf
      %2266 = vmax.xlane.f32.xlu0 %v2265
      %v2267 = vpop.xlane.xlu0 %2266
      %v2268 = vsel %vm567, %v2176, -inf
      %2269 = vmax.xlane.f32.xlu0 %v2268
      %v2270 = vpop.xlane.xlu0 %2269
      %v2271 = vsel %vm567, %v2179, -inf
      %2272 = vmax.xlane.f32.xlu0 %v2271
      %v2273 = vpop.xlane.xlu0 %2272
      %v2274 = vsel %vm567, %v2181, -inf
      %2275 = vmax.xlane.f32.xlu0 %v2274
      %v2276 = vpop.xlane.xlu0 %2275
      %v2277 = vsel %vm567, %v2184, -inf
      %2278 = vmax.xlane.f32.xlu0 %v2277
      %v2279 = vpop.xlane.xlu0 %2278
      %v2280 = vsel %vm567, %v2186, -inf
      %2281 = vmax.xlane.f32.xlu0 %v2280
      %v2282 = vpop.xlane.xlu0 %2281
      %v2283 = vsel %vm567, %v2189, -inf
      %2284 = vmax.xlane.f32.xlu0 %v2283
      %v2285 = vpop.xlane.xlu0 %2284
      %v2286 = vsel %vm567, %v2191, -inf
      %2287 = vmax.xlane.f32.xlu0 %v2286
      %v2288 = vpop.xlane.xlu0 %2287
      %v2289 = vsub.f32 %v2114, %v2195
      %v2290 = vsub.f32 %v2116, %v2198
      %v2291 = vsub.f32 %v2119, %v2201
      %v2292 = vsub.f32 %v2121, %v2204
      %v2293 = vsub.f32 %v2124, %v2207
      %v2294 = vsub.f32 %v2126, %v2210
      %v2295 = vsub.f32 %v2129, %v2213
      %v2296 = vsub.f32 %v2131, %v2216
      %v2297 = vsub.f32 %v2134, %v2219
      %v2298 = vsub.f32 %v2136, %v2222
      %v2299 = vsub.f32 %v2139, %v2225
      %v2300 = vsub.f32 %v2141, %v2228
      %v2301 = vsub.f32 %v2144, %v2231
      %v2302 = vsub.f32 %v2146, %v2234
      %v2303 = vsub.f32 %v2149, %v2237
      %v2304 = vsub.f32 %v2151, %v2240
      %v2305 = vsub.f32 %v2154, %v2243
      %v2306 = vsub.f32 %v2156, %v2246
      %v2307 = vsub.f32 %v2159, %v2249
      %v2308 = vsub.f32 %v2161, %v2252
      %v2309 = vsub.f32 %v2164, %v2255
      %v2310 = vsub.f32 %v2166, %v2258
      %v2311 = vsub.f32 %v2169, %v2261
      %v2312 = vsub.f32 %v2171, %v2264
      %v2313 = vsub.f32 %v2174, %v2267
      %v2314 = vsub.f32 %v2176, %v2270
      %v2315 = vsub.f32 %v2179, %v2273
      %v2316 = vsub.f32 %v2181, %v2276
      %v2317 = vsub.f32 %v2184, %v2279
      %v2318 = vsub.f32 %v2186, %v2282
      %v2319 = vsub.f32 %v2189, %v2285
      %v2320 = vsub.f32 %v2191, %v2288
      %v2321 = vmul.f32 %v2289, 1.442695
      %v2322 = vpow.pop %v2321
      %v2323 = vmul.f32 %v2290, 1.442695
      %v2324 = vpow.pop %v2323
      %v2325 = vmul.f32 %v2291, 1.442695
      %v2326 = vpow.pop %v2325
      %v2327 = vmul.f32 %v2292, 1.442695
      %v2328 = vpow.pop %v2327
      %v2329 = vmul.f32 %v2293, 1.442695
      %v2330 = vpow.pop %v2329
      %v2331 = vmul.f32 %v2294, 1.442695
      %v2332 = vpow.pop %v2331
      %v2333 = vmul.f32 %v2295, 1.442695
      %v2334 = vpow.pop %v2333
      %v2335 = vmul.f32 %v2296, 1.442695
      %v2336 = vpow.pop %v2335
      %v2337 = vmul.f32 %v2297, 1.442695
      %v2338 = vpow.pop %v2337
      %v2339 = vmul.f32 %v2298, 1.442695
      %v2340 = vpow.pop %v2339
      %v2341 = vmul.f32 %v2299, 1.442695
      %v2342 = vpow.pop %v2341
      %v2343 = vmul.f32 %v2300, 1.442695
      %v2344 = vpow.pop %v2343
      %v2345 = vmul.f32 %v2301, 1.442695
      %v2346 = vpow.pop %v2345
      %v2347 = vmul.f32 %v2302, 1.442695
      %v2348 = vpow.pop %v2347
      %v2349 = vmul.f32 %v2303, 1.442695
      %v2350 = vpow.pop %v2349
      %v2351 = vmul.f32 %v2304, 1.442695
      %v2352 = vpow.pop %v2351
      %v2353 = vmul.f32 %v2305, 1.442695
      %v2354 = vpow.pop %v2353
      %v2355 = vmul.f32 %v2306, 1.442695
      %v2356 = vpow.pop %v2355
      %v2357 = vmul.f32 %v2307, 1.442695
      %v2358 = vpow.pop %v2357
      %v2359 = vmul.f32 %v2308, 1.442695
      %v2360 = vpow.pop %v2359
      %v2361 = vmul.f32 %v2309, 1.442695
      %v2362 = vpow.pop %v2361
      %v2363 = vmul.f32 %v2310, 1.442695
      %v2364 = vpow.pop %v2363
      %v2365 = vmul.f32 %v2311, 1.442695
      %v2366 = vpow.pop %v2365
      %v2367 = vmul.f32 %v2312, 1.442695
      %v2368 = vpow.pop %v2367
      %v2369 = vmul.f32 %v2313, 1.442695
      %v2370 = vpow.pop %v2369
      %v2371 = vmul.f32 %v2314, 1.442695
      %v2372 = vpow.pop %v2371
      %v2373 = vmul.f32 %v2315, 1.442695
      %v2374 = vpow.pop %v2373
      %v2375 = vmul.f32 %v2316, 1.442695
      %v2376 = vpow.pop %v2375
      %v2377 = vmul.f32 %v2317, 1.442695
      %v2378 = vpow.pop %v2377
      %v2379 = vmul.f32 %v2318, 1.442695
      %v2380 = vpow.pop %v2379
      %v2381 = vmul.f32 %v2319, 1.442695
      %v2382 = vpow.pop %v2381
      %v2383 = vmul.f32 %v2320, 1.442695
      %v2384 = vpow.pop %v2383
      %v2385 = vsel %vm567, %v2322, 0.0
      %2386 = vadd.xlane.f32.xlu0 %v2385
      %v2387 = vpop.xlane.xlu0 %2386
      %v2388 = vsel %vm567, %v2324, 0.0
      %2389 = vadd.xlane.f32.xlu0 %v2388
      %v2390 = vpop.xlane.xlu0 %2389
      %v2391 = vsel %vm567, %v2326, 0.0
      %2392 = vadd.xlane.f32.xlu0 %v2391
      %v2393 = vpop.xlane.xlu0 %2392
      %v2394 = vsel %vm567, %v2328, 0.0
      %2395 = vadd.xlane.f32.xlu0 %v2394
      %v2396 = vpop.xlane.xlu0 %2395
      %v2397 = vsel %vm567, %v2330, 0.0
      %2398 = vadd.xlane.f32.xlu0 %v2397
      %v2399 = vpop.xlane.xlu0 %2398
      %v2400 = vsel %vm567, %v2332, 0.0
      %2401 = vadd.xlane.f32.xlu0 %v2400
      %v2402 = vpop.xlane.xlu0 %2401
      %v2403 = vsel %vm567, %v2334, 0.0
      %2404 = vadd.xlane.f32.xlu0 %v2403
      %v2405 = vpop.xlane.xlu0 %2404
      %v2406 = vsel %vm567, %v2336, 0.0
      %2407 = vadd.xlane.f32.xlu0 %v2406
      %v2408 = vpop.xlane.xlu0 %2407
      %v2409 = vsel %vm567, %v2338, 0.0
      %2410 = vadd.xlane.f32.xlu0 %v2409
      %v2411 = vpop.xlane.xlu0 %2410
      %v2412 = vsel %vm567, %v2340, 0.0
      %2413 = vadd.xlane.f32.xlu0 %v2412
      %v2414 = vpop.xlane.xlu0 %2413
      %v2415 = vsel %vm567, %v2342, 0.0
      %2416 = vadd.xlane.f32.xlu0 %v2415
      %v2417 = vpop.xlane.xlu0 %2416
      %v2418 = vsel %vm567, %v2344, 0.0
      %2419 = vadd.xlane.f32.xlu0 %v2418
      %v2420 = vpop.xlane.xlu0 %2419
      %v2421 = vsel %vm567, %v2346, 0.0
      %2422 = vadd.xlane.f32.xlu0 %v2421
      %v2423 = vpop.xlane.xlu0 %2422
      %v2424 = vsel %vm567, %v2348, 0.0
      %2425 = vadd.xlane.f32.xlu0 %v2424
      %v2426 = vpop.xlane.xlu0 %2425
      %v2427 = vsel %vm567, %v2350, 0.0
      %2428 = vadd.xlane.f32.xlu0 %v2427
      %v2429 = vpop.xlane.xlu0 %2428
      %v2430 = vsel %vm567, %v2352, 0.0
      %2431 = vadd.xlane.f32.xlu0 %v2430
      %v2432 = vpop.xlane.xlu0 %2431
      %v2433 = vsel %vm567, %v2354, 0.0
      %2434 = vadd.xlane.f32.xlu0 %v2433
      %v2435 = vpop.xlane.xlu0 %2434
      %v2436 = vsel %vm567, %v2356, 0.0
      %2437 = vadd.xlane.f32.xlu0 %v2436
      %v2438 = vpop.xlane.xlu0 %2437
      %v2439 = vsel %vm567, %v2358, 0.0
      %2440 = vadd.xlane.f32.xlu0 %v2439
      %v2441 = vpop.xlane.xlu0 %2440
      %v2442 = vsel %vm567, %v2360, 0.0
      %2443 = vadd.xlane.f32.xlu0 %v2442
      %v2444 = vpop.xlane.xlu0 %2443
      %v2445 = vsel %vm567, %v2362, 0.0
      %2446 = vadd.xlane.f32.xlu0 %v2445
      %v2447 = vpop.xlane.xlu0 %2446
      %v2448 = vsel %vm567, %v2364, 0.0
      %2449 = vadd.xlane.f32.xlu0 %v2448
      %v2450 = vpop.xlane.xlu0 %2449
      %v2451 = vsel %vm567, %v2366, 0.0
      %2452 = vadd.xlane.f32.xlu0 %v2451
      %v2453 = vpop.xlane.xlu0 %2452
      %v2454 = vsel %vm567, %v2368, 0.0
      %2455 = vadd.xlane.f32.xlu0 %v2454
      %v2456 = vpop.xlane.xlu0 %2455
      %v2457 = vsel %vm567, %v2370, 0.0
      %2458 = vadd.xlane.f32.xlu0 %v2457
      %v2459 = vpop.xlane.xlu0 %2458
      %v2460 = vsel %vm567, %v2372, 0.0
      %2461 = vadd.xlane.f32.xlu0 %v2460
      %v2462 = vpop.xlane.xlu0 %2461
      %v2463 = vsel %vm567, %v2374, 0.0
      %2464 = vadd.xlane.f32.xlu0 %v2463
      %v2465 = vpop.xlane.xlu0 %2464
      %v2466 = vsel %vm567, %v2376, 0.0
      %2467 = vadd.xlane.f32.xlu0 %v2466
      %v2468 = vpop.xlane.xlu0 %2467
      %v2469 = vsel %vm567, %v2378, 0.0
      %2470 = vadd.xlane.f32.xlu0 %v2469
      %v2471 = vpop.xlane.xlu0 %2470
      %v2472 = vsel %vm567, %v2380, 0.0
      %2473 = vadd.xlane.f32.xlu0 %v2472
      %v2474 = vpop.xlane.xlu0 %2473
      %v2475 = vsel %vm567, %v2382, 0.0
      %2476 = vadd.xlane.f32.xlu0 %v2475
      %v2477 = vpop.xlane.xlu0 %2476
      %v2478 = vsel %vm567, %v2384, 0.0
      %2479 = vadd.xlane.f32.xlu0 %v2478
      %v2480 = vpop.xlane.xlu0 %2479
      %v2481 = vrcp.pop %v2387
      %v2482 = vrcp.pop %v2390
      %v2483 = vrcp.pop %v2393
      %v2484 = vrcp.pop %v2396
      %v2485 = vrcp.pop %v2399
      %v2486 = vrcp.pop %v2402
      %v2487 = vrcp.pop %v2405
      %v2488 = vrcp.pop %v2408
      %v2489 = vrcp.pop %v2411
      %v2490 = vrcp.pop %v2414
      %v2491 = vrcp.pop %v2417
      %v2492 = vrcp.pop %v2420
      %v2493 = vrcp.pop %v2423
      %v2494 = vrcp.pop %v2426
      %v2495 = vrcp.pop %v2429
      %v2496 = vrcp.pop %v2432
      %v2497 = vrcp.pop %v2435
      %v2498 = vrcp.pop %v2438
      %v2499 = vrcp.pop %v2441
      %v2500 = vrcp.pop %v2444
      %v2501 = vrcp.pop %v2447
      %v2502 = vrcp.pop %v2450
      %v2503 = vrcp.pop %v2453
      %v2504 = vrcp.pop %v2456
      %v2505 = vrcp.pop %v2459
      %v2506 = vrcp.pop %v2462
      %v2507 = vrcp.pop %v2465
      %v2508 = vrcp.pop %v2468
      %v2509 = vrcp.pop %v2471
      %v2510 = vrcp.pop %v2474
      %v2511 = vrcp.pop %v2477
      %v2512 = vrcp.pop %v2480
      %v2513 = vmul.f32 %v2322, %v2481
      %v2514 = vmul.f32 %v2324, %v2482
      %v2515 = vmul.f32 %v2326, %v2483
      %v2516 = vmul.f32 %v2328, %v2484
      %v2517 = vmul.f32 %v2330, %v2485
      %v2518 = vmul.f32 %v2332, %v2486
      %v2519 = vmul.f32 %v2334, %v2487
      %v2520 = vmul.f32 %v2336, %v2488
      %v2521 = vmul.f32 %v2338, %v2489
      %v2522 = vmul.f32 %v2340, %v2490
      %v2523 = vmul.f32 %v2342, %v2491
      %v2524 = vmul.f32 %v2344, %v2492
      %v2525 = vmul.f32 %v2346, %v2493
      %v2526 = vmul.f32 %v2348, %v2494
      %v2527 = vmul.f32 %v2350, %v2495
      %v2528 = vmul.f32 %v2352, %v2496
      %v2529 = vmul.f32 %v2354, %v2497
      %v2530 = vmul.f32 %v2356, %v2498
      %v2531 = vmul.f32 %v2358, %v2499
      %v2532 = vmul.f32 %v2360, %v2500
      %v2533 = vmul.f32 %v2362, %v2501
      %v2534 = vmul.f32 %v2364, %v2502
      %v2535 = vmul.f32 %v2366, %v2503
      %v2536 = vmul.f32 %v2368, %v2504
      %v2537 = vmul.f32 %v2370, %v2505
      %v2538 = vmul.f32 %v2372, %v2506
      %v2539 = vmul.f32 %v2374, %v2507
      %v2540 = vmul.f32 %v2376, %v2508
      %v2541 = vmul.f32 %v2378, %v2509
      %v2542 = vmul.f32 %v2380, %v2510
      %v2543 = vmul.f32 %v2382, %v2511
      %v2544 = vmul.f32 %v2384, %v2512
      %v2545 = vpack.c.bf16 %v2514, %v2513
      %v2546 = vpack.c.bf16 %v2516, %v2515
      %v2547 = vpack.c.bf16 %v2518, %v2517
      %v2548 = vpack.c.bf16 %v2520, %v2519
      %v2549 = vpack.c.bf16 %v2522, %v2521
      %v2550 = vpack.c.bf16 %v2524, %v2523
      %v2551 = vpack.c.bf16 %v2526, %v2525
      %v2552 = vpack.c.bf16 %v2528, %v2527
      %v2553 = vpack.c.bf16 %v2530, %v2529
      %v2554 = vpack.c.bf16 %v2532, %v2531
      %v2555 = vpack.c.bf16 %v2534, %v2533
      %v2556 = vpack.c.bf16 %v2536, %v2535
      %v2557 = vpack.c.bf16 %v2538, %v2537
      %v2558 = vpack.c.bf16 %v2540, %v2539
      %v2559 = vpack.c.bf16 %v2542, %v2541
      %v2560 = vpack.c.bf16 %v2544, %v2543
      %2561 = vrot.lane.b32.xlu0 %v940, 120
      %v2562 = vpop.permute.xlu0 %2561
      %v2565 = vsel %vm567, %v2545, 0
      %v2568 = vsel %vm567, %v2546, 0
      %v2571 = vsel %vm567, %v2547, 0
      %v2574 = vsel %vm567, %v2548, 0
      %v2577 = vsel %vm567, %v2549, 0
      %v2580 = vsel %vm567, %v2550, 0
      %v2583 = vsel %vm567, %v2551, 0
      %v2586 = vsel %vm567, %v2552, 0
      %v2589 = vsel %vm567, %v2553, 0
      %v2592 = vsel %vm567, %v2554, 0
      %v2595 = vsel %vm567, %v2555, 0
      %v2598 = vsel %vm567, %v2556, 0
      %v2601 = vsel %vm567, %v2557, 0
      %v2604 = vsel %vm567, %v2558, 0
      %v2607 = vsel %vm567, %v2559, 0
      %v2610 = vsel %vm567, %v2560, 0
      %2612 = vmatpush.bf16.msra.mxu0 0
      %2613 = vmatpush.bf16.msra.mxu0 0
      %2614 = vmatpush.bf16.msra.mxu0 0
      %2615 = vmatpush.bf16.msra.mxu0 0
      %2616 = vmatpush.bf16.msra.mxu0 0
      %2617 = vmatpush.bf16.msra.mxu0 0
      %2618 = vmatpush.bf16.msra.mxu0 0
      %2619 = vmatpush.bf16.msra.mxu0 %v2562
      %2620 = vmatmul.bf16.gmra.mxu0 %v2565
      %v2621 = vpop.f32.mrf.mxu0
      %v2622 = vadd.f32 0.0, %v2621
      %v2623 = vpop.f32.mrf.mxu0
      %v2624 = vadd.f32 0.0, %v2623
      %2625 = vmatmul.bf16.gmra.mxu0 %v2568
      %v2626 = vpop.f32.mrf.mxu0
      %v2627 = vadd.f32 0.0, %v2626
      %v2628 = vpop.f32.mrf.mxu0
      %v2629 = vadd.f32 0.0, %v2628
      %2630 = vmatmul.bf16.gmra.mxu0 %v2571
      %v2631 = vpop.f32.mrf.mxu0
      %v2632 = vadd.f32 0.0, %v2631
      %v2633 = vpop.f32.mrf.mxu0
      %v2634 = vadd.f32 0.0, %v2633
      %2635 = vmatmul.bf16.gmra.mxu0 %v2574
      %v2636 = vpop.f32.mrf.mxu0
      %v2637 = vadd.f32 0.0, %v2636
      %v2638 = vpop.f32.mrf.mxu0
      %v2639 = vadd.f32 0.0, %v2638
      %2640 = vmatmul.bf16.gmra.mxu0 %v2577
      %v2641 = vpop.f32.mrf.mxu0
      %v2642 = vadd.f32 0.0, %v2641
      %v2643 = vpop.f32.mrf.mxu0
      %v2644 = vadd.f32 0.0, %v2643
      %2645 = vmatmul.bf16.gmra.mxu0 %v2580
      %v2646 = vpop.f32.mrf.mxu0
      %v2647 = vadd.f32 0.0, %v2646
      %v2648 = vpop.f32.mrf.mxu0
      %v2649 = vadd.f32 0.0, %v2648
      %2650 = vmatmul.bf16.gmra.mxu0 %v2583
      %v2651 = vpop.f32.mrf.mxu0
      %v2652 = vadd.f32 0.0, %v2651
      %v2653 = vpop.f32.mrf.mxu0
      %v2654 = vadd.f32 0.0, %v2653
      %2655 = vmatmul.bf16.gmra.mxu0 %v2586
      %v2656 = vpop.f32.mrf.mxu0
      %v2657 = vadd.f32 0.0, %v2656
      %v2658 = vpop.f32.mrf.mxu0
      %v2659 = vadd.f32 0.0, %v2658
      %2660 = vmatmul.bf16.gmra.mxu0 %v2589
      %v2661 = vpop.f32.mrf.mxu0
      %v2662 = vadd.f32 0.0, %v2661
      %v2663 = vpop.f32.mrf.mxu0
      %v2664 = vadd.f32 0.0, %v2663
      %2665 = vmatmul.bf16.gmra.mxu0 %v2592
      %v2666 = vpop.f32.mrf.mxu0
      %v2667 = vadd.f32 0.0, %v2666
      %v2668 = vpop.f32.mrf.mxu0
      %v2669 = vadd.f32 0.0, %v2668
      %2670 = vmatmul.bf16.gmra.mxu0 %v2595
      %v2671 = vpop.f32.mrf.mxu0
      %v2672 = vadd.f32 0.0, %v2671
      %v2673 = vpop.f32.mrf.mxu0
      %v2674 = vadd.f32 0.0, %v2673
      %2675 = vmatmul.bf16.gmra.mxu0 %v2598
      %v2676 = vpop.f32.mrf.mxu0
      %v2677 = vadd.f32 0.0, %v2676
      %v2678 = vpop.f32.mrf.mxu0
      %v2679 = vadd.f32 0.0, %v2678
      %2680 = vmatmul.bf16.gmra.mxu0 %v2601
      %v2681 = vpop.f32.mrf.mxu0
      %v2682 = vadd.f32 0.0, %v2681
      %v2683 = vpop.f32.mrf.mxu0
      %v2684 = vadd.f32 0.0, %v2683
      %2685 = vmatmul.bf16.gmra.mxu0 %v2604
      %v2686 = vpop.f32.mrf.mxu0
      %v2687 = vadd.f32 0.0, %v2686
      %v2688 = vpop.f32.mrf.mxu0
      %v2689 = vadd.f32 0.0, %v2688
      %2690 = vmatmul.bf16.gmra.mxu0 %v2607
      %v2691 = vpop.f32.mrf.mxu0
      %v2692 = vadd.f32 0.0, %v2691
      %v2693 = vpop.f32.mrf.mxu0
      %v2694 = vadd.f32 0.0, %v2693
      %2695 = vmatmul.bf16.gmra.mxu0 %v2610
      %v2696 = vpop.f32.mrf.mxu0
      %v2697 = vadd.f32 0.0, %v2696
      %v2698 = vpop.f32.mrf.mxu0
      %v2699 = vadd.f32 0.0, %v2698
      %2700 = vdwg.mxu0
      %v2701 = vpack.c.bf16 %v2622, %v2622
      %v2702 = vpack.c.bf16 %v2624, %v2624
      %v2703 = vpack.c.bf16 %v2627, %v2627
      %v2704 = vpack.c.bf16 %v2629, %v2629
      %v2705 = vpack.c.bf16 %v2632, %v2632
      %v2706 = vpack.c.bf16 %v2634, %v2634
      %v2707 = vpack.c.bf16 %v2637, %v2637
      %v2708 = vpack.c.bf16 %v2639, %v2639
      %v2709 = vpack.c.bf16 %v2642, %v2642
      %v2710 = vpack.c.bf16 %v2644, %v2644
      %v2711 = vpack.c.bf16 %v2647, %v2647
      %v2712 = vpack.c.bf16 %v2649, %v2649
      %v2713 = vpack.c.bf16 %v2652, %v2652
      %v2714 = vpack.c.bf16 %v2654, %v2654
      %v2715 = vpack.c.bf16 %v2657, %v2657
      %v2716 = vpack.c.bf16 %v2659, %v2659
      %v2717 = vpack.c.bf16 %v2662, %v2662
      %v2718 = vpack.c.bf16 %v2664, %v2664
      %v2719 = vpack.c.bf16 %v2667, %v2667
      %v2720 = vpack.c.bf16 %v2669, %v2669
      %v2721 = vpack.c.bf16 %v2672, %v2672
      %v2722 = vpack.c.bf16 %v2674, %v2674
      %v2723 = vpack.c.bf16 %v2677, %v2677
      %v2724 = vpack.c.bf16 %v2679, %v2679
      %v2725 = vpack.c.bf16 %v2682, %v2682
      %v2726 = vpack.c.bf16 %v2684, %v2684
      %v2727 = vpack.c.bf16 %v2687, %v2687
      %v2728 = vpack.c.bf16 %v2689, %v2689
      %v2729 = vpack.c.bf16 %v2692, %v2692
      %v2730 = vpack.c.bf16 %v2694, %v2694
      %v2731 = vpack.c.bf16 %v2697, %v2697
      %v2732 = vpack.c.bf16 %v2699, %v2699
      %2765 = vrot.lane.b32.xlu0 %v2701, 8
      %v2766 = vpop.permute.xlu0 %2765
      %2767 = vrot.lane.b32.xlu0 %v2702, 8
      %v2768 = vpop.permute.xlu0 %2767
      %2769 = vrot.lane.b32.xlu0 %v2703, 8
      %v2770 = vpop.permute.xlu0 %2769
      %2771 = vrot.lane.b32.xlu0 %v2704, 8
      %v2772 = vpop.permute.xlu0 %2771
      %2773 = vrot.lane.b32.xlu0 %v2705, 8
      %v2774 = vpop.permute.xlu0 %2773
      %2775 = vrot.lane.b32.xlu0 %v2706, 8
      %v2776 = vpop.permute.xlu0 %2775
      %2777 = vrot.lane.b32.xlu0 %v2707, 8
      %v2778 = vpop.permute.xlu0 %2777
      %2779 = vrot.lane.b32.xlu0 %v2708, 8
      %v2780 = vpop.permute.xlu0 %2779
      %2781 = vrot.lane.b32.xlu0 %v2709, 8
      %v2782 = vpop.permute.xlu0 %2781
      %2783 = vrot.lane.b32.xlu0 %v2710, 8
      %v2784 = vpop.permute.xlu0 %2783
      %2785 = vrot.lane.b32.xlu0 %v2711, 8
      %v2786 = vpop.permute.xlu0 %2785
      %2787 = vrot.lane.b32.xlu0 %v2712, 8
      %v2788 = vpop.permute.xlu0 %2787
      %2789 = vrot.lane.b32.xlu0 %v2713, 8
      %v2790 = vpop.permute.xlu0 %2789
      %2791 = vrot.lane.b32.xlu0 %v2714, 8
      %v2792 = vpop.permute.xlu0 %2791
      %2793 = vrot.lane.b32.xlu0 %v2715, 8
      %v2794 = vpop.permute.xlu0 %2793
      %2795 = vrot.lane.b32.xlu0 %v2716, 8
      %v2796 = vpop.permute.xlu0 %2795
      %2797 = vrot.lane.b32.xlu0 %v2717, 8
      %v2798 = vpop.permute.xlu0 %2797
      %2799 = vrot.lane.b32.xlu0 %v2718, 8
      %v2800 = vpop.permute.xlu0 %2799
      %2801 = vrot.lane.b32.xlu0 %v2719, 8
      %v2802 = vpop.permute.xlu0 %2801
      %2803 = vrot.lane.b32.xlu0 %v2720, 8
      %v2804 = vpop.permute.xlu0 %2803
      %2805 = vrot.lane.b32.xlu0 %v2721, 8
      %v2806 = vpop.permute.xlu0 %2805
      %2807 = vrot.lane.b32.xlu0 %v2722, 8
      %v2808 = vpop.permute.xlu0 %2807
      %2809 = vrot.lane.b32.xlu0 %v2723, 8
      %v2810 = vpop.permute.xlu0 %2809
      %2811 = vrot.lane.b32.xlu0 %v2724, 8
      %v2812 = vpop.permute.xlu0 %2811
      %2813 = vrot.lane.b32.xlu0 %v2725, 8
      %v2814 = vpop.permute.xlu0 %2813
      %2815 = vrot.lane.b32.xlu0 %v2726, 8
      %v2816 = vpop.permute.xlu0 %2815
      %2817 = vrot.lane.b32.xlu0 %v2727, 8
      %v2818 = vpop.permute.xlu0 %2817
      %2819 = vrot.lane.b32.xlu0 %v2728, 8
      %v2820 = vpop.permute.xlu0 %2819
      %2821 = vrot.lane.b32.xlu0 %v2729, 8
      %v2822 = vpop.permute.xlu0 %2821
      %2823 = vrot.lane.b32.xlu0 %v2730, 8
      %v2824 = vpop.permute.xlu0 %2823
      %2825 = vrot.lane.b32.xlu0 %v2731, 8
      %v2826 = vpop.permute.xlu0 %2825
      %2827 = vrot.lane.b32.xlu0 %v2732, 8
      %v2828 = vpop.permute.xlu0 %2827
      %vm2861 = vcmask 93248
      %2862 = vst.msk [vmem:[#allocation2] sm:$0xf] %vm2861, %v2766
      %2863 = vst.msk [vmem:[#allocation2 + $0x4] sm:$0xf] %vm2861, %v2768
      %2864 = vst.msk [vmem:[#allocation2 + $0x8] sm:$0xf] %vm2861, %v2770
      %2865 = vst.msk [vmem:[#allocation2 + $0xc] sm:$0xf] %vm2861, %v2772
      %2866 = vst.msk [vmem:[#allocation2 + $0x10] sm:$0xf] %vm2861, %v2774
      %2867 = vst.msk [vmem:[#allocation2 + $0x14] sm:$0xf] %vm2861, %v2776
      %2868 = vst.msk [vmem:[#allocation2 + $0x18] sm:$0xf] %vm2861, %v2778
      %2869 = vst.msk [vmem:[#allocation2 + $0x1c] sm:$0xf] %vm2861, %v2780
      %2870 = vst.msk [vmem:[#allocation2 + $0x20] sm:$0xf] %vm2861, %v2782
      %2871 = vst.msk [vmem:[#allocation2 + $0x24] sm:$0xf] %vm2861, %v2784
      %2872 = vst.msk [vmem:[#allocation2 + $0x28] sm:$0xf] %vm2861, %v2786
      %2873 = vst.msk [vmem:[#allocation2 + $0x2c] sm:$0xf] %vm2861, %v2788
      %2874 = vst.msk [vmem:[#allocation2 + $0x30] sm:$0xf] %vm2861, %v2790
      %2875 = vst.msk [vmem:[#allocation2 + $0x34] sm:$0xf] %vm2861, %v2792
      %2876 = vst.msk [vmem:[#allocation2 + $0x38] sm:$0xf] %vm2861, %v2794
      %2877 = vst.msk [vmem:[#allocation2 + $0x3c] sm:$0xf] %vm2861, %v2796
      %2878 = vst.msk [vmem:[#allocation2 + $0x40] sm:$0xf] %vm2861, %v2798
      %2879 = vst.msk [vmem:[#allocation2 + $0x44] sm:$0xf] %vm2861, %v2800
      %2880 = vst.msk [vmem:[#allocation2 + $0x48] sm:$0xf] %vm2861, %v2802
      %2881 = vst.msk [vmem:[#allocation2 + $0x4c] sm:$0xf] %vm2861, %v2804
      %2882 = vst.msk [vmem:[#allocation2 + $0x50] sm:$0xf] %vm2861, %v2806
      %2883 = vst.msk [vmem:[#allocation2 + $0x54] sm:$0xf] %vm2861, %v2808
      %2884 = vst.msk [vmem:[#allocation2 + $0x58] sm:$0xf] %vm2861, %v2810
      %2885 = vst.msk [vmem:[#allocation2 + $0x5c] sm:$0xf] %vm2861, %v2812
      %2886 = vst.msk [vmem:[#allocation2 + $0x60] sm:$0xf] %vm2861, %v2814
      %2887 = vst.msk [vmem:[#allocation2 + $0x64] sm:$0xf] %vm2861, %v2816
      %2888 = vst.msk [vmem:[#allocation2 + $0x68] sm:$0xf] %vm2861, %v2818
      %2889 = vst.msk [vmem:[#allocation2 + $0x6c] sm:$0xf] %vm2861, %v2820
      %2890 = vst.msk [vmem:[#allocation2 + $0x70] sm:$0xf] %vm2861, %v2822
      %2891 = vst.msk [vmem:[#allocation2 + $0x74] sm:$0xf] %vm2861, %v2824
      %2892 = vst.msk [vmem:[#allocation2 + $0x78] sm:$0xf] %vm2861, %v2826
      %2893 = vst.msk [vmem:[#allocation2 + $0x7c] sm:$0xf] %vm2861, %v2828
      %2894 = vrot.lane.b32.xlu0 %v405, 116
      %v2895 = vpop.permute.xlu0 %2894
      %2896 = vrot.lane.b32.xlu0 %v406, 116
      %v2897 = vpop.permute.xlu0 %2896
      %2898 = vrot.lane.b32.xlu0 %v407, 116
      %v2899 = vpop.permute.xlu0 %2898
      %2900 = vrot.lane.b32.xlu0 %v408, 116
      %v2901 = vpop.permute.xlu0 %2900
      %2902 = vrot.lane.b32.xlu0 %v409, 116
      %v2903 = vpop.permute.xlu0 %2902
      %2904 = vrot.lane.b32.xlu0 %v410, 116
      %v2905 = vpop.permute.xlu0 %2904
      %2906 = vrot.lane.b32.xlu0 %v411, 116
      %v2907 = vpop.permute.xlu0 %2906
      %2908 = vrot.lane.b32.xlu0 %v412, 116
      %v2909 = vpop.permute.xlu0 %2908
      %2910 = vrot.lane.b32.xlu0 %v413, 116
      %v2911 = vpop.permute.xlu0 %2910
      %2912 = vrot.lane.b32.xlu0 %v414, 116
      %v2913 = vpop.permute.xlu0 %2912
      %2914 = vrot.lane.b32.xlu0 %v415, 116
      %v2915 = vpop.permute.xlu0 %2914
      %2916 = vrot.lane.b32.xlu0 %v416, 116
      %v2917 = vpop.permute.xlu0 %2916
      %2918 = vrot.lane.b32.xlu0 %v417, 116
      %v2919 = vpop.permute.xlu0 %2918
      %2920 = vrot.lane.b32.xlu0 %v418, 116
      %v2921 = vpop.permute.xlu0 %2920
      %2922 = vrot.lane.b32.xlu0 %v419, 116
      %v2923 = vpop.permute.xlu0 %2922
      %2924 = vrot.lane.b32.xlu0 %v420, 116
      %v2925 = vpop.permute.xlu0 %2924
      %2926 = vrot.lane.b32.xlu0 %v425, 116
      %v2927 = vpop.permute.xlu0 %2926
      %v2929 = vsel %vm426, %v2895, 0
      %v2932 = vsel %vm426, %v2897, 0
      %v2935 = vsel %vm426, %v2899, 0
      %v2938 = vsel %vm426, %v2901, 0
      %v2941 = vsel %vm426, %v2903, 0
      %v2944 = vsel %vm426, %v2905, 0
      %v2947 = vsel %vm426, %v2907, 0
      %v2950 = vsel %vm426, %v2909, 0
      %v2953 = vsel %vm426, %v2911, 0
      %v2956 = vsel %vm426, %v2913, 0
      %v2959 = vsel %vm426, %v2915, 0
      %v2962 = vsel %vm426, %v2917, 0
      %v2965 = vsel %vm426, %v2919, 0
      %v2968 = vsel %vm426, %v2921, 0
      %v2971 = vsel %vm426, %v2923, 0
      %v2974 = vsel %vm426, %v2925, 0
      %v2977 = vsel %vm426, %v2927, 0
      %2979 = vmatpush.bf16.xpose.msra.mxu0 0
      %2980 = vmatpush.bf16.xpose.msra.mxu0 0
      %2981 = vmatpush.bf16.xpose.msra.mxu0 0
      %2982 = vmatpush.bf16.xpose.msra.mxu0 0
      %2983 = vmatpush.bf16.xpose.msra.mxu0 0
      %2984 = vmatpush.bf16.xpose.msra.mxu0 0
      %2985 = vmatpush.bf16.xpose.msra.mxu0 0
      %2986 = vmatpush.bf16.xpose.msra.mxu0 %v2977
      %2987 = vmatmul.bf16.gmra.mxu0 %v2929
      %v2988 = vpop.f32.mrf.mxu0
      %v2989 = vadd.f32 0.0, %v2988
      %v2990 = vpop.f32.mrf.mxu0
      %v2991 = vadd.f32 0.0, %v2990
      %2992 = vmatmul.bf16.gmra.mxu0 %v2932
      %v2993 = vpop.f32.mrf.mxu0
      %v2994 = vadd.f32 0.0, %v2993
      %v2995 = vpop.f32.mrf.mxu0
      %v2996 = vadd.f32 0.0, %v2995
      %2997 = vmatmul.bf16.gmra.mxu0 %v2935
      %v2998 = vpop.f32.mrf.mxu0
      %v2999 = vadd.f32 0.0, %v2998
      %v3000 = vpop.f32.mrf.mxu0
      %v3001 = vadd.f32 0.0, %v3000
      %3002 = vmatmul.bf16.gmra.mxu0 %v2938
      %v3003 = vpop.f32.mrf.mxu0
      %v3004 = vadd.f32 0.0, %v3003
      %v3005 = vpop.f32.mrf.mxu0
      %v3006 = vadd.f32 0.0, %v3005
      %3007 = vmatmul.bf16.gmra.mxu0 %v2941
      %v3008 = vpop.f32.mrf.mxu0
      %v3009 = vadd.f32 0.0, %v3008
      %v3010 = vpop.f32.mrf.mxu0
      %v3011 = vadd.f32 0.0, %v3010
      %3012 = vmatmul.bf16.gmra.mxu0 %v2944
      %v3013 = vpop.f32.mrf.mxu0
      %v3014 = vadd.f32 0.0, %v3013
      %v3015 = vpop.f32.mrf.mxu0
      %v3016 = vadd.f32 0.0, %v3015
      %3017 = vmatmul.bf16.gmra.mxu0 %v2947
      %v3018 = vpop.f32.mrf.mxu0
      %v3019 = vadd.f32 0.0, %v3018
      %v3020 = vpop.f32.mrf.mxu0
      %v3021 = vadd.f32 0.0, %v3020
      %3022 = vmatmul.bf16.gmra.mxu0 %v2950
      %v3023 = vpop.f32.mrf.mxu0
      %v3024 = vadd.f32 0.0, %v3023
      %v3025 = vpop.f32.mrf.mxu0
      %v3026 = vadd.f32 0.0, %v3025
      %3027 = vmatmul.bf16.gmra.mxu0 %v2953
      %v3028 = vpop.f32.mrf.mxu0
      %v3029 = vadd.f32 0.0, %v3028
      %v3030 = vpop.f32.mrf.mxu0
      %v3031 = vadd.f32 0.0, %v3030
      %3032 = vmatmul.bf16.gmra.mxu0 %v2956
      %v3033 = vpop.f32.mrf.mxu0
      %v3034 = vadd.f32 0.0, %v3033
      %v3035 = vpop.f32.mrf.mxu0
      %v3036 = vadd.f32 0.0, %v3035
      %3037 = vmatmul.bf16.gmra.mxu0 %v2959
      %v3038 = vpop.f32.mrf.mxu0
      %v3039 = vadd.f32 0.0, %v3038
      %v3040 = vpop.f32.mrf.mxu0
      %v3041 = vadd.f32 0.0, %v3040
      %3042 = vmatmul.bf16.gmra.mxu0 %v2962
      %v3043 = vpop.f32.mrf.mxu0
      %v3044 = vadd.f32 0.0, %v3043
      %v3045 = vpop.f32.mrf.mxu0
      %v3046 = vadd.f32 0.0, %v3045
      %3047 = vmatmul.bf16.gmra.mxu0 %v2965
      %v3048 = vpop.f32.mrf.mxu0
      %v3049 = vadd.f32 0.0, %v3048
      %v3050 = vpop.f32.mrf.mxu0
      %v3051 = vadd.f32 0.0, %v3050
      %3052 = vmatmul.bf16.gmra.mxu0 %v2968
      %v3053 = vpop.f32.mrf.mxu0
      %v3054 = vadd.f32 0.0, %v3053
      %v3055 = vpop.f32.mrf.mxu0
      %v3056 = vadd.f32 0.0, %v3055
      %3057 = vmatmul.bf16.gmra.mxu0 %v2971
      %v3058 = vpop.f32.mrf.mxu0
      %v3059 = vadd.f32 0.0, %v3058
      %v3060 = vpop.f32.mrf.mxu0
      %v3061 = vadd.f32 0.0, %v3060
      %3062 = vmatmul.bf16.gmra.mxu0 %v2974
      %v3063 = vpop.f32.mrf.mxu0
      %v3064 = vadd.f32 0.0, %v3063
      %v3065 = vpop.f32.mrf.mxu0
      %v3066 = vadd.f32 0.0, %v3065
      %3067 = vdwg.mxu0
      %v3068 = vsel %vm567, %v2989, -inf
      %3069 = vmax.xlane.f32.xlu0 %v3068
      %v3070 = vpop.xlane.xlu0 %3069
      %v3071 = vsel %vm567, %v2991, -inf
      %3072 = vmax.xlane.f32.xlu0 %v3071
      %v3073 = vpop.xlane.xlu0 %3072
      %v3074 = vsel %vm567, %v2994, -inf
      %3075 = vmax.xlane.f32.xlu0 %v3074
      %v3076 = vpop.xlane.xlu0 %3075
      %v3077 = vsel %vm567, %v2996, -inf
      %3078 = vmax.xlane.f32.xlu0 %v3077
      %v3079 = vpop.xlane.xlu0 %3078
      %v3080 = vsel %vm567, %v2999, -inf
      %3081 = vmax.xlane.f32.xlu0 %v3080
      %v3082 = vpop.xlane.xlu0 %3081
      %v3083 = vsel %vm567, %v3001, -inf
      %3084 = vmax.xlane.f32.xlu0 %v3083
      %v3085 = vpop.xlane.xlu0 %3084
      %v3086 = vsel %vm567, %v3004, -inf
      %3087 = vmax.xlane.f32.xlu0 %v3086
      %v3088 = vpop.xlane.xlu0 %3087
      %v3089 = vsel %vm567, %v3006, -inf
      %3090 = vmax.xlane.f32.xlu0 %v3089
      %v3091 = vpop.xlane.xlu0 %3090
      %v3092 = vsel %vm567, %v3009, -inf
      %3093 = vmax.xlane.f32.xlu0 %v3092
      %v3094 = vpop.xlane.xlu0 %3093
      %v3095 = vsel %vm567, %v3011, -inf
      %3096 = vmax.xlane.f32.xlu0 %v3095
      %v3097 = vpop.xlane.xlu0 %3096
      %v3098 = vsel %vm567, %v3014, -inf
      %3099 = vmax.xlane.f32.xlu0 %v3098
      %v3100 = vpop.xlane.xlu0 %3099
      %v3101 = vsel %vm567, %v3016, -inf
      %3102 = vmax.xlane.f32.xlu0 %v3101
      %v3103 = vpop.xlane.xlu0 %3102
      %v3104 = vsel %vm567, %v3019, -inf
      %3105 = vmax.xlane.f32.xlu0 %v3104
      %v3106 = vpop.xlane.xlu0 %3105
      %v3107 = vsel %vm567, %v3021, -inf
      %3108 = vmax.xlane.f32.xlu0 %v3107
      %v3109 = vpop.xlane.xlu0 %3108
      %v3110 = vsel %vm567, %v3024, -inf
      %3111 = vmax.xlane.f32.xlu0 %v3110
      %v3112 = vpop.xlane.xlu0 %3111
      %v3113 = vsel %vm567, %v3026, -inf
      %3114 = vmax.xlane.f32.xlu0 %v3113
      %v3115 = vpop.xlane.xlu0 %3114
      %v3116 = vsel %vm567, %v3029, -inf
      %3117 = vmax.xlane.f32.xlu0 %v3116
      %v3118 = vpop.xlane.xlu0 %3117
      %v3119 = vsel %vm567, %v3031, -inf
      %3120 = vmax.xlane.f32.xlu0 %v3119
      %v3121 = vpop.xlane.xlu0 %3120
      %v3122 = vsel %vm567, %v3034, -inf
      %3123 = vmax.xlane.f32.xlu0 %v3122
      %v3124 = vpop.xlane.xlu0 %3123
      %v3125 = vsel %vm567, %v3036, -inf
      %3126 = vmax.xlane.f32.xlu0 %v3125
      %v3127 = vpop.xlane.xlu0 %3126
      %v3128 = vsel %vm567, %v3039, -inf
      %3129 = vmax.xlane.f32.xlu0 %v3128
      %v3130 = vpop.xlane.xlu0 %3129
      %v3131 = vsel %vm567, %v3041, -inf
      %3132 = vmax.xlane.f32.xlu0 %v3131
      %v3133 = vpop.xlane.xlu0 %3132
      %v3134 = vsel %vm567, %v3044, -inf
      %3135 = vmax.xlane.f32.xlu0 %v3134
      %v3136 = vpop.xlane.xlu0 %3135
      %v3137 = vsel %vm567, %v3046, -inf
      %3138 = vmax.xlane.f32.xlu0 %v3137
      %v3139 = vpop.xlane.xlu0 %3138
      %v3140 = vsel %vm567, %v3049, -inf
      %3141 = vmax.xlane.f32.xlu0 %v3140
      %v3142 = vpop.xlane.xlu0 %3141
      %v3143 = vsel %vm567, %v3051, -inf
      %3144 = vmax.xlane.f32.xlu0 %v3143
      %v3145 = vpop.xlane.xlu0 %3144
      %v3146 = vsel %vm567, %v3054, -inf
      %3147 = vmax.xlane.f32.xlu0 %v3146
      %v3148 = vpop.xlane.xlu0 %3147
      %v3149 = vsel %vm567, %v3056, -inf
      %3150 = vmax.xlane.f32.xlu0 %v3149
      %v3151 = vpop.xlane.xlu0 %3150
      %v3152 = vsel %vm567, %v3059, -inf
      %3153 = vmax.xlane.f32.xlu0 %v3152
      %v3154 = vpop.xlane.xlu0 %3153
      %v3155 = vsel %vm567, %v3061, -inf
      %3156 = vmax.xlane.f32.xlu0 %v3155
      %v3157 = vpop.xlane.xlu0 %3156
      %v3158 = vsel %vm567, %v3064, -inf
      %3159 = vmax.xlane.f32.xlu0 %v3158
      %v3160 = vpop.xlane.xlu0 %3159
      %v3161 = vsel %vm567, %v3066, -inf
      %3162 = vmax.xlane.f32.xlu0 %v3161
      %v3163 = vpop.xlane.xlu0 %3162
      %v3164 = vsub.f32 %v2989, %v3070
      %v3165 = vsub.f32 %v2991, %v3073
      %v3166 = vsub.f32 %v2994, %v3076
      %v3167 = vsub.f32 %v2996, %v3079
      %v3168 = vsub.f32 %v2999, %v3082
      %v3169 = vsub.f32 %v3001, %v3085
      %v3170 = vsub.f32 %v3004, %v3088
      %v3171 = vsub.f32 %v3006, %v3091
      %v3172 = vsub.f32 %v3009, %v3094
      %v3173 = vsub.f32 %v3011, %v3097
      %v3174 = vsub.f32 %v3014, %v3100
      %v3175 = vsub.f32 %v3016, %v3103
      %v3176 = vsub.f32 %v3019, %v3106
      %v3177 = vsub.f32 %v3021, %v3109
      %v3178 = vsub.f32 %v3024, %v3112
      %v3179 = vsub.f32 %v3026, %v3115
      %v3180 = vsub.f32 %v3029, %v3118
      %v3181 = vsub.f32 %v3031, %v3121
      %v3182 = vsub.f32 %v3034, %v3124
      %v3183 = vsub.f32 %v3036, %v3127
      %v3184 = vsub.f32 %v3039, %v3130
      %v3185 = vsub.f32 %v3041, %v3133
      %v3186 = vsub.f32 %v3044, %v3136
      %v3187 = vsub.f32 %v3046, %v3139
      %v3188 = vsub.f32 %v3049, %v3142
      %v3189 = vsub.f32 %v3051, %v3145
      %v3190 = vsub.f32 %v3054, %v3148
      %v3191 = vsub.f32 %v3056, %v3151
      %v3192 = vsub.f32 %v3059, %v3154
      %v3193 = vsub.f32 %v3061, %v3157
      %v3194 = vsub.f32 %v3064, %v3160
      %v3195 = vsub.f32 %v3066, %v3163
      %v3196 = vmul.f32 %v3164, 1.442695
      %v3197 = vpow.pop %v3196
      %v3198 = vmul.f32 %v3165, 1.442695
      %v3199 = vpow.pop %v3198
      %v3200 = vmul.f32 %v3166, 1.442695
      %v3201 = vpow.pop %v3200
      %v3202 = vmul.f32 %v3167, 1.442695
      %v3203 = vpow.pop %v3202
      %v3204 = vmul.f32 %v3168, 1.442695
      %v3205 = vpow.pop %v3204
      %v3206 = vmul.f32 %v3169, 1.442695
      %v3207 = vpow.pop %v3206
      %v3208 = vmul.f32 %v3170, 1.442695
      %v3209 = vpow.pop %v3208
      %v3210 = vmul.f32 %v3171, 1.442695
      %v3211 = vpow.pop %v3210
      %v3212 = vmul.f32 %v3172, 1.442695
      %v3213 = vpow.pop %v3212
      %v3214 = vmul.f32 %v3173, 1.442695
      %v3215 = vpow.pop %v3214
      %v3216 = vmul.f32 %v3174, 1.442695
      %v3217 = vpow.pop %v3216
      %v3218 = vmul.f32 %v3175, 1.442695
      %v3219 = vpow.pop %v3218
      %v3220 = vmul.f32 %v3176, 1.442695
      %v3221 = vpow.pop %v3220
      %v3222 = vmul.f32 %v3177, 1.442695
      %v3223 = vpow.pop %v3222
      %v3224 = vmul.f32 %v3178, 1.442695
      %v3225 = vpow.pop %v3224
      %v3226 = vmul.f32 %v3179, 1.442695
      %v3227 = vpow.pop %v3226
      %v3228 = vmul.f32 %v3180, 1.442695
      %v3229 = vpow.pop %v3228
      %v3230 = vmul.f32 %v3181, 1.442695
      %v3231 = vpow.pop %v3230
      %v3232 = vmul.f32 %v3182, 1.442695
      %v3233 = vpow.pop %v3232
      %v3234 = vmul.f32 %v3183, 1.442695
      %v3235 = vpow.pop %v3234
      %v3236 = vmul.f32 %v3184, 1.442695
      %v3237 = vpow.pop %v3236
      %v3238 = vmul.f32 %v3185, 1.442695
      %v3239 = vpow.pop %v3238
      %v3240 = vmul.f32 %v3186, 1.442695
      %v3241 = vpow.pop %v3240
      %v3242 = vmul.f32 %v3187, 1.442695
      %v3243 = vpow.pop %v3242
      %v3244 = vmul.f32 %v3188, 1.442695
      %v3245 = vpow.pop %v3244
      %v3246 = vmul.f32 %v3189, 1.442695
      %v3247 = vpow.pop %v3246
      %v3248 = vmul.f32 %v3190, 1.442695
      %v3249 = vpow.pop %v3248
      %v3250 = vmul.f32 %v3191, 1.442695
      %v3251 = vpow.pop %v3250
      %v3252 = vmul.f32 %v3192, 1.442695
      %v3253 = vpow.pop %v3252
      %v3254 = vmul.f32 %v3193, 1.442695
      %v3255 = vpow.pop %v3254
      %v3256 = vmul.f32 %v3194, 1.442695
      %v3257 = vpow.pop %v3256
      %v3258 = vmul.f32 %v3195, 1.442695
      %v3259 = vpow.pop %v3258
      %v3260 = vsel %vm567, %v3197, 0.0
      %3261 = vadd.xlane.f32.xlu0 %v3260
      %v3262 = vpop.xlane.xlu0 %3261
      %v3263 = vsel %vm567, %v3199, 0.0
      %3264 = vadd.xlane.f32.xlu0 %v3263
      %v3265 = vpop.xlane.xlu0 %3264
      %v3266 = vsel %vm567, %v3201, 0.0
      %3267 = vadd.xlane.f32.xlu0 %v3266
      %v3268 = vpop.xlane.xlu0 %3267
      %v3269 = vsel %vm567, %v3203, 0.0
      %3270 = vadd.xlane.f32.xlu0 %v3269
      %v3271 = vpop.xlane.xlu0 %3270
      %v3272 = vsel %vm567, %v3205, 0.0
      %3273 = vadd.xlane.f32.xlu0 %v3272
      %v3274 = vpop.xlane.xlu0 %3273
      %v3275 = vsel %vm567, %v3207, 0.0
      %3276 = vadd.xlane.f32.xlu0 %v3275
      %v3277 = vpop.xlane.xlu0 %3276
      %v3278 = vsel %vm567, %v3209, 0.0
      %3279 = vadd.xlane.f32.xlu0 %v3278
      %v3280 = vpop.xlane.xlu0 %3279
      %v3281 = vsel %vm567, %v3211, 0.0
      %3282 = vadd.xlane.f32.xlu0 %v3281
      %v3283 = vpop.xlane.xlu0 %3282
      %v3284 = vsel %vm567, %v3213, 0.0
      %3285 = vadd.xlane.f32.xlu0 %v3284
      %v3286 = vpop.xlane.xlu0 %3285
      %v3287 = vsel %vm567, %v3215, 0.0
      %3288 = vadd.xlane.f32.xlu0 %v3287
      %v3289 = vpop.xlane.xlu0 %3288
      %v3290 = vsel %vm567, %v3217, 0.0
      %3291 = vadd.xlane.f32.xlu0 %v3290
      %v3292 = vpop.xlane.xlu0 %3291
      %v3293 = vsel %vm567, %v3219, 0.0
      %3294 = vadd.xlane.f32.xlu0 %v3293
      %v3295 = vpop.xlane.xlu0 %3294
      %v3296 = vsel %vm567, %v3221, 0.0
      %3297 = vadd.xlane.f32.xlu0 %v3296
      %v3298 = vpop.xlane.xlu0 %3297
      %v3299 = vsel %vm567, %v3223, 0.0
      %3300 = vadd.xlane.f32.xlu0 %v3299
      %v3301 = vpop.xlane.xlu0 %3300
      %v3302 = vsel %vm567, %v3225, 0.0
      %3303 = vadd.xlane.f32.xlu0 %v3302
      %v3304 = vpop.xlane.xlu0 %3303
      %v3305 = vsel %vm567, %v3227, 0.0
      %3306 = vadd.xlane.f32.xlu0 %v3305
      %v3307 = vpop.xlane.xlu0 %3306
      %v3308 = vsel %vm567, %v3229, 0.0
      %3309 = vadd.xlane.f32.xlu0 %v3308
      %v3310 = vpop.xlane.xlu0 %3309
      %v3311 = vsel %vm567, %v3231, 0.0
      %3312 = vadd.xlane.f32.xlu0 %v3311
      %v3313 = vpop.xlane.xlu0 %3312
      %v3314 = vsel %vm567, %v3233, 0.0
      %3315 = vadd.xlane.f32.xlu0 %v3314
      %v3316 = vpop.xlane.xlu0 %3315
      %v3317 = vsel %vm567, %v3235, 0.0
      %3318 = vadd.xlane.f32.xlu0 %v3317
      %v3319 = vpop.xlane.xlu0 %3318
      %v3320 = vsel %vm567, %v3237, 0.0
      %3321 = vadd.xlane.f32.xlu0 %v3320
      %v3322 = vpop.xlane.xlu0 %3321
      %v3323 = vsel %vm567, %v3239, 0.0
      %3324 = vadd.xlane.f32.xlu0 %v3323
      %v3325 = vpop.xlane.xlu0 %3324
      %v3326 = vsel %vm567, %v3241, 0.0
      %3327 = vadd.xlane.f32.xlu0 %v3326
      %v3328 = vpop.xlane.xlu0 %3327
      %v3329 = vsel %vm567, %v3243, 0.0
      %3330 = vadd.xlane.f32.xlu0 %v3329
      %v3331 = vpop.xlane.xlu0 %3330
      %v3332 = vsel %vm567, %v3245, 0.0
      %3333 = vadd.xlane.f32.xlu0 %v3332
      %v3334 = vpop.xlane.xlu0 %3333
      %v3335 = vsel %vm567, %v3247, 0.0
      %3336 = vadd.xlane.f32.xlu0 %v3335
      %v3337 = vpop.xlane.xlu0 %3336
      %v3338 = vsel %vm567, %v3249, 0.0
      %3339 = vadd.xlane.f32.xlu0 %v3338
      %v3340 = vpop.xlane.xlu0 %3339
      %v3341 = vsel %vm567, %v3251, 0.0
      %3342 = vadd.xlane.f32.xlu0 %v3341
      %v3343 = vpop.xlane.xlu0 %3342
      %v3344 = vsel %vm567, %v3253, 0.0
      %3345 = vadd.xlane.f32.xlu0 %v3344
      %v3346 = vpop.xlane.xlu0 %3345
      %v3347 = vsel %vm567, %v3255, 0.0
      %3348 = vadd.xlane.f32.xlu0 %v3347
      %v3349 = vpop.xlane.xlu0 %3348
      %v3350 = vsel %vm567, %v3257, 0.0
      %3351 = vadd.xlane.f32.xlu0 %v3350
      %v3352 = vpop.xlane.xlu0 %3351
      %v3353 = vsel %vm567, %v3259, 0.0
      %3354 = vadd.xlane.f32.xlu0 %v3353
      %v3355 = vpop.xlane.xlu0 %3354
      %v3356 = vrcp.pop %v3262
      %v3357 = vrcp.pop %v3265
      %v3358 = vrcp.pop %v3268
      %v3359 = vrcp.pop %v3271
      %v3360 = vrcp.pop %v3274
      %v3361 = vrcp.pop %v3277
      %v3362 = vrcp.pop %v3280
      %v3363 = vrcp.pop %v3283
      %v3364 = vrcp.pop %v3286
      %v3365 = vrcp.pop %v3289
      %v3366 = vrcp.pop %v3292
      %v3367 = vrcp.pop %v3295
      %v3368 = vrcp.pop %v3298
      %v3369 = vrcp.pop %v3301
      %v3370 = vrcp.pop %v3304
      %v3371 = vrcp.pop %v3307
      %v3372 = vrcp.pop %v3310
      %v3373 = vrcp.pop %v3313
      %v3374 = vrcp.pop %v3316
      %v3375 = vrcp.pop %v3319
      %v3376 = vrcp.pop %v3322
      %v3377 = vrcp.pop %v3325
      %v3378 = vrcp.pop %v3328
      %v3379 = vrcp.pop %v3331
      %v3380 = vrcp.pop %v3334
      %v3381 = vrcp.pop %v3337
      %v3382 = vrcp.pop %v3340
      %v3383 = vrcp.pop %v3343
      %v3384 = vrcp.pop %v3346
      %v3385 = vrcp.pop %v3349
      %v3386 = vrcp.pop %v3352
      %v3387 = vrcp.pop %v3355
      %v3388 = vmul.f32 %v3197, %v3356
      %v3389 = vmul.f32 %v3199, %v3357
      %v3390 = vmul.f32 %v3201, %v3358
      %v3391 = vmul.f32 %v3203, %v3359
      %v3392 = vmul.f32 %v3205, %v3360
      %v3393 = vmul.f32 %v3207, %v3361
      %v3394 = vmul.f32 %v3209, %v3362
      %v3395 = vmul.f32 %v3211, %v3363
      %v3396 = vmul.f32 %v3213, %v3364
      %v3397 = vmul.f32 %v3215, %v3365
      %v3398 = vmul.f32 %v3217, %v3366
      %v3399 = vmul.f32 %v3219, %v3367
      %v3400 = vmul.f32 %v3221, %v3368
      %v3401 = vmul.f32 %v3223, %v3369
      %v3402 = vmul.f32 %v3225, %v3370
      %v3403 = vmul.f32 %v3227, %v3371
      %v3404 = vmul.f32 %v3229, %v3372
      %v3405 = vmul.f32 %v3231, %v3373
      %v3406 = vmul.f32 %v3233, %v3374
      %v3407 = vmul.f32 %v3235, %v3375
      %v3408 = vmul.f32 %v3237, %v3376
      %v3409 = vmul.f32 %v3239, %v3377
      %v3410 = vmul.f32 %v3241, %v3378
      %v3411 = vmul.f32 %v3243, %v3379
      %v3412 = vmul.f32 %v3245, %v3380
      %v3413 = vmul.f32 %v3247, %v3381
      %v3414 = vmul.f32 %v3249, %v3382
      %v3415 = vmul.f32 %v3251, %v3383
      %v3416 = vmul.f32 %v3253, %v3384
      %v3417 = vmul.f32 %v3255, %v3385
      %v3418 = vmul.f32 %v3257, %v3386
      %v3419 = vmul.f32 %v3259, %v3387
      %v3420 = vpack.c.bf16 %v3389, %v3388
      %v3421 = vpack.c.bf16 %v3391, %v3390
      %v3422 = vpack.c.bf16 %v3393, %v3392
      %v3423 = vpack.c.bf16 %v3395, %v3394
      %v3424 = vpack.c.bf16 %v3397, %v3396
      %v3425 = vpack.c.bf16 %v3399, %v3398
      %v3426 = vpack.c.bf16 %v3401, %v3400
      %v3427 = vpack.c.bf16 %v3403, %v3402
      %v3428 = vpack.c.bf16 %v3405, %v3404
      %v3429 = vpack.c.bf16 %v3407, %v3406
      %v3430 = vpack.c.bf16 %v3409, %v3408
      %v3431 = vpack.c.bf16 %v3411, %v3410
      %v3432 = vpack.c.bf16 %v3413, %v3412
      %v3433 = vpack.c.bf16 %v3415, %v3414
      %v3434 = vpack.c.bf16 %v3417, %v3416
      %v3435 = vpack.c.bf16 %v3419, %v3418
      %3436 = vrot.lane.b32.xlu0 %v940, 116
      %v3437 = vpop.permute.xlu0 %3436
      %v3440 = vsel %vm567, %v3420, 0
      %v3443 = vsel %vm567, %v3421, 0
      %v3446 = vsel %vm567, %v3422, 0
      %v3449 = vsel %vm567, %v3423, 0
      %v3452 = vsel %vm567, %v3424, 0
      %v3455 = vsel %vm567, %v3425, 0
      %v3458 = vsel %vm567, %v3426, 0
      %v3461 = vsel %vm567, %v3427, 0
      %v3464 = vsel %vm567, %v3428, 0
      %v3467 = vsel %vm567, %v3429, 0
      %v3470 = vsel %vm567, %v3430, 0
      %v3473 = vsel %vm567, %v3431, 0
      %v3476 = vsel %vm567, %v3432, 0
      %v3479 = vsel %vm567, %v3433, 0
      %v3482 = vsel %vm567, %v3434, 0
      %v3485 = vsel %vm567, %v3435, 0
      %3487 = vmatpush.bf16.msra.mxu0 0
      %3488 = vmatpush.bf16.msra.mxu0 0
      %3489 = vmatpush.bf16.msra.mxu0 0
      %3490 = vmatpush.bf16.msra.mxu0 0
      %3491 = vmatpush.bf16.msra.mxu0 0
      %3492 = vmatpush.bf16.msra.mxu0 0
      %3493 = vmatpush.bf16.msra.mxu0 0
      %3494 = vmatpush.bf16.msra.mxu0 %v3437
      %3495 = vmatmul.bf16.gmra.mxu0 %v3440
      %v3496 = vpop.f32.mrf.mxu0
      %v3497 = vadd.f32 0.0, %v3496
      %v3498 = vpop.f32.mrf.mxu0
      %v3499 = vadd.f32 0.0, %v3498
      %3500 = vmatmul.bf16.gmra.mxu0 %v3443
      %v3501 = vpop.f32.mrf.mxu0
      %v3502 = vadd.f32 0.0, %v3501
      %v3503 = vpop.f32.mrf.mxu0
      %v3504 = vadd.f32 0.0, %v3503
      %3505 = vmatmul.bf16.gmra.mxu0 %v3446
      %v3506 = vpop.f32.mrf.mxu0
      %v3507 = vadd.f32 0.0, %v3506
      %v3508 = vpop.f32.mrf.mxu0
      %v3509 = vadd.f32 0.0, %v3508
      %3510 = vmatmul.bf16.gmra.mxu0 %v3449
      %v3511 = vpop.f32.mrf.mxu0
      %v3512 = vadd.f32 0.0, %v3511
      %v3513 = vpop.f32.mrf.mxu0
      %v3514 = vadd.f32 0.0, %v3513
      %3515 = vmatmul.bf16.gmra.mxu0 %v3452
      %v3516 = vpop.f32.mrf.mxu0
      %v3517 = vadd.f32 0.0, %v3516
      %v3518 = vpop.f32.mrf.mxu0
      %v3519 = vadd.f32 0.0, %v3518
      %3520 = vmatmul.bf16.gmra.mxu0 %v3455
      %v3521 = vpop.f32.mrf.mxu0
      %v3522 = vadd.f32 0.0, %v3521
      %v3523 = vpop.f32.mrf.mxu0
      %v3524 = vadd.f32 0.0, %v3523
      %3525 = vmatmul.bf16.gmra.mxu0 %v3458
      %v3526 = vpop.f32.mrf.mxu0
      %v3527 = vadd.f32 0.0, %v3526
      %v3528 = vpop.f32.mrf.mxu0
      %v3529 = vadd.f32 0.0, %v3528
      %3530 = vmatmul.bf16.gmra.mxu0 %v3461
      %v3531 = vpop.f32.mrf.mxu0
      %v3532 = vadd.f32 0.0, %v3531
      %v3533 = vpop.f32.mrf.mxu0
      %v3534 = vadd.f32 0.0, %v3533
      %3535 = vmatmul.bf16.gmra.mxu0 %v3464
      %v3536 = vpop.f32.mrf.mxu0
      %v3537 = vadd.f32 0.0, %v3536
      %v3538 = vpop.f32.mrf.mxu0
      %v3539 = vadd.f32 0.0, %v3538
      %3540 = vmatmul.bf16.gmra.mxu0 %v3467
      %v3541 = vpop.f32.mrf.mxu0
      %v3542 = vadd.f32 0.0, %v3541
      %v3543 = vpop.f32.mrf.mxu0
      %v3544 = vadd.f32 0.0, %v3543
      %3545 = vmatmul.bf16.gmra.mxu0 %v3470
      %v3546 = vpop.f32.mrf.mxu0
      %v3547 = vadd.f32 0.0, %v3546
      %v3548 = vpop.f32.mrf.mxu0
      %v3549 = vadd.f32 0.0, %v3548
      %3550 = vmatmul.bf16.gmra.mxu0 %v3473
      %v3551 = vpop.f32.mrf.mxu0
      %v3552 = vadd.f32 0.0, %v3551
      %v3553 = vpop.f32.mrf.mxu0
      %v3554 = vadd.f32 0.0, %v3553
      %3555 = vmatmul.bf16.gmra.mxu0 %v3476
      %v3556 = vpop.f32.mrf.mxu0
      %v3557 = vadd.f32 0.0, %v3556
      %v3558 = vpop.f32.mrf.mxu0
      %v3559 = vadd.f32 0.0, %v3558
      %3560 = vmatmul.bf16.gmra.mxu0 %v3479
      %v3561 = vpop.f32.mrf.mxu0
      %v3562 = vadd.f32 0.0, %v3561
      %v3563 = vpop.f32.mrf.mxu0
      %v3564 = vadd.f32 0.0, %v3563
      %3565 = vmatmul.bf16.gmra.mxu0 %v3482
      %v3566 = vpop.f32.mrf.mxu0
      %v3567 = vadd.f32 0.0, %v3566
      %v3568 = vpop.f32.mrf.mxu0
      %v3569 = vadd.f32 0.0, %v3568
      %3570 = vmatmul.bf16.gmra.mxu0 %v3485
      %v3571 = vpop.f32.mrf.mxu0
      %v3572 = vadd.f32 0.0, %v3571
      %v3573 = vpop.f32.mrf.mxu0
      %v3574 = vadd.f32 0.0, %v3573
      %3575 = vdwg.mxu0
      %v3576 = vpack.c.bf16 %v3497, %v3497
      %v3577 = vpack.c.bf16 %v3499, %v3499
      %v3578 = vpack.c.bf16 %v3502, %v3502
      %v3579 = vpack.c.bf16 %v3504, %v3504
      %v3580 = vpack.c.bf16 %v3507, %v3507
      %v3581 = vpack.c.bf16 %v3509, %v3509
      %v3582 = vpack.c.bf16 %v3512, %v3512
      %v3583 = vpack.c.bf16 %v3514, %v3514
      %v3584 = vpack.c.bf16 %v3517, %v3517
      %v3585 = vpack.c.bf16 %v3519, %v3519
      %v3586 = vpack.c.bf16 %v3522, %v3522
      %v3587 = vpack.c.bf16 %v3524, %v3524
      %v3588 = vpack.c.bf16 %v3527, %v3527
      %v3589 = vpack.c.bf16 %v3529, %v3529
      %v3590 = vpack.c.bf16 %v3532, %v3532
      %v3591 = vpack.c.bf16 %v3534, %v3534
      %v3592 = vpack.c.bf16 %v3537, %v3537
      %v3593 = vpack.c.bf16 %v3539, %v3539
      %v3594 = vpack.c.bf16 %v3542, %v3542
      %v3595 = vpack.c.bf16 %v3544, %v3544
      %v3596 = vpack.c.bf16 %v3547, %v3547
      %v3597 = vpack.c.bf16 %v3549, %v3549
      %v3598 = vpack.c.bf16 %v3552, %v3552
      %v3599 = vpack.c.bf16 %v3554, %v3554
      %v3600 = vpack.c.bf16 %v3557, %v3557
      %v3601 = vpack.c.bf16 %v3559, %v3559
      %v3602 = vpack.c.bf16 %v3562, %v3562
      %v3603 = vpack.c.bf16 %v3564, %v3564
      %v3604 = vpack.c.bf16 %v3567, %v3567
      %v3605 = vpack.c.bf16 %v3569, %v3569
      %v3606 = vpack.c.bf16 %v3572, %v3572
      %v3607 = vpack.c.bf16 %v3574, %v3574
      %3640 = vrot.lane.b32.xlu0 %v3576, 12
      %v3641 = vpop.permute.xlu0 %3640
      %3642 = vrot.lane.b32.xlu0 %v3577, 12
      %v3643 = vpop.permute.xlu0 %3642
      %3644 = vrot.lane.b32.xlu0 %v3578, 12
      %v3645 = vpop.permute.xlu0 %3644
      %3646 = vrot.lane.b32.xlu0 %v3579, 12
      %v3647 = vpop.permute.xlu0 %3646
      %3648 = vrot.lane.b32.xlu0 %v3580, 12
      %v3649 = vpop.permute.xlu0 %3648
      %3650 = vrot.lane.b32.xlu0 %v3581, 12
      %v3651 = vpop.permute.xlu0 %3650
      %3652 = vrot.lane.b32.xlu0 %v3582, 12
      %v3653 = vpop.permute.xlu0 %3652
      %3654 = vrot.lane.b32.xlu0 %v3583, 12
      %v3655 = vpop.permute.xlu0 %3654
      %3656 = vrot.lane.b32.xlu0 %v3584, 12
      %v3657 = vpop.permute.xlu0 %3656
      %3658 = vrot.lane.b32.xlu0 %v3585, 12
      %v3659 = vpop.permute.xlu0 %3658
      %3660 = vrot.lane.b32.xlu0 %v3586, 12
      %v3661 = vpop.permute.xlu0 %3660
      %3662 = vrot.lane.b32.xlu0 %v3587, 12
      %v3663 = vpop.permute.xlu0 %3662
      %3664 = vrot.lane.b32.xlu0 %v3588, 12
      %v3665 = vpop.permute.xlu0 %3664
      %3666 = vrot.lane.b32.xlu0 %v3589, 12
      %v3667 = vpop.permute.xlu0 %3666
      %3668 = vrot.lane.b32.xlu0 %v3590, 12
      %v3669 = vpop.permute.xlu0 %3668
      %3670 = vrot.lane.b32.xlu0 %v3591, 12
      %v3671 = vpop.permute.xlu0 %3670
      %3672 = vrot.lane.b32.xlu0 %v3592, 12
      %v3673 = vpop.permute.xlu0 %3672
      %3674 = vrot.lane.b32.xlu0 %v3593, 12
      %v3675 = vpop.permute.xlu0 %3674
      %3676 = vrot.lane.b32.xlu0 %v3594, 12
      %v3677 = vpop.permute.xlu0 %3676
      %3678 = vrot.lane.b32.xlu0 %v3595, 12
      %v3679 = vpop.permute.xlu0 %3678
      %3680 = vrot.lane.b32.xlu0 %v3596, 12
      %v3681 = vpop.permute.xlu0 %3680
      %3682 = vrot.lane.b32.xlu0 %v3597, 12
      %v3683 = vpop.permute.xlu0 %3682
      %3684 = vrot.lane.b32.xlu0 %v3598, 12
      %v3685 = vpop.permute.xlu0 %3684
      %3686 = vrot.lane.b32.xlu0 %v3599, 12
      %v3687 = vpop.permute.xlu0 %3686
      %3688 = vrot.lane.b32.xlu0 %v3600, 12
      %v3689 = vpop.permute.xlu0 %3688
      %3690 = vrot.lane.b32.xlu0 %v3601, 12
      %v3691 = vpop.permute.xlu0 %3690
      %3692 = vrot.lane.b32.xlu0 %v3602, 12
      %v3693 = vpop.permute.xlu0 %3692
      %3694 = vrot.lane.b32.xlu0 %v3603, 12
      %v3695 = vpop.permute.xlu0 %3694
      %3696 = vrot.lane.b32.xlu0 %v3604, 12
      %v3697 = vpop.permute.xlu0 %3696
      %3698 = vrot.lane.b32.xlu0 %v3605, 12
      %v3699 = vpop.permute.xlu0 %3698
      %3700 = vrot.lane.b32.xlu0 %v3606, 12
      %v3701 = vpop.permute.xlu0 %3700
      %3702 = vrot.lane.b32.xlu0 %v3607, 12
      %v3703 = vpop.permute.xlu0 %3702
      %vm3736 = vcmask 126048
      %3737 = vst.msk [vmem:[#allocation2] sm:$0xf] %vm3736, %v3641
      %3738 = vst.msk [vmem:[#allocation2 + $0x4] sm:$0xf] %vm3736, %v3643
      %3739 = vst.msk [vmem:[#allocation2 + $0x8] sm:$0xf] %vm3736, %v3645
      %3740 = vst.msk [vmem:[#allocation2 + $0xc] sm:$0xf] %vm3736, %v3647
      %3741 = vst.msk [vmem:[#allocation2 + $0x10] sm:$0xf] %vm3736, %v3649
      %3742 = vst.msk [vmem:[#allocation2 + $0x14] sm:$0xf] %vm3736, %v3651
      %3743 = vst.msk [vmem:[#allocation2 + $0x18] sm:$0xf] %vm3736, %v3653
      %3744 = vst.msk [vmem:[#allocation2 + $0x1c] sm:$0xf] %vm3736, %v3655
      %3745 = vst.msk [vmem:[#allocation2 + $0x20] sm:$0xf] %vm3736, %v3657
      %3746 = vst.msk [vmem:[#allocation2 + $0x24] sm:$0xf] %vm3736, %v3659
      %3747 = vst.msk [vmem:[#allocation2 + $0x28] sm:$0xf] %vm3736, %v3661
      %3748 = vst.msk [vmem:[#allocation2 + $0x2c] sm:$0xf] %vm3736, %v3663
      %3749 = vst.msk [vmem:[#allocation2 + $0x30] sm:$0xf] %vm3736, %v3665
      %3750 = vst.msk [vmem:[#allocation2 + $0x34] sm:$0xf] %vm3736, %v3667
      %3751 = vst.msk [vmem:[#allocation2 + $0x38] sm:$0xf] %vm3736, %v3669
      %3752 = vst.msk [vmem:[#allocation2 + $0x3c] sm:$0xf] %vm3736, %v3671
      %3753 = vst.msk [vmem:[#allocation2 + $0x40] sm:$0xf] %vm3736, %v3673
      %3754 = vst.msk [vmem:[#allocation2 + $0x44] sm:$0xf] %vm3736, %v3675
      %3755 = vst.msk [vmem:[#allocation2 + $0x48] sm:$0xf] %vm3736, %v3677
      %3756 = vst.msk [vmem:[#allocation2 + $0x4c] sm:$0xf] %vm3736, %v3679
      %3757 = vst.msk [vmem:[#allocation2 + $0x50] sm:$0xf] %vm3736, %v3681
      %3758 = vst.msk [vmem:[#allocation2 + $0x54] sm:$0xf] %vm3736, %v3683
      %3759 = vst.msk [vmem:[#allocation2 + $0x58] sm:$0xf] %vm3736, %v3685
      %3760 = vst.msk [vmem:[#allocation2 + $0x5c] sm:$0xf] %vm3736, %v3687
      %3761 = vst.msk [vmem:[#allocation2 + $0x60] sm:$0xf] %vm3736, %v3689
      %3762 = vst.msk [vmem:[#allocation2 + $0x64] sm:$0xf] %vm3736, %v3691
      %3763 = vst.msk [vmem:[#allocation2 + $0x68] sm:$0xf] %vm3736, %v3693
      %3764 = vst.msk [vmem:[#allocation2 + $0x6c] sm:$0xf] %vm3736, %v3695
      %3765 = vst.msk [vmem:[#allocation2 + $0x70] sm:$0xf] %vm3736, %v3697
      %3766 = vst.msk [vmem:[#allocation2 + $0x74] sm:$0xf] %vm3736, %v3699
      %3767 = vst.msk [vmem:[#allocation2 + $0x78] sm:$0xf] %vm3736, %v3701
      %3768 = vst.msk [vmem:[#allocation2 + $0x7c] sm:$0xf] %vm3736, %v3703
      %3769 = vrot.lane.b32.xlu0 %v405, 112
      %v3770 = vpop.permute.xlu0 %3769
      %3771 = vrot.lane.b32.xlu0 %v406, 112
      %v3772 = vpop.permute.xlu0 %3771
      %3773 = vrot.lane.b32.xlu0 %v407, 112
      %v3774 = vpop.permute.xlu0 %3773
      %3775 = vrot.lane.b32.xlu0 %v408, 112
      %v3776 = vpop.permute.xlu0 %3775
      %3777 = vrot.lane.b32.xlu0 %v409, 112
      %v3778 = vpop.permute.xlu0 %3777
      %3779 = vrot.lane.b32.xlu0 %v410, 112
      %v3780 = vpop.permute.xlu0 %3779
      %3781 = vrot.lane.b32.xlu0 %v411, 112
      %v3782 = vpop.permute.xlu0 %3781
      %3783 = vrot.lane.b32.xlu0 %v412, 112
      %v3784 = vpop.permute.xlu0 %3783
      %3785 = vrot.lane.b32.xlu0 %v413, 112
      %v3786 = vpop.permute.xlu0 %3785
      %3787 = vrot.lane.b32.xlu0 %v414, 112
      %v3788 = vpop.permute.xlu0 %3787
      %3789 = vrot.lane.b32.xlu0 %v415, 112
      %v3790 = vpop.permute.xlu0 %3789
      %3791 = vrot.lane.b32.xlu0 %v416, 112
      %v3792 = vpop.permute.xlu0 %3791
      %3793 = vrot.lane.b32.xlu0 %v417, 112
      %v3794 = vpop.permute.xlu0 %3793
      %3795 = vrot.lane.b32.xlu0 %v418, 112
      %v3796 = vpop.permute.xlu0 %3795
      %3797 = vrot.lane.b32.xlu0 %v419, 112
      %v3798 = vpop.permute.xlu0 %3797
      %3799 = vrot.lane.b32.xlu0 %v420, 112
      %v3800 = vpop.permute.xlu0 %3799
      %3801 = vrot.lane.b32.xlu0 %v425, 112
      %v3802 = vpop.permute.xlu0 %3801
      %v3804 = vsel %vm426, %v3770, 0
      %v3807 = vsel %vm426, %v3772, 0
      %v3810 = vsel %vm426, %v3774, 0
      %v3813 = vsel %vm426, %v3776, 0
      %v3816 = vsel %vm426, %v3778, 0
      %v3819 = vsel %vm426, %v3780, 0
      %v3822 = vsel %vm426, %v3782, 0
      %v3825 = vsel %vm426, %v3784, 0
      %v3828 = vsel %vm426, %v3786, 0
      %v3831 = vsel %vm426, %v3788, 0
      %v3834 = vsel %vm426, %v3790, 0
      %v3837 = vsel %vm426, %v3792, 0
      %v3840 = vsel %vm426, %v3794, 0
      %v3843 = vsel %vm426, %v3796, 0
      %v3846 = vsel %vm426, %v3798, 0
      %v3849 = vsel %vm426, %v3800, 0
      %v3852 = vsel %vm426, %v3802, 0
      %3854 = vmatpush.bf16.xpose.msra.mxu0 0
      %3855 = vmatpush.bf16.xpose.msra.mxu0 0
      %3856 = vmatpush.bf16.xpose.msra.mxu0 0
      %3857 = vmatpush.bf16.xpose.msra.mxu0 0
      %3858 = vmatpush.bf16.xpose.msra.mxu0 0
      %3859 = vmatpush.bf16.xpose.msra.mxu0 0
      %3860 = vmatpush.bf16.xpose.msra.mxu0 0
      %3861 = vmatpush.bf16.xpose.msra.mxu0 %v3852
      %3862 = vmatmul.bf16.gmra.mxu0 %v3804
      %v3863 = vpop.f32.mrf.mxu0
      %v3864 = vadd.f32 0.0, %v3863
      %v3865 = vpop.f32.mrf.mxu0
      %v3866 = vadd.f32 0.0, %v3865
      %3867 = vmatmul.bf16.gmra.mxu0 %v3807
      %v3868 = vpop.f32.mrf.mxu0
      %v3869 = vadd.f32 0.0, %v3868
      %v3870 = vpop.f32.mrf.mxu0
      %v3871 = vadd.f32 0.0, %v3870
      %3872 = vmatmul.bf16.gmra.mxu0 %v3810
      %v3873 = vpop.f32.mrf.mxu0
      %v3874 = vadd.f32 0.0, %v3873
      %v3875 = vpop.f32.mrf.mxu0
      %v3876 = vadd.f32 0.0, %v3875
      %3877 = vmatmul.bf16.gmra.mxu0 %v3813
      %v3878 = vpop.f32.mrf.mxu0
      %v3879 = vadd.f32 0.0, %v3878
      %v3880 = vpop.f32.mrf.mxu0
      %v3881 = vadd.f32 0.0, %v3880
      %3882 = vmatmul.bf16.gmra.mxu0 %v3816
      %v3883 = vpop.f32.mrf.mxu0
      %v3884 = vadd.f32 0.0, %v3883
      %v3885 = vpop.f32.mrf.mxu0
      %v3886 = vadd.f32 0.0, %v3885
      %3887 = vmatmul.bf16.gmra.mxu0 %v3819
      %v3888 = vpop.f32.mrf.mxu0
      %v3889 = vadd.f32 0.0, %v3888
      %v3890 = vpop.f32.mrf.mxu0
      %v3891 = vadd.f32 0.0, %v3890
      %3892 = vmatmul.bf16.gmra.mxu0 %v3822
      %v3893 = vpop.f32.mrf.mxu0
      %v3894 = vadd.f32 0.0, %v3893
      %v3895 = vpop.f32.mrf.mxu0
      %v3896 = vadd.f32 0.0, %v3895
      %3897 = vmatmul.bf16.gmra.mxu0 %v3825
      %v3898 = vpop.f32.mrf.mxu0
      %v3899 = vadd.f32 0.0, %v3898
      %v3900 = vpop.f32.mrf.mxu0
      %v3901 = vadd.f32 0.0, %v3900
      %3902 = vmatmul.bf16.gmra.mxu0 %v3828
      %v3903 = vpop.f32.mrf.mxu0
      %v3904 = vadd.f32 0.0, %v3903
      %v3905 = vpop.f32.mrf.mxu0
      %v3906 = vadd.f32 0.0, %v3905
      %3907 = vmatmul.bf16.gmra.mxu0 %v3831
      %v3908 = vpop.f32.mrf.mxu0
      %v3909 = vadd.f32 0.0, %v3908
      %v3910 = vpop.f32.mrf.mxu0
      %v3911 = vadd.f32 0.0, %v3910
      %3912 = vmatmul.bf16.gmra.mxu0 %v3834
      %v3913 = vpop.f32.mrf.mxu0
      %v3914 = vadd.f32 0.0, %v3913
      %v3915 = vpop.f32.mrf.mxu0
      %v3916 = vadd.f32 0.0, %v3915
      %3917 = vmatmul.bf16.gmra.mxu0 %v3837
      %v3918 = vpop.f32.mrf.mxu0
      %v3919 = vadd.f32 0.0, %v3918
      %v3920 = vpop.f32.mrf.mxu0
      %v3921 = vadd.f32 0.0, %v3920
      %3922 = vmatmul.bf16.gmra.mxu0 %v3840
      %v3923 = vpop.f32.mrf.mxu0
      %v3924 = vadd.f32 0.0, %v3923
      %v3925 = vpop.f32.mrf.mxu0
      %v3926 = vadd.f32 0.0, %v3925
      %3927 = vmatmul.bf16.gmra.mxu0 %v3843
      %v3928 = vpop.f32.mrf.mxu0
      %v3929 = vadd.f32 0.0, %v3928
      %v3930 = vpop.f32.mrf.mxu0
      %v3931 = vadd.f32 0.0, %v3930
      %3932 = vmatmul.bf16.gmra.mxu0 %v3846
      %v3933 = vpop.f32.mrf.mxu0
      %v3934 = vadd.f32 0.0, %v3933
      %v3935 = vpop.f32.mrf.mxu0
      %v3936 = vadd.f32 0.0, %v3935
      %3937 = vmatmul.bf16.gmra.mxu0 %v3849
      %v3938 = vpop.f32.mrf.mxu0
      %v3939 = vadd.f32 0.0, %v3938
      %v3940 = vpop.f32.mrf.mxu0
      %v3941 = vadd.f32 0.0, %v3940
      %3942 = vdwg.mxu0
      %v3943 = vsel %vm567, %v3864, -inf
      %3944 = vmax.xlane.f32.xlu0 %v3943
      %v3945 = vpop.xlane.xlu0 %3944
      %v3946 = vsel %vm567, %v3866, -inf
      %3947 = vmax.xlane.f32.xlu0 %v3946
      %v3948 = vpop.xlane.xlu0 %3947
      %v3949 = vsel %vm567, %v3869, -inf
      %3950 = vmax.xlane.f32.xlu0 %v3949
      %v3951 = vpop.xlane.xlu0 %3950
      %v3952 = vsel %vm567, %v3871, -inf
      %3953 = vmax.xlane.f32.xlu0 %v3952
      %v3954 = vpop.xlane.xlu0 %3953
      %v3955 = vsel %vm567, %v3874, -inf
      %3956 = vmax.xlane.f32.xlu0 %v3955
      %v3957 = vpop.xlane.xlu0 %3956
      %v3958 = vsel %vm567, %v3876, -inf
      %3959 = vmax.xlane.f32.xlu0 %v3958
      %v3960 = vpop.xlane.xlu0 %3959
      %v3961 = vsel %vm567, %v3879, -inf
      %3962 = vmax.xlane.f32.xlu0 %v3961
      %v3963 = vpop.xlane.xlu0 %3962
      %v3964 = vsel %vm567, %v3881, -inf
      %3965 = vmax.xlane.f32.xlu0 %v3964
      %v3966 = vpop.xlane.xlu0 %3965
      %v3967 = vsel %vm567, %v3884, -inf
      %3968 = vmax.xlane.f32.xlu0 %v3967
      %v3969 = vpop.xlane.xlu0 %3968
      %v3970 = vsel %vm567, %v3886, -inf
      %3971 = vmax.xlane.f32.xlu0 %v3970
      %v3972 = vpop.xlane.xlu0 %3971
      %v3973 = vsel %vm567, %v3889, -inf
      %3974 = vmax.xlane.f32.xlu0 %v3973
      %v3975 = vpop.xlane.xlu0 %3974
      %v3976 = vsel %vm567, %v3891, -inf
      %3977 = vmax.xlane.f32.xlu0 %v3976
      %v3978 = vpop.xlane.xlu0 %3977
      %v3979 = vsel %vm567, %v3894, -inf
      %3980 = vmax.xlane.f32.xlu0 %v3979
      %v3981 = vpop.xlane.xlu0 %3980
      %v3982 = vsel %vm567, %v3896, -inf
      %3983 = vmax.xlane.f32.xlu0 %v3982
      %v3984 = vpop.xlane.xlu0 %3983
      %v3985 = vsel %vm567, %v3899, -inf
      %3986 = vmax.xlane.f32.xlu0 %v3985
      %v3987 = vpop.xlane.xlu0 %3986
      %v3988 = vsel %vm567, %v3901, -inf
      %3989 = vmax.xlane.f32.xlu0 %v3988
      %v3990 = vpop.xlane.xlu0 %3989
      %v3991 = vsel %vm567, %v3904, -inf
      %3992 = vmax.xlane.f32.xlu0 %v3991
      %v3993 = vpop.xlane.xlu0 %3992
      %v3994 = vsel %vm567, %v3906, -inf
      %3995 = vmax.xlane.f32.xlu0 %v3994
      %v3996 = vpop.xlane.xlu0 %3995
      %v3997 = vsel %vm567, %v3909, -inf
      %3998 = vmax.xlane.f32.xlu0 %v3997
      %v3999 = vpop.xlane.xlu0 %3998
      %v4000 = vsel %vm567, %v3911, -inf
      %4001 = vmax.xlane.f32.xlu0 %v4000
      %v4002 = vpop.xlane.xlu0 %4001
      %v4003 = vsel %vm567, %v3914, -inf
      %4004 = vmax.xlane.f32.xlu0 %v4003
      %v4005 = vpop.xlane.xlu0 %4004
      %v4006 = vsel %vm567, %v3916, -inf
      %4007 = vmax.xlane.f32.xlu0 %v4006
      %v4008 = vpop.xlane.xlu0 %4007
      %v4009 = vsel %vm567, %v3919, -inf
      %4010 = vmax.xlane.f32.xlu0 %v4009
      %v4011 = vpop.xlane.xlu0 %4010
      %v4012 = vsel %vm567, %v3921, -inf
      %4013 = vmax.xlane.f32.xlu0 %v4012
      %v4014 = vpop.xlane.xlu0 %4013
      %v4015 = vsel %vm567, %v3924, -inf
      %4016 = vmax.xlane.f32.xlu0 %v4015
      %v4017 = vpop.xlane.xlu0 %4016
      %v4018 = vsel %vm567, %v3926, -inf
      %4019 = vmax.xlane.f32.xlu0 %v4018
      %v4020 = vpop.xlane.xlu0 %4019
      %v4021 = vsel %vm567, %v3929, -inf
      %4022 = vmax.xlane.f32.xlu0 %v4021
      %v4023 = vpop.xlane.xlu0 %4022
      %v4024 = vsel %vm567, %v3931, -inf
      %4025 = vmax.xlane.f32.xlu0 %v4024
      %v4026 = vpop.xlane.xlu0 %4025
      %v4027 = vsel %vm567, %v3934, -inf
      %4028 = vmax.xlane.f32.xlu0 %v4027
      %v4029 = vpop.xlane.xlu0 %4028
      %v4030 = vsel %vm567, %v3936, -inf
      %4031 = vmax.xlane.f32.xlu0 %v4030
      %v4032 = vpop.xlane.xlu0 %4031
      %v4033 = vsel %vm567, %v3939, -inf
      %4034 = vmax.xlane.f32.xlu0 %v4033
      %v4035 = vpop.xlane.xlu0 %4034
      %v4036 = vsel %vm567, %v3941, -inf
      %4037 = vmax.xlane.f32.xlu0 %v4036
      %v4038 = vpop.xlane.xlu0 %4037
      %v4039 = vsub.f32 %v3864, %v3945
      %v4040 = vsub.f32 %v3866, %v3948
      %v4041 = vsub.f32 %v3869, %v3951
      %v4042 = vsub.f32 %v3871, %v3954
      %v4043 = vsub.f32 %v3874, %v3957
      %v4044 = vsub.f32 %v3876, %v3960
      %v4045 = vsub.f32 %v3879, %v3963
      %v4046 = vsub.f32 %v3881, %v3966
      %v4047 = vsub.f32 %v3884, %v3969
      %v4048 = vsub.f32 %v3886, %v3972
      %v4049 = vsub.f32 %v3889, %v3975
      %v4050 = vsub.f32 %v3891, %v3978
      %v4051 = vsub.f32 %v3894, %v3981
      %v4052 = vsub.f32 %v3896, %v3984
      %v4053 = vsub.f32 %v3899, %v3987
      %v4054 = vsub.f32 %v3901, %v3990
      %v4055 = vsub.f32 %v3904, %v3993
      %v4056 = vsub.f32 %v3906, %v3996
      %v4057 = vsub.f32 %v3909, %v3999
      %v4058 = vsub.f32 %v3911, %v4002
      %v4059 = vsub.f32 %v3914, %v4005
      %v4060 = vsub.f32 %v3916, %v4008
      %v4061 = vsub.f32 %v3919, %v4011
      %v4062 = vsub.f32 %v3921, %v4014
      %v4063 = vsub.f32 %v3924, %v4017
      %v4064 = vsub.f32 %v3926, %v4020
      %v4065 = vsub.f32 %v3929, %v4023
      %v4066 = vsub.f32 %v3931, %v4026
      %v4067 = vsub.f32 %v3934, %v4029
      %v4068 = vsub.f32 %v3936, %v4032
      %v4069 = vsub.f32 %v3939, %v4035
      %v4070 = vsub.f32 %v3941, %v4038
      %v4071 = vmul.f32 %v4039, 1.442695
      %v4072 = vpow.pop %v4071
      %v4073 = vmul.f32 %v4040, 1.442695
      %v4074 = vpow.pop %v4073
      %v4075 = vmul.f32 %v4041, 1.442695
      %v4076 = vpow.pop %v4075
      %v4077 = vmul.f32 %v4042, 1.442695
      %v4078 = vpow.pop %v4077
      %v4079 = vmul.f32 %v4043, 1.442695
      %v4080 = vpow.pop %v4079
      %v4081 = vmul.f32 %v4044, 1.442695
      %v4082 = vpow.pop %v4081
      %v4083 = vmul.f32 %v4045, 1.442695
      %v4084 = vpow.pop %v4083
      %v4085 = vmul.f32 %v4046, 1.442695
      %v4086 = vpow.pop %v4085
      %v4087 = vmul.f32 %v4047, 1.442695
      %v4088 = vpow.pop %v4087
      %v4089 = vmul.f32 %v4048, 1.442695
      %v4090 = vpow.pop %v4089
      %v4091 = vmul.f32 %v4049, 1.442695
      %v4092 = vpow.pop %v4091
      %v4093 = vmul.f32 %v4050, 1.442695
      %v4094 = vpow.pop %v4093
      %v4095 = vmul.f32 %v4051, 1.442695
      %v4096 = vpow.pop %v4095
      %v4097 = vmul.f32 %v4052, 1.442695
      %v4098 = vpow.pop %v4097
      %v4099 = vmul.f32 %v4053, 1.442695
      %v4100 = vpow.pop %v4099
      %v4101 = vmul.f32 %v4054, 1.442695
      %v4102 = vpow.pop %v4101
      %v4103 = vmul.f32 %v4055, 1.442695
      %v4104 = vpow.pop %v4103
      %v4105 = vmul.f32 %v4056, 1.442695
      %v4106 = vpow.pop %v4105
      %v4107 = vmul.f32 %v4057, 1.442695
      %v4108 = vpow.pop %v4107
      %v4109 = vmul.f32 %v4058, 1.442695
      %v4110 = vpow.pop %v4109
      %v4111 = vmul.f32 %v4059, 1.442695
      %v4112 = vpow.pop %v4111
      %v4113 = vmul.f32 %v4060, 1.442695
      %v4114 = vpow.pop %v4113
      %v4115 = vmul.f32 %v4061, 1.442695
      %v4116 = vpow.pop %v4115
      %v4117 = vmul.f32 %v4062, 1.442695
      %v4118 = vpow.pop %v4117
      %v4119 = vmul.f32 %v4063, 1.442695
      %v4120 = vpow.pop %v4119
      %v4121 = vmul.f32 %v4064, 1.442695
      %v4122 = vpow.pop %v4121
      %v4123 = vmul.f32 %v4065, 1.442695
      %v4124 = vpow.pop %v4123
      %v4125 = vmul.f32 %v4066, 1.442695
      %v4126 = vpow.pop %v4125
      %v4127 = vmul.f32 %v4067, 1.442695
      %v4128 = vpow.pop %v4127
      %v4129 = vmul.f32 %v4068, 1.442695
      %v4130 = vpow.pop %v4129
      %v4131 = vmul.f32 %v4069, 1.442695
      %v4132 = vpow.pop %v4131
      %v4133 = vmul.f32 %v4070, 1.442695
      %v4134 = vpow.pop %v4133
      %v4135 = vsel %vm567, %v4072, 0.0
      %4136 = vadd.xlane.f32.xlu0 %v4135
      %v4137 = vpop.xlane.xlu0 %4136
      %v4138 = vsel %vm567, %v4074, 0.0
      %4139 = vadd.xlane.f32.xlu0 %v4138
      %v4140 = vpop.xlane.xlu0 %4139
      %v4141 = vsel %vm567, %v4076, 0.0
      %4142 = vadd.xlane.f32.xlu0 %v4141
      %v4143 = vpop.xlane.xlu0 %4142
      %v4144 = vsel %vm567, %v4078, 0.0
      %4145 = vadd.xlane.f32.xlu0 %v4144
      %v4146 = vpop.xlane.xlu0 %4145
      %v4147 = vsel %vm567, %v4080, 0.0
      %4148 = vadd.xlane.f32.xlu0 %v4147
      %v4149 = vpop.xlane.xlu0 %4148
      %v4150 = vsel %vm567, %v4082, 0.0
      %4151 = vadd.xlane.f32.xlu0 %v4150
      %v4152 = vpop.xlane.xlu0 %4151
      %v4153 = vsel %vm567, %v4084, 0.0
      %4154 = vadd.xlane.f32.xlu0 %v4153
      %v4155 = vpop.xlane.xlu0 %4154
      %v4156 = vsel %vm567, %v4086, 0.0
      %4157 = vadd.xlane.f32.xlu0 %v4156
      %v4158 = vpop.xlane.xlu0 %4157
      %v4159 = vsel %vm567, %v4088, 0.0
      %4160 = vadd.xlane.f32.xlu0 %v4159
      %v4161 = vpop.xlane.xlu0 %4160
      %v4162 = vsel %vm567, %v4090, 0.0
      %4163 = vadd.xlane.f32.xlu0 %v4162
      %v4164 = vpop.xlane.xlu0 %4163
      %v4165 = vsel %vm567, %v4092, 0.0
      %4166 = vadd.xlane.f32.xlu0 %v4165
      %v4167 = vpop.xlane.xlu0 %4166
      %v4168 = vsel %vm567, %v4094, 0.0
      %4169 = vadd.xlane.f32.xlu0 %v4168
      %v4170 = vpop.xlane.xlu0 %4169
      %v4171 = vsel %vm567, %v4096, 0.0
      %4172 = vadd.xlane.f32.xlu0 %v4171
      %v4173 = vpop.xlane.xlu0 %4172
      %v4174 = vsel %vm567, %v4098, 0.0
      %4175 = vadd.xlane.f32.xlu0 %v4174
      %v4176 = vpop.xlane.xlu0 %4175
      %v4177 = vsel %vm567, %v4100, 0.0
      %4178 = vadd.xlane.f32.xlu0 %v4177
      %v4179 = vpop.xlane.xlu0 %4178
      %v4180 = vsel %vm567, %v4102, 0.0
      %4181 = vadd.xlane.f32.xlu0 %v4180
      %v4182 = vpop.xlane.xlu0 %4181
      %v4183 = vsel %vm567, %v4104, 0.0
      %4184 = vadd.xlane.f32.xlu0 %v4183
      %v4185 = vpop.xlane.xlu0 %4184
      %v4186 = vsel %vm567, %v4106, 0.0
      %4187 = vadd.xlane.f32.xlu0 %v4186
      %v4188 = vpop.xlane.xlu0 %4187
      %v4189 = vsel %vm567, %v4108, 0.0
      %4190 = vadd.xlane.f32.xlu0 %v4189
      %v4191 = vpop.xlane.xlu0 %4190
      %v4192 = vsel %vm567, %v4110, 0.0
      %4193 = vadd.xlane.f32.xlu0 %v4192
      %v4194 = vpop.xlane.xlu0 %4193
      %v4195 = vsel %vm567, %v4112, 0.0
      %4196 = vadd.xlane.f32.xlu0 %v4195
      %v4197 = vpop.xlane.xlu0 %4196
      %v4198 = vsel %vm567, %v4114, 0.0
      %4199 = vadd.xlane.f32.xlu0 %v4198
      %v4200 = vpop.xlane.xlu0 %4199
      %v4201 = vsel %vm567, %v4116, 0.0
      %4202 = vadd.xlane.f32.xlu0 %v4201
      %v4203 = vpop.xlane.xlu0 %4202
      %v4204 = vsel %vm567, %v4118, 0.0
      %4205 = vadd.xlane.f32.xlu0 %v4204
      %v4206 = vpop.xlane.xlu0 %4205
      %v4207 = vsel %vm567, %v4120, 0.0
      %4208 = vadd.xlane.f32.xlu0 %v4207
      %v4209 = vpop.xlane.xlu0 %4208
      %v4210 = vsel %vm567, %v4122, 0.0
      %4211 = vadd.xlane.f32.xlu0 %v4210
      %v4212 = vpop.xlane.xlu0 %4211
      %v4213 = vsel %vm567, %v4124, 0.0
      %4214 = vadd.xlane.f32.xlu0 %v4213
      %v4215 = vpop.xlane.xlu0 %4214
      %v4216 = vsel %vm567, %v4126, 0.0
      %4217 = vadd.xlane.f32.xlu0 %v4216
      %v4218 = vpop.xlane.xlu0 %4217
      %v4219 = vsel %vm567, %v4128, 0.0
      %4220 = vadd.xlane.f32.xlu0 %v4219
      %v4221 = vpop.xlane.xlu0 %4220
      %v4222 = vsel %vm567, %v4130, 0.0
      %4223 = vadd.xlane.f32.xlu0 %v4222
      %v4224 = vpop.xlane.xlu0 %4223
      %v4225 = vsel %vm567, %v4132, 0.0
      %4226 = vadd.xlane.f32.xlu0 %v4225
      %v4227 = vpop.xlane.xlu0 %4226
      %v4228 = vsel %vm567, %v4134, 0.0
      %4229 = vadd.xlane.f32.xlu0 %v4228
      %v4230 = vpop.xlane.xlu0 %4229
      %v4231 = vrcp.pop %v4137
      %v4232 = vrcp.pop %v4140
      %v4233 = vrcp.pop %v4143
      %v4234 = vrcp.pop %v4146
      %v4235 = vrcp.pop %v4149
      %v4236 = vrcp.pop %v4152
      %v4237 = vrcp.pop %v4155
      %v4238 = vrcp.pop %v4158
      %v4239 = vrcp.pop %v4161
      %v4240 = vrcp.pop %v4164
      %v4241 = vrcp.pop %v4167
      %v4242 = vrcp.pop %v4170
      %v4243 = vrcp.pop %v4173
      %v4244 = vrcp.pop %v4176
      %v4245 = vrcp.pop %v4179
      %v4246 = vrcp.pop %v4182
      %v4247 = vrcp.pop %v4185
      %v4248 = vrcp.pop %v4188
      %v4249 = vrcp.pop %v4191
      %v4250 = vrcp.pop %v4194
      %v4251 = vrcp.pop %v4197
      %v4252 = vrcp.pop %v4200
      %v4253 = vrcp.pop %v4203
      %v4254 = vrcp.pop %v4206
      %v4255 = vrcp.pop %v4209
      %v4256 = vrcp.pop %v4212
      %v4257 = vrcp.pop %v4215
      %v4258 = vrcp.pop %v4218
      %v4259 = vrcp.pop %v4221
      %v4260 = vrcp.pop %v4224
      %v4261 = vrcp.pop %v4227
      %v4262 = vrcp.pop %v4230
      %v4263 = vmul.f32 %v4072, %v4231
      %v4264 = vmul.f32 %v4074, %v4232
      %v4265 = vmul.f32 %v4076, %v4233
      %v4266 = vmul.f32 %v4078, %v4234
      %v4267 = vmul.f32 %v4080, %v4235
      %v4268 = vmul.f32 %v4082, %v4236
      %v4269 = vmul.f32 %v4084, %v4237
      %v4270 = vmul.f32 %v4086, %v4238
      %v4271 = vmul.f32 %v4088, %v4239
      %v4272 = vmul.f32 %v4090, %v4240
      %v4273 = vmul.f32 %v4092, %v4241
      %v4274 = vmul.f32 %v4094, %v4242
      %v4275 = vmul.f32 %v4096, %v4243
      %v4276 = vmul.f32 %v4098, %v4244
      %v4277 = vmul.f32 %v4100, %v4245
      %v4278 = vmul.f32 %v4102, %v4246
      %v4279 = vmul.f32 %v4104, %v4247
      %v4280 = vmul.f32 %v4106, %v4248
      %v4281 = vmul.f32 %v4108, %v4249
      %v4282 = vmul.f32 %v4110, %v4250
      %v4283 = vmul.f32 %v4112, %v4251
      %v4284 = vmul.f32 %v4114, %v4252
      %v4285 = vmul.f32 %v4116, %v4253
      %v4286 = vmul.f32 %v4118, %v4254
      %v4287 = vmul.f32 %v4120, %v4255
      %v4288 = vmul.f32 %v4122, %v4256
      %v4289 = vmul.f32 %v4124, %v4257
      %v4290 = vmul.f32 %v4126, %v4258
      %v4291 = vmul.f32 %v4128, %v4259
      %v4292 = vmul.f32 %v4130, %v4260
      %v4293 = vmul.f32 %v4132, %v4261
      %v4294 = vmul.f32 %v4134, %v4262
      %v4295 = vpack.c.bf16 %v4264, %v4263
      %v4296 = vpack.c.bf16 %v4266, %v4265
      %v4297 = vpack.c.bf16 %v4268, %v4267
      %v4298 = vpack.c.bf16 %v4270, %v4269
      %v4299 = vpack.c.bf16 %v4272, %v4271
      %v4300 = vpack.c.bf16 %v4274, %v4273
      %v4301 = vpack.c.bf16 %v4276, %v4275
      %v4302 = vpack.c.bf16 %v4278, %v4277
      %v4303 = vpack.c.bf16 %v4280, %v4279
      %v4304 = vpack.c.bf16 %v4282, %v4281
      %v4305 = vpack.c.bf16 %v4284, %v4283
      %v4306 = vpack.c.bf16 %v4286, %v4285
      %v4307 = vpack.c.bf16 %v4288, %v4287
      %v4308 = vpack.c.bf16 %v4290, %v4289
      %v4309 = vpack.c.bf16 %v4292, %v4291
      %v4310 = vpack.c.bf16 %v4294, %v4293
      %4311 = vrot.lane.b32.xlu0 %v940, 112
      %v4312 = vpop.permute.xlu0 %4311
      %v4315 = vsel %vm567, %v4295, 0
      %v4318 = vsel %vm567, %v4296, 0
      %v4321 = vsel %vm567, %v4297, 0
      %v4324 = vsel %vm567, %v4298, 0
      %v4327 = vsel %vm567, %v4299, 0
      %v4330 = vsel %vm567, %v4300, 0
      %v4333 = vsel %vm567, %v4301, 0
      %v4336 = vsel %vm567, %v4302, 0
      %v4339 = vsel %vm567, %v4303, 0
      %v4342 = vsel %vm567, %v4304, 0
      %v4345 = vsel %vm567, %v4305, 0
      %v4348 = vsel %vm567, %v4306, 0
      %v4351 = vsel %vm567, %v4307, 0
      %v4354 = vsel %vm567, %v4308, 0
      %v4357 = vsel %vm567, %v4309, 0
      %v4360 = vsel %vm567, %v4310, 0
      %4362 = vmatpush.bf16.msra.mxu0 0
      %4363 = vmatpush.bf16.msra.mxu0 0
      %4364 = vmatpush.bf16.msra.mxu0 0
      %4365 = vmatpush.bf16.msra.mxu0 0
      %4366 = vmatpush.bf16.msra.mxu0 0
      %4367 = vmatpush.bf16.msra.mxu0 0
      %4368 = vmatpush.bf16.msra.mxu0 0
      %4369 = vmatpush.bf16.msra.mxu0 %v4312
      %4370 = vmatmul.bf16.gmra.mxu0 %v4315
      %v4371 = vpop.f32.mrf.mxu0
      %v4372 = vadd.f32 0.0, %v4371
      %v4373 = vpop.f32.mrf.mxu0
      %v4374 = vadd.f32 0.0, %v4373
      %4375 = vmatmul.bf16.gmra.mxu0 %v4318
      %v4376 = vpop.f32.mrf.mxu0
      %v4377 = vadd.f32 0.0, %v4376
      %v4378 = vpop.f32.mrf.mxu0
      %v4379 = vadd.f32 0.0, %v4378
      %4380 = vmatmul.bf16.gmra.mxu0 %v4321
      %v4381 = vpop.f32.mrf.mxu0
      %v4382 = vadd.f32 0.0, %v4381
      %v4383 = vpop.f32.mrf.mxu0
      %v4384 = vadd.f32 0.0, %v4383
      %4385 = vmatmul.bf16.gmra.mxu0 %v4324
      %v4386 = vpop.f32.mrf.mxu0
      %v4387 = vadd.f32 0.0, %v4386
      %v4388 = vpop.f32.mrf.mxu0
      %v4389 = vadd.f32 0.0, %v4388
      %4390 = vmatmul.bf16.gmra.mxu0 %v4327
      %v4391 = vpop.f32.mrf.mxu0
      %v4392 = vadd.f32 0.0, %v4391
      %v4393 = vpop.f32.mrf.mxu0
      %v4394 = vadd.f32 0.0, %v4393
      %4395 = vmatmul.bf16.gmra.mxu0 %v4330
      %v4396 = vpop.f32.mrf.mxu0
      %v4397 = vadd.f32 0.0, %v4396
      %v4398 = vpop.f32.mrf.mxu0
      %v4399 = vadd.f32 0.0, %v4398
      %4400 = vmatmul.bf16.gmra.mxu0 %v4333
      %v4401 = vpop.f32.mrf.mxu0
      %v4402 = vadd.f32 0.0, %v4401
      %v4403 = vpop.f32.mrf.mxu0
      %v4404 = vadd.f32 0.0, %v4403
      %4405 = vmatmul.bf16.gmra.mxu0 %v4336
      %v4406 = vpop.f32.mrf.mxu0
      %v4407 = vadd.f32 0.0, %v4406
      %v4408 = vpop.f32.mrf.mxu0
      %v4409 = vadd.f32 0.0, %v4408
      %4410 = vmatmul.bf16.gmra.mxu0 %v4339
      %v4411 = vpop.f32.mrf.mxu0
      %v4412 = vadd.f32 0.0, %v4411
      %v4413 = vpop.f32.mrf.mxu0
      %v4414 = vadd.f32 0.0, %v4413
      %4415 = vmatmul.bf16.gmra.mxu0 %v4342
      %v4416 = vpop.f32.mrf.mxu0
      %v4417 = vadd.f32 0.0, %v4416
      %v4418 = vpop.f32.mrf.mxu0
      %v4419 = vadd.f32 0.0, %v4418
      %4420 = vmatmul.bf16.gmra.mxu0 %v4345
      %v4421 = vpop.f32.mrf.mxu0
      %v4422 = vadd.f32 0.0, %v4421
      %v4423 = vpop.f32.mrf.mxu0
      %v4424 = vadd.f32 0.0, %v4423
      %4425 = vmatmul.bf16.gmra.mxu0 %v4348
      %v4426 = vpop.f32.mrf.mxu0
      %v4427 = vadd.f32 0.0, %v4426
      %v4428 = vpop.f32.mrf.mxu0
      %v4429 = vadd.f32 0.0, %v4428
      %4430 = vmatmul.bf16.gmra.mxu0 %v4351
      %v4431 = vpop.f32.mrf.mxu0
      %v4432 = vadd.f32 0.0, %v4431
      %v4433 = vpop.f32.mrf.mxu0
      %v4434 = vadd.f32 0.0, %v4433
      %4435 = vmatmul.bf16.gmra.mxu0 %v4354
      %v4436 = vpop.f32.mrf.mxu0
      %v4437 = vadd.f32 0.0, %v4436
      %v4438 = vpop.f32.mrf.mxu0
      %v4439 = vadd.f32 0.0, %v4438
      %4440 = vmatmul.bf16.gmra.mxu0 %v4357
      %v4441 = vpop.f32.mrf.mxu0
      %v4442 = vadd.f32 0.0, %v4441
      %v4443 = vpop.f32.mrf.mxu0
      %v4444 = vadd.f32 0.0, %v4443
      %4445 = vmatmul.bf16.gmra.mxu0 %v4360
      %v4446 = vpop.f32.mrf.mxu0
      %v4447 = vadd.f32 0.0, %v4446
      %v4448 = vpop.f32.mrf.mxu0
      %v4449 = vadd.f32 0.0, %v4448
      %4450 = vdwg.mxu0
      %v4451 = vpack.c.bf16 %v4372, %v4372
      %v4452 = vpack.c.bf16 %v4374, %v4374
      %v4453 = vpack.c.bf16 %v4377, %v4377
      %v4454 = vpack.c.bf16 %v4379, %v4379
      %v4455 = vpack.c.bf16 %v4382, %v4382
      %v4456 = vpack.c.bf16 %v4384, %v4384
      %v4457 = vpack.c.bf16 %v4387, %v4387
      %v4458 = vpack.c.bf16 %v4389, %v4389
      %v4459 = vpack.c.bf16 %v4392, %v4392
      %v4460 = vpack.c.bf16 %v4394, %v4394
      %v4461 = vpack.c.bf16 %v4397, %v4397
      %v4462 = vpack.c.bf16 %v4399, %v4399
      %v4463 = vpack.c.bf16 %v4402, %v4402
      %v4464 = vpack.c.bf16 %v4404, %v4404
      %v4465 = vpack.c.bf16 %v4407, %v4407
      %v4466 = vpack.c.bf16 %v4409, %v4409
      %v4467 = vpack.c.bf16 %v4412, %v4412
      %v4468 = vpack.c.bf16 %v4414, %v4414
      %v4469 = vpack.c.bf16 %v4417, %v4417
      %v4470 = vpack.c.bf16 %v4419, %v4419
      %v4471 = vpack.c.bf16 %v4422, %v4422
      %v4472 = vpack.c.bf16 %v4424, %v4424
      %v4473 = vpack.c.bf16 %v4427, %v4427
      %v4474 = vpack.c.bf16 %v4429, %v4429
      %v4475 = vpack.c.bf16 %v4432, %v4432
      %v4476 = vpack.c.bf16 %v4434, %v4434
      %v4477 = vpack.c.bf16 %v4437, %v4437
      %v4478 = vpack.c.bf16 %v4439, %v4439
      %v4479 = vpack.c.bf16 %v4442, %v4442
      %v4480 = vpack.c.bf16 %v4444, %v4444
      %v4481 = vpack.c.bf16 %v4447, %v4447
      %v4482 = vpack.c.bf16 %v4449, %v4449
      %4515 = vrot.lane.b32.xlu0 %v4451, 16
      %v4516 = vpop.permute.xlu0 %4515
      %4517 = vrot.lane.b32.xlu0 %v4452, 16
      %v4518 = vpop.permute.xlu0 %4517
      %4519 = vrot.lane.b32.xlu0 %v4453, 16
      %v4520 = vpop.permute.xlu0 %4519
      %4521 = vrot.lane.b32.xlu0 %v4454, 16
      %v4522 = vpop.permute.xlu0 %4521
      %4523 = vrot.lane.b32.xlu0 %v4455, 16
      %v4524 = vpop.permute.xlu0 %4523
      %4525 = vrot.lane.b32.xlu0 %v4456, 16
      %v4526 = vpop.permute.xlu0 %4525
      %4527 = vrot.lane.b32.xlu0 %v4457, 16
      %v4528 = vpop.permute.xlu0 %4527
      %4529 = vrot.lane.b32.xlu0 %v4458, 16
      %v4530 = vpop.permute.xlu0 %4529
      %4531 = vrot.lane.b32.xlu0 %v4459, 16
      %v4532 = vpop.permute.xlu0 %4531
      %4533 = vrot.lane.b32.xlu0 %v4460, 16
      %v4534 = vpop.permute.xlu0 %4533
      %4535 = vrot.lane.b32.xlu0 %v4461, 16
      %v4536 = vpop.permute.xlu0 %4535
      %4537 = vrot.lane.b32.xlu0 %v4462, 16
      %v4538 = vpop.permute.xlu0 %4537
      %4539 = vrot.lane.b32.xlu0 %v4463, 16
      %v4540 = vpop.permute.xlu0 %4539
      %4541 = vrot.lane.b32.xlu0 %v4464, 16
      %v4542 = vpop.permute.xlu0 %4541
      %4543 = vrot.lane.b32.xlu0 %v4465, 16
      %v4544 = vpop.permute.xlu0 %4543
      %4545 = vrot.lane.b32.xlu0 %v4466, 16
      %v4546 = vpop.permute.xlu0 %4545
      %4547 = vrot.lane.b32.xlu0 %v4467, 16
      %v4548 = vpop.permute.xlu0 %4547
      %4549 = vrot.lane.b32.xlu0 %v4468, 16
      %v4550 = vpop.permute.xlu0 %4549
      %4551 = vrot.lane.b32.xlu0 %v4469, 16
      %v4552 = vpop.permute.xlu0 %4551
      %4553 = vrot.lane.b32.xlu0 %v4470, 16
      %v4554 = vpop.permute.xlu0 %4553
      %4555 = vrot.lane.b32.xlu0 %v4471, 16
      %v4556 = vpop.permute.xlu0 %4555
      %4557 = vrot.lane.b32.xlu0 %v4472, 16
      %v4558 = vpop.permute.xlu0 %4557
      %4559 = vrot.lane.b32.xlu0 %v4473, 16
      %v4560 = vpop.permute.xlu0 %4559
      %4561 = vrot.lane.b32.xlu0 %v4474, 16
      %v4562 = vpop.permute.xlu0 %4561
      %4563 = vrot.lane.b32.xlu0 %v4475, 16
      %v4564 = vpop.permute.xlu0 %4563
      %4565 = vrot.lane.b32.xlu0 %v4476, 16
      %v4566 = vpop.permute.xlu0 %4565
      %4567 = vrot.lane.b32.xlu0 %v4477, 16
      %v4568 = vpop.permute.xlu0 %4567
      %4569 = vrot.lane.b32.xlu0 %v4478, 16
      %v4570 = vpop.permute.xlu0 %4569
      %4571 = vrot.lane.b32.xlu0 %v4479, 16
      %v4572 = vpop.permute.xlu0 %4571
      %4573 = vrot.lane.b32.xlu0 %v4480, 16
      %v4574 = vpop.permute.xlu0 %4573
      %4575 = vrot.lane.b32.xlu0 %v4481, 16
      %v4576 = vpop.permute.xlu0 %4575
      %4577 = vrot.lane.b32.xlu0 %v4482, 16
      %v4578 = vpop.permute.xlu0 %4577
      %vm4611 = vcmask 158848
      %4612 = vst.msk [vmem:[#allocation2] sm:$0xf] %vm4611, %v4516
      %4613 = vst.msk [vmem:[#allocation2 + $0x4] sm:$0xf] %vm4611, %v4518
      %4614 = vst.msk [vmem:[#allocation2 + $0x8] sm:$0xf] %vm4611, %v4520
      %4615 = vst.msk [vmem:[#allocation2 + $0xc] sm:$0xf] %vm4611, %v4522
      %4616 = vst.msk [vmem:[#allocation2 + $0x10] sm:$0xf] %vm4611, %v4524
      %4617 = vst.msk [vmem:[#allocation2 + $0x14] sm:$0xf] %vm4611, %v4526
      %4618 = vst.msk [vmem:[#allocation2 + $0x18] sm:$0xf] %vm4611, %v4528
      %4619 = vst.msk [vmem:[#allocation2 + $0x1c] sm:$0xf] %vm4611, %v4530
      %4620 = vst.msk [vmem:[#allocation2 + $0x20] sm:$0xf] %vm4611, %v4532
      %4621 = vst.msk [vmem:[#allocation2 + $0x24] sm:$0xf] %vm4611, %v4534
      %4622 = vst.msk [vmem:[#allocation2 + $0x28] sm:$0xf] %vm4611, %v4536
      %4623 = vst.msk [vmem:[#allocation2 + $0x2c] sm:$0xf] %vm4611, %v4538
      %4624 = vst.msk [vmem:[#allocation2 + $0x30] sm:$0xf] %vm4611, %v4540
      %4625 = vst.msk [vmem:[#allocation2 + $0x34] sm:$0xf] %vm4611, %v4542
      %4626 = vst.msk [vmem:[#allocation2 + $0x38] sm:$0xf] %vm4611, %v4544
      %4627 = vst.msk [vmem:[#allocation2 + $0x3c] sm:$0xf] %vm4611, %v4546
      %4628 = vst.msk [vmem:[#allocation2 + $0x40] sm:$0xf] %vm4611, %v4548
      %4629 = vst.msk [vmem:[#allocation2 + $0x44] sm:$0xf] %vm4611, %v4550
      %4630 = vst.msk [vmem:[#allocation2 + $0x48] sm:$0xf] %vm4611, %v4552
      %4631 = vst.msk [vmem:[#allocation2 + $0x4c] sm:$0xf] %vm4611, %v4554
      %4632 = vst.msk [vmem:[#allocation2 + $0x50] sm:$0xf] %vm4611, %v4556
      %4633 = vst.msk [vmem:[#allocation2 + $0x54] sm:$0xf] %vm4611, %v4558
      %4634 = vst.msk [vmem:[#allocation2 + $0x58] sm:$0xf] %vm4611, %v4560
      %4635 = vst.msk [vmem:[#allocation2 + $0x5c] sm:$0xf] %vm4611, %v4562
      %4636 = vst.msk [vmem:[#allocation2 + $0x60] sm:$0xf] %vm4611, %v4564
      %4637 = vst.msk [vmem:[#allocation2 + $0x64] sm:$0xf] %vm4611, %v4566
      %4638 = vst.msk [vmem:[#allocation2 + $0x68] sm:$0xf] %vm4611, %v4568
      %4639 = vst.msk [vmem:[#allocation2 + $0x6c] sm:$0xf] %vm4611, %v4570
      %4640 = vst.msk [vmem:[#allocation2 + $0x70] sm:$0xf] %vm4611, %v4572
      %4641 = vst.msk [vmem:[#allocation2 + $0x74] sm:$0xf] %vm4611, %v4574
      %4642 = vst.msk [vmem:[#allocation2 + $0x78] sm:$0xf] %vm4611, %v4576
      %4643 = vst.msk [vmem:[#allocation2 + $0x7c] sm:$0xf] %vm4611, %v4578
      %4644 = vrot.lane.b32.xlu0 %v405, 108
      %v4645 = vpop.permute.xlu0 %4644
      %4646 = vrot.lane.b32.xlu0 %v406, 108
      %v4647 = vpop.permute.xlu0 %4646
      %4648 = vrot.lane.b32.xlu0 %v407, 108
      %v4649 = vpop.permute.xlu0 %4648
      %4650 = vrot.lane.b32.xlu0 %v408, 108
      %v4651 = vpop.permute.xlu0 %4650
      %4652 = vrot.lane.b32.xlu0 %v409, 108
      %v4653 = vpop.permute.xlu0 %4652
      %4654 = vrot.lane.b32.xlu0 %v410, 108
      %v4655 = vpop.permute.xlu0 %4654
      %4656 = vrot.lane.b32.xlu0 %v411, 108
      %v4657 = vpop.permute.xlu0 %4656
      %4658 = vrot.lane.b32.xlu0 %v412, 108
      %v4659 = vpop.permute.xlu0 %4658
      %4660 = vrot.lane.b32.xlu0 %v413, 108
      %v4661 = vpop.permute.xlu0 %4660
      %4662 = vrot.lane.b32.xlu0 %v414, 108
      %v4663 = vpop.permute.xlu0 %4662
      %4664 = vrot.lane.b32.xlu0 %v415, 108
      %v4665 = vpop.permute.xlu0 %4664
      %4666 = vrot.lane.b32.xlu0 %v416, 108
      %v4667 = vpop.permute.xlu0 %4666
      %4668 = vrot.lane.b32.xlu0 %v417, 108
      %v4669 = vpop.permute.xlu0 %4668
      %4670 = vrot.lane.b32.xlu0 %v418, 108
      %v4671 = vpop.permute.xlu0 %4670
      %4672 = vrot.lane.b32.xlu0 %v419, 108
      %v4673 = vpop.permute.xlu0 %4672
      %4674 = vrot.lane.b32.xlu0 %v420, 108
      %v4675 = vpop.permute.xlu0 %4674
      %4676 = vrot.lane.b32.xlu0 %v425, 108
      %v4677 = vpop.permute.xlu0 %4676
      %v4679 = vsel %vm426, %v4645, 0
      %v4682 = vsel %vm426, %v4647, 0
      %v4685 = vsel %vm426, %v4649, 0
      %v4688 = vsel %vm426, %v4651, 0
      %v4691 = vsel %vm426, %v4653, 0
      %v4694 = vsel %vm426, %v4655, 0
      %v4697 = vsel %vm426, %v4657, 0
      %v4700 = vsel %vm426, %v4659, 0
      %v4703 = vsel %vm426, %v4661, 0
      %v4706 = vsel %vm426, %v4663, 0
      %v4709 = vsel %vm426, %v4665, 0
      %v4712 = vsel %vm426, %v4667, 0
      %v4715 = vsel %vm426, %v4669, 0
      %v4718 = vsel %vm426, %v4671, 0
      %v4721 = vsel %vm426, %v4673, 0
      %v4724 = vsel %vm426, %v4675, 0
      %v4727 = vsel %vm426, %v4677, 0
      %4729 = vmatpush.bf16.xpose.msra.mxu0 0
      %4730 = vmatpush.bf16.xpose.msra.mxu0 0
      %4731 = vmatpush.bf16.xpose.msra.mxu0 0
      %4732 = vmatpush.bf16.xpose.msra.mxu0 0
      %4733 = vmatpush.bf16.xpose.msra.mxu0 0
      %4734 = vmatpush.bf16.xpose.msra.mxu0 0
      %4735 = vmatpush.bf16.xpose.msra.mxu0 0
      %4736 = vmatpush.bf16.xpose.msra.mxu0 %v4727
      %4737 = vmatmul.bf16.gmra.mxu0 %v4679
      %v4738 = vpop.f32.mrf.mxu0
      %v4739 = vadd.f32 0.0, %v4738
      %v4740 = vpop.f32.mrf.mxu0
      %v4741 = vadd.f32 0.0, %v4740
      %4742 = vmatmul.bf16.gmra.mxu0 %v4682
      %v4743 = vpop.f32.mrf.mxu0
      %v4744 = vadd.f32 0.0, %v4743
      %v4745 = vpop.f32.mrf.mxu0
      %v4746 = vadd.f32 0.0, %v4745
      %4747 = vmatmul.bf16.gmra.mxu0 %v4685
      %v4748 = vpop.f32.mrf.mxu0
      %v4749 = vadd.f32 0.0, %v4748
      %v4750 = vpop.f32.mrf.mxu0
      %v4751 = vadd.f32 0.0, %v4750
      %4752 = vmatmul.bf16.gmra.mxu0 %v4688
      %v4753 = vpop.f32.mrf.mxu0
      %v4754 = vadd.f32 0.0, %v4753
      %v4755 = vpop.f32.mrf.mxu0
      %v4756 = vadd.f32 0.0, %v4755
      %4757 = vmatmul.bf16.gmra.mxu0 %v4691
      %v4758 = vpop.f32.mrf.mxu0
      %v4759 = vadd.f32 0.0, %v4758
      %v4760 = vpop.f32.mrf.mxu0
      %v4761 = vadd.f32 0.0, %v4760
      %4762 = vmatmul.bf16.gmra.mxu0 %v4694
      %v4763 = vpop.f32.mrf.mxu0
      %v4764 = vadd.f32 0.0, %v4763
      %v4765 = vpop.f32.mrf.mxu0
      %v4766 = vadd.f32 0.0, %v4765
      %4767 = vmatmul.bf16.gmra.mxu0 %v4697
      %v4768 = vpop.f32.mrf.mxu0
      %v4769 = vadd.f32 0.0, %v4768
      %v4770 = vpop.f32.mrf.mxu0
      %v4771 = vadd.f32 0.0, %v4770
      %4772 = vmatmul.bf16.gmra.mxu0 %v4700
      %v4773 = vpop.f32.mrf.mxu0
      %v4774 = vadd.f32 0.0, %v4773
      %v4775 = vpop.f32.mrf.mxu0
      %v4776 = vadd.f32 0.0, %v4775
      %4777 = vmatmul.bf16.gmra.mxu0 %v4703
      %v4778 = vpop.f32.mrf.mxu0
      %v4779 = vadd.f32 0.0, %v4778
      %v4780 = vpop.f32.mrf.mxu0
      %v4781 = vadd.f32 0.0, %v4780
      %4782 = vmatmul.bf16.gmra.mxu0 %v4706
      %v4783 = vpop.f32.mrf.mxu0
      %v4784 = vadd.f32 0.0, %v4783
      %v4785 = vpop.f32.mrf.mxu0
      %v4786 = vadd.f32 0.0, %v4785
      %4787 = vmatmul.bf16.gmra.mxu0 %v4709
      %v4788 = vpop.f32.mrf.mxu0
      %v4789 = vadd.f32 0.0, %v4788
      %v4790 = vpop.f32.mrf.mxu0
      %v4791 = vadd.f32 0.0, %v4790
      %4792 = vmatmul.bf16.gmra.mxu0 %v4712
      %v4793 = vpop.f32.mrf.mxu0
      %v4794 = vadd.f32 0.0, %v4793
      %v4795 = vpop.f32.mrf.mxu0
      %v4796 = vadd.f32 0.0, %v4795
      %4797 = vmatmul.bf16.gmra.mxu0 %v4715
      %v4798 = vpop.f32.mrf.mxu0
      %v4799 = vadd.f32 0.0, %v4798
      %v4800 = vpop.f32.mrf.mxu0
      %v4801 = vadd.f32 0.0, %v4800
      %4802 = vmatmul.bf16.gmra.mxu0 %v4718
      %v4803 = vpop.f32.mrf.mxu0
      %v4804 = vadd.f32 0.0, %v4803
      %v4805 = vpop.f32.mrf.mxu0
      %v4806 = vadd.f32 0.0, %v4805
      %4807 = vmatmul.bf16.gmra.mxu0 %v4721
      %v4808 = vpop.f32.mrf.mxu0
      %v4809 = vadd.f32 0.0, %v4808
      %v4810 = vpop.f32.mrf.mxu0
      %v4811 = vadd.f32 0.0, %v4810
      %4812 = vmatmul.bf16.gmra.mxu0 %v4724
      %v4813 = vpop.f32.mrf.mxu0
      %v4814 = vadd.f32 0.0, %v4813
      %v4815 = vpop.f32.mrf.mxu0
      %v4816 = vadd.f32 0.0, %v4815
      %4817 = vdwg.mxu0
      %v4818 = vsel %vm567, %v4739, -inf
      %4819 = vmax.xlane.f32.xlu0 %v4818
      %v4820 = vpop.xlane.xlu0 %4819
      %v4821 = vsel %vm567, %v4741, -inf
      %4822 = vmax.xlane.f32.xlu0 %v4821
      %v4823 = vpop.xlane.xlu0 %4822
      %v4824 = vsel %vm567, %v4744, -inf
      %4825 = vmax.xlane.f32.xlu0 %v4824
      %v4826 = vpop.xlane.xlu0 %4825
      %v4827 = vsel %vm567, %v4746, -inf
      %4828 = vmax.xlane.f32.xlu0 %v4827
      %v4829 = vpop.xlane.xlu0 %4828
      %v4830 = vsel %vm567, %v4749, -inf
      %4831 = vmax.xlane.f32.xlu0 %v4830
      %v4832 = vpop.xlane.xlu0 %4831
      %v4833 = vsel %vm567, %v4751, -inf
      %4834 = vmax.xlane.f32.xlu0 %v4833
      %v4835 = vpop.xlane.xlu0 %4834
      %v4836 = vsel %vm567, %v4754, -inf
      %4837 = vmax.xlane.f32.xlu0 %v4836
      %v4838 = vpop.xlane.xlu0 %4837
      %v4839 = vsel %vm567, %v4756, -inf
      %4840 = vmax.xlane.f32.xlu0 %v4839
      %v4841 = vpop.xlane.xlu0 %4840
      %v4842 = vsel %vm567, %v4759, -inf
      %4843 = vmax.xlane.f32.xlu0 %v4842
      %v4844 = vpop.xlane.xlu0 %4843
      %v4845 = vsel %vm567, %v4761, -inf
      %4846 = vmax.xlane.f32.xlu0 %v4845
      %v4847 = vpop.xlane.xlu0 %4846
      %v4848 = vsel %vm567, %v4764, -inf
      %4849 = vmax.xlane.f32.xlu0 %v4848
      %v4850 = vpop.xlane.xlu0 %4849
      %v4851 = vsel %vm567, %v4766, -inf
      %4852 = vmax.xlane.f32.xlu0 %v4851
      %v4853 = vpop.xlane.xlu0 %4852
      %v4854 = vsel %vm567, %v4769, -inf
      %4855 = vmax.xlane.f32.xlu0 %v4854
      %v4856 = vpop.xlane.xlu0 %4855
      %v4857 = vsel %vm567, %v4771, -inf
      %4858 = vmax.xlane.f32.xlu0 %v4857
      %v4859 = vpop.xlane.xlu0 %4858
      %v4860 = vsel %vm567, %v4774, -inf
      %4861 = vmax.xlane.f32.xlu0 %v4860
      %v4862 = vpop.xlane.xlu0 %4861
      %v4863 = vsel %vm567, %v4776, -inf
      %4864 = vmax.xlane.f32.xlu0 %v4863
      %v4865 = vpop.xlane.xlu0 %4864
      %v4866 = vsel %vm567, %v4779, -inf
      %4867 = vmax.xlane.f32.xlu0 %v4866
      %v4868 = vpop.xlane.xlu0 %4867
      %v4869 = vsel %vm567, %v4781, -inf
      %4870 = vmax.xlane.f32.xlu0 %v4869
      %v4871 = vpop.xlane.xlu0 %4870
      %v4872 = vsel %vm567, %v4784, -inf
      %4873 = vmax.xlane.f32.xlu0 %v4872
      %v4874 = vpop.xlane.xlu0 %4873
      %v4875 = vsel %vm567, %v4786, -inf
      %4876 = vmax.xlane.f32.xlu0 %v4875
      %v4877 = vpop.xlane.xlu0 %4876
      %v4878 = vsel %vm567, %v4789, -inf
      %4879 = vmax.xlane.f32.xlu0 %v4878
      %v4880 = vpop.xlane.xlu0 %4879
      %v4881 = vsel %vm567, %v4791, -inf
      %4882 = vmax.xlane.f32.xlu0 %v4881
      %v4883 = vpop.xlane.xlu0 %4882
      %v4884 = vsel %vm567, %v4794, -inf
      %4885 = vmax.xlane.f32.xlu0 %v4884
      %v4886 = vpop.xlane.xlu0 %4885
      %v4887 = vsel %vm567, %v4796, -inf
      %4888 = vmax.xlane.f32.xlu0 %v4887
      %v4889 = vpop.xlane.xlu0 %4888
      %v4890 = vsel %vm567, %v4799, -inf
      %4891 = vmax.xlane.f32.xlu0 %v4890
      %v4892 = vpop.xlane.xlu0 %4891
      %v4893 = vsel %vm567, %v4801, -inf
      %4894 = vmax.xlane.f32.xlu0 %v4893
      %v4895 = vpop.xlane.xlu0 %4894
      %v4896 = vsel %vm567, %v4804, -inf
      %4897 = vmax.xlane.f32.xlu0 %v4896
      %v4898 = vpop.xlane.xlu0 %4897
      %v4899 = vsel %vm567, %v4806, -inf
      %4900 = vmax.xlane.f32.xlu0 %v4899
      %v4901 = vpop.xlane.xlu0 %4900
      %v4902 = vsel %vm567, %v4809, -inf
      %4903 = vmax.xlane.f32.xlu0 %v4902
      %v4904 = vpop.xlane.xlu0 %4903
      %v4905 = vsel %vm567, %v4811, -inf
      %4906 = vmax.xlane.f32.xlu0 %v4905
      %v4907 = vpop.xlane.xlu0 %4906
      %v4908 = vsel %vm567, %v4814, -inf
      %4909 = vmax.xlane.f32.xlu0 %v4908
      %v4910 = vpop.xlane.xlu0 %4909
      %v4911 = vsel %vm567, %v4816, -inf
      %4912 = vmax.xlane.f32.xlu0 %v4911
      %v4913 = vpop.xlane.xlu0 %4912
      %v4914 = vsub.f32 %v4739, %v4820
      %v4915 = vsub.f32 %v4741, %v4823
      %v4916 = vsub.f32 %v4744, %v4826
      %v4917 = vsub.f32 %v4746, %v4829
      %v4918 = vsub.f32 %v4749, %v4832
      %v4919 = vsub.f32 %v4751, %v4835
      %v4920 = vsub.f32 %v4754, %v4838
      %v4921 = vsub.f32 %v4756, %v4841
      %v4922 = vsub.f32 %v4759, %v4844
      %v4923 = vsub.f32 %v4761, %v4847
      %v4924 = vsub.f32 %v4764, %v4850
      %v4925 = vsub.f32 %v4766, %v4853
      %v4926 = vsub.f32 %v4769, %v4856
      %v4927 = vsub.f32 %v4771, %v4859
      %v4928 = vsub.f32 %v4774, %v4862
      %v4929 = vsub.f32 %v4776, %v4865
      %v4930 = vsub.f32 %v4779, %v4868
      %v4931 = vsub.f32 %v4781, %v4871
      %v4932 = vsub.f32 %v4784, %v4874
      %v4933 = vsub.f32 %v4786, %v4877
      %v4934 = vsub.f32 %v4789, %v4880
      %v4935 = vsub.f32 %v4791, %v4883
      %v4936 = vsub.f32 %v4794, %v4886
      %v4937 = vsub.f32 %v4796, %v4889
      %v4938 = vsub.f32 %v4799, %v4892
      %v4939 = vsub.f32 %v4801, %v4895
      %v4940 = vsub.f32 %v4804, %v4898
      %v4941 = vsub.f32 %v4806, %v4901
      %v4942 = vsub.f32 %v4809, %v4904
      %v4943 = vsub.f32 %v4811, %v4907
      %v4944 = vsub.f32 %v4814, %v4910
      %v4945 = vsub.f32 %v4816, %v4913
      %v4946 = vmul.f32 %v4914, 1.442695
      %v4947 = vpow.pop %v4946
      %v4948 = vmul.f32 %v4915, 1.442695
      %v4949 = vpow.pop %v4948
      %v4950 = vmul.f32 %v4916, 1.442695
      %v4951 = vpow.pop %v4950
      %v4952 = vmul.f32 %v4917, 1.442695
      %v4953 = vpow.pop %v4952
      %v4954 = vmul.f32 %v4918, 1.442695
      %v4955 = vpow.pop %v4954
      %v4956 = vmul.f32 %v4919, 1.442695
      %v4957 = vpow.pop %v4956
      %v4958 = vmul.f32 %v4920, 1.442695
      %v4959 = vpow.pop %v4958
      %v4960 = vmul.f32 %v4921, 1.442695
      %v4961 = vpow.pop %v4960
      %v4962 = vmul.f32 %v4922, 1.442695
      %v4963 = vpow.pop %v4962
      %v4964 = vmul.f32 %v4923, 1.442695
      %v4965 = vpow.pop %v4964
      %v4966 = vmul.f32 %v4924, 1.442695
      %v4967 = vpow.pop %v4966
      %v4968 = vmul.f32 %v4925, 1.442695
      %v4969 = vpow.pop %v4968
      %v4970 = vmul.f32 %v4926, 1.442695
      %v4971 = vpow.pop %v4970
      %v4972 = vmul.f32 %v4927, 1.442695
      %v4973 = vpow.pop %v4972
      %v4974 = vmul.f32 %v4928, 1.442695
      %v4975 = vpow.pop %v4974
      %v4976 = vmul.f32 %v4929, 1.442695
      %v4977 = vpow.pop %v4976
      %v4978 = vmul.f32 %v4930, 1.442695
      %v4979 = vpow.pop %v4978
      %v4980 = vmul.f32 %v4931, 1.442695
      %v4981 = vpow.pop %v4980
      %v4982 = vmul.f32 %v4932, 1.442695
      %v4983 = vpow.pop %v4982
      %v4984 = vmul.f32 %v4933, 1.442695
      %v4985 = vpow.pop %v4984
      %v4986 = vmul.f32 %v4934, 1.442695
      %v4987 = vpow.pop %v4986
      %v4988 = vmul.f32 %v4935, 1.442695
      %v4989 = vpow.pop %v4988
      %v4990 = vmul.f32 %v4936, 1.442695
      %v4991 = vpow.pop %v4990
      %v4992 = vmul.f32 %v4937, 1.442695
      %v4993 = vpow.pop %v4992
      %v4994 = vmul.f32 %v4938, 1.442695
      %v4995 = vpow.pop %v4994
      %v4996 = vmul.f32 %v4939, 1.442695
      %v4997 = vpow.pop %v4996
      %v4998 = vmul.f32 %v4940, 1.442695
      %v4999 = vpow.pop %v4998
      %v5000 = vmul.f32 %v4941, 1.442695
      %v5001 = vpow.pop %v5000
      %v5002 = vmul.f32 %v4942, 1.442695
      %v5003 = vpow.pop %v5002
      %v5004 = vmul.f32 %v4943, 1.442695
      %v5005 = vpow.pop %v5004
      %v5006 = vmul.f32 %v4944, 1.442695
      %v5007 = vpow.pop %v5006
      %v5008 = vmul.f32 %v4945, 1.442695
      %v5009 = vpow.pop %v5008
      %v5010 = vsel %vm567, %v4947, 0.0
      %5011 = vadd.xlane.f32.xlu0 %v5010
      %v5012 = vpop.xlane.xlu0 %5011
      %v5013 = vsel %vm567, %v4949, 0.0
      %5014 = vadd.xlane.f32.xlu0 %v5013
      %v5015 = vpop.xlane.xlu0 %5014
      %v5016 = vsel %vm567, %v4951, 0.0
      %5017 = vadd.xlane.f32.xlu0 %v5016
      %v5018 = vpop.xlane.xlu0 %5017
      %v5019 = vsel %vm567, %v4953, 0.0
      %5020 = vadd.xlane.f32.xlu0 %v5019
      %v5021 = vpop.xlane.xlu0 %5020
      %v5022 = vsel %vm567, %v4955, 0.0
      %5023 = vadd.xlane.f32.xlu0 %v5022
      %v5024 = vpop.xlane.xlu0 %5023
      %v5025 = vsel %vm567, %v4957, 0.0
      %5026 = vadd.xlane.f32.xlu0 %v5025
      %v5027 = vpop.xlane.xlu0 %5026
      %v5028 = vsel %vm567, %v4959, 0.0
      %5029 = vadd.xlane.f32.xlu0 %v5028
      %v5030 = vpop.xlane.xlu0 %5029
      %v5031 = vsel %vm567, %v4961, 0.0
      %5032 = vadd.xlane.f32.xlu0 %v5031
      %v5033 = vpop.xlane.xlu0 %5032
      %v5034 = vsel %vm567, %v4963, 0.0
      %5035 = vadd.xlane.f32.xlu0 %v5034
      %v5036 = vpop.xlane.xlu0 %5035
      %v5037 = vsel %vm567, %v4965, 0.0
      %5038 = vadd.xlane.f32.xlu0 %v5037
      %v5039 = vpop.xlane.xlu0 %5038
      %v5040 = vsel %vm567, %v4967, 0.0
      %5041 = vadd.xlane.f32.xlu0 %v5040
      %v5042 = vpop.xlane.xlu0 %5041
      %v5043 = vsel %vm567, %v4969, 0.0
      %5044 = vadd.xlane.f32.xlu0 %v5043
      %v5045 = vpop.xlane.xlu0 %5044
      %v5046 = vsel %vm567, %v4971, 0.0
      %5047 = vadd.xlane.f32.xlu0 %v5046
      %v5048 = vpop.xlane.xlu0 %5047
      %v5049 = vsel %vm567, %v4973, 0.0
      %5050 = vadd.xlane.f32.xlu0 %v5049
      %v5051 = vpop.xlane.xlu0 %5050
      %v5052 = vsel %vm567, %v4975, 0.0
      %5053 = vadd.xlane.f32.xlu0 %v5052
      %v5054 = vpop.xlane.xlu0 %5053
      %v5055 = vsel %vm567, %v4977, 0.0
      %5056 = vadd.xlane.f32.xlu0 %v5055
      %v5057 = vpop.xlane.xlu0 %5056
      %v5058 = vsel %vm567, %v4979, 0.0
      %5059 = vadd.xlane.f32.xlu0 %v5058
      %v5060 = vpop.xlane.xlu0 %5059
      %v5061 = vsel %vm567, %v4981, 0.0
      %5062 = vadd.xlane.f32.xlu0 %v5061
      %v5063 = vpop.xlane.xlu0 %5062
      %v5064 = vsel %vm567, %v4983, 0.0
      %5065 = vadd.xlane.f32.xlu0 %v5064
      %v5066 = vpop.xlane.xlu0 %5065
      %v5067 = vsel %vm567, %v4985, 0.0
      %5068 = vadd.xlane.f32.xlu0 %v5067
      %v5069 = vpop.xlane.xlu0 %5068
      %v5070 = vsel %vm567, %v4987, 0.0
      %5071 = vadd.xlane.f32.xlu0 %v5070
      %v5072 = vpop.xlane.xlu0 %5071
      %v5073 = vsel %vm567, %v4989, 0.0
      %5074 = vadd.xlane.f32.xlu0 %v5073
      %v5075 = vpop.xlane.xlu0 %5074
      %v5076 = vsel %vm567, %v4991, 0.0
      %5077 = vadd.xlane.f32.xlu0 %v5076
      %v5078 = vpop.xlane.xlu0 %5077
      %v5079 = vsel %vm567, %v4993, 0.0
      %5080 = vadd.xlane.f32.xlu0 %v5079
      %v5081 = vpop.xlane.xlu0 %5080
      %v5082 = vsel %vm567, %v4995, 0.0
      %5083 = vadd.xlane.f32.xlu0 %v5082
      %v5084 = vpop.xlane.xlu0 %5083
      %v5085 = vsel %vm567, %v4997, 0.0
      %5086 = vadd.xlane.f32.xlu0 %v5085
      %v5087 = vpop.xlane.xlu0 %5086
      %v5088 = vsel %vm567, %v4999, 0.0
      %5089 = vadd.xlane.f32.xlu0 %v5088
      %v5090 = vpop.xlane.xlu0 %5089
      %v5091 = vsel %vm567, %v5001, 0.0
      %5092 = vadd.xlane.f32.xlu0 %v5091
      %v5093 = vpop.xlane.xlu0 %5092
      %v5094 = vsel %vm567, %v5003, 0.0
      %5095 = vadd.xlane.f32.xlu0 %v5094
      %v5096 = vpop.xlane.xlu0 %5095
      %v5097 = vsel %vm567, %v5005, 0.0
      %5098 = vadd.xlane.f32.xlu0 %v5097
      %v5099 = vpop.xlane.xlu0 %5098
      %v5100 = vsel %vm567, %v5007, 0.0
      %5101 = vadd.xlane.f32.xlu0 %v5100
      %v5102 = vpop.xlane.xlu0 %5101
      %v5103 = vsel %vm567, %v5009, 0.0
      %5104 = vadd.xlane.f32.xlu0 %v5103
      %v5105 = vpop.xlane.xlu0 %5104
      %v5106 = vrcp.pop %v5012
      %v5107 = vrcp.pop %v5015
      %v5108 = vrcp.pop %v5018
      %v5109 = vrcp.pop %v5021
      %v5110 = vrcp.pop %v5024
      %v5111 = vrcp.pop %v5027
      %v5112 = vrcp.pop %v5030
      %v5113 = vrcp.pop %v5033
      %v5114 = vrcp.pop %v5036
      %v5115 = vrcp.pop %v5039
      %v5116 = vrcp.pop %v5042
      %v5117 = vrcp.pop %v5045
      %v5118 = vrcp.pop %v5048
      %v5119 = vrcp.pop %v5051
      %v5120 = vrcp.pop %v5054
      %v5121 = vrcp.pop %v5057
      %v5122 = vrcp.pop %v5060
      %v5123 = vrcp.pop %v5063
      %v5124 = vrcp.pop %v5066
      %v5125 = vrcp.pop %v5069
      %v5126 = vrcp.pop %v5072
      %v5127 = vrcp.pop %v5075
      %v5128 = vrcp.pop %v5078
      %v5129 = vrcp.pop %v5081
      %v5130 = vrcp.pop %v5084
      %v5131 = vrcp.pop %v5087
      %v5132 = vrcp.pop %v5090
      %v5133 = vrcp.pop %v5093
      %v5134 = vrcp.pop %v5096
      %v5135 = vrcp.pop %v5099
      %v5136 = vrcp.pop %v5102
      %v5137 = vrcp.pop %v5105
      %v5138 = vmul.f32 %v4947, %v5106
      %v5139 = vmul.f32 %v4949, %v5107
      %v5140 = vmul.f32 %v4951, %v5108
      %v5141 = vmul.f32 %v4953, %v5109
      %v5142 = vmul.f32 %v4955, %v5110
      %v5143 = vmul.f32 %v4957, %v5111
      %v5144 = vmul.f32 %v4959, %v5112
      %v5145 = vmul.f32 %v4961, %v5113
      %v5146 = vmul.f32 %v4963, %v5114
      %v5147 = vmul.f32 %v4965, %v5115
      %v5148 = vmul.f32 %v4967, %v5116
      %v5149 = vmul.f32 %v4969, %v5117
      %v5150 = vmul.f32 %v4971, %v5118
      %v5151 = vmul.f32 %v4973, %v5119
      %v5152 = vmul.f32 %v4975, %v5120
      %v5153 = vmul.f32 %v4977, %v5121
      %v5154 = vmul.f32 %v4979, %v5122
      %v5155 = vmul.f32 %v4981, %v5123
      %v5156 = vmul.f32 %v4983, %v5124
      %v5157 = vmul.f32 %v4985, %v5125
      %v5158 = vmul.f32 %v4987, %v5126
      %v5159 = vmul.f32 %v4989, %v5127
      %v5160 = vmul.f32 %v4991, %v5128
      %v5161 = vmul.f32 %v4993, %v5129
      %v5162 = vmul.f32 %v4995, %v5130
      %v5163 = vmul.f32 %v4997, %v5131
      %v5164 = vmul.f32 %v4999, %v5132
      %v5165 = vmul.f32 %v5001, %v5133
      %v5166 = vmul.f32 %v5003, %v5134
      %v5167 = vmul.f32 %v5005, %v5135
      %v5168 = vmul.f32 %v5007, %v5136
      %v5169 = vmul.f32 %v5009, %v5137
      %v5170 = vpack.c.bf16 %v5139, %v5138
      %v5171 = vpack.c.bf16 %v5141, %v5140
      %v5172 = vpack.c.bf16 %v5143, %v5142
      %v5173 = vpack.c.bf16 %v5145, %v5144
      %v5174 = vpack.c.bf16 %v5147, %v5146
      %v5175 = vpack.c.bf16 %v5149, %v5148
      %v5176 = vpack.c.bf16 %v5151, %v5150
      %v5177 = vpack.c.bf16 %v5153, %v5152
      %v5178 = vpack.c.bf16 %v5155, %v5154
      %v5179 = vpack.c.bf16 %v5157, %v5156
      %v5180 = vpack.c.bf16 %v5159, %v5158
      %v5181 = vpack.c.bf16 %v5161, %v5160
      %v5182 = vpack.c.bf16 %v5163, %v5162
      %v5183 = vpack.c.bf16 %v5165, %v5164
      %v5184 = vpack.c.bf16 %v5167, %v5166
      %v5185 = vpack.c.bf16 %v5169, %v5168
      %5186 = vrot.lane.b32.xlu0 %v940, 108
      %v5187 = vpop.permute.xlu0 %5186
      %v5190 = vsel %vm567, %v5170, 0
      %v5193 = vsel %vm567, %v5171, 0
      %v5196 = vsel %vm567, %v5172, 0
      %v5199 = vsel %vm567, %v5173, 0
      %v5202 = vsel %vm567, %v5174, 0
      %v5205 = vsel %vm567, %v5175, 0
      %v5208 = vsel %vm567, %v5176, 0
      %v5211 = vsel %vm567, %v5177, 0
      %v5214 = vsel %vm567, %v5178, 0
      %v5217 = vsel %vm567, %v5179, 0
      %v5220 = vsel %vm567, %v5180, 0
      %v5223 = vsel %vm567, %v5181, 0
      %v5226 = vsel %vm567, %v5182, 0
      %v5229 = vsel %vm567, %v5183, 0
      %v5232 = vsel %vm567, %v5184, 0
      %v5235 = vsel %vm567, %v5185, 0
      %5237 = vmatpush.bf16.msra.mxu0 0
      %5238 = vmatpush.bf16.msra.mxu0 0
      %5239 = vmatpush.bf16.msra.mxu0 0
      %5240 = vmatpush.bf16.msra.mxu0 0
      %5241 = vmatpush.bf16.msra.mxu0 0
      %5242 = vmatpush.bf16.msra.mxu0 0
      %5243 = vmatpush.bf16.msra.mxu0 0
      %5244 = vmatpush.bf16.msra.mxu0 %v5187
      %5245 = vmatmul.bf16.gmra.mxu0 %v5190
      %v5246 = vpop.f32.mrf.mxu0
      %v5247 = vadd.f32 0.0, %v5246
      %v5248 = vpop.f32.mrf.mxu0
      %v5249 = vadd.f32 0.0, %v5248
      %5250 = vmatmul.bf16.gmra.mxu0 %v5193
      %v5251 = vpop.f32.mrf.mxu0
      %v5252 = vadd.f32 0.0, %v5251
      %v5253 = vpop.f32.mrf.mxu0
      %v5254 = vadd.f32 0.0, %v5253
      %5255 = vmatmul.bf16.gmra.mxu0 %v5196
      %v5256 = vpop.f32.mrf.mxu0
      %v5257 = vadd.f32 0.0, %v5256
      %v5258 = vpop.f32.mrf.mxu0
      %v5259 = vadd.f32 0.0, %v5258
      %5260 = vmatmul.bf16.gmra.mxu0 %v5199
      %v5261 = vpop.f32.mrf.mxu0
      %v5262 = vadd.f32 0.0, %v5261
      %v5263 = vpop.f32.mrf.mxu0
      %v5264 = vadd.f32 0.0, %v5263
      %5265 = vmatmul.bf16.gmra.mxu0 %v5202
      %v5266 = vpop.f32.mrf.mxu0
      %v5267 = vadd.f32 0.0, %v5266
      %v5268 = vpop.f32.mrf.mxu0
      %v5269 = vadd.f32 0.0, %v5268
      %5270 = vmatmul.bf16.gmra.mxu0 %v5205
      %v5271 = vpop.f32.mrf.mxu0
      %v5272 = vadd.f32 0.0, %v5271
      %v5273 = vpop.f32.mrf.mxu0
      %v5274 = vadd.f32 0.0, %v5273
      %5275 = vmatmul.bf16.gmra.mxu0 %v5208
      %v5276 = vpop.f32.mrf.mxu0
      %v5277 = vadd.f32 0.0, %v5276
      %v5278 = vpop.f32.mrf.mxu0
      %v5279 = vadd.f32 0.0, %v5278
      %5280 = vmatmul.bf16.gmra.mxu0 %v5211
      %v5281 = vpop.f32.mrf.mxu0
      %v5282 = vadd.f32 0.0, %v5281
      %v5283 = vpop.f32.mrf.mxu0
      %v5284 = vadd.f32 0.0, %v5283
      %5285 = vmatmul.bf16.gmra.mxu0 %v5214
      %v5286 = vpop.f32.mrf.mxu0
      %v5287 = vadd.f32 0.0, %v5286
      %v5288 = vpop.f32.mrf.mxu0
      %v5289 = vadd.f32 0.0, %v5288
      %5290 = vmatmul.bf16.gmra.mxu0 %v5217
      %v5291 = vpop.f32.mrf.mxu0
      %v5292 = vadd.f32 0.0, %v5291
      %v5293 = vpop.f32.mrf.mxu0
      %v5294 = vadd.f32 0.0, %v5293
      %5295 = vmatmul.bf16.gmra.mxu0 %v5220
      %v5296 = vpop.f32.mrf.mxu0
      %v5297 = vadd.f32 0.0, %v5296
      %v5298 = vpop.f32.mrf.mxu0
      %v5299 = vadd.f32 0.0, %v5298
      %5300 = vmatmul.bf16.gmra.mxu0 %v5223
      %v5301 = vpop.f32.mrf.mxu0
      %v5302 = vadd.f32 0.0, %v5301
      %v5303 = vpop.f32.mrf.mxu0
      %v5304 = vadd.f32 0.0, %v5303
      %5305 = vmatmul.bf16.gmra.mxu0 %v5226
      %v5306 = vpop.f32.mrf.mxu0
      %v5307 = vadd.f32 0.0, %v5306
      %v5308 = vpop.f32.mrf.mxu0
      %v5309 = vadd.f32 0.0, %v5308
      %5310 = vmatmul.bf16.gmra.mxu0 %v5229
      %v5311 = vpop.f32.mrf.mxu0
      %v5312 = vadd.f32 0.0, %v5311
      %v5313 = vpop.f32.mrf.mxu0
      %v5314 = vadd.f32 0.0, %v5313
      %5315 = vmatmul.bf16.gmra.mxu0 %v5232
      %v5316 = vpop.f32.mrf.mxu0
      %v5317 = vadd.f32 0.0, %v5316
      %v5318 = vpop.f32.mrf.mxu0
      %v5319 = vadd.f32 0.0, %v5318
      %5320 = vmatmul.bf16.gmra.mxu0 %v5235
      %v5321 = vpop.f32.mrf.mxu0
      %v5322 = vadd.f32 0.0, %v5321
      %v5323 = vpop.f32.mrf.mxu0
      %v5324 = vadd.f32 0.0, %v5323
      %5325 = vdwg.mxu0
      %v5326 = vpack.c.bf16 %v5247, %v5247
      %v5327 = vpack.c.bf16 %v5249, %v5249
      %v5328 = vpack.c.bf16 %v5252, %v5252
      %v5329 = vpack.c.bf16 %v5254, %v5254
      %v5330 = vpack.c.bf16 %v5257, %v5257
      %v5331 = vpack.c.bf16 %v5259, %v5259
      %v5332 = vpack.c.bf16 %v5262, %v5262
      %v5333 = vpack.c.bf16 %v5264, %v5264
      %v5334 = vpack.c.bf16 %v5267, %v5267
      %v5335 = vpack.c.bf16 %v5269, %v5269
      %v5336 = vpack.c.bf16 %v5272, %v5272
      %v5337 = vpack.c.bf16 %v5274, %v5274
      %v5338 = vpack.c.bf16 %v5277, %v5277
      %v5339 = vpack.c.bf16 %v5279, %v5279
      %v5340 = vpack.c.bf16 %v5282, %v5282
      %v5341 = vpack.c.bf16 %v5284, %v5284
      %v5342 = vpack.c.bf16 %v5287, %v5287
      %v5343 = vpack.c.bf16 %v5289, %v5289
      %v5344 = vpack.c.bf16 %v5292, %v5292
      %v5345 = vpack.c.bf16 %v5294, %v5294
      %v5346 = vpack.c.bf16 %v5297, %v5297
      %v5347 = vpack.c.bf16 %v5299, %v5299
      %v5348 = vpack.c.bf16 %v5302, %v5302
      %v5349 = vpack.c.bf16 %v5304, %v5304
      %v5350 = vpack.c.bf16 %v5307, %v5307
      %v5351 = vpack.c.bf16 %v5309, %v5309
      %v5352 = vpack.c.bf16 %v5312, %v5312
      %v5353 = vpack.c.bf16 %v5314, %v5314
      %v5354 = vpack.c.bf16 %v5317, %v5317
      %v5355 = vpack.c.bf16 %v5319, %v5319
      %v5356 = vpack.c.bf16 %v5322, %v5322
      %v5357 = vpack.c.bf16 %v5324, %v5324
      %5390 = vrot.lane.b32.xlu0 %v5326, 20
      %v5391 = vpop.permute.xlu0 %5390
      %5392 = vrot.lane.b32.xlu0 %v5327, 20
      %v5393 = vpop.permute.xlu0 %5392
      %5394 = vrot.lane.b32.xlu0 %v5328, 20
      %v5395 = vpop.permute.xlu0 %5394
      %5396 = vrot.lane.b32.xlu0 %v5329, 20
      %v5397 = vpop.permute.xlu0 %5396
      %5398 = vrot.lane.b32.xlu0 %v5330, 20
      %v5399 = vpop.permute.xlu0 %5398
      %5400 = vrot.lane.b32.xlu0 %v5331, 20
      %v5401 = vpop.permute.xlu0 %5400
      %5402 = vrot.lane.b32.xlu0 %v5332, 20
      %v5403 = vpop.permute.xlu0 %5402
      %5404 = vrot.lane.b32.xlu0 %v5333, 20
      %v5405 = vpop.permute.xlu0 %5404
      %5406 = vrot.lane.b32.xlu0 %v5334, 20
      %v5407 = vpop.permute.xlu0 %5406
      %5408 = vrot.lane.b32.xlu0 %v5335, 20
      %v5409 = vpop.permute.xlu0 %5408
      %5410 = vrot.lane.b32.xlu0 %v5336, 20
      %v5411 = vpop.permute.xlu0 %5410
      %5412 = vrot.lane.b32.xlu0 %v5337, 20
      %v5413 = vpop.permute.xlu0 %5412
      %5414 = vrot.lane.b32.xlu0 %v5338, 20
      %v5415 = vpop.permute.xlu0 %5414
      %5416 = vrot.lane.b32.xlu0 %v5339, 20
      %v5417 = vpop.permute.xlu0 %5416
      %5418 = vrot.lane.b32.xlu0 %v5340, 20
      %v5419 = vpop.permute.xlu0 %5418
      %5420 = vrot.lane.b32.xlu0 %v5341, 20
      %v5421 = vpop.permute.xlu0 %5420
      %5422 = vrot.lane.b32.xlu0 %v5342, 20
      %v5423 = vpop.permute.xlu0 %5422
      %5424 = vrot.lane.b32.xlu0 %v5343, 20
      %v5425 = vpop.permute.xlu0 %5424
      %5426 = vrot.lane.b32.xlu0 %v5344, 20
      %v5427 = vpop.permute.xlu0 %5426
      %5428 = vrot.lane.b32.xlu0 %v5345, 20
      %v5429 = vpop.permute.xlu0 %5428
      %5430 = vrot.lane.b32.xlu0 %v5346, 20
      %v5431 = vpop.permute.xlu0 %5430
      %5432 = vrot.lane.b32.xlu0 %v5347, 20
      %v5433 = vpop.permute.xlu0 %5432
      %5434 = vrot.lane.b32.xlu0 %v5348, 20
      %v5435 = vpop.permute.xlu0 %5434
      %5436 = vrot.lane.b32.xlu0 %v5349, 20
      %v5437 = vpop.permute.xlu0 %5436
      %5438 = vrot.lane.b32.xlu0 %v5350, 20
      %v5439 = vpop.permute.xlu0 %5438
      %5440 = vrot.lane.b32.xlu0 %v5351, 20
      %v5441 = vpop.permute.xlu0 %5440
      %5442 = vrot.lane.b32.xlu0 %v5352, 20
      %v5443 = vpop.permute.xlu0 %5442
      %5444 = vrot.lane.b32.xlu0 %v5353, 20
      %v5445 = vpop.permute.xlu0 %5444
      %5446 = vrot.lane.b32.xlu0 %v5354, 20
      %v5447 = vpop.permute.xlu0 %5446
      %5448 = vrot.lane.b32.xlu0 %v5355, 20
      %v5449 = vpop.permute.xlu0 %5448
      %5450 = vrot.lane.b32.xlu0 %v5356, 20
      %v5451 = vpop.permute.xlu0 %5450
      %5452 = vrot.lane.b32.xlu0 %v5357, 20
      %v5453 = vpop.permute.xlu0 %5452
      %vm5486 = vcmask 191648
      %5487 = vst.msk [vmem:[#allocation2] sm:$0xf] %vm5486, %v5391
      %5488 = vst.msk [vmem:[#allocation2 + $0x4] sm:$0xf] %vm5486, %v5393
      %5489 = vst.msk [vmem:[#allocation2 + $0x8] sm:$0xf] %vm5486, %v5395
      %5490 = vst.msk [vmem:[#allocation2 + $0xc] sm:$0xf] %vm5486, %v5397
      %5491 = vst.msk [vmem:[#allocation2 + $0x10] sm:$0xf] %vm5486, %v5399
      %5492 = vst.msk [vmem:[#allocation2 + $0x14] sm:$0xf] %vm5486, %v5401
      %5493 = vst.msk [vmem:[#allocation2 + $0x18] sm:$0xf] %vm5486, %v5403
      %5494 = vst.msk [vmem:[#allocation2 + $0x1c] sm:$0xf] %vm5486, %v5405
      %5495 = vst.msk [vmem:[#allocation2 + $0x20] sm:$0xf] %vm5486, %v5407
      %5496 = vst.msk [vmem:[#allocation2 + $0x24] sm:$0xf] %vm5486, %v5409
      %5497 = vst.msk [vmem:[#allocation2 + $0x28] sm:$0xf] %vm5486, %v5411
      %5498 = vst.msk [vmem:[#allocation2 + $0x2c] sm:$0xf] %vm5486, %v5413
      %5499 = vst.msk [vmem:[#allocation2 + $0x30] sm:$0xf] %vm5486, %v5415
      %5500 = vst.msk [vmem:[#allocation2 + $0x34] sm:$0xf] %vm5486, %v5417
      %5501 = vst.msk [vmem:[#allocation2 + $0x38] sm:$0xf] %vm5486, %v5419
      %5502 = vst.msk [vmem:[#allocation2 + $0x3c] sm:$0xf] %vm5486, %v5421
      %5503 = vst.msk [vmem:[#allocation2 + $0x40] sm:$0xf] %vm5486, %v5423
      %5504 = vst.msk [vmem:[#allocation2 + $0x44] sm:$0xf] %vm5486, %v5425
      %5505 = vst.msk [vmem:[#allocation2 + $0x48] sm:$0xf] %vm5486, %v5427
      %5506 = vst.msk [vmem:[#allocation2 + $0x4c] sm:$0xf] %vm5486, %v5429
      %5507 = vst.msk [vmem:[#allocation2 + $0x50] sm:$0xf] %vm5486, %v5431
      %5508 = vst.msk [vmem:[#allocation2 + $0x54] sm:$0xf] %vm5486, %v5433
      %5509 = vst.msk [vmem:[#allocation2 + $0x58] sm:$0xf] %vm5486, %v5435
      %5510 = vst.msk [vmem:[#allocation2 + $0x5c] sm:$0xf] %vm5486, %v5437
      %5511 = vst.msk [vmem:[#allocation2 + $0x60] sm:$0xf] %vm5486, %v5439
      %5512 = vst.msk [vmem:[#allocation2 + $0x64] sm:$0xf] %vm5486, %v5441
      %5513 = vst.msk [vmem:[#allocation2 + $0x68] sm:$0xf] %vm5486, %v5443
      %5514 = vst.msk [vmem:[#allocation2 + $0x6c] sm:$0xf] %vm5486, %v5445
      %5515 = vst.msk [vmem:[#allocation2 + $0x70] sm:$0xf] %vm5486, %v5447
      %5516 = vst.msk [vmem:[#allocation2 + $0x74] sm:$0xf] %vm5486, %v5449
      %5517 = vst.msk [vmem:[#allocation2 + $0x78] sm:$0xf] %vm5486, %v5451
      %5518 = vst.msk [vmem:[#allocation2 + $0x7c] sm:$0xf] %vm5486, %v5453
      %5519 = vrot.lane.b32.xlu0 %v405, 104
      %v5520 = vpop.permute.xlu0 %5519
      %5521 = vrot.lane.b32.xlu0 %v406, 104
      %v5522 = vpop.permute.xlu0 %5521
      %5523 = vrot.lane.b32.xlu0 %v407, 104
      %v5524 = vpop.permute.xlu0 %5523
      %5525 = vrot.lane.b32.xlu0 %v408, 104
      %v5526 = vpop.permute.xlu0 %5525
      %5527 = vrot.lane.b32.xlu0 %v409, 104
      %v5528 = vpop.permute.xlu0 %5527
      %5529 = vrot.lane.b32.xlu0 %v410, 104
      %v5530 = vpop.permute.xlu0 %5529
      %5531 = vrot.lane.b32.xlu0 %v411, 104
      %v5532 = vpop.permute.xlu0 %5531
      %5533 = vrot.lane.b32.xlu0 %v412, 104
      %v5534 = vpop.permute.xlu0 %5533
      %5535 = vrot.lane.b32.xlu0 %v413, 104
      %v5536 = vpop.permute.xlu0 %5535
      %5537 = vrot.lane.b32.xlu0 %v414, 104
      %v5538 = vpop.permute.xlu0 %5537
      %5539 = vrot.lane.b32.xlu0 %v415, 104
      %v5540 = vpop.permute.xlu0 %5539
      %5541 = vrot.lane.b32.xlu0 %v416, 104
      %v5542 = vpop.permute.xlu0 %5541
      %5543 = vrot.lane.b32.xlu0 %v417, 104
      %v5544 = vpop.permute.xlu0 %5543
      %5545 = vrot.lane.b32.xlu0 %v418, 104
      %v5546 = vpop.permute.xlu0 %5545
      %5547 = vrot.lane.b32.xlu0 %v419, 104
      %v5548 = vpop.permute.xlu0 %5547
      %5549 = vrot.lane.b32.xlu0 %v420, 104
      %v5550 = vpop.permute.xlu0 %5549
      %5551 = vrot.lane.b32.xlu0 %v425, 104
      %v5552 = vpop.permute.xlu0 %5551
      %v5554 = vsel %vm426, %v5520, 0
      %v5557 = vsel %vm426, %v5522, 0
      %v5560 = vsel %vm426, %v5524, 0
      %v5563 = vsel %vm426, %v5526, 0
      %v5566 = vsel %vm426, %v5528, 0
      %v5569 = vsel %vm426, %v5530, 0
      %v5572 = vsel %vm426, %v5532, 0
      %v5575 = vsel %vm426, %v5534, 0
      %v5578 = vsel %vm426, %v5536, 0
      %v5581 = vsel %vm426, %v5538, 0
      %v5584 = vsel %vm426, %v5540, 0
      %v5587 = vsel %vm426, %v5542, 0
      %v5590 = vsel %vm426, %v5544, 0
      %v5593 = vsel %vm426, %v5546, 0
      %v5596 = vsel %vm426, %v5548, 0
      %v5599 = vsel %vm426, %v5550, 0
      %v5602 = vsel %vm426, %v5552, 0
      %5604 = vmatpush.bf16.xpose.msra.mxu0 0
      %5605 = vmatpush.bf16.xpose.msra.mxu0 0
      %5606 = vmatpush.bf16.xpose.msra.mxu0 0
      %5607 = vmatpush.bf16.xpose.msra.mxu0 0
      %5608 = vmatpush.bf16.xpose.msra.mxu0 0
      %5609 = vmatpush.bf16.xpose.msra.mxu0 0
      %5610 = vmatpush.bf16.xpose.msra.mxu0 0
      %5611 = vmatpush.bf16.xpose.msra.mxu0 %v5602
      %5612 = vmatmul.bf16.gmra.mxu0 %v5554
      %v5613 = vpop.f32.mrf.mxu0
      %v5614 = vadd.f32 0.0, %v5613
      %v5615 = vpop.f32.mrf.mxu0
      %v5616 = vadd.f32 0.0, %v5615
      %5617 = vmatmul.bf16.gmra.mxu0 %v5557
      %v5618 = vpop.f32.mrf.mxu0
      %v5619 = vadd.f32 0.0, %v5618
      %v5620 = vpop.f32.mrf.mxu0
      %v5621 = vadd.f32 0.0, %v5620
      %5622 = vmatmul.bf16.gmra.mxu0 %v5560
      %v5623 = vpop.f32.mrf.mxu0
      %v5624 = vadd.f32 0.0, %v5623
      %v5625 = vpop.f32.mrf.mxu0
      %v5626 = vadd.f32 0.0, %v5625
      %5627 = vmatmul.bf16.gmra.mxu0 %v5563
      %v5628 = vpop.f32.mrf.mxu0
      %v5629 = vadd.f32 0.0, %v5628
      %v5630 = vpop.f32.mrf.mxu0
      %v5631 = vadd.f32 0.0, %v5630
      %5632 = vmatmul.bf16.gmra.mxu0 %v5566
      %v5633 = vpop.f32.mrf.mxu0
      %v5634 = vadd.f32 0.0, %v5633
      %v5635 = vpop.f32.mrf.mxu0
      %v5636 = vadd.f32 0.0, %v5635
      %5637 = vmatmul.bf16.gmra.mxu0 %v5569
      %v5638 = vpop.f32.mrf.mxu0
      %v5639 = vadd.f32 0.0, %v5638
      %v5640 = vpop.f32.mrf.mxu0
      %v5641 = vadd.f32 0.0, %v5640
      %5642 = vmatmul.bf16.gmra.mxu0 %v5572
      %v5643 = vpop.f32.mrf.mxu0
      %v5644 = vadd.f32 0.0, %v5643
      %v5645 = vpop.f32.mrf.mxu0
      %v5646 = vadd.f32 0.0, %v5645
      %5647 = vmatmul.bf16.gmra.mxu0 %v5575
      %v5648 = vpop.f32.mrf.mxu0
      %v5649 = vadd.f32 0.0, %v5648
      %v5650 = vpop.f32.mrf.mxu0
      %v5651 = vadd.f32 0.0, %v5650
      %5652 = vmatmul.bf16.gmra.mxu0 %v5578
      %v5653 = vpop.f32.mrf.mxu0
      %v5654 = vadd.f32 0.0, %v5653
      %v5655 = vpop.f32.mrf.mxu0
      %v5656 = vadd.f32 0.0, %v5655
      %5657 = vmatmul.bf16.gmra.mxu0 %v5581
      %v5658 = vpop.f32.mrf.mxu0
      %v5659 = vadd.f32 0.0, %v5658
      %v5660 = vpop.f32.mrf.mxu0
      %v5661 = vadd.f32 0.0, %v5660
      %5662 = vmatmul.bf16.gmra.mxu0 %v5584
      %v5663 = vpop.f32.mrf.mxu0
      %v5664 = vadd.f32 0.0, %v5663
      %v5665 = vpop.f32.mrf.mxu0
      %v5666 = vadd.f32 0.0, %v5665
      %5667 = vmatmul.bf16.gmra.mxu0 %v5587
      %v5668 = vpop.f32.mrf.mxu0
      %v5669 = vadd.f32 0.0, %v5668
      %v5670 = vpop.f32.mrf.mxu0
      %v5671 = vadd.f32 0.0, %v5670
      %5672 = vmatmul.bf16.gmra.mxu0 %v5590
      %v5673 = vpop.f32.mrf.mxu0
      %v5674 = vadd.f32 0.0, %v5673
      %v5675 = vpop.f32.mrf.mxu0
      %v5676 = vadd.f32 0.0, %v5675
      %5677 = vmatmul.bf16.gmra.mxu0 %v5593
      %v5678 = vpop.f32.mrf.mxu0
      %v5679 = vadd.f32 0.0, %v5678
      %v5680 = vpop.f32.mrf.mxu0
      %v5681 = vadd.f32 0.0, %v5680
      %5682 = vmatmul.bf16.gmra.mxu0 %v5596
      %v5683 = vpop.f32.mrf.mxu0
      %v5684 = vadd.f32 0.0, %v5683
      %v5685 = vpop.f32.mrf.mxu0
      %v5686 = vadd.f32 0.0, %v5685
      %5687 = vmatmul.bf16.gmra.mxu0 %v5599
      %v5688 = vpop.f32.mrf.mxu0
      %v5689 = vadd.f32 0.0, %v5688
      %v5690 = vpop.f32.mrf.mxu0
      %v5691 = vadd.f32 0.0, %v5690
      %5692 = vdwg.mxu0
      %v5693 = vsel %vm567, %v5614, -inf
      %5694 = vmax.xlane.f32.xlu0 %v5693
      %v5695 = vpop.xlane.xlu0 %5694
      %v5696 = vsel %vm567, %v5616, -inf
      %5697 = vmax.xlane.f32.xlu0 %v5696
      %v5698 = vpop.xlane.xlu0 %5697
      %v5699 = vsel %vm567, %v5619, -inf
      %5700 = vmax.xlane.f32.xlu0 %v5699
      %v5701 = vpop.xlane.xlu0 %5700
      %v5702 = vsel %vm567, %v5621, -inf
      %5703 = vmax.xlane.f32.xlu0 %v5702
      %v5704 = vpop.xlane.xlu0 %5703
      %v5705 = vsel %vm567, %v5624, -inf
      %5706 = vmax.xlane.f32.xlu0 %v5705
      %v5707 = vpop.xlane.xlu0 %5706
      %v5708 = vsel %vm567, %v5626, -inf
      %5709 = vmax.xlane.f32.xlu0 %v5708
      %v5710 = vpop.xlane.xlu0 %5709
      %v5711 = vsel %vm567, %v5629, -inf
      %5712 = vmax.xlane.f32.xlu0 %v5711
      %v5713 = vpop.xlane.xlu0 %5712
      %v5714 = vsel %vm567, %v5631, -inf
      %5715 = vmax.xlane.f32.xlu0 %v5714
      %v5716 = vpop.xlane.xlu0 %5715
      %v5717 = vsel %vm567, %v5634, -inf
      %5718 = vmax.xlane.f32.xlu0 %v5717
      %v5719 = vpop.xlane.xlu0 %5718
      %v5720 = vsel %vm567, %v5636, -inf
      %5721 = vmax.xlane.f32.xlu0 %v5720
      %v5722 = vpop.xlane.xlu0 %5721
      %v5723 = vsel %vm567, %v5639, -inf
      %5724 = vmax.xlane.f32.xlu0 %v5723
      %v5725 = vpop.xlane.xlu0 %5724
      %v5726 = vsel %vm567, %v5641, -inf
      %5727 = vmax.xlane.f32.xlu0 %v5726
      %v5728 = vpop.xlane.xlu0 %5727
      %v5729 = vsel %vm567, %v5644, -inf
      %5730 = vmax.xlane.f32.xlu0 %v5729
      %v5731 = vpop.xlane.xlu0 %5730
      %v5732 = vsel %vm567, %v5646, -inf
      %5733 = vmax.xlane.f32.xlu0 %v5732
      %v5734 = vpop.xlane.xlu0 %5733
      %v5735 = vsel %vm567, %v5649, -inf
      %5736 = vmax.xlane.f32.xlu0 %v5735
      %v5737 = vpop.xlane.xlu0 %5736
      %v5738 = vsel %vm567, %v5651, -inf
      %5739 = vmax.xlane.f32.xlu0 %v5738
      %v5740 = vpop.xlane.xlu0 %5739
      %v5741 = vsel %vm567, %v5654, -inf
      %5742 = vmax.xlane.f32.xlu0 %v5741
      %v5743 = vpop.xlane.xlu0 %5742
      %v5744 = vsel %vm567, %v5656, -inf
      %5745 = vmax.xlane.f32.xlu0 %v5744
      %v5746 = vpop.xlane.xlu0 %5745
      %v5747 = vsel %vm567, %v5659, -inf
      %5748 = vmax.xlane.f32.xlu0 %v5747
      %v5749 = vpop.xlane.xlu0 %5748
      %v5750 = vsel %vm567, %v5661, -inf
      %5751 = vmax.xlane.f32.xlu0 %v5750
      %v5752 = vpop.xlane.xlu0 %5751
      %v5753 = vsel %vm567, %v5664, -inf
      %5754 = vmax.xlane.f32.xlu0 %v5753
      %v5755 = vpop.xlane.xlu0 %5754
      %v5756 = vsel %vm567, %v5666, -inf
      %5757 = vmax.xlane.f32.xlu0 %v5756
      %v5758 = vpop.xlane.xlu0 %5757
      %v5759 = vsel %vm567, %v5669, -inf
      %5760 = vmax.xlane.f32.xlu0 %v5759
      %v5761 = vpop.xlane.xlu0 %5760
      %v5762 = vsel %vm567, %v5671, -inf
      %5763 = vmax.xlane.f32.xlu0 %v5762
      %v5764 = vpop.xlane.xlu0 %5763
      %v5765 = vsel %vm567, %v5674, -inf
      %5766 = vmax.xlane.f32.xlu0 %v5765
      %v5767 = vpop.xlane.xlu0 %5766
      %v5768 = vsel %vm567, %v5676, -inf
      %5769 = vmax.xlane.f32.xlu0 %v5768
      %v5770 = vpop.xlane.xlu0 %5769
      %v5771 = vsel %vm567, %v5679, -inf
      %5772 = vmax.xlane.f32.xlu0 %v5771
      %v5773 = vpop.xlane.xlu0 %5772
      %v5774 = vsel %vm567, %v5681, -inf
      %5775 = vmax.xlane.f32.xlu0 %v5774
      %v5776 = vpop.xlane.xlu0 %5775
      %v5777 = vsel %vm567, %v5684, -inf
      %5778 = vmax.xlane.f32.xlu0 %v5777
      %v5779 = vpop.xlane.xlu0 %5778
      %v5780 = vsel %vm567, %v5686, -inf
      %5781 = vmax.xlane.f32.xlu0 %v5780
      %v5782 = vpop.xlane.xlu0 %5781
      %v5783 = vsel %vm567, %v5689, -inf
      %5784 = vmax.xlane.f32.xlu0 %v5783
      %v5785 = vpop.xlane.xlu0 %5784
      %v5786 = vsel %vm567, %v5691, -inf
      %5787 = vmax.xlane.f32.xlu0 %v5786
      %v5788 = vpop.xlane.xlu0 %5787
      %v5789 = vsub.f32 %v5614, %v5695
      %v5790 = vsub.f32 %v5616, %v5698
      %v5791 = vsub.f32 %v5619, %v5701
      %v5792 = vsub.f32 %v5621, %v5704
      %v5793 = vsub.f32 %v5624, %v5707
      %v5794 = vsub.f32 %v5626, %v5710
      %v5795 = vsub.f32 %v5629, %v5713
      %v5796 = vsub.f32 %v5631, %v5716
      %v5797 = vsub.f32 %v5634, %v5719
      %v5798 = vsub.f32 %v5636, %v5722
      %v5799 = vsub.f32 %v5639, %v5725
      %v5800 = vsub.f32 %v5641, %v5728
      %v5801 = vsub.f32 %v5644, %v5731
      %v5802 = vsub.f32 %v5646, %v5734
      %v5803 = vsub.f32 %v5649, %v5737
      %v5804 = vsub.f32 %v5651, %v5740
      %v5805 = vsub.f32 %v5654, %v5743
      %v5806 = vsub.f32 %v5656, %v5746
      %v5807 = vsub.f32 %v5659, %v5749
      %v5808 = vsub.f32 %v5661, %v5752
      %v5809 = vsub.f32 %v5664, %v5755
      %v5810 = vsub.f32 %v5666, %v5758
      %v5811 = vsub.f32 %v5669, %v5761
      %v5812 = vsub.f32 %v5671, %v5764
      %v5813 = vsub.f32 %v5674, %v5767
      %v5814 = vsub.f32 %v5676, %v5770
      %v5815 = vsub.f32 %v5679, %v5773
      %v5816 = vsub.f32 %v5681, %v5776
      %v5817 = vsub.f32 %v5684, %v5779
      %v5818 = vsub.f32 %v5686, %v5782
      %v5819 = vsub.f32 %v5689, %v5785
      %v5820 = vsub.f32 %v5691, %v5788
      %v5821 = vmul.f32 %v5789, 1.442695
      %v5822 = vpow.pop %v5821
      %v5823 = vmul.f32 %v5790, 1.442695
      %v5824 = vpow.pop %v5823
      %v5825 = vmul.f32 %v5791, 1.442695
      %v5826 = vpow.pop %v5825
      %v5827 = vmul.f32 %v5792, 1.442695
      %v5828 = vpow.pop %v5827
      %v5829 = vmul.f32 %v5793, 1.442695
      %v5830 = vpow.pop %v5829
      %v5831 = vmul.f32 %v5794, 1.442695
      %v5832 = vpow.pop %v5831
      %v5833 = vmul.f32 %v5795, 1.442695
      %v5834 = vpow.pop %v5833
      %v5835 = vmul.f32 %v5796, 1.442695
      %v5836 = vpow.pop %v5835
      %v5837 = vmul.f32 %v5797, 1.442695
      %v5838 = vpow.pop %v5837
      %v5839 = vmul.f32 %v5798, 1.442695
      %v5840 = vpow.pop %v5839
      %v5841 = vmul.f32 %v5799, 1.442695
      %v5842 = vpow.pop %v5841
      %v5843 = vmul.f32 %v5800, 1.442695
      %v5844 = vpow.pop %v5843
      %v5845 = vmul.f32 %v5801, 1.442695
      %v5846 = vpow.pop %v5845
      %v5847 = vmul.f32 %v5802, 1.442695
      %v5848 = vpow.pop %v5847
      %v5849 = vmul.f32 %v5803, 1.442695
      %v5850 = vpow.pop %v5849
      %v5851 = vmul.f32 %v5804, 1.442695
      %v5852 = vpow.pop %v5851
      %v5853 = vmul.f32 %v5805, 1.442695
      %v5854 = vpow.pop %v5853
      %v5855 = vmul.f32 %v5806, 1.442695
      %v5856 = vpow.pop %v5855
      %v5857 = vmul.f32 %v5807, 1.442695
      %v5858 = vpow.pop %v5857
      %v5859 = vmul.f32 %v5808, 1.442695
      %v5860 = vpow.pop %v5859
      %v5861 = vmul.f32 %v5809, 1.442695
      %v5862 = vpow.pop %v5861
      %v5863 = vmul.f32 %v5810, 1.442695
      %v5864 = vpow.pop %v5863
      %v5865 = vmul.f32 %v5811, 1.442695
      %v5866 = vpow.pop %v5865
      %v5867 = vmul.f32 %v5812, 1.442695
      %v5868 = vpow.pop %v5867
      %v5869 = vmul.f32 %v5813, 1.442695
      %v5870 = vpow.pop %v5869
      %v5871 = vmul.f32 %v5814, 1.442695
      %v5872 = vpow.pop %v5871
      %v5873 = vmul.f32 %v5815, 1.442695
      %v5874 = vpow.pop %v5873
      %v5875 = vmul.f32 %v5816, 1.442695
      %v5876 = vpow.pop %v5875
      %v5877 = vmul.f32 %v5817, 1.442695
      %v5878 = vpow.pop %v5877
      %v5879 = vmul.f32 %v5818, 1.442695
      %v5880 = vpow.pop %v5879
      %v5881 = vmul.f32 %v5819, 1.442695
      %v5882 = vpow.pop %v5881
      %v5883 = vmul.f32 %v5820, 1.442695
      %v5884 = vpow.pop %v5883
      %v5885 = vsel %vm567, %v5822, 0.0
      %5886 = vadd.xlane.f32.xlu0 %v5885
      %v5887 = vpop.xlane.xlu0 %5886
      %v5888 = vsel %vm567, %v5824, 0.0
      %5889 = vadd.xlane.f32.xlu0 %v5888
      %v5890 = vpop.xlane.xlu0 %5889
      %v5891 = vsel %vm567, %v5826, 0.0
      %5892 = vadd.xlane.f32.xlu0 %v5891
      %v5893 = vpop.xlane.xlu0 %5892
      %v5894 = vsel %vm567, %v5828, 0.0
      %5895 = vadd.xlane.f32.xlu0 %v5894
      %v5896 = vpop.xlane.xlu0 %5895
      %v5897 = vsel %vm567, %v5830, 0.0
      %5898 = vadd.xlane.f32.xlu0 %v5897
      %v5899 = vpop.xlane.xlu0 %5898
      %v5900 = vsel %vm567, %v5832, 0.0
      %5901 = vadd.xlane.f32.xlu0 %v5900
      %v5902 = vpop.xlane.xlu0 %5901
      %v5903 = vsel %vm567, %v5834, 0.0
      %5904 = vadd.xlane.f32.xlu0 %v5903
      %v5905 = vpop.xlane.xlu0 %5904
      %v5906 = vsel %vm567, %v5836, 0.0
      %5907 = vadd.xlane.f32.xlu0 %v5906
      %v5908 = vpop.xlane.xlu0 %5907
      %v5909 = vsel %vm567, %v5838, 0.0
      %5910 = vadd.xlane.f32.xlu0 %v5909
      %v5911 = vpop.xlane.xlu0 %5910
      %v5912 = vsel %vm567, %v5840, 0.0
      %5913 = vadd.xlane.f32.xlu0 %v5912
      %v5914 = vpop.xlane.xlu0 %5913
      %v5915 = vsel %vm567, %v5842, 0.0
      %5916 = vadd.xlane.f32.xlu0 %v5915
      %v5917 = vpop.xlane.xlu0 %5916
      %v5918 = vsel %vm567, %v5844, 0.0
      %5919 = vadd.xlane.f32.xlu0 %v5918
      %v5920 = vpop.xlane.xlu0 %5919
      %v5921 = vsel %vm567, %v5846, 0.0
      %5922 = vadd.xlane.f32.xlu0 %v5921
      %v5923 = vpop.xlane.xlu0 %5922
      %v5924 = vsel %vm567, %v5848, 0.0
      %5925 = vadd.xlane.f32.xlu0 %v5924
      %v5926 = vpop.xlane.xlu0 %5925
      %v5927 = vsel %vm567, %v5850, 0.0
      %5928 = vadd.xlane.f32.xlu0 %v5927
      %v5929 = vpop.xlane.xlu0 %5928
      %v5930 = vsel %vm567, %v5852, 0.0
      %5931 = vadd.xlane.f32.xlu0 %v5930
      %v5932 = vpop.xlane.xlu0 %5931
      %v5933 = vsel %vm567, %v5854, 0.0
      %5934 = vadd.xlane.f32.xlu0 %v5933
      %v5935 = vpop.xlane.xlu0 %5934
      %v5936 = vsel %vm567, %v5856, 0.0
      %5937 = vadd.xlane.f32.xlu0 %v5936
      %v5938 = vpop.xlane.xlu0 %5937
      %v5939 = vsel %vm567, %v5858, 0.0
      %5940 = vadd.xlane.f32.xlu0 %v5939
      %v5941 = vpop.xlane.xlu0 %5940
      %v5942 = vsel %vm567, %v5860, 0.0
      %5943 = vadd.xlane.f32.xlu0 %v5942
      %v5944 = vpop.xlane.xlu0 %5943
      %v5945 = vsel %vm567, %v5862, 0.0
      %5946 = vadd.xlane.f32.xlu0 %v5945
      %v5947 = vpop.xlane.xlu0 %5946
      %v5948 = vsel %vm567, %v5864, 0.0
      %5949 = vadd.xlane.f32.xlu0 %v5948
      %v5950 = vpop.xlane.xlu0 %5949
      %v5951 = vsel %vm567, %v5866, 0.0
      %5952 = vadd.xlane.f32.xlu0 %v5951
      %v5953 = vpop.xlane.xlu0 %5952
      %v5954 = vsel %vm567, %v5868, 0.0
      %5955 = vadd.xlane.f32.xlu0 %v5954
      %v5956 = vpop.xlane.xlu0 %5955
      %v5957 = vsel %vm567, %v5870, 0.0
      %5958 = vadd.xlane.f32.xlu0 %v5957
      %v5959 = vpop.xlane.xlu0 %5958
      %v5960 = vsel %vm567, %v5872, 0.0
      %5961 = vadd.xlane.f32.xlu0 %v5960
      %v5962 = vpop.xlane.xlu0 %5961
      %v5963 = vsel %vm567, %v5874, 0.0
      %5964 = vadd.xlane.f32.xlu0 %v5963
      %v5965 = vpop.xlane.xlu0 %5964
      %v5966 = vsel %vm567, %v5876, 0.0
      %5967 = vadd.xlane.f32.xlu0 %v5966
      %v5968 = vpop.xlane.xlu0 %5967
      %v5969 = vsel %vm567, %v5878, 0.0
      %5970 = vadd.xlane.f32.xlu0 %v5969
      %v5971 = vpop.xlane.xlu0 %5970
      %v5972 = vsel %vm567, %v5880, 0.0
      %5973 = vadd.xlane.f32.xlu0 %v5972
      %v5974 = vpop.xlane.xlu0 %5973
      %v5975 = vsel %vm567, %v5882, 0.0
      %5976 = vadd.xlane.f32.xlu0 %v5975
      %v5977 = vpop.xlane.xlu0 %5976
      %v5978 = vsel %vm567, %v5884, 0.0
      %5979 = vadd.xlane.f32.xlu0 %v5978
      %v5980 = vpop.xlane.xlu0 %5979
      %v5981 = vrcp.pop %v5887
      %v5982 = vrcp.pop %v5890
      %v5983 = vrcp.pop %v5893
      %v5984 = vrcp.pop %v5896
      %v5985 = vrcp.pop %v5899
      %v5986 = vrcp.pop %v5902
      %v5987 = vrcp.pop %v5905
      %v5988 = vrcp.pop %v5908
      %v5989 = vrcp.pop %v5911
      %v5990 = vrcp.pop %v5914
      %v5991 = vrcp.pop %v5917
      %v5992 = vrcp.pop %v5920
      %v5993 = vrcp.pop %v5923
      %v5994 = vrcp.pop %v5926
      %v5995 = vrcp.pop %v5929
      %v5996 = vrcp.pop %v5932
      %v5997 = vrcp.pop %v5935
      %v5998 = vrcp.pop %v5938
      %v5999 = vrcp.pop %v5941
      %v6000 = vrcp.pop %v5944
      %v6001 = vrcp.pop %v5947
      %v6002 = vrcp.pop %v5950
      %v6003 = vrcp.pop %v5953
      %v6004 = vrcp.pop %v5956
      %v6005 = vrcp.pop %v5959
      %v6006 = vrcp.pop %v5962
      %v6007 = vrcp.pop %v5965
      %v6008 = vrcp.pop %v5968
      %v6009 = vrcp.pop %v5971
      %v6010 = vrcp.pop %v5974
      %v6011 = vrcp.pop %v5977
      %v6012 = vrcp.pop %v5980
      %v6013 = vmul.f32 %v5822, %v5981
      %v6014 = vmul.f32 %v5824, %v5982
      %v6015 = vmul.f32 %v5826, %v5983
      %v6016 = vmul.f32 %v5828, %v5984
      %v6017 = vmul.f32 %v5830, %v5985
      %v6018 = vmul.f32 %v5832, %v5986
      %v6019 = vmul.f32 %v5834, %v5987
      %v6020 = vmul.f32 %v5836, %v5988
      %v6021 = vmul.f32 %v5838, %v5989
      %v6022 = vmul.f32 %v5840, %v5990
      %v6023 = vmul.f32 %v5842, %v5991
      %v6024 = vmul.f32 %v5844, %v5992
      %v6025 = vmul.f32 %v5846, %v5993
      %v6026 = vmul.f32 %v5848, %v5994
      %v6027 = vmul.f32 %v5850, %v5995
      %v6028 = vmul.f32 %v5852, %v5996
      %v6029 = vmul.f32 %v5854, %v5997
      %v6030 = vmul.f32 %v5856, %v5998
      %v6031 = vmul.f32 %v5858, %v5999
      %v6032 = vmul.f32 %v5860, %v6000
      %v6033 = vmul.f32 %v5862, %v6001
      %v6034 = vmul.f32 %v5864, %v6002
      %v6035 = vmul.f32 %v5866, %v6003
      %v6036 = vmul.f32 %v5868, %v6004
      %v6037 = vmul.f32 %v5870, %v6005
      %v6038 = vmul.f32 %v5872, %v6006
      %v6039 = vmul.f32 %v5874, %v6007
      %v6040 = vmul.f32 %v5876, %v6008
      %v6041 = vmul.f32 %v5878, %v6009
      %v6042 = vmul.f32 %v5880, %v6010
      %v6043 = vmul.f32 %v5882, %v6011
      %v6044 = vmul.f32 %v5884, %v6012
      %v6045 = vpack.c.bf16 %v6014, %v6013
      %v6046 = vpack.c.bf16 %v6016, %v6015
      %v6047 = vpack.c.bf16 %v6018, %v6017
      %v6048 = vpack.c.bf16 %v6020, %v6019
      %v6049 = vpack.c.bf16 %v6022, %v6021
      %v6050 = vpack.c.bf16 %v6024, %v6023
      %v6051 = vpack.c.bf16 %v6026, %v6025
      %v6052 = vpack.c.bf16 %v6028, %v6027
      %v6053 = vpack.c.bf16 %v6030, %v6029
      %v6054 = vpack.c.bf16 %v6032, %v6031
      %v6055 = vpack.c.bf16 %v6034, %v6033
      %v6056 = vpack.c.bf16 %v6036, %v6035
      %v6057 = vpack.c.bf16 %v6038, %v6037
      %v6058 = vpack.c.bf16 %v6040, %v6039
      %v6059 = vpack.c.bf16 %v6042, %v6041
      %v6060 = vpack.c.bf16 %v6044, %v6043
      %6061 = vrot.lane.b32.xlu0 %v940, 104
      %v6062 = vpop.permute.xlu0 %6061
      %v6065 = vsel %vm567, %v6045, 0
      %v6068 = vsel %vm567, %v6046, 0
      %v6071 = vsel %vm567, %v6047, 0
      %v6074 = vsel %vm567, %v6048, 0
      %v6077 = vsel %vm567, %v6049, 0
      %v6080 = vsel %vm567, %v6050, 0
      %v6083 = vsel %vm567, %v6051, 0
      %v6086 = vsel %vm567, %v6052, 0
      %v6089 = vsel %vm567, %v6053, 0
      %v6092 = vsel %vm567, %v6054, 0
      %v6095 = vsel %vm567, %v6055, 0
      %v6098 = vsel %vm567, %v6056, 0
      %v6101 = vsel %vm567, %v6057, 0
      %v6104 = vsel %vm567, %v6058, 0
      %v6107 = vsel %vm567, %v6059, 0
      %v6110 = vsel %vm567, %v6060, 0
      %6112 = vmatpush.bf16.msra.mxu0 0
      %6113 = vmatpush.bf16.msra.mxu0 0
      %6114 = vmatpush.bf16.msra.mxu0 0
      %6115 = vmatpush.bf16.msra.mxu0 0
      %6116 = vmatpush.bf16.msra.mxu0 0
      %6117 = vmatpush.bf16.msra.mxu0 0
      %6118 = vmatpush.bf16.msra.mxu0 0
      %6119 = vmatpush.bf16.msra.mxu0 %v6062
      %6120 = vmatmul.bf16.gmra.mxu0 %v6065
      %v6121 = vpop.f32.mrf.mxu0
      %v6122 = vadd.f32 0.0, %v6121
      %v6123 = vpop.f32.mrf.mxu0
      %v6124 = vadd.f32 0.0, %v6123
      %6125 = vmatmul.bf16.gmra.mxu0 %v6068
      %v6126 = vpop.f32.mrf.mxu0
      %v6127 = vadd.f32 0.0, %v6126
      %v6128 = vpop.f32.mrf.mxu0
      %v6129 = vadd.f32 0.0, %v6128
      %6130 = vmatmul.bf16.gmra.mxu0 %v6071
      %v6131 = vpop.f32.mrf.mxu0
      %v6132 = vadd.f32 0.0, %v6131
      %v6133 = vpop.f32.mrf.mxu0
      %v6134 = vadd.f32 0.0, %v6133
      %6135 = vmatmul.bf16.gmra.mxu0 %v6074
      %v6136 = vpop.f32.mrf.mxu0
      %v6137 = vadd.f32 0.0, %v6136
      %v6138 = vpop.f32.mrf.mxu0
      %v6139 = vadd.f32 0.0, %v6138
      %6140 = vmatmul.bf16.gmra.mxu0 %v6077
      %v6141 = vpop.f32.mrf.mxu0
      %v6142 = vadd.f32 0.0, %v6141
      %v6143 = vpop.f32.mrf.mxu0
      %v6144 = vadd.f32 0.0, %v6143
      %6145 = vmatmul.bf16.gmra.mxu0 %v6080
      %v6146 = vpop.f32.mrf.mxu0
      %v6147 = vadd.f32 0.0, %v6146
      %v6148 = vpop.f32.mrf.mxu0
      %v6149 = vadd.f32 0.0, %v6148
      %6150 = vmatmul.bf16.gmra.mxu0 %v6083
      %v6151 = vpop.f32.mrf.mxu0
      %v6152 = vadd.f32 0.0, %v6151
      %v6153 = vpop.f32.mrf.mxu0
      %v6154 = vadd.f32 0.0, %v6153
      %6155 = vmatmul.bf16.gmra.mxu0 %v6086
      %v6156 = vpop.f32.mrf.mxu0
      %v6157 = vadd.f32 0.0, %v6156
      %v6158 = vpop.f32.mrf.mxu0
      %v6159 = vadd.f32 0.0, %v6158
      %6160 = vmatmul.bf16.gmra.mxu0 %v6089
      %v6161 = vpop.f32.mrf.mxu0
      %v6162 = vadd.f32 0.0, %v6161
      %v6163 = vpop.f32.mrf.mxu0
      %v6164 = vadd.f32 0.0, %v6163
      %6165 = vmatmul.bf16.gmra.mxu0 %v6092
      %v6166 = vpop.f32.mrf.mxu0
      %v6167 = vadd.f32 0.0, %v6166
      %v6168 = vpop.f32.mrf.mxu0
      %v6169 = vadd.f32 0.0, %v6168
      %6170 = vmatmul.bf16.gmra.mxu0 %v6095
      %v6171 = vpop.f32.mrf.mxu0
      %v6172 = vadd.f32 0.0, %v6171
      %v6173 = vpop.f32.mrf.mxu0
      %v6174 = vadd.f32 0.0, %v6173
      %6175 = vmatmul.bf16.gmra.mxu0 %v6098
      %v6176 = vpop.f32.mrf.mxu0
      %v6177 = vadd.f32 0.0, %v6176
      %v6178 = vpop.f32.mrf.mxu0
      %v6179 = vadd.f32 0.0, %v6178
      %6180 = vmatmul.bf16.gmra.mxu0 %v6101
      %v6181 = vpop.f32.mrf.mxu0
      %v6182 = vadd.f32 0.0, %v6181
      %v6183 = vpop.f32.mrf.mxu0
      %v6184 = vadd.f32 0.0, %v6183
      %6185 = vmatmul.bf16.gmra.mxu0 %v6104
      %v6186 = vpop.f32.mrf.mxu0
      %v6187 = vadd.f32 0.0, %v6186
      %v6188 = vpop.f32.mrf.mxu0
      %v6189 = vadd.f32 0.0, %v6188
      %6190 = vmatmul.bf16.gmra.mxu0 %v6107
      %v6191 = vpop.f32.mrf.mxu0
      %v6192 = vadd.f32 0.0, %v6191
      %v6193 = vpop.f32.mrf.mxu0
      %v6194 = vadd.f32 0.0, %v6193
      %6195 = vmatmul.bf16.gmra.mxu0 %v6110
      %v6196 = vpop.f32.mrf.mxu0
      %v6197 = vadd.f32 0.0, %v6196
      %v6198 = vpop.f32.mrf.mxu0
      %v6199 = vadd.f32 0.0, %v6198
      %6200 = vdwg.mxu0
      %v6201 = vpack.c.bf16 %v6122, %v6122
      %v6202 = vpack.c.bf16 %v6124, %v6124
      %v6203 = vpack.c.bf16 %v6127, %v6127
      %v6204 = vpack.c.bf16 %v6129, %v6129
      %v6205 = vpack.c.bf16 %v6132, %v6132
      %v6206 = vpack.c.bf16 %v6134, %v6134
      %v6207 = vpack.c.bf16 %v6137, %v6137
      %v6208 = vpack.c.bf16 %v6139, %v6139
      %v6209 = vpack.c.bf16 %v6142, %v6142
      %v6210 = vpack.c.bf16 %v6144, %v6144
      %v6211 = vpack.c.bf16 %v6147, %v6147
      %v6212 = vpack.c.bf16 %v6149, %v6149
      %v6213 = vpack.c.bf16 %v6152, %v6152
      %v6214 = vpack.c.bf16 %v6154, %v6154
      %v6215 = vpack.c.bf16 %v6157, %v6157
      %v6216 = vpack.c.bf16 %v6159, %v6159
      %v6217 = vpack.c.bf16 %v6162, %v6162
      %v6218 = vpack.c.bf16 %v6164, %v6164
      %v6219 = vpack.c.bf16 %v6167, %v6167
      %v6220 = vpack.c.bf16 %v6169, %v6169
      %v6221 = vpack.c.bf16 %v6172, %v6172
      %v6222 = vpack.c.bf16 %v6174, %v6174
      %v6223 = vpack.c.bf16 %v6177, %v6177
      %v6224 = vpack.c.bf16 %v6179, %v6179
      %v6225 = vpack.c.bf16 %v6182, %v6182
      %v6226 = vpack.c.bf16 %v6184, %v6184
      %v6227 = vpack.c.bf16 %v6187, %v6187
      %v6228 = vpack.c.bf16 %v6189, %v6189
      %v6229 = vpack.c.bf16 %v6192, %v6192
      %v6230 = vpack.c.bf16 %v6194, %v6194
      %v6231 = vpack.c.bf16 %v6197, %v6197
      %v6232 = vpack.c.bf16 %v6199, %v6199
      %6265 = vrot.lane.b32.xlu0 %v6201, 24
      %v6266 = vpop.permute.xlu0 %6265
      %6267 = vrot.lane.b32.xlu0 %v6202, 24
      %v6268 = vpop.permute.xlu0 %6267
      %6269 = vrot.lane.b32.xlu0 %v6203, 24
      %v6270 = vpop.permute.xlu0 %6269
      %6271 = vrot.lane.b32.xlu0 %v6204, 24
      %v6272 = vpop.permute.xlu0 %6271
      %6273 = vrot.lane.b32.xlu0 %v6205, 24
      %v6274 = vpop.permute.xlu0 %6273
      %6275 = vrot.lane.b32.xlu0 %v6206, 24
      %v6276 = vpop.permute.xlu0 %6275
      %6277 = vrot.lane.b32.xlu0 %v6207, 24
      %v6278 = vpop.permute.xlu0 %6277
      %6279 = vrot.lane.b32.xlu0 %v6208, 24
      %v6280 = vpop.permute.xlu0 %6279
      %6281 = vrot.lane.b32.xlu0 %v6209, 24
      %v6282 = vpop.permute.xlu0 %6281
      %6283 = vrot.lane.b32.xlu0 %v6210, 24
      %v6284 = vpop.permute.xlu0 %6283
      %6285 = vrot.lane.b32.xlu0 %v6211, 24
      %v6286 = vpop.permute.xlu0 %6285
      %6287 = vrot.lane.b32.xlu0 %v6212, 24
      %v6288 = vpop.permute.xlu0 %6287
      %6289 = vrot.lane.b32.xlu0 %v6213, 24
      %v6290 = vpop.permute.xlu0 %6289
      %6291 = vrot.lane.b32.xlu0 %v6214, 24
      %v6292 = vpop.permute.xlu0 %6291
      %6293 = vrot.lane.b32.xlu0 %v6215, 24
      %v6294 = vpop.permute.xlu0 %6293
      %6295 = vrot.lane.b32.xlu0 %v6216, 24
      %v6296 = vpop.permute.xlu0 %6295
      %6297 = vrot.lane.b32.xlu0 %v6217, 24
      %v6298 = vpop.permute.xlu0 %6297
      %6299 = vrot.lane.b32.xlu0 %v6218, 24
      %v6300 = vpop.permute.xlu0 %6299
      %6301 = vrot.lane.b32.xlu0 %v6219, 24
      %v6302 = vpop.permute.xlu0 %6301
      %6303 = vrot.lane.b32.xlu0 %v6220, 24
      %v6304 = vpop.permute.xlu0 %6303
      %6305 = vrot.lane.b32.xlu0 %v6221, 24
      %v6306 = vpop.permute.xlu0 %6305
      %6307 = vrot.lane.b32.xlu0 %v6222, 24
      %v6308 = vpop.permute.xlu0 %6307
      %6309 = vrot.lane.b32.xlu0 %v6223, 24
      %v6310 = vpop.permute.xlu0 %6309
      %6311 = vrot.lane.b32.xlu0 %v6224, 24
      %v6312 = vpop.permute.xlu0 %6311
      %6313 = vrot.lane.b32.xlu0 %v6225, 24
      %v6314 = vpop.permute.xlu0 %6313
      %6315 = vrot.lane.b32.xlu0 %v6226, 24
      %v6316 = vpop.permute.xlu0 %6315
      %6317 = vrot.lane.b32.xlu0 %v6227, 24
      %v6318 = vpop.permute.xlu0 %6317
      %6319 = vrot.lane.b32.xlu0 %v6228, 24
      %v6320 = vpop.permute.xlu0 %6319
      %6321 = vrot.lane.b32.xlu0 %v6229, 24
      %v6322 = vpop.permute.xlu0 %6321
      %6323 = vrot.lane.b32.xlu0 %v6230, 24
      %v6324 = vpop.permute.xlu0 %6323
      %6325 = vrot.lane.b32.xlu0 %v6231, 24
      %v6326 = vpop.permute.xlu0 %6325
      %6327 = vrot.lane.b32.xlu0 %v6232, 24
      %v6328 = vpop.permute.xlu0 %6327
      %vm6361 = vcmask 224448
      %6362 = vst.msk [vmem:[#allocation2] sm:$0xf] %vm6361, %v6266
      %6363 = vst.msk [vmem:[#allocation2 + $0x4] sm:$0xf] %vm6361, %v6268
      %6364 = vst.msk [vmem:[#allocation2 + $0x8] sm:$0xf] %vm6361, %v6270
      %6365 = vst.msk [vmem:[#allocation2 + $0xc] sm:$0xf] %vm6361, %v6272
      %6366 = vst.msk [vmem:[#allocation2 + $0x10] sm:$0xf] %vm6361, %v6274
      %6367 = vst.msk [vmem:[#allocation2 + $0x14] sm:$0xf] %vm6361, %v6276
      %6368 = vst.msk [vmem:[#allocation2 + $0x18] sm:$0xf] %vm6361, %v6278
      %6369 = vst.msk [vmem:[#allocation2 + $0x1c] sm:$0xf] %vm6361, %v6280
      %6370 = vst.msk [vmem:[#allocation2 + $0x20] sm:$0xf] %vm6361, %v6282
      %6371 = vst.msk [vmem:[#allocation2 + $0x24] sm:$0xf] %vm6361, %v6284
      %6372 = vst.msk [vmem:[#allocation2 + $0x28] sm:$0xf] %vm6361, %v6286
      %6373 = vst.msk [vmem:[#allocation2 + $0x2c] sm:$0xf] %vm6361, %v6288
      %6374 = vst.msk [vmem:[#allocation2 + $0x30] sm:$0xf] %vm6361, %v6290
      %6375 = vst.msk [vmem:[#allocation2 + $0x34] sm:$0xf] %vm6361, %v6292
      %6376 = vst.msk [vmem:[#allocation2 + $0x38] sm:$0xf] %vm6361, %v6294
      %6377 = vst.msk [vmem:[#allocation2 + $0x3c] sm:$0xf] %vm6361, %v6296
      %6378 = vst.msk [vmem:[#allocation2 + $0x40] sm:$0xf] %vm6361, %v6298
      %6379 = vst.msk [vmem:[#allocation2 + $0x44] sm:$0xf] %vm6361, %v6300
      %6380 = vst.msk [vmem:[#allocation2 + $0x48] sm:$0xf] %vm6361, %v6302
      %6381 = vst.msk [vmem:[#allocation2 + $0x4c] sm:$0xf] %vm6361, %v6304
      %6382 = vst.msk [vmem:[#allocation2 + $0x50] sm:$0xf] %vm6361, %v6306
      %6383 = vst.msk [vmem:[#allocation2 + $0x54] sm:$0xf] %vm6361, %v6308
      %6384 = vst.msk [vmem:[#allocation2 + $0x58] sm:$0xf] %vm6361, %v6310
      %6385 = vst.msk [vmem:[#allocation2 + $0x5c] sm:$0xf] %vm6361, %v6312
      %6386 = vst.msk [vmem:[#allocation2 + $0x60] sm:$0xf] %vm6361, %v6314
      %6387 = vst.msk [vmem:[#allocation2 + $0x64] sm:$0xf] %vm6361, %v6316
      %6388 = vst.msk [vmem:[#allocation2 + $0x68] sm:$0xf] %vm6361, %v6318
      %6389 = vst.msk [vmem:[#allocation2 + $0x6c] sm:$0xf] %vm6361, %v6320
      %6390 = vst.msk [vmem:[#allocation2 + $0x70] sm:$0xf] %vm6361, %v6322
      %6391 = vst.msk [vmem:[#allocation2 + $0x74] sm:$0xf] %vm6361, %v6324
      %6392 = vst.msk [vmem:[#allocation2 + $0x78] sm:$0xf] %vm6361, %v6326
      %6393 = vst.msk [vmem:[#allocation2 + $0x7c] sm:$0xf] %vm6361, %v6328
      %6394 = vrot.lane.b32.xlu0 %v405, 100
      %v6395 = vpop.permute.xlu0 %6394
      %6396 = vrot.lane.b32.xlu0 %v406, 100
      %v6397 = vpop.permute.xlu0 %6396
      %6398 = vrot.lane.b32.xlu0 %v407, 100
      %v6399 = vpop.permute.xlu0 %6398
      %6400 = vrot.lane.b32.xlu0 %v408, 100
      %v6401 = vpop.permute.xlu0 %6400
      %6402 = vrot.lane.b32.xlu0 %v409, 100
      %v6403 = vpop.permute.xlu0 %6402
      %6404 = vrot.lane.b32.xlu0 %v410, 100
      %v6405 = vpop.permute.xlu0 %6404
      %6406 = vrot.lane.b32.xlu0 %v411, 100
      %v6407 = vpop.permute.xlu0 %6406
      %6408 = vrot.lane.b32.xlu0 %v412, 100
      %v6409 = vpop.permute.xlu0 %6408
      %6410 = vrot.lane.b32.xlu0 %v413, 100
      %v6411 = vpop.permute.xlu0 %6410
      %6412 = vrot.lane.b32.xlu0 %v414, 100
      %v6413 = vpop.permute.xlu0 %6412
      %6414 = vrot.lane.b32.xlu0 %v415, 100
      %v6415 = vpop.permute.xlu0 %6414
      %6416 = vrot.lane.b32.xlu0 %v416, 100
      %v6417 = vpop.permute.xlu0 %6416
      %6418 = vrot.lane.b32.xlu0 %v417, 100
      %v6419 = vpop.permute.xlu0 %6418
      %6420 = vrot.lane.b32.xlu0 %v418, 100
      %v6421 = vpop.permute.xlu0 %6420
      %6422 = vrot.lane.b32.xlu0 %v419, 100
      %v6423 = vpop.permute.xlu0 %6422
      %6424 = vrot.lane.b32.xlu0 %v420, 100
      %v6425 = vpop.permute.xlu0 %6424
      %6426 = vrot.lane.b32.xlu0 %v425, 100
      %v6427 = vpop.permute.xlu0 %6426
      %v6429 = vsel %vm426, %v6395, 0
      %v6432 = vsel %vm426, %v6397, 0
      %v6435 = vsel %vm426, %v6399, 0
      %v6438 = vsel %vm426, %v6401, 0
      %v6441 = vsel %vm426, %v6403, 0
      %v6444 = vsel %vm426, %v6405, 0
      %v6447 = vsel %vm426, %v6407, 0
      %v6450 = vsel %vm426, %v6409, 0
      %v6453 = vsel %vm426, %v6411, 0
      %v6456 = vsel %vm426, %v6413, 0
      %v6459 = vsel %vm426, %v6415, 0
      %v6462 = vsel %vm426, %v6417, 0
      %v6465 = vsel %vm426, %v6419, 0
      %v6468 = vsel %vm426, %v6421, 0
      %v6471 = vsel %vm426, %v6423, 0
      %v6474 = vsel %vm426, %v6425, 0
      %v6477 = vsel %vm426, %v6427, 0
      %6479 = vmatpush.bf16.xpose.msra.mxu0 0
      %6480 = vmatpush.bf16.xpose.msra.mxu0 0
      %6481 = vmatpush.bf16.xpose.msra.mxu0 0
      %6482 = vmatpush.bf16.xpose.msra.mxu0 0
      %6483 = vmatpush.bf16.xpose.msra.mxu0 0
      %6484 = vmatpush.bf16.xpose.msra.mxu0 0
      %6485 = vmatpush.bf16.xpose.msra.mxu0 0
      %6486 = vmatpush.bf16.xpose.msra.mxu0 %v6477
      %6487 = vmatmul.bf16.gmra.mxu0 %v6429
      %v6488 = vpop.f32.mrf.mxu0
      %v6489 = vadd.f32 0.0, %v6488
      %v6490 = vpop.f32.mrf.mxu0
      %v6491 = vadd.f32 0.0, %v6490
      %6492 = vmatmul.bf16.gmra.mxu0 %v6432
      %v6493 = vpop.f32.mrf.mxu0
      %v6494 = vadd.f32 0.0, %v6493
      %v6495 = vpop.f32.mrf.mxu0
      %v6496 = vadd.f32 0.0, %v6495
      %6497 = vmatmul.bf16.gmra.mxu0 %v6435
      %v6498 = vpop.f32.mrf.mxu0
      %v6499 = vadd.f32 0.0, %v6498
      %v6500 = vpop.f32.mrf.mxu0
      %v6501 = vadd.f32 0.0, %v6500
      %6502 = vmatmul.bf16.gmra.mxu0 %v6438
      %v6503 = vpop.f32.mrf.mxu0
      %v6504 = vadd.f32 0.0, %v6503
      %v6505 = vpop.f32.mrf.mxu0
      %v6506 = vadd.f32 0.0, %v6505
      %6507 = vmatmul.bf16.gmra.mxu0 %v6441
      %v6508 = vpop.f32.mrf.mxu0
      %v6509 = vadd.f32 0.0, %v6508
      %v6510 = vpop.f32.mrf.mxu0
      %v6511 = vadd.f32 0.0, %v6510
      %6512 = vmatmul.bf16.gmra.mxu0 %v6444
      %v6513 = vpop.f32.mrf.mxu0
      %v6514 = vadd.f32 0.0, %v6513
      %v6515 = vpop.f32.mrf.mxu0
      %v6516 = vadd.f32 0.0, %v6515
      %6517 = vmatmul.bf16.gmra.mxu0 %v6447
      %v6518 = vpop.f32.mrf.mxu0
      %v6519 = vadd.f32 0.0, %v6518
      %v6520 = vpop.f32.mrf.mxu0
      %v6521 = vadd.f32 0.0, %v6520
      %6522 = vmatmul.bf16.gmra.mxu0 %v6450
      %v6523 = vpop.f32.mrf.mxu0
      %v6524 = vadd.f32 0.0, %v6523
      %v6525 = vpop.f32.mrf.mxu0
      %v6526 = vadd.f32 0.0, %v6525
      %6527 = vmatmul.bf16.gmra.mxu0 %v6453
      %v6528 = vpop.f32.mrf.mxu0
      %v6529 = vadd.f32 0.0, %v6528
      %v6530 = vpop.f32.mrf.mxu0
      %v6531 = vadd.f32 0.0, %v6530
      %6532 = vmatmul.bf16.gmra.mxu0 %v6456
      %v6533 = vpop.f32.mrf.mxu0
      %v6534 = vadd.f32 0.0, %v6533
      %v6535 = vpop.f32.mrf.mxu0
      %v6536 = vadd.f32 0.0, %v6535
      %6537 = vmatmul.bf16.gmra.mxu0 %v6459
      %v6538 = vpop.f32.mrf.mxu0
      %v6539 = vadd.f32 0.0, %v6538
      %v6540 = vpop.f32.mrf.mxu0
      %v6541 = vadd.f32 0.0, %v6540
      %6542 = vmatmul.bf16.gmra.mxu0 %v6462
      %v6543 = vpop.f32.mrf.mxu0
      %v6544 = vadd.f32 0.0, %v6543
      %v6545 = vpop.f32.mrf.mxu0
      %v6546 = vadd.f32 0.0, %v6545
      %6547 = vmatmul.bf16.gmra.mxu0 %v6465
      %v6548 = vpop.f32.mrf.mxu0
      %v6549 = vadd.f32 0.0, %v6548
      %v6550 = vpop.f32.mrf.mxu0
      %v6551 = vadd.f32 0.0, %v6550
      %6552 = vmatmul.bf16.gmra.mxu0 %v6468
      %v6553 = vpop.f32.mrf.mxu0
      %v6554 = vadd.f32 0.0, %v6553
      %v6555 = vpop.f32.mrf.mxu0
      %v6556 = vadd.f32 0.0, %v6555
      %6557 = vmatmul.bf16.gmra.mxu0 %v6471
      %v6558 = vpop.f32.mrf.mxu0
      %v6559 = vadd.f32 0.0, %v6558
      %v6560 = vpop.f32.mrf.mxu0
      %v6561 = vadd.f32 0.0, %v6560
      %6562 = vmatmul.bf16.gmra.mxu0 %v6474
      %v6563 = vpop.f32.mrf.mxu0
      %v6564 = vadd.f32 0.0, %v6563
      %v6565 = vpop.f32.mrf.mxu0
      %v6566 = vadd.f32 0.0, %v6565
      %6567 = vdwg.mxu0
      %v6568 = vsel %vm567, %v6489, -inf
      %6569 = vmax.xlane.f32.xlu0 %v6568
      %v6570 = vpop.xlane.xlu0 %6569
      %v6571 = vsel %vm567, %v6491, -inf
      %6572 = vmax.xlane.f32.xlu0 %v6571
      %v6573 = vpop.xlane.xlu0 %6572
      %v6574 = vsel %vm567, %v6494, -inf
      %6575 = vmax.xlane.f32.xlu0 %v6574
      %v6576 = vpop.xlane.xlu0 %6575
      %v6577 = vsel %vm567, %v6496, -inf
      %6578 = vmax.xlane.f32.xlu0 %v6577
      %v6579 = vpop.xlane.xlu0 %6578
      %v6580 = vsel %vm567, %v6499, -inf
      %6581 = vmax.xlane.f32.xlu0 %v6580
      %v6582 = vpop.xlane.xlu0 %6581
      %v6583 = vsel %vm567, %v6501, -inf
      %6584 = vmax.xlane.f32.xlu0 %v6583
      %v6585 = vpop.xlane.xlu0 %6584
      %v6586 = vsel %vm567, %v6504, -inf
      %6587 = vmax.xlane.f32.xlu0 %v6586
      %v6588 = vpop.xlane.xlu0 %6587
      %v6589 = vsel %vm567, %v6506, -inf
      %6590 = vmax.xlane.f32.xlu0 %v6589
      %v6591 = vpop.xlane.xlu0 %6590
      %v6592 = vsel %vm567, %v6509, -inf
      %6593 = vmax.xlane.f32.xlu0 %v6592
      %v6594 = vpop.xlane.xlu0 %6593
      %v6595 = vsel %vm567, %v6511, -inf
      %6596 = vmax.xlane.f32.xlu0 %v6595
      %v6597 = vpop.xlane.xlu0 %6596
      %v6598 = vsel %vm567, %v6514, -inf
      %6599 = vmax.xlane.f32.xlu0 %v6598
      %v6600 = vpop.xlane.xlu0 %6599
      %v6601 = vsel %vm567, %v6516, -inf
      %6602 = vmax.xlane.f32.xlu0 %v6601
      %v6603 = vpop.xlane.xlu0 %6602
      %v6604 = vsel %vm567, %v6519, -inf
      %6605 = vmax.xlane.f32.xlu0 %v6604
      %v6606 = vpop.xlane.xlu0 %6605
      %v6607 = vsel %vm567, %v6521, -inf
      %6608 = vmax.xlane.f32.xlu0 %v6607
      %v6609 = vpop.xlane.xlu0 %6608
      %v6610 = vsel %vm567, %v6524, -inf
      %6611 = vmax.xlane.f32.xlu0 %v6610
      %v6612 = vpop.xlane.xlu0 %6611
      %v6613 = vsel %vm567, %v6526, -inf
      %6614 = vmax.xlane.f32.xlu0 %v6613
      %v6615 = vpop.xlane.xlu0 %6614
      %v6616 = vsel %vm567, %v6529, -inf
      %6617 = vmax.xlane.f32.xlu0 %v6616
      %v6618 = vpop.xlane.xlu0 %6617
      %v6619 = vsel %vm567, %v6531, -inf
      %6620 = vmax.xlane.f32.xlu0 %v6619
      %v6621 = vpop.xlane.xlu0 %6620
      %v6622 = vsel %vm567, %v6534, -inf
      %6623 = vmax.xlane.f32.xlu0 %v6622
      %v6624 = vpop.xlane.xlu0 %6623
      %v6625 = vsel %vm567, %v6536, -inf
      %6626 = vmax.xlane.f32.xlu0 %v6625
      %v6627 = vpop.xlane.xlu0 %6626
      %v6628 = vsel %vm567, %v6539, -inf
      %6629 = vmax.xlane.f32.xlu0 %v6628
      %v6630 = vpop.xlane.xlu0 %6629
      %v6631 = vsel %vm567, %v6541, -inf
      %6632 = vmax.xlane.f32.xlu0 %v6631
      %v6633 = vpop.xlane.xlu0 %6632
      %v6634 = vsel %vm567, %v6544, -inf
      %6635 = vmax.xlane.f32.xlu0 %v6634
      %v6636 = vpop.xlane.xlu0 %6635
      %v6637 = vsel %vm567, %v6546, -inf
      %6638 = vmax.xlane.f32.xlu0 %v6637
      %v6639 = vpop.xlane.xlu0 %6638
      %v6640 = vsel %vm567, %v6549, -inf
      %6641 = vmax.xlane.f32.xlu0 %v6640
      %v6642 = vpop.xlane.xlu0 %6641
      %v6643 = vsel %vm567, %v6551, -inf
      %6644 = vmax.xlane.f32.xlu0 %v6643
      %v6645 = vpop.xlane.xlu0 %6644
      %v6646 = vsel %vm567, %v6554, -inf
      %6647 = vmax.xlane.f32.xlu0 %v6646
      %v6648 = vpop.xlane.xlu0 %6647
      %v6649 = vsel %vm567, %v6556, -inf
      %6650 = vmax.xlane.f32.xlu0 %v6649
      %v6651 = vpop.xlane.xlu0 %6650
      %v6652 = vsel %vm567, %v6559, -inf
      %6653 = vmax.xlane.f32.xlu0 %v6652
      %v6654 = vpop.xlane.xlu0 %6653
      %v6655 = vsel %vm567, %v6561, -inf
      %6656 = vmax.xlane.f32.xlu0 %v6655
      %v6657 = vpop.xlane.xlu0 %6656
      %v6658 = vsel %vm567, %v6564, -inf
      %6659 = vmax.xlane.f32.xlu0 %v6658
      %v6660 = vpop.xlane.xlu0 %6659
      %v6661 = vsel %vm567, %v6566, -inf
      %6662 = vmax.xlane.f32.xlu0 %v6661
      %v6663 = vpop.xlane.xlu0 %6662
      %v6664 = vsub.f32 %v6489, %v6570
      %v6665 = vsub.f32 %v6491, %v6573
      %v6666 = vsub.f32 %v6494, %v6576
      %v6667 = vsub.f32 %v6496, %v6579
      %v6668 = vsub.f32 %v6499, %v6582
      %v6669 = vsub.f32 %v6501, %v6585
      %v6670 = vsub.f32 %v6504, %v6588
      %v6671 = vsub.f32 %v6506, %v6591
      %v6672 = vsub.f32 %v6509, %v6594
      %v6673 = vsub.f32 %v6511, %v6597
      %v6674 = vsub.f32 %v6514, %v6600
      %v6675 = vsub.f32 %v6516, %v6603
      %v6676 = vsub.f32 %v6519, %v6606
      %v6677 = vsub.f32 %v6521, %v6609
      %v6678 = vsub.f32 %v6524, %v6612
      %v6679 = vsub.f32 %v6526, %v6615
      %v6680 = vsub.f32 %v6529, %v6618
      %v6681 = vsub.f32 %v6531, %v6621
      %v6682 = vsub.f32 %v6534, %v6624
      %v6683 = vsub.f32 %v6536, %v6627
      %v6684 = vsub.f32 %v6539, %v6630
      %v6685 = vsub.f32 %v6541, %v6633
      %v6686 = vsub.f32 %v6544, %v6636
      %v6687 = vsub.f32 %v6546, %v6639
      %v6688 = vsub.f32 %v6549, %v6642
      %v6689 = vsub.f32 %v6551, %v6645
      %v6690 = vsub.f32 %v6554, %v6648
      %v6691 = vsub.f32 %v6556, %v6651
      %v6692 = vsub.f32 %v6559, %v6654
      %v6693 = vsub.f32 %v6561, %v6657
      %v6694 = vsub.f32 %v6564, %v6660
      %v6695 = vsub.f32 %v6566, %v6663
      %v6696 = vmul.f32 %v6664, 1.442695
      %v6697 = vpow.pop %v6696
      %v6698 = vmul.f32 %v6665, 1.442695
      %v6699 = vpow.pop %v6698
      %v6700 = vmul.f32 %v6666, 1.442695
      %v6701 = vpow.pop %v6700
      %v6702 = vmul.f32 %v6667, 1.442695
      %v6703 = vpow.pop %v6702
      %v6704 = vmul.f32 %v6668, 1.442695
      %v6705 = vpow.pop %v6704
      %v6706 = vmul.f32 %v6669, 1.442695
      %v6707 = vpow.pop %v6706
      %v6708 = vmul.f32 %v6670, 1.442695
      %v6709 = vpow.pop %v6708
      %v6710 = vmul.f32 %v6671, 1.442695
      %v6711 = vpow.pop %v6710
      %v6712 = vmul.f32 %v6672, 1.442695
      %v6713 = vpow.pop %v6712
      %v6714 = vmul.f32 %v6673, 1.442695
      %v6715 = vpow.pop %v6714
      %v6716 = vmul.f32 %v6674, 1.442695
      %v6717 = vpow.pop %v6716
      %v6718 = vmul.f32 %v6675, 1.442695
      %v6719 = vpow.pop %v6718
      %v6720 = vmul.f32 %v6676, 1.442695
      %v6721 = vpow.pop %v6720
      %v6722 = vmul.f32 %v6677, 1.442695
      %v6723 = vpow.pop %v6722
      %v6724 = vmul.f32 %v6678, 1.442695
      %v6725 = vpow.pop %v6724
      %v6726 = vmul.f32 %v6679, 1.442695
      %v6727 = vpow.pop %v6726
      %v6728 = vmul.f32 %v6680, 1.442695
      %v6729 = vpow.pop %v6728
      %v6730 = vmul.f32 %v6681, 1.442695
      %v6731 = vpow.pop %v6730
      %v6732 = vmul.f32 %v6682, 1.442695
      %v6733 = vpow.pop %v6732
      %v6734 = vmul.f32 %v6683, 1.442695
      %v6735 = vpow.pop %v6734
      %v6736 = vmul.f32 %v6684, 1.442695
      %v6737 = vpow.pop %v6736
      %v6738 = vmul.f32 %v6685, 1.442695
      %v6739 = vpow.pop %v6738
      %v6740 = vmul.f32 %v6686, 1.442695
      %v6741 = vpow.pop %v6740
      %v6742 = vmul.f32 %v6687, 1.442695
      %v6743 = vpow.pop %v6742
      %v6744 = vmul.f32 %v6688, 1.442695
      %v6745 = vpow.pop %v6744
      %v6746 = vmul.f32 %v6689, 1.442695
      %v6747 = vpow.pop %v6746
      %v6748 = vmul.f32 %v6690, 1.442695
      %v6749 = vpow.pop %v6748
      %v6750 = vmul.f32 %v6691, 1.442695
      %v6751 = vpow.pop %v6750
      %v6752 = vmul.f32 %v6692, 1.442695
      %v6753 = vpow.pop %v6752
      %v6754 = vmul.f32 %v6693, 1.442695
      %v6755 = vpow.pop %v6754
      %v6756 = vmul.f32 %v6694, 1.442695
      %v6757 = vpow.pop %v6756
      %v6758 = vmul.f32 %v6695, 1.442695
      %v6759 = vpow.pop %v6758
      %v6760 = vsel %vm567, %v6697, 0.0
      %6761 = vadd.xlane.f32.xlu0 %v6760
      %v6762 = vpop.xlane.xlu0 %6761
      %v6763 = vsel %vm567, %v6699, 0.0
      %6764 = vadd.xlane.f32.xlu0 %v6763
      %v6765 = vpop.xlane.xlu0 %6764
      %v6766 = vsel %vm567, %v6701, 0.0
      %6767 = vadd.xlane.f32.xlu0 %v6766
      %v6768 = vpop.xlane.xlu0 %6767
      %v6769 = vsel %vm567, %v6703, 0.0
      %6770 = vadd.xlane.f32.xlu0 %v6769
      %v6771 = vpop.xlane.xlu0 %6770
      %v6772 = vsel %vm567, %v6705, 0.0
      %6773 = vadd.xlane.f32.xlu0 %v6772
      %v6774 = vpop.xlane.xlu0 %6773
      %v6775 = vsel %vm567, %v6707, 0.0
      %6776 = vadd.xlane.f32.xlu0 %v6775
      %v6777 = vpop.xlane.xlu0 %6776
      %v6778 = vsel %vm567, %v6709, 0.0
      %6779 = vadd.xlane.f32.xlu0 %v6778
      %v6780 = vpop.xlane.xlu0 %6779
      %v6781 = vsel %vm567, %v6711, 0.0
      %6782 = vadd.xlane.f32.xlu0 %v6781
      %v6783 = vpop.xlane.xlu0 %6782
      %v6784 = vsel %vm567, %v6713, 0.0
      %6785 = vadd.xlane.f32.xlu0 %v6784
      %v6786 = vpop.xlane.xlu0 %6785
      %v6787 = vsel %vm567, %v6715, 0.0
      %6788 = vadd.xlane.f32.xlu0 %v6787
      %v6789 = vpop.xlane.xlu0 %6788
      %v6790 = vsel %vm567, %v6717, 0.0
      %6791 = vadd.xlane.f32.xlu0 %v6790
      %v6792 = vpop.xlane.xlu0 %6791
      %v6793 = vsel %vm567, %v6719, 0.0
      %6794 = vadd.xlane.f32.xlu0 %v6793
      %v6795 = vpop.xlane.xlu0 %6794
      %v6796 = vsel %vm567, %v6721, 0.0
      %6797 = vadd.xlane.f32.xlu0 %v6796
      %v6798 = vpop.xlane.xlu0 %6797
      %v6799 = vsel %vm567, %v6723, 0.0
      %6800 = vadd.xlane.f32.xlu0 %v6799
      %v6801 = vpop.xlane.xlu0 %6800
      %v6802 = vsel %vm567, %v6725, 0.0
      %6803 = vadd.xlane.f32.xlu0 %v6802
      %v6804 = vpop.xlane.xlu0 %6803
      %v6805 = vsel %vm567, %v6727, 0.0
      %6806 = vadd.xlane.f32.xlu0 %v6805
      %v6807 = vpop.xlane.xlu0 %6806
      %v6808 = vsel %vm567, %v6729, 0.0
      %6809 = vadd.xlane.f32.xlu0 %v6808
      %v6810 = vpop.xlane.xlu0 %6809
      %v6811 = vsel %vm567, %v6731, 0.0
      %6812 = vadd.xlane.f32.xlu0 %v6811
      %v6813 = vpop.xlane.xlu0 %6812
      %v6814 = vsel %vm567, %v6733, 0.0
      %6815 = vadd.xlane.f32.xlu0 %v6814
      %v6816 = vpop.xlane.xlu0 %6815
      %v6817 = vsel %vm567, %v6735, 0.0
      %6818 = vadd.xlane.f32.xlu0 %v6817
      %v6819 = vpop.xlane.xlu0 %6818
      %v6820 = vsel %vm567, %v6737, 0.0
      %6821 = vadd.xlane.f32.xlu0 %v6820
      %v6822 = vpop.xlane.xlu0 %6821
      %v6823 = vsel %vm567, %v6739, 0.0
      %6824 = vadd.xlane.f32.xlu0 %v6823
      %v6825 = vpop.xlane.xlu0 %6824
      %v6826 = vsel %vm567, %v6741, 0.0
      %6827 = vadd.xlane.f32.xlu0 %v6826
      %v6828 = vpop.xlane.xlu0 %6827
      %v6829 = vsel %vm567, %v6743, 0.0
      %6830 = vadd.xlane.f32.xlu0 %v6829
      %v6831 = vpop.xlane.xlu0 %6830
      %v6832 = vsel %vm567, %v6745, 0.0
      %6833 = vadd.xlane.f32.xlu0 %v6832
      %v6834 = vpop.xlane.xlu0 %6833
      %v6835 = vsel %vm567, %v6747, 0.0
      %6836 = vadd.xlane.f32.xlu0 %v6835
      %v6837 = vpop.xlane.xlu0 %6836
      %v6838 = vsel %vm567, %v6749, 0.0
      %6839 = vadd.xlane.f32.xlu0 %v6838
      %v6840 = vpop.xlane.xlu0 %6839
      %v6841 = vsel %vm567, %v6751, 0.0
      %6842 = vadd.xlane.f32.xlu0 %v6841
      %v6843 = vpop.xlane.xlu0 %6842
      %v6844 = vsel %vm567, %v6753, 0.0
      %6845 = vadd.xlane.f32.xlu0 %v6844
      %v6846 = vpop.xlane.xlu0 %6845
      %v6847 = vsel %vm567, %v6755, 0.0
      %6848 = vadd.xlane.f32.xlu0 %v6847
      %v6849 = vpop.xlane.xlu0 %6848
      %v6850 = vsel %vm567, %v6757, 0.0
      %6851 = vadd.xlane.f32.xlu0 %v6850
      %v6852 = vpop.xlane.xlu0 %6851
      %v6853 = vsel %vm567, %v6759, 0.0
      %6854 = vadd.xlane.f32.xlu0 %v6853
      %v6855 = vpop.xlane.xlu0 %6854
      %v6856 = vrcp.pop %v6762
      %v6857 = vrcp.pop %v6765
      %v6858 = vrcp.pop %v6768
      %v6859 = vrcp.pop %v6771
      %v6860 = vrcp.pop %v6774
      %v6861 = vrcp.pop %v6777
      %v6862 = vrcp.pop %v6780
      %v6863 = vrcp.pop %v6783
      %v6864 = vrcp.pop %v6786
      %v6865 = vrcp.pop %v6789
      %v6866 = vrcp.pop %v6792
      %v6867 = vrcp.pop %v6795
      %v6868 = vrcp.pop %v6798
      %v6869 = vrcp.pop %v6801
      %v6870 = vrcp.pop %v6804
      %v6871 = vrcp.pop %v6807
      %v6872 = vrcp.pop %v6810
      %v6873 = vrcp.pop %v6813
      %v6874 = vrcp.pop %v6816
      %v6875 = vrcp.pop %v6819
      %v6876 = vrcp.pop %v6822
      %v6877 = vrcp.pop %v6825
      %v6878 = vrcp.pop %v6828
      %v6879 = vrcp.pop %v6831
      %v6880 = vrcp.pop %v6834
      %v6881 = vrcp.pop %v6837
      %v6882 = vrcp.pop %v6840
      %v6883 = vrcp.pop %v6843
      %v6884 = vrcp.pop %v6846
      %v6885 = vrcp.pop %v6849
      %v6886 = vrcp.pop %v6852
      %v6887 = vrcp.pop %v6855
      %v6888 = vmul.f32 %v6697, %v6856
      %v6889 = vmul.f32 %v6699, %v6857
      %v6890 = vmul.f32 %v6701, %v6858
      %v6891 = vmul.f32 %v6703, %v6859
      %v6892 = vmul.f32 %v6705, %v6860
      %v6893 = vmul.f32 %v6707, %v6861
      %v6894 = vmul.f32 %v6709, %v6862
      %v6895 = vmul.f32 %v6711, %v6863
      %v6896 = vmul.f32 %v6713, %v6864
      %v6897 = vmul.f32 %v6715, %v6865
      %v6898 = vmul.f32 %v6717, %v6866
      %v6899 = vmul.f32 %v6719, %v6867
      %v6900 = vmul.f32 %v6721, %v6868
      %v6901 = vmul.f32 %v6723, %v6869
      %v6902 = vmul.f32 %v6725, %v6870
      %v6903 = vmul.f32 %v6727, %v6871
      %v6904 = vmul.f32 %v6729, %v6872
      %v6905 = vmul.f32 %v6731, %v6873
      %v6906 = vmul.f32 %v6733, %v6874
      %v6907 = vmul.f32 %v6735, %v6875
      %v6908 = vmul.f32 %v6737, %v6876
      %v6909 = vmul.f32 %v6739, %v6877
      %v6910 = vmul.f32 %v6741, %v6878
      %v6911 = vmul.f32 %v6743, %v6879
      %v6912 = vmul.f32 %v6745, %v6880
      %v6913 = vmul.f32 %v6747, %v6881
      %v6914 = vmul.f32 %v6749, %v6882
      %v6915 = vmul.f32 %v6751, %v6883
      %v6916 = vmul.f32 %v6753, %v6884
      %v6917 = vmul.f32 %v6755, %v6885
      %v6918 = vmul.f32 %v6757, %v6886
      %v6919 = vmul.f32 %v6759, %v6887
      %v6920 = vpack.c.bf16 %v6889, %v6888
      %v6921 = vpack.c.bf16 %v6891, %v6890
      %v6922 = vpack.c.bf16 %v6893, %v6892
      %v6923 = vpack.c.bf16 %v6895, %v6894
      %v6924 = vpack.c.bf16 %v6897, %v6896
      %v6925 = vpack.c.bf16 %v6899, %v6898
      %v6926 = vpack.c.bf16 %v6901, %v6900
      %v6927 = vpack.c.bf16 %v6903, %v6902
      %v6928 = vpack.c.bf16 %v6905, %v6904
      %v6929 = vpack.c.bf16 %v6907, %v6906
      %v6930 = vpack.c.bf16 %v6909, %v6908
      %v6931 = vpack.c.bf16 %v6911, %v6910
      %v6932 = vpack.c.bf16 %v6913, %v6912
      %v6933 = vpack.c.bf16 %v6915, %v6914
      %v6934 = vpack.c.bf16 %v6917, %v6916
      %v6935 = vpack.c.bf16 %v6919, %v6918
      %6936 = vrot.lane.b32.xlu0 %v940, 100
      %v6937 = vpop.permute.xlu0 %6936
      %v6940 = vsel %vm567, %v6920, 0
      %v6943 = vsel %vm567, %v6921, 0
      %v6946 = vsel %vm567, %v6922, 0
      %v6949 = vsel %vm567, %v6923, 0
      %v6952 = vsel %vm567, %v6924, 0
      %v6955 = vsel %vm567, %v6925, 0
      %v6958 = vsel %vm567, %v6926, 0
      %v6961 = vsel %vm567, %v6927, 0
      %v6964 = vsel %vm567, %v6928, 0
      %v6967 = vsel %vm567, %v6929, 0
      %v6970 = vsel %vm567, %v6930, 0
      %v6973 = vsel %vm567, %v6931, 0
      %v6976 = vsel %vm567, %v6932, 0
      %v6979 = vsel %vm567, %v6933, 0
      %v6982 = vsel %vm567, %v6934, 0
      %v6985 = vsel %vm567, %v6935, 0
      %6987 = vmatpush.bf16.msra.mxu0 0
      %6988 = vmatpush.bf16.msra.mxu0 0
      %6989 = vmatpush.bf16.msra.mxu0 0
      %6990 = vmatpush.bf16.msra.mxu0 0
      %6991 = vmatpush.bf16.msra.mxu0 0
      %6992 = vmatpush.bf16.msra.mxu0 0
      %6993 = vmatpush.bf16.msra.mxu0 0
      %6994 = vmatpush.bf16.msra.mxu0 %v6937
      %6995 = vmatmul.bf16.gmra.mxu0 %v6940
      %v6996 = vpop.f32.mrf.mxu0
      %v6997 = vadd.f32 0.0, %v6996
      %v6998 = vpop.f32.mrf.mxu0
      %v6999 = vadd.f32 0.0, %v6998
      %7000 = vmatmul.bf16.gmra.mxu0 %v6943
      %v7001 = vpop.f32.mrf.mxu0
      %v7002 = vadd.f32 0.0, %v7001
      %v7003 = vpop.f32.mrf.mxu0
      %v7004 = vadd.f32 0.0, %v7003
      %7005 = vmatmul.bf16.gmra.mxu0 %v6946
      %v7006 = vpop.f32.mrf.mxu0
      %v7007 = vadd.f32 0.0, %v7006
      %v7008 = vpop.f32.mrf.mxu0
      %v7009 = vadd.f32 0.0, %v7008
      %7010 = vmatmul.bf16.gmra.mxu0 %v6949
      %v7011 = vpop.f32.mrf.mxu0
      %v7012 = vadd.f32 0.0, %v7011
      %v7013 = vpop.f32.mrf.mxu0
      %v7014 = vadd.f32 0.0, %v7013
      %7015 = vmatmul.bf16.gmra.mxu0 %v6952
      %v7016 = vpop.f32.mrf.mxu0
      %v7017 = vadd.f32 0.0, %v7016
      %v7018 = vpop.f32.mrf.mxu0
      %v7019 = vadd.f32 0.0, %v7018
      %7020 = vmatmul.bf16.gmra.mxu0 %v6955
      %v7021 = vpop.f32.mrf.mxu0
      %v7022 = vadd.f32 0.0, %v7021
      %v7023 = vpop.f32.mrf.mxu0
      %v7024 = vadd.f32 0.0, %v7023
      %7025 = vmatmul.bf16.gmra.mxu0 %v6958
      %v7026 = vpop.f32.mrf.mxu0
      %v7027 = vadd.f32 0.0, %v7026
      %v7028 = vpop.f32.mrf.mxu0
      %v7029 = vadd.f32 0.0, %v7028
      %7030 = vmatmul.bf16.gmra.mxu0 %v6961
      %v7031 = vpop.f32.mrf.mxu0
      %v7032 = vadd.f32 0.0, %v7031
      %v7033 = vpop.f32.mrf.mxu0
      %v7034 = vadd.f32 0.0, %v7033
      %7035 = vmatmul.bf16.gmra.mxu0 %v6964
      %v7036 = vpop.f32.mrf.mxu0
      %v7037 = vadd.f32 0.0, %v7036
      %v7038 = vpop.f32.mrf.mxu0
      %v7039 = vadd.f32 0.0, %v7038
      %7040 = vmatmul.bf16.gmra.mxu0 %v6967
      %v7041 = vpop.f32.mrf.mxu0
      %v7042 = vadd.f32 0.0, %v7041
      %v7043 = vpop.f32.mrf.mxu0
      %v7044 = vadd.f32 0.0, %v7043
      %7045 = vmatmul.bf16.gmra.mxu0 %v6970
      %v7046 = vpop.f32.mrf.mxu0
      %v7047 = vadd.f32 0.0, %v7046
      %v7048 = vpop.f32.mrf.mxu0
      %v7049 = vadd.f32 0.0, %v7048
      %7050 = vmatmul.bf16.gmra.mxu0 %v6973
      %v7051 = vpop.f32.mrf.mxu0
      %v7052 = vadd.f32 0.0, %v7051
      %v7053 = vpop.f32.mrf.mxu0
      %v7054 = vadd.f32 0.0, %v7053
      %7055 = vmatmul.bf16.gmra.mxu0 %v6976
      %v7056 = vpop.f32.mrf.mxu0
      %v7057 = vadd.f32 0.0, %v7056
      %v7058 = vpop.f32.mrf.mxu0
      %v7059 = vadd.f32 0.0, %v7058
      %7060 = vmatmul.bf16.gmra.mxu0 %v6979
      %v7061 = vpop.f32.mrf.mxu0
      %v7062 = vadd.f32 0.0, %v7061
      %v7063 = vpop.f32.mrf.mxu0
      %v7064 = vadd.f32 0.0, %v7063
      %7065 = vmatmul.bf16.gmra.mxu0 %v6982
      %v7066 = vpop.f32.mrf.mxu0
      %v7067 = vadd.f32 0.0, %v7066
      %v7068 = vpop.f32.mrf.mxu0
      %v7069 = vadd.f32 0.0, %v7068
      %7070 = vmatmul.bf16.gmra.mxu0 %v6985
      %v7071 = vpop.f32.mrf.mxu0
      %v7072 = vadd.f32 0.0, %v7071
      %v7073 = vpop.f32.mrf.mxu0
      %v7074 = vadd.f32 0.0, %v7073
      %7075 = vdwg.mxu0
      %v7076 = vpack.c.bf16 %v6997, %v6997
      %v7077 = vpack.c.bf16 %v6999, %v6999
      %v7078 = vpack.c.bf16 %v7002, %v7002
      %v7079 = vpack.c.bf16 %v7004, %v7004
      %v7080 = vpack.c.bf16 %v7007, %v7007
      %v7081 = vpack.c.bf16 %v7009, %v7009
      %v7082 = vpack.c.bf16 %v7012, %v7012
      %v7083 = vpack.c.bf16 %v7014, %v7014
      %v7084 = vpack.c.bf16 %v7017, %v7017
      %v7085 = vpack.c.bf16 %v7019, %v7019
      %v7086 = vpack.c.bf16 %v7022, %v7022
      %v7087 = vpack.c.bf16 %v7024, %v7024
      %v7088 = vpack.c.bf16 %v7027, %v7027
      %v7089 = vpack.c.bf16 %v7029, %v7029
      %v7090 = vpack.c.bf16 %v7032, %v7032
      %v7091 = vpack.c.bf16 %v7034, %v7034
      %v7092 = vpack.c.bf16 %v7037, %v7037
      %v7093 = vpack.c.bf16 %v7039, %v7039
      %v7094 = vpack.c.bf16 %v7042, %v7042
      %v7095 = vpack.c.bf16 %v7044, %v7044
      %v7096 = vpack.c.bf16 %v7047, %v7047
      %v7097 = vpack.c.bf16 %v7049, %v7049
      %v7098 = vpack.c.bf16 %v7052, %v7052
      %v7099 = vpack.c.bf16 %v7054, %v7054
      %v7100 = vpack.c.bf16 %v7057, %v7057
      %v7101 = vpack.c.bf16 %v7059, %v7059
      %v7102 = vpack.c.bf16 %v7062, %v7062
      %v7103 = vpack.c.bf16 %v7064, %v7064
      %v7104 = vpack.c.bf16 %v7067, %v7067
      %v7105 = vpack.c.bf16 %v7069, %v7069
      %v7106 = vpack.c.bf16 %v7072, %v7072
      %v7107 = vpack.c.bf16 %v7074, %v7074
      %7140 = vrot.lane.b32.xlu0 %v7076, 28
      %v7141 = vpop.permute.xlu0 %7140
      %7142 = vrot.lane.b32.xlu0 %v7077, 28
      %v7143 = vpop.permute.xlu0 %7142
      %7144 = vrot.lane.b32.xlu0 %v7078, 28
      %v7145 = vpop.permute.xlu0 %7144
      %7146 = vrot.lane.b32.xlu0 %v7079, 28
      %v7147 = vpop.permute.xlu0 %7146
      %7148 = vrot.lane.b32.xlu0 %v7080, 28
      %v7149 = vpop.permute.xlu0 %7148
      %7150 = vrot.lane.b32.xlu0 %v7081, 28
      %v7151 = vpop.permute.xlu0 %7150
      %7152 = vrot.lane.b32.xlu0 %v7082, 28
      %v7153 = vpop.permute.xlu0 %7152
      %7154 = vrot.lane.b32.xlu0 %v7083, 28
      %v7155 = vpop.permute.xlu0 %7154
      %7156 = vrot.lane.b32.xlu0 %v7084, 28
      %v7157 = vpop.permute.xlu0 %7156
      %7158 = vrot.lane.b32.xlu0 %v7085, 28
      %v7159 = vpop.permute.xlu0 %7158
      %7160 = vrot.lane.b32.xlu0 %v7086, 28
      %v7161 = vpop.permute.xlu0 %7160
      %7162 = vrot.lane.b32.xlu0 %v7087, 28
      %v7163 = vpop.permute.xlu0 %7162
      %7164 = vrot.lane.b32.xlu0 %v7088, 28
      %v7165 = vpop.permute.xlu0 %7164
      %7166 = vrot.lane.b32.xlu0 %v7089, 28
      %v7167 = vpop.permute.xlu0 %7166
      %7168 = vrot.lane.b32.xlu0 %v7090, 28
      %v7169 = vpop.permute.xlu0 %7168
      %7170 = vrot.lane.b32.xlu0 %v7091, 28
      %v7171 = vpop.permute.xlu0 %7170
      %7172 = vrot.lane.b32.xlu0 %v7092, 28
      %v7173 = vpop.permute.xlu0 %7172
      %7174 = vrot.lane.b32.xlu0 %v7093, 28
      %v7175 = vpop.permute.xlu0 %7174
      %7176 = vrot.lane.b32.xlu0 %v7094, 28
      %v7177 = vpop.permute.xlu0 %7176
      %7178 = vrot.lane.b32.xlu0 %v7095, 28
      %v7179 = vpop.permute.xlu0 %7178
      %7180 = vrot.lane.b32.xlu0 %v7096, 28
      %v7181 = vpop.permute.xlu0 %7180
      %7182 = vrot.lane.b32.xlu0 %v7097, 28
      %v7183 = vpop.permute.xlu0 %7182
      %7184 = vrot.lane.b32.xlu0 %v7098, 28
      %v7185 = vpop.permute.xlu0 %7184
      %7186 = vrot.lane.b32.xlu0 %v7099, 28
      %v7187 = vpop.permute.xlu0 %7186
      %7188 = vrot.lane.b32.xlu0 %v7100, 28
      %v7189 = vpop.permute.xlu0 %7188
      %7190 = vrot.lane.b32.xlu0 %v7101, 28
      %v7191 = vpop.permute.xlu0 %7190
      %7192 = vrot.lane.b32.xlu0 %v7102, 28
      %v7193 = vpop.permute.xlu0 %7192
      %7194 = vrot.lane.b32.xlu0 %v7103, 28
      %v7195 = vpop.permute.xlu0 %7194
      %7196 = vrot.lane.b32.xlu0 %v7104, 28
      %v7197 = vpop.permute.xlu0 %7196
      %7198 = vrot.lane.b32.xlu0 %v7105, 28
      %v7199 = vpop.permute.xlu0 %7198
      %7200 = vrot.lane.b32.xlu0 %v7106, 28
      %v7201 = vpop.permute.xlu0 %7200
      %7202 = vrot.lane.b32.xlu0 %v7107, 28
      %v7203 = vpop.permute.xlu0 %7202
      %vm7236 = vcmask 257248
      %7237 = vst.msk [vmem:[#allocation2] sm:$0xf] %vm7236, %v7141
      %7238 = vst.msk [vmem:[#allocation2 + $0x4] sm:$0xf] %vm7236, %v7143
      %7239 = vst.msk [vmem:[#allocation2 + $0x8] sm:$0xf] %vm7236, %v7145
      %7240 = vst.msk [vmem:[#allocation2 + $0xc] sm:$0xf] %vm7236, %v7147
      %7241 = vst.msk [vmem:[#allocation2 + $0x10] sm:$0xf] %vm7236, %v7149
      %7242 = vst.msk [vmem:[#allocation2 + $0x14] sm:$0xf] %vm7236, %v7151
      %7243 = vst.msk [vmem:[#allocation2 + $0x18] sm:$0xf] %vm7236, %v7153
      %7244 = vst.msk [vmem:[#allocation2 + $0x1c] sm:$0xf] %vm7236, %v7155
      %7245 = vst.msk [vmem:[#allocation2 + $0x20] sm:$0xf] %vm7236, %v7157
      %7246 = vst.msk [vmem:[#allocation2 + $0x24] sm:$0xf] %vm7236, %v7159
      %7247 = vst.msk [vmem:[#allocation2 + $0x28] sm:$0xf] %vm7236, %v7161
      %7248 = vst.msk [vmem:[#allocation2 + $0x2c] sm:$0xf] %vm7236, %v7163
      %7249 = vst.msk [vmem:[#allocation2 + $0x30] sm:$0xf] %vm7236, %v7165
      %7250 = vst.msk [vmem:[#allocation2 + $0x34] sm:$0xf] %vm7236, %v7167
      %7251 = vst.msk [vmem:[#allocation2 + $0x38] sm:$0xf] %vm7236, %v7169
      %7252 = vst.msk [vmem:[#allocation2 + $0x3c] sm:$0xf] %vm7236, %v7171
      %7253 = vst.msk [vmem:[#allocation2 + $0x40] sm:$0xf] %vm7236, %v7173
      %7254 = vst.msk [vmem:[#allocation2 + $0x44] sm:$0xf] %vm7236, %v7175
      %7255 = vst.msk [vmem:[#allocation2 + $0x48] sm:$0xf] %vm7236, %v7177
      %7256 = vst.msk [vmem:[#allocation2 + $0x4c] sm:$0xf] %vm7236, %v7179
      %7257 = vst.msk [vmem:[#allocation2 + $0x50] sm:$0xf] %vm7236, %v7181
      %7258 = vst.msk [vmem:[#allocation2 + $0x54] sm:$0xf] %vm7236, %v7183
      %7259 = vst.msk [vmem:[#allocation2 + $0x58] sm:$0xf] %vm7236, %v7185
      %7260 = vst.msk [vmem:[#allocation2 + $0x5c] sm:$0xf] %vm7236, %v7187
      %7261 = vst.msk [vmem:[#allocation2 + $0x60] sm:$0xf] %vm7236, %v7189
      %7262 = vst.msk [vmem:[#allocation2 + $0x64] sm:$0xf] %vm7236, %v7191
      %7263 = vst.msk [vmem:[#allocation2 + $0x68] sm:$0xf] %vm7236, %v7193
      %7264 = vst.msk [vmem:[#allocation2 + $0x6c] sm:$0xf] %vm7236, %v7195
      %7265 = vst.msk [vmem:[#allocation2 + $0x70] sm:$0xf] %vm7236, %v7197
      %7266 = vst.msk [vmem:[#allocation2 + $0x74] sm:$0xf] %vm7236, %v7199
      %7267 = vst.msk [vmem:[#allocation2 + $0x78] sm:$0xf] %vm7236, %v7201
      %7268 = vst.msk [vmem:[#allocation2 + $0x7c] sm:$0xf] %vm7236, %v7203
      %v7269 = vld [vmem:[#allocation2] sm:$0xf]
      %v7270 = vld [vmem:[#allocation2 + $0x4] sm:$0xf]
      %v7271 = vld [vmem:[#allocation2 + $0x8] sm:$0xf]
      %v7272 = vld [vmem:[#allocation2 + $0xc] sm:$0xf]
      %v7273 = vld [vmem:[#allocation2 + $0x10] sm:$0xf]
      %v7274 = vld [vmem:[#allocation2 + $0x14] sm:$0xf]
      %v7275 = vld [vmem:[#allocation2 + $0x18] sm:$0xf]
      %v7276 = vld [vmem:[#allocation2 + $0x1c] sm:$0xf]
      %v7277 = vld [vmem:[#allocation2 + $0x20] sm:$0xf]
      %v7278 = vld [vmem:[#allocation2 + $0x24] sm:$0xf]
      %v7279 = vld [vmem:[#allocation2 + $0x28] sm:$0xf]
      %v7280 = vld [vmem:[#allocation2 + $0x2c] sm:$0xf]
      %v7281 = vld [vmem:[#allocation2 + $0x30] sm:$0xf]
      %v7282 = vld [vmem:[#allocation2 + $0x34] sm:$0xf]
      %v7283 = vld [vmem:[#allocation2 + $0x38] sm:$0xf]
      %v7284 = vld [vmem:[#allocation2 + $0x3c] sm:$0xf]
      %v7285 = vld [vmem:[#allocation2 + $0x40] sm:$0xf]
      %v7286 = vld [vmem:[#allocation2 + $0x44] sm:$0xf]
      %v7287 = vld [vmem:[#allocation2 + $0x48] sm:$0xf]
      %v7288 = vld [vmem:[#allocation2 + $0x4c] sm:$0xf]
      %v7289 = vld [vmem:[#allocation2 + $0x50] sm:$0xf]
      %v7290 = vld [vmem:[#allocation2 + $0x54] sm:$0xf]
      %v7291 = vld [vmem:[#allocation2 + $0x58] sm:$0xf]
      %v7292 = vld [vmem:[#allocation2 + $0x5c] sm:$0xf]
      %v7293 = vld [vmem:[#allocation2 + $0x60] sm:$0xf]
      %v7294 = vld [vmem:[#allocation2 + $0x64] sm:$0xf]
      %v7295 = vld [vmem:[#allocation2 + $0x68] sm:$0xf]
      %v7296 = vld [vmem:[#allocation2 + $0x6c] sm:$0xf]
      %v7297 = vld [vmem:[#allocation2 + $0x70] sm:$0xf]
      %v7298 = vld [vmem:[#allocation2 + $0x74] sm:$0xf]
      %v7299 = vld [vmem:[#allocation2 + $0x78] sm:$0xf]
      %v7300 = vld [vmem:[#allocation2 + $0x7c] sm:$0xf]
      %v7301 = vld [vmem:[%s3] sm:$0xf]
      %v7302 = vld [vmem:[%s3 + $0x4] sm:$0xf]
      %v7303 = vld [vmem:[%s3 + $0x8] sm:$0xf]
      %v7304 = vld [vmem:[%s3 + $0xc] sm:$0xf]
      %v7305 = vld [vmem:[%s4] sm:$0x1]
      %v7307 = vperm.slane %v7305, 0
      %v7341 = vunpack.c.l.b16 %v7269
      %v7342 = vunpack.c.l.b16 %v7270
      %v7343 = vunpack.c.l.b16 %v7271
      %v7344 = vunpack.c.l.b16 %v7272
      %v7345 = vunpack.c.l.b16 %v7273
      %v7346 = vunpack.c.l.b16 %v7274
      %v7347 = vunpack.c.l.b16 %v7275
      %v7348 = vunpack.c.l.b16 %v7276
      %v7349 = vunpack.c.l.b16 %v7277
      %v7350 = vunpack.c.l.b16 %v7278
      %v7351 = vunpack.c.l.b16 %v7279
      %v7352 = vunpack.c.l.b16 %v7280
      %v7353 = vunpack.c.l.b16 %v7281
      %v7354 = vunpack.c.l.b16 %v7282
      %v7355 = vunpack.c.l.b16 %v7283
      %v7356 = vunpack.c.l.b16 %v7284
      %v7357 = vunpack.c.l.b16 %v7285
      %v7358 = vunpack.c.l.b16 %v7286
      %v7359 = vunpack.c.l.b16 %v7287
      %v7360 = vunpack.c.l.b16 %v7288
      %v7361 = vunpack.c.l.b16 %v7289
      %v7362 = vunpack.c.l.b16 %v7290
      %v7363 = vunpack.c.l.b16 %v7291
      %v7364 = vunpack.c.l.b16 %v7292
      %v7365 = vunpack.c.l.b16 %v7293
      %v7366 = vunpack.c.l.b16 %v7294
      %v7367 = vunpack.c.l.b16 %v7295
      %v7368 = vunpack.c.l.b16 %v7296
      %v7369 = vunpack.c.l.b16 %v7297
      %v7370 = vunpack.c.l.b16 %v7298
      %v7371 = vunpack.c.l.b16 %v7299
      %v7372 = vunpack.c.l.b16 %v7300
      %v7373 = vpack.c.b16 %v7342, %v7341
      %v7374 = vpack.c.b16 %v7344, %v7343
      %v7375 = vpack.c.b16 %v7346, %v7345
      %v7376 = vpack.c.b16 %v7348, %v7347
      %v7377 = vpack.c.b16 %v7350, %v7349
      %v7378 = vpack.c.b16 %v7352, %v7351
      %v7379 = vpack.c.b16 %v7354, %v7353
      %v7380 = vpack.c.b16 %v7356, %v7355
      %v7381 = vpack.c.b16 %v7358, %v7357
      %v7382 = vpack.c.b16 %v7360, %v7359
      %v7383 = vpack.c.b16 %v7362, %v7361
      %v7384 = vpack.c.b16 %v7364, %v7363
      %v7385 = vpack.c.b16 %v7366, %v7365
      %v7386 = vpack.c.b16 %v7368, %v7367
      %v7387 = vpack.c.b16 %v7370, %v7369
      %v7388 = vpack.c.b16 %v7372, %v7371
      %v7393 = vunpack.c.l.b16 %v7301
      %v7394 = vunpack.c.l.b16 %v7302
      %v7395 = vunpack.c.l.b16 %v7303
      %v7396 = vunpack.c.l.b16 %v7304
      %v7397 = vpack.c.b16 %v7394, %v7393
      %v7398 = vpack.c.b16 %v7396, %v7395
      %vm7401 = vcmask 261120
      %v7403 = vsel %vm7401, %v7373, 0
      %v7406 = vsel %vm7401, %v7374, 0
      %v7409 = vsel %vm7401, %v7375, 0
      %v7412 = vsel %vm7401, %v7376, 0
      %v7415 = vsel %vm7401, %v7377, 0
      %v7418 = vsel %vm7401, %v7378, 0
      %v7421 = vsel %vm7401, %v7379, 0
      %v7424 = vsel %vm7401, %v7380, 0
      %v7427 = vsel %vm7401, %v7381, 0
      %v7430 = vsel %vm7401, %v7382, 0
      %v7433 = vsel %vm7401, %v7383, 0
      %v7436 = vsel %vm7401, %v7384, 0
      %v7439 = vsel %vm7401, %v7385, 0
      %v7442 = vsel %vm7401, %v7386, 0
      %v7445 = vsel %vm7401, %v7387, 0
      %v7448 = vsel %vm7401, %v7388, 0
      %7450 = vmatpush.bf16.msra.mxu0 0
      %7451 = vmatpush.bf16.msra.mxu0 0
      %7452 = vmatpush.bf16.msra.mxu0 0
      %7453 = vmatpush.bf16.msra.mxu0 0
      %7454 = vmatpush.bf16.msra.mxu0 0
      %7455 = vmatpush.bf16.msra.mxu0 0
      %7456 = vmatpush.bf16.msra.mxu0 %v7398
      %7457 = vmatpush.bf16.msra.mxu0 %v7397
      %7458 = vmatmul.bf16.gmra.mxu0 %v7403
      %v7459 = vpop.f32.mrf.mxu0
      %v7460 = vadd.f32 %v7307, %v7459
      %v7461 = vpop.f32.mrf.mxu0
      %v7462 = vadd.f32 %v7307, %v7461
      %7463 = vmatmul.bf16.gmra.mxu0 %v7406
      %v7464 = vpop.f32.mrf.mxu0
      %v7465 = vadd.f32 %v7307, %v7464
      %v7466 = vpop.f32.mrf.mxu0
      %v7467 = vadd.f32 %v7307, %v7466
      %7468 = vmatmul.bf16.gmra.mxu0 %v7409
      %v7469 = vpop.f32.mrf.mxu0
      %v7470 = vadd.f32 %v7307, %v7469
      %v7471 = vpop.f32.mrf.mxu0
      %v7472 = vadd.f32 %v7307, %v7471
      %7473 = vmatmul.bf16.gmra.mxu0 %v7412
      %v7474 = vpop.f32.mrf.mxu0
      %v7475 = vadd.f32 %v7307, %v7474
      %v7476 = vpop.f32.mrf.mxu0
      %v7477 = vadd.f32 %v7307, %v7476
      %7478 = vmatmul.bf16.gmra.mxu0 %v7415
      %v7479 = vpop.f32.mrf.mxu0
      %v7480 = vadd.f32 %v7307, %v7479
      %v7481 = vpop.f32.mrf.mxu0
      %v7482 = vadd.f32 %v7307, %v7481
      %7483 = vmatmul.bf16.gmra.mxu0 %v7418
      %v7484 = vpop.f32.mrf.mxu0
      %v7485 = vadd.f32 %v7307, %v7484
      %v7486 = vpop.f32.mrf.mxu0
      %v7487 = vadd.f32 %v7307, %v7486
      %7488 = vmatmul.bf16.gmra.mxu0 %v7421
      %v7489 = vpop.f32.mrf.mxu0
      %v7490 = vadd.f32 %v7307, %v7489
      %v7491 = vpop.f32.mrf.mxu0
      %v7492 = vadd.f32 %v7307, %v7491
      %7493 = vmatmul.bf16.gmra.mxu0 %v7424
      %v7494 = vpop.f32.mrf.mxu0
      %v7495 = vadd.f32 %v7307, %v7494
      %v7496 = vpop.f32.mrf.mxu0
      %v7497 = vadd.f32 %v7307, %v7496
      %7498 = vmatmul.bf16.gmra.mxu0 %v7427
      %v7499 = vpop.f32.mrf.mxu0
      %v7500 = vadd.f32 %v7307, %v7499
      %v7501 = vpop.f32.mrf.mxu0
      %v7502 = vadd.f32 %v7307, %v7501
      %7503 = vmatmul.bf16.gmra.mxu0 %v7430
      %v7504 = vpop.f32.mrf.mxu0
      %v7505 = vadd.f32 %v7307, %v7504
      %v7506 = vpop.f32.mrf.mxu0
      %v7507 = vadd.f32 %v7307, %v7506
      %7508 = vmatmul.bf16.gmra.mxu0 %v7433
      %v7509 = vpop.f32.mrf.mxu0
      %v7510 = vadd.f32 %v7307, %v7509
      %v7511 = vpop.f32.mrf.mxu0
      %v7512 = vadd.f32 %v7307, %v7511
      %7513 = vmatmul.bf16.gmra.mxu0 %v7436
      %v7514 = vpop.f32.mrf.mxu0
      %v7515 = vadd.f32 %v7307, %v7514
      %v7516 = vpop.f32.mrf.mxu0
      %v7517 = vadd.f32 %v7307, %v7516
      %7518 = vmatmul.bf16.gmra.mxu0 %v7439
      %v7519 = vpop.f32.mrf.mxu0
      %v7520 = vadd.f32 %v7307, %v7519
      %v7521 = vpop.f32.mrf.mxu0
      %v7522 = vadd.f32 %v7307, %v7521
      %7523 = vmatmul.bf16.gmra.mxu0 %v7442
      %v7524 = vpop.f32.mrf.mxu0
      %v7525 = vadd.f32 %v7307, %v7524
      %v7526 = vpop.f32.mrf.mxu0
      %v7527 = vadd.f32 %v7307, %v7526
      %7528 = vmatmul.bf16.gmra.mxu0 %v7445
      %v7529 = vpop.f32.mrf.mxu0
      %v7530 = vadd.f32 %v7307, %v7529
      %v7531 = vpop.f32.mrf.mxu0
      %v7532 = vadd.f32 %v7307, %v7531
      %7533 = vmatmul.bf16.gmra.mxu0 %v7448
      %v7534 = vpop.f32.mrf.mxu0
      %v7535 = vadd.f32 %v7307, %v7534
      %v7536 = vpop.f32.mrf.mxu0
      %v7537 = vadd.f32 %v7307, %v7536
      %7538 = vdwg.mxu0
      %7539 = vst.msk [vmem:[%s302] sm:$0xff] %vm7401, %v7460
      %7540 = vst.msk [vmem:[%s302 + $0x8] sm:$0xff] %vm7401, %v7462
      %7541 = vst.msk [vmem:[%s302 + $0x10] sm:$0xff] %vm7401, %v7465
      %7542 = vst.msk [vmem:[%s302 + $0x18] sm:$0xff] %vm7401, %v7467
      %7543 = vst.msk [vmem:[%s302 + $0x20] sm:$0xff] %vm7401, %v7470
      %7544 = vst.msk [vmem:[%s302 + $0x28] sm:$0xff] %vm7401, %v7472
      %7545 = vst.msk [vmem:[%s302 + $0x30] sm:$0xff] %vm7401, %v7475
      %7546 = vst.msk [vmem:[%s302 + $0x38] sm:$0xff] %vm7401, %v7477
      %7547 = vst.msk [vmem:[%s302 + $0x40] sm:$0xff] %vm7401, %v7480
      %7548 = vst.msk [vmem:[%s302 + $0x48] sm:$0xff] %vm7401, %v7482
      %7549 = vst.msk [vmem:[%s302 + $0x50] sm:$0xff] %vm7401, %v7485
      %7550 = vst.msk [vmem:[%s302 + $0x58] sm:$0xff] %vm7401, %v7487
      %7551 = vst.msk [vmem:[%s302 + $0x60] sm:$0xff] %vm7401, %v7490
      %7552 = vst.msk [vmem:[%s302 + $0x68] sm:$0xff] %vm7401, %v7492
      %7553 = vst.msk [vmem:[%s302 + $0x70] sm:$0xff] %vm7401, %v7495
      %7554 = vst.msk [vmem:[%s302 + $0x78] sm:$0xff] %vm7401, %v7497
      %7555 = vst.msk [vmem:[%s302 + $0x80] sm:$0xff] %vm7401, %v7500
      %7556 = vst.msk [vmem:[%s302 + $0x88] sm:$0xff] %vm7401, %v7502
      %7557 = vst.msk [vmem:[%s302 + $0x90] sm:$0xff] %vm7401, %v7505
      %7558 = vst.msk [vmem:[%s302 + $0x98] sm:$0xff] %vm7401, %v7507
      %7559 = vst.msk [vmem:[%s302 + $0xa0] sm:$0xff] %vm7401, %v7510
      %7560 = vst.msk [vmem:[%s302 + $0xa8] sm:$0xff] %vm7401, %v7512
      %7561 = vst.msk [vmem:[%s302 + $0xb0] sm:$0xff] %vm7401, %v7515
      %7562 = vst.msk [vmem:[%s302 + $0xb8] sm:$0xff] %vm7401, %v7517
      %7563 = vst.msk [vmem:[%s302 + $0xc0] sm:$0xff] %vm7401, %v7520
      %7564 = vst.msk [vmem:[%s302 + $0xc8] sm:$0xff] %vm7401, %v7522
      %7565 = vst.msk [vmem:[%s302 + $0xd0] sm:$0xff] %vm7401, %v7525
      %7566 = vst.msk [vmem:[%s302 + $0xd8] sm:$0xff] %vm7401, %v7527
      %7567 = vst.msk [vmem:[%s302 + $0xe0] sm:$0xff] %vm7401, %v7530
      %7568 = vst.msk [vmem:[%s302 + $0xe8] sm:$0xff] %vm7401, %v7532
      %7569 = vst.msk [vmem:[%s302 + $0xf0] sm:$0xff] %vm7401, %v7535
      %7570 = vst.msk [vmem:[%s302 + $0xf8] sm:$0xff] %vm7401, %v7537
      %s7571 = smul.u32 32, %s21
      %p7572 = scmp.lt.s32.totalorder %s20, 1
      %s7573 = scalar_select %p7572, %s20, 1
      %p7574 = scmp.lt.s32.totalorder %s7571, 31
      %s7575 = scalar_select %p7574, %s7571, 31
      %s7576 = smul.addr %s7573, 32
      %s7577 = sadd.s32 %s7575, %s7576
      %s7578 = smul.addr %s7577, 8
      %s7579 = scalar_lea.vmem %s5, %s7578
      // Predicated region
      $region41: #{_lambda_.7} parent=39 // pred_check
        %p7580 = pneg %p170
      $region42: #{_lambda_.7} parent=39 // pred_check_branch
        %7582 = sbr.rel (%p7580) target = $region44
      $region43: #{_lambda_.7} parent=39 // pred_region
        %s7583 = smul.u32 32, %s21
      $region44: #{_lambda_.7} parent=39 // pred_fallthru
        _
    $region40: #{_lambda_.7} parent=5 // pred_fallthru
      _
    %p7584 = scmp.le.s32.totalorder 2, %s11
    // Predicated region
    $region45: #{_lambda_.7} parent=5 // pred_check
      %p7585 = pneg %p7584
    $region46: #{_lambda_.7} parent=5 // pred_check_branch
      %7587 = sbr.rel (%p7585) target = $region48
    $region47: #{_lambda_.7} parent=5 // pred_region
      %s7588 = ssub.s32 %s11, 2
      // Predicated region
      $region49: #{_lambda_.7} parent=47 // pred_check
        %p7589 = pneg %p176
      $region50: #{_lambda_.7} parent=47 // pred_check_branch
        %7591 = sbr.rel (%p7589) target = $region52
      $region51: #{_lambda_.7} parent=47 // pred_region
        %s7592 = smul.u32 32, %s23
        %p7593 = scmp.lt.s32.totalorder %s22, 1
        %s7594 = scalar_select %p7593, %s22, 1
        %p7595 = scmp.lt.s32.totalorder %s7592, 31
        %s7596 = scalar_select %p7595, %s7592, 31
        %s7597 = smul.addr %s7594, 32
        %s7598 = sadd.s32 %s7596, %s7597
        %s7599 = smul.addr %s7598, 8
        %s7600 = scalar_lea.vmem %s5, %s7599
      $region52: #{_lambda_.7} parent=47 // pred_fallthru
        _
    $region48: #{_lambda_.7} parent=5 // pred_fallthru
      _
  $region6: #{_lambda_.7} parent=0 // loop_footer
    %s15 = sadd.s32 1, %s11
  $region7: #{_lambda_.7} parent=0 // loop_footer_branch
    %10 = sbr.rel target = $region3
  $region8: #{_lambda_.7} parent=0 // loop_exit
    _

</llo_original>
